<compile_context>
chip_gen: v6e
topology: v6e:2x2x1
jax: 0.10.0
libtpu: 0.0.40
codegen_flags: <defaults>
</compile_context>

<pallas_src>
import math

import jax
import jax.numpy as jnp
import numpy as np
from jax.experimental import pallas as pl
from jax.experimental.pallas import tpu as pltpu


# Single-buffer pipeline mode for VMEM-resident weights (halves weight VMEM).
try:
    _WEIGHT_PIPELINE = pl.Buffered(1)
except Exception:  # pragma: no cover - older jax without pl.Buffered
    _WEIGHT_PIPELINE = None


# ----------------------------------------------------------------------------
# Fused kernel: one (batch, q-tile) block per grid step.
# ----------------------------------------------------------------------------
def _make_layer_kernel(nhead, has_qpos, need_weights, mm_dtype):
    def kernel(*refs):
        it = iter(refs)
        src_ref = next(it)                              # raw query (residual base)
        qin_ref = next(it) if has_qpos else None        # query + q_pos (pre-fused)
        k_ref = next(it)                                # key + k_pos  (pre-fused; value == k)
        wq_ref, wk_ref, wv_ref = next(it), next(it), next(it)
        bq_ref, bk_ref, bv_ref = next(it), next(it), next(it)
        wo_ref, bo_ref = next(it), next(it)             # wo_ref: (D, D)
        g1_ref, be1_ref = next(it), next(it)
        w1_ref, b1_ref = next(it), next(it)
        w2_ref, b2_ref = next(it), next(it)
        g2_ref, be2_ref = next(it), next(it)
        out_ref = next(it)
        attnw_ref = next(it) if need_weights else None

        src = src_ref[0]                                # (tq, D) f32
        q = qin_ref[0] if has_qpos else src             # (tq, D)
        k = k_ref[0]                                    # (Lk, D)

        tq, D = src.shape
        Lk = k.shape[0]
        dh = D // nhead

        def proj(a, w_ref, b_ref):                      # full-D contraction on the MXU
            y = jnp.dot(a.astype(mm_dtype), w_ref[...],
                        preferred_element_type=jnp.float32)
            return y + b_ref[...]

        # 1/sqrt(dh) is pre-folded into wq / bq (see prepare_params).
        qp = proj(q, wq_ref, bq_ref)                    # (tq, D)
        kp = proj(k, wk_ref, bk_ref)                    # (Lk, D)
        vp = proj(k, wv_ref, bv_ref)                    # (Lk, D)

        def heads(x, L):                                # (L, D) -> (nhead, L, dh)
            return jnp.transpose(x.reshape(L, nhead, dh), (1, 0, 2))

        qh = heads(qp, tq).astype(mm_dtype)
        kh = heads(kp, Lk).astype(mm_dtype)
        vh = heads(vp, Lk).astype(mm_dtype)

        # Batched scaled-dot-product attention over all heads (f32 softmax stats).
        s = jnp.einsum('hqd,hkd->hqk', qh, kh,
                       preferred_element_type=jnp.float32)          # (h, tq, Lk)
        s = s - jnp.max(s, axis=-1, keepdims=True)
        p = jnp.exp(s)
        denom = jnp.sum(p, axis=-1, keepdims=True)
        if need_weights:
            pn = p / denom                               # exact softmax for returned weights
            attnw_ref[0] = jnp.mean(pn, axis=0).astype(attnw_ref.dtype)
        else:
            pn = p * pl.reciprocal(denom, approx=True)   # EUP slot, ~free

        o = jnp.einsum('hqk,hkd->hqd', pn.astype(mm_dtype), vh,
                       preferred_element_type=jnp.float32)          # (h, tq, dh)
        # Merge heads (head h -> lanes [h*dh:(h+1)*dh]) and do ONE K=D output proj.
        o_merged = jnp.transpose(o, (1, 0, 2)).reshape(tq, D)
        attn_out = jnp.dot(o_merged.astype(mm_dtype), wo_ref[...],
                           preferred_element_type=jnp.float32) + bo_ref[...]

        # residual + LayerNorm1  (dropout1 = identity)
        eps = 1e-5
        x = src + attn_out
        mu = jnp.mean(x, axis=-1, keepdims=True)
        var = jnp.mean((x - mu) ** 2, axis=-1, keepdims=True)
        xn = (x - mu) * jax.lax.rsqrt(var + eps)
        xn = xn * g1_ref[...] + be1_ref[...]

        # FFN: linear1 -> relu -> (dropout = identity) -> linear2
        h1 = jnp.dot(xn.astype(mm_dtype), w1_ref[...],
                     preferred_element_type=jnp.float32) + b1_ref[...]
        h1 = jnp.maximum(h1, 0.0)
        y = jnp.dot(h1.astype(mm_dtype), w2_ref[...],
                    preferred_element_type=jnp.float32) + b2_ref[...]

        # residual + LayerNorm2  (dropout2 = identity)
        x2 = xn + y
        mu2 = jnp.mean(x2, axis=-1, keepdims=True)
        var2 = jnp.mean((x2 - mu2) ** 2, axis=-1, keepdims=True)
        x2n = (x2 - mu2) * jax.lax.rsqrt(var2 + eps)
        out_ref[0] = (x2n * g2_ref[...] + be2_ref[...]).astype(out_ref.dtype)

    return kernel


# ----------------------------------------------------------------------------
# Helpers: tile selection, VMEM budget, weight BlockSpecs
# ----------------------------------------------------------------------------
def _choose_block_q(Lq, B):
    """Largest multiple-of-8 divisor of Lq, capped at 256; when B == 1 also cap at
    Lq//2 so the 'parallel' grid has >=2 tiles for v7x's two TensorCores."""
    cap = 256
    if B == 1:
        cap = min(cap, max(8, Lq // 2))
    best = None
    for bq in range(8, min(cap, Lq) + 1, 8):
        if Lq % bq == 0:
            best = bq
    return best if best is not None else Lq


def _vmem_budget_bytes(block_q, Lk, D, F, nhead, w_itemsize, has_qpos, need_weights):
    dh = D // nhead
    weights = (4 * D * D + 2 * D * F) * w_itemsize                 # Buffered(1) weights
    smalls = (6 * D + F) * 4 * 2                                   # biases + LN params
    acts = 2 * 4 * ((1 + int(has_qpos)) * block_q * D              # src (+ q+pos)
                    + Lk * D                                       # fused key(+pos)
                    + block_q * D)                                 # output block
    if need_weights:
        acts += 2 * 4 * block_q * Lk
    temps = 4 * (3 * nhead * block_q * Lk                          # s / p / pn
                 + nhead * (block_q + 2 * Lk) * dh                 # qh / kh / vh
                 + nhead * block_q * dh + block_q * D              # o + merged heads
                 + block_q * F                                     # FFN hidden
                 + 4 * block_q * D)                                # proj / LN temporaries
    return weights + smalls + acts + temps


def _weight_spec(shape, pipe):
    idx = lambda b, qi, _n=len(shape): (0,) * _n
    if pipe is None:
        return pl.BlockSpec(shape, idx)
    return pl.BlockSpec(shape, idx, pipeline_mode=pipe)


# ----------------------------------------------------------------------------
# Public wrapper
# ----------------------------------------------------------------------------
def cx_transformer_encoder_layer(query, key, params, nhead,
                                 q_pos=None, k_pos=None,
                                 need_weights=False, block_q=None,
                                 batch_first=False, weights_dtype=jnp.float32,
                                 vmem_limit_bytes=None):
    """forward_post (normalize_before=False), inference (dropouts = identity).

    query/key: (L, B, d_model) seq-first (PyTorch batch_first=False) or
    (B, L, d_model) if batch_first=True.  `params` must come from prepare_params()
    (attention scale folded into Wq/bq, matmul weights in the MXU dtype).
    Returns (output in the same layout as query, head-averaged attention weights
    (B, Lq, Lk) or None).
    """
    # TODO(synk): attn_mask / key_padding_mask paths not implemented (None only).
    # TODO(synk): for long Lk, stream K/V over a third grid axis with flash-style
    #             online softmax (bounds VMEM independent of Lk); gate on
    #             need_weights=False since full rows are needed to return weights.
    if batch_first:
        B, Lq, D = query.shape
        Lk = key.shape[1]
        srcb = query
        kb = key if k_pos is None else key + k_pos
        qb = None if q_pos is None else query + q_pos
    else:
        Lq, B, D = query.shape
        Lk = key.shape[0]
        srcb = jnp.transpose(query, (1, 0, 2))
        kb = jnp.transpose(key if k_pos is None else key + k_pos, (1, 0, 2))
        qb = None if q_pos is None else jnp.transpose(query + q_pos, (1, 0, 2))

    has_qpos = qb is not None
    F = params["w1_t"].shape[1]

    if block_q is None:
        block_q = _choose_block_q(Lq, B)
    assert Lq % block_q == 0, "block_q must divide Lq"
    assert block_q == Lq or block_q % 8 == 0, "block_q must be a multiple of 8 (or Lq)"
    nq = Lq // block_q

    mm_dtype = jnp.dtype(params["wq_t"].dtype)
    if vmem_limit_bytes is None:
        est = _vmem_budget_bytes(block_q, Lk, D, F, nhead, mm_dtype.itemsize,
                                 has_qpos, need_weights)
        vmem_limit_bytes = max(32 * 1024 * 1024,
                               min(int(1.5 * est), 64 * 1024 * 1024))

    qblk = lambda b, qi: (b, qi, 0)
    kblk = lambda b, qi: (b, 0, 0)

    inputs = [srcb]
    base_specs = [pl.BlockSpec((1, block_q, D), qblk)]
    if has_qpos:
        inputs.append(qb)
        base_specs.append(pl.BlockSpec((1, block_q, D), qblk))
    inputs.append(kb)
    base_specs.append(pl.BlockSpec((1, Lk, D), kblk))

    weight_args = [
        (params["wq_t"], (D, D)), (params["wk_t"], (D, D)), (params["wv_t"], (D, D)),
        (params["bq"], (1, D)), (params["bk"], (1, D)), (params["bv"], (1, D)),
        (params["wo_t"], (D, D)), (params["bo"], (1, D)),
        (params["ln1_g"], (1, D)), (params["ln1_b"], (1, D)),
        (params["w1_t"], (D, F)), (params["b1"], (1, F)),
        (params["w2_t"], (F, D)), (params["b2"], (1, D)),
        (params["ln2_g"], (1, D)), (params["ln2_b"], (1, D)),
    ]
    inputs += [a for a, _ in weight_args]

    if need_weights:
        out_shape = (jax.ShapeDtypeStruct((B, Lq, D), jnp.float32),
                     jax.ShapeDtypeStruct((B, Lq, Lk), weights_dtype))
        out_specs = (pl.BlockSpec((1, block_q, D), qblk),
                     pl.BlockSpec((1, block_q, Lk), qblk))
    else:
        out_shape = jax.ShapeDtypeStruct((B, Lq, D), jnp.float32)
        out_specs = pl.BlockSpec((1, block_q, D), qblk)

    kernel = _make_layer_kernel(nhead, has_qpos, need_weights, mm_dtype)
    cparams = pltpu.CompilerParams(
        dimension_semantics=("parallel", "parallel"),
        vmem_limit_bytes=vmem_limit_bytes)

    def _call(weight_pipe):
        in_specs = base_specs + [_weight_spec(s, weight_pipe) for _, s in weight_args]
        return pl.pallas_call(
            kernel, out_shape=out_shape, grid=(B, nq),
            in_specs=in_specs, out_specs=out_specs,
            compiler_params=cparams,
        )(*inputs)

    try:
        results = _call(_WEIGHT_PIPELINE)
    except Exception:
        if _WEIGHT_PIPELINE is None:
            raise
        results = _call(None)     # fall back to default (double-buffered) weights

    if need_weights:
        out_b, attn_w = results
    else:
        out_b, attn_w = results, None

    out = out_b if batch_first else jnp.transpose(out_b, (1, 0, 2))
    return out, attn_w


# ----------------------------------------------------------------------------
# Parameter init / prep
# ----------------------------------------------------------------------------
def init_params(key, d_model, nhead, dim_feedforward):
    ks = jax.random.split(key, 12)
    D, F = d_model, dim_feedforward
    in_proj_w = jax.random.normal(ks[0], (3 * D, D), jnp.float32) * 0.1
    in_proj_b = jax.random.normal(ks[1], (3 * D,), jnp.float32) * 0.1
    out_proj_w = jax.random.normal(ks[2], (D, D), jnp.float32) * 0.1
    out_proj_b = jax.random.normal(ks[3], (D,), jnp.float32) * 0.1
    w1 = jax.random.normal(ks[4], (F, D), jnp.float32) * 0.1
    b1 = jax.random.normal(ks[5], (F,), jnp.float32) * 0.1
    w2 = jax.random.normal(ks[6], (D, F), jnp.float32) * 0.1
    b2 = jax.random.normal(ks[7], (D,), jnp.float32) * 0.1
    ln1_g = 1.0 + 0.1 * jax.random.normal(ks[8], (D,), jnp.float32)
    ln1_b = 0.1 * jax.random.normal(ks[9], (D,), jnp.float32)
    ln2_g = 1.0 + 0.1 * jax.random.normal(ks[10], (D,), jnp.float32)
    ln2_b = 0.1 * jax.random.normal(ks[11], (D,), jnp.float32)
    return {
        # attention (pre-transposed so the kernel does x @ W)
        "wq_t": in_proj_w[:D].T, "wk_t": in_proj_w[D:2 * D].T, "wv_t": in_proj_w[2 * D:].T,
        "bq": in_proj_b[:D].reshape(1, D),
        "bk": in_proj_b[D:2 * D].reshape(1, D),
        "bv": in_proj_b[2 * D:].reshape(1, D),
        "wo_t": out_proj_w.T, "bo": out_proj_b.reshape(1, D),
        # FFN
        "w1_t": w1.T, "b1": b1.reshape(1, F),
        "w2_t": w2.T, "b2": b2.reshape(1, D),
        # LayerNorms
        "ln1_g": ln1_g.reshape(1, D), "ln1_b": ln1_b.reshape(1, D),
        "ln2_g": ln2_g.reshape(1, D), "ln2_b": ln2_b.reshape(1, D),
    }


def prepare_params(params, nhead, mm_dtype=jnp.bfloat16):
    """One-time host-side kernel-parameter prep:
      * folds the 1/sqrt(head_dim) attention scale into Wq / bq,
      * casts matmul weights (MXU operands) to `mm_dtype` (bf16 default: ~2x MXU
        throughput on v6e/v7x and half the weight DMA).  Biases, LayerNorm params
        and all softmax / LayerNorm math stay f32."""
    # TODO(synk): on v7x, w1_t / w2_t could be fp8 with per-tensor scales applied
    #             after the f32 accumulation (another ~2x FFN MXU throughput).
    D = params["wq_t"].shape[0]
    dh = D // nhead
    scale = 1.0 / math.sqrt(dh)
    out = dict(params)
    out["wq_t"] = (params["wq_t"] * scale).astype(mm_dtype)
    out["bq"] = params["bq"] * scale
    for name in ("wk_t", "wv_t", "wo_t", "w1_t", "w2_t"):
        out[name] = params[name].astype(mm_dtype)
    return out


# ----------------------------------------------------------------------------
# Pure-JAX reference (mirrors PyTorch MultiheadAttention + forward_post math)
# ----------------------------------------------------------------------------
def _ref_forward(query, key, p, nhead, q_pos=None, k_pos=None):
    eps = 1e-5
    q = query if q_pos is None else query + q_pos
    k = key if k_pos is None else key + k_pos
    L, B, D = query.shape
    Lk = key.shape[0]
    dh = D // nhead
    qb = jnp.transpose(q, (1, 0, 2))
    kb = jnp.transpose(k, (1, 0, 2))
    qp = qb @ p["wq_t"] + p["bq"]
    kp = kb @ p["wk_t"] + p["bk"]
    vp = kb @ p["wv_t"] + p["bv"]
    sp = lambda x, Lx: x.reshape(B, Lx, nhead, dh).transpose(0, 2, 1, 3)
    qh = sp(qp, L) / np.sqrt(dh)
    kh = sp(kp, Lk)
    vh = sp(vp, Lk)
    s = jnp.einsum("bhqd,bhkd->bhqk", qh, kh)
    pm = jax.nn.softmax(s, axis=-1)
    o = jnp.einsum("bhqk,bhkd->bhqd", pm, vh).transpose(0, 2, 1, 3).reshape(B, L, D)
    attn_out = o @ p["wo_t"] + p["bo"]
    attn_w = pm.mean(axis=1)

    def ln(x, g, b):
        mu = x.mean(-1, keepdims=True)
        var = ((x - mu) ** 2).mean(-1, keepdims=True)
        return (x - mu) / jnp.sqrt(var + eps) * g + b

    src = jnp.transpose(query, (1, 0, 2)) + attn_out
    src = ln(src, p["ln1_g"], p["ln1_b"])
    h = jax.nn.relu(src @ p["w1_t"] + p["b1"])
    y = h @ p["w2_t"] + p["b2"]
    src = ln(src + y, p["ln2_g"], p["ln2_b"])
    return jnp.transpose(src, (1, 0, 2)), attn_w


# ----------------------------------------------------------------------------
# Demo / correctness check
# ----------------------------------------------------------------------------
if __name__ == "__main__":
    d_model, nhead, dim_ff = 128, 4, 256     # lane-dense small shapes (D multiple of 128)
    Lq, Lk, B = 16, 16, 2

    root = jax.random.PRNGKey(0)
    k_params, k_q, k_k, k_qp, k_kp = jax.random.split(root, 5)
    params = init_params(k_params, d_model, nhead, dim_ff)

    query = jax.random.normal(k_q, (Lq, B, d_model), jnp.float32)
    keyt = jax.random.normal(k_k, (Lk, B, d_model), jnp.float32)
    q_pos = 0.1 * jax.random.normal(k_qp, (Lq, B, d_model), jnp.float32)
    k_pos = 0.1 * jax.random.normal(k_kp, (Lk, B, d_model), jnp.float32)

    out_ref, attn_ref = _ref_forward(query, keyt, params, nhead,
                                     q_pos=q_pos, k_pos=k_pos)

    # 1) f32 matmul operands, need_weights=True (exact softmax divide)
    p_f32 = prepare_params(params, nhead, jnp.float32)
    out, attn_w = cx_transformer_encoder_layer(query, keyt, p_f32, nhead,
                                               q_pos=q_pos, k_pos=k_pos,
                                               need_weights=True)
    out = jax.block_until_ready(out)
    attn_w = jax.block_until_ready(attn_w)
    np.testing.assert_allclose(np.asarray(out), np.asarray(out_ref),
                               rtol=5e-3, atol=5e-3)
    np.testing.assert_allclose(np.asarray(attn_w), np.asarray(attn_ref),
                               rtol=5e-3, atol=5e-3)

    # 2) Default fast path: bf16 matmul operands (f32 accumulation),
    #    need_weights=False, EUP approximate reciprocal in the softmax.
    p_bf16 = prepare_params(params, nhead)          # bf16 is the default
    out16, attn16 = cx_transformer_encoder_layer(query, keyt, p_bf16, nhead,
                                                 q_pos=q_pos, k_pos=k_pos)
    out16 = jax.block_until_ready(out16)
    assert attn16 is None
    np.testing.assert_allclose(np.asarray(out16), np.asarray(out_ref),
                               rtol=6e-2, atol=6e-2)   # loose bf16 tolerance

    # 3) f32 operands, need_weights=False (approx reciprocal)
    out_nw, _ = cx_transformer_encoder_layer(query, keyt, p_f32, nhead,
                                             q_pos=q_pos, k_pos=k_pos,
                                             need_weights=False)
    out_nw = jax.block_until_ready(out_nw)
    np.testing.assert_allclose(np.asarray(out_nw), np.asarray(out_ref),
                               rtol=5e-3, atol=5e-3)

    # 4) batch-first path (no wrapper-side transposes) matches seq-first path
    out_bf, _ = cx_transformer_encoder_layer(
        jnp.transpose(query, (1, 0, 2)), jnp.transpose(keyt, (1, 0, 2)), p_f32, nhead,
        q_pos=jnp.transpose(q_pos, (1, 0, 2)), k_pos=jnp.transpose(k_pos, (1, 0, 2)),
        need_weights=False, batch_first=True)
    out_bf = jax.block_until_ready(out_bf)
    np.testing.assert_allclose(np.asarray(out_bf),
                               np.asarray(jnp.transpose(out_nw, (1, 0, 2))),
                               rtol=1e-5, atol=1e-5)

    print("KERNEL_OK")
</pallas_src>

<mosaic_0001>
module attributes {stable_mosaic.version = 11 : i64} {
  func.func @kernel(%arg0: i32, %arg1: i32, %arg2: memref<1x16x128xf32, #tpu.memory_space<vmem>>, %arg3: memref<1x16x128xf32, #tpu.memory_space<vmem>>, %arg4: memref<1x16x128xf32, #tpu.memory_space<vmem>>, %arg5: memref<128x128xf32, #tpu.memory_space<vmem>>, %arg6: memref<128x128xf32, #tpu.memory_space<vmem>>, %arg7: memref<128x128xf32, #tpu.memory_space<vmem>>, %arg8: memref<1x128xf32, #tpu.memory_space<vmem>>, %arg9: memref<1x128xf32, #tpu.memory_space<vmem>>, %arg10: memref<1x128xf32, #tpu.memory_space<vmem>>, %arg11: memref<128x128xf32, #tpu.memory_space<vmem>>, %arg12: memref<1x128xf32, #tpu.memory_space<vmem>>, %arg13: memref<1x128xf32, #tpu.memory_space<vmem>>, %arg14: memref<1x128xf32, #tpu.memory_space<vmem>>, %arg15: memref<128x256xf32, #tpu.memory_space<vmem>>, %arg16: memref<1x256xf32, #tpu.memory_space<vmem>>, %arg17: memref<256x128xf32, #tpu.memory_space<vmem>>, %arg18: memref<1x128xf32, #tpu.memory_space<vmem>>, %arg19: memref<1x128xf32, #tpu.memory_space<vmem>>, %arg20: memref<1x128xf32, #tpu.memory_space<vmem>>, %arg21: memref<1x16x128xf32, #tpu.memory_space<vmem>>, %arg22: memref<1x16x16xf32, #tpu.memory_space<vmem>>) attributes {dimension_semantics = [#tpu.dimension_semantics<parallel>, #tpu.dimension_semantics<parallel>], iteration_bounds = array<i64: 2, 1>, scalar_prefetch = 0 : i64, scratch_operands = 0 : i64, tpu.core_type = #tpu.core_type<tc>, window_params = [{transform_indices = @transform_0, window_bounds = array<i64: 1, 16, 128>}, {transform_indices = @transform_1, window_bounds = array<i64: 1, 16, 128>}, {transform_indices = @transform_2, window_bounds = array<i64: 1, 16, 128>}, {pipeline_mode = #tpu.pipeline_mode<synchronous>, transform_indices = @transform_3, window_bounds = array<i64: 128, 128>}, {pipeline_mode = #tpu.pipeline_mode<synchronous>, transform_indices = @transform_4, window_bounds = array<i64: 128, 128>}, {pipeline_mode = #tpu.pipeline_mode<synchronous>, transform_indices = @transform_5, window_bounds = array<i64: 128, 128>}, {pipeline_mode = #tpu.pipeline_mode<synchronous>, transform_indices = @transform_6, window_bounds = array<i64: 1, 128>}, {pipeline_mode = #tpu.pipeline_mode<synchronous>, transform_indices = @transform_7, window_bounds = array<i64: 1, 128>}, {pipeline_mode = #tpu.pipeline_mode<synchronous>, transform_indices = @transform_8, window_bounds = array<i64: 1, 128>}, {pipeline_mode = #tpu.pipeline_mode<synchronous>, transform_indices = @transform_9, window_bounds = array<i64: 128, 128>}, {pipeline_mode = #tpu.pipeline_mode<synchronous>, transform_indices = @transform_10, window_bounds = array<i64: 1, 128>}, {pipeline_mode = #tpu.pipeline_mode<synchronous>, transform_indices = @transform_11, window_bounds = array<i64: 1, 128>}, {pipeline_mode = #tpu.pipeline_mode<synchronous>, transform_indices = @transform_12, window_bounds = array<i64: 1, 128>}, {pipeline_mode = #tpu.pipeline_mode<synchronous>, transform_indices = @transform_13, window_bounds = array<i64: 128, 256>}, {pipeline_mode = #tpu.pipeline_mode<synchronous>, transform_indices = @transform_14, window_bounds = array<i64: 1, 256>}, {pipeline_mode = #tpu.pipeline_mode<synchronous>, transform_indices = @transform_15, window_bounds = array<i64: 256, 128>}, {pipeline_mode = #tpu.pipeline_mode<synchronous>, transform_indices = @transform_16, window_bounds = array<i64: 1, 128>}, {pipeline_mode = #tpu.pipeline_mode<synchronous>, transform_indices = @transform_17, window_bounds = array<i64: 1, 128>}, {pipeline_mode = #tpu.pipeline_mode<synchronous>, transform_indices = @transform_18, window_bounds = array<i64: 1, 128>}, {transform_indices = @transform_19, window_bounds = array<i64: 1, 16, 128>}, {transform_indices = @transform_20, window_bounds = array<i64: 1, 16, 16>}]} {
    %c0 = arith.constant 0 : index
    %c0_0 = arith.constant 0 : index
    %c0_1 = arith.constant 0 : index
    %0 = vector.load %arg2[%c0, %c0_0, %c0_1] : memref<1x16x128xf32, #tpu.memory_space<vmem>>, vector<1x16x128xf32>
    %1 = vector.shape_cast %0 : vector<1x16x128xf32> to vector<16x128xf32>
    %c0_2 = arith.constant 0 : index
    %c0_3 = arith.constant 0 : index
    %c0_4 = arith.constant 0 : index
    %2 = vector.load %arg3[%c0_2, %c0_3, %c0_4] : memref<1x16x128xf32, #tpu.memory_space<vmem>>, vector<1x16x128xf32>
    %3 = vector.shape_cast %2 : vector<1x16x128xf32> to vector<16x128xf32>
    %c0_5 = arith.constant 0 : index
    %c0_6 = arith.constant 0 : index
    %c0_7 = arith.constant 0 : index
    %4 = vector.load %arg4[%c0_5, %c0_6, %c0_7] : memref<1x16x128xf32, #tpu.memory_space<vmem>>, vector<1x16x128xf32>
    %5 = vector.shape_cast %4 : vector<1x16x128xf32> to vector<16x128xf32>
    %c0_8 = arith.constant 0 : index
    %c0_9 = arith.constant 0 : index
    %6 = vector.load %arg5[%c0_8, %c0_9] : memref<128x128xf32, #tpu.memory_space<vmem>>, vector<128x128xf32>
    %cst = arith.constant dense<0.000000e+00> : vector<16x128xf32>
    %7 = tpu.matmul %3, %6, %cst {dimension_numbers = #tpu.dot_dimension_numbers<[1], [0], [0], [1], [0, 0, 1, 1], [], []>} : vector<16x128xf32>, vector<128x128xf32>, vector<16x128xf32> -> vector<16x128xf32>
    %c0_10 = arith.constant 0 : index
    %c0_11 = arith.constant 0 : index
    %8 = vector.load %arg8[%c0_10, %c0_11] : memref<1x128xf32, #tpu.memory_space<vmem>>, vector<1x128xf32>
    %9 = vector.broadcast %8 : vector<1x128xf32> to vector<16x128xf32>
    %10 = arith.addf %7, %9 : vector<16x128xf32>
    %c0_12 = arith.constant 0 : index
    %c0_13 = arith.constant 0 : index
    %11 = vector.load %arg6[%c0_12, %c0_13] : memref<128x128xf32, #tpu.memory_space<vmem>>, vector<128x128xf32>
    %cst_14 = arith.constant dense<0.000000e+00> : vector<16x128xf32>
    %12 = tpu.matmul %5, %11, %cst_14 {dimension_numbers = #tpu.dot_dimension_numbers<[1], [0], [0], [1], [0, 0, 1, 1], [], []>} : vector<16x128xf32>, vector<128x128xf32>, vector<16x128xf32> -> vector<16x128xf32>
    %c0_15 = arith.constant 0 : index
    %c0_16 = arith.constant 0 : index
    %13 = vector.load %arg9[%c0_15, %c0_16] : memref<1x128xf32, #tpu.memory_space<vmem>>, vector<1x128xf32>
    %14 = vector.broadcast %13 : vector<1x128xf32> to vector<16x128xf32>
    %15 = arith.addf %12, %14 : vector<16x128xf32>
    %c0_17 = arith.constant 0 : index
    %c0_18 = arith.constant 0 : index
    %16 = vector.load %arg7[%c0_17, %c0_18] : memref<128x128xf32, #tpu.memory_space<vmem>>, vector<128x128xf32>
    %cst_19 = arith.constant dense<0.000000e+00> : vector<16x128xf32>
    %17 = tpu.matmul %5, %16, %cst_19 {dimension_numbers = #tpu.dot_dimension_numbers<[1], [0], [0], [1], [0, 0, 1, 1], [], []>} : vector<16x128xf32>, vector<128x128xf32>, vector<16x128xf32> -> vector<16x128xf32>
    %c0_20 = arith.constant 0 : index
    %c0_21 = arith.constant 0 : index
    %18 = vector.load %arg10[%c0_20, %c0_21] : memref<1x128xf32, #tpu.memory_space<vmem>>, vector<1x128xf32>
    %19 = vector.broadcast %18 : vector<1x128xf32> to vector<16x128xf32>
    %20 = arith.addf %17, %19 : vector<16x128xf32>
    %21 = vector.shape_cast %10 : vector<16x128xf32> to vector<16x4x32xf32>
    %22 = tpu.transpose %21, [1, 0, 2] : vector<16x4x32xf32> -> vector<4x16x32xf32>
    %23 = vector.shape_cast %15 : vector<16x128xf32> to vector<16x4x32xf32>
    %24 = tpu.transpose %23, [1, 0, 2] : vector<16x4x32xf32> -> vector<4x16x32xf32>
    %25 = vector.shape_cast %20 : vector<16x128xf32> to vector<16x4x32xf32>
    %26 = tpu.transpose %25, [1, 0, 2] : vector<16x4x32xf32> -> vector<4x16x32xf32>
    "tpu.trace_start"() <{level = 10 : i32, message = "hqd,hkd->hqk"}> : () -> ()
    %cst_22 = arith.constant dense<0.000000e+00> : vector<4x16x16xf32>
    %27 = tpu.matmul %22, %24, %cst_22 {dimension_numbers = #tpu.dot_dimension_numbers<[2], [2], [1], [1], [0, 0, 0, 1, 1, 1], [0], [0]>} : vector<4x16x32xf32>, vector<4x16x32xf32>, vector<4x16x16xf32> -> vector<4x16x16xf32>
    "tpu.trace_stop"() : () -> ()
    %cst_23 = arith.constant dense<0xFF800000> : vector<4x16xf32>
    %28 = vector.multi_reduction <maximumf>, %27, %cst_23 [2] : vector<4x16x16xf32> to vector<4x16xf32>
    %29 = vector.shape_cast %28 : vector<4x16xf32> to vector<4x16x1xf32>
    %30 = vector.broadcast %29 : vector<4x16x1xf32> to vector<4x16x16xf32>
    %31 = arith.subf %27, %30 : vector<4x16x16xf32>
    %32 = math.exp %31 : vector<4x16x16xf32>
    %cst_24 = arith.constant dense<0.000000e+00> : vector<4x16xf32>
    %33 = vector.multi_reduction <add>, %32, %cst_24 [2] : vector<4x16x16xf32> to vector<4x16xf32>
    %34 = vector.shape_cast %33 : vector<4x16xf32> to vector<4x16x1xf32>
    %35 = vector.broadcast %34 : vector<4x16x1xf32> to vector<4x16x16xf32>
    %36 = arith.divf %32, %35 : vector<4x16x16xf32>
    %cst_25 = arith.constant dense<0.000000e+00> : vector<16x16xf32>
    %37 = vector.multi_reduction <add>, %36, %cst_25 [0] : vector<4x16x16xf32> to vector<16x16xf32>
    %cst_26 = arith.constant 4.000000e+00 : f32
    %38 = vector.broadcast %cst_26 : f32 to vector<16x16xf32>
    %39 = arith.divf %37, %38 : vector<16x16xf32>
    %c0_27 = arith.constant 0 : index
    %c0_28 = arith.constant 0 : index
    %c0_29 = arith.constant 0 : index
    %40 = vector.load %arg22[%c0_27, %c0_28, %c0_29] : memref<1x16x16xf32, #tpu.memory_space<vmem>>, vector<1x16x16xf32>
    %41 = vector.shape_cast %40 : vector<1x16x16xf32> to vector<16x16xf32>
    %42 = vector.shape_cast %39 : vector<16x16xf32> to vector<1x16x16xf32>
    tpu.vector_store %arg22[%c0_27, %c0_28, %c0_29], %42 {strides = array<i32>} : memref<1x16x16xf32, #tpu.memory_space<vmem>>, vector<1x16x16xf32>,
    "tpu.trace_start"() <{level = 10 : i32, message = "hqk,hkd->hqd"}> : () -> ()
    %cst_30 = arith.constant dense<0.000000e+00> : vector<4x16x32xf32>
    %43 = tpu.matmul %36, %26, %cst_30 {dimension_numbers = #tpu.dot_dimension_numbers<[2], [1], [1], [2], [0, 0, 0, 1, 1, 2], [0], [0]>} : vector<4x16x16xf32>, vector<4x16x32xf32>, vector<4x16x32xf32> -> vector<4x16x32xf32>
    "tpu.trace_stop"() : () -> ()
    %44 = tpu.transpose %43, [1, 0, 2] : vector<4x16x32xf32> -> vector<16x4x32xf32>
    %45 = vector.shape_cast %44 : vector<16x4x32xf32> to vector<16x128xf32>
    %c0_31 = arith.constant 0 : index
    %c0_32 = arith.constant 0 : index
    %46 = vector.load %arg11[%c0_31, %c0_32] : memref<128x128xf32, #tpu.memory_space<vmem>>, vector<128x128xf32>
    %cst_33 = arith.constant dense<0.000000e+00> : vector<16x128xf32>
    %47 = tpu.matmul %45, %46, %cst_33 {dimension_numbers = #tpu.dot_dimension_numbers<[1], [0], [0], [1], [0, 0, 1, 1], [], []>} : vector<16x128xf32>, vector<128x128xf32>, vector<16x128xf32> -> vector<16x128xf32>
    %c0_34 = arith.constant 0 : index
    %c0_35 = arith.constant 0 : index
    %48 = vector.load %arg12[%c0_34, %c0_35] : memref<1x128xf32, #tpu.memory_space<vmem>>, vector<1x128xf32>
    %49 = vector.broadcast %48 : vector<1x128xf32> to vector<16x128xf32>
    %50 = arith.addf %47, %49 : vector<16x128xf32>
    %51 = arith.addf %1, %50 : vector<16x128xf32>
    %cst_36 = arith.constant dense<0.000000e+00> : vector<16xf32>
    %52 = vector.multi_reduction <add>, %51, %cst_36 [1] : vector<16x128xf32> to vector<16xf32>
    %53 = vector.shape_cast %52 : vector<16xf32> to vector<16x1xf32>
    %cst_37 = arith.constant 1.280000e+02 : f32
    %54 = vector.broadcast %cst_37 : f32 to vector<16x1xf32>
    %55 = arith.divf %53, %54 : vector<16x1xf32>
    %56 = vector.broadcast %55 : vector<16x1xf32> to vector<16x128xf32>
    %57 = arith.subf %51, %56 : vector<16x128xf32>
    %58 = arith.mulf %57, %57 : vector<16x128xf32>
    %cst_38 = arith.constant dense<0.000000e+00> : vector<16xf32>
    %59 = vector.multi_reduction <add>, %58, %cst_38 [1] : vector<16x128xf32> to vector<16xf32>
    %60 = vector.shape_cast %59 : vector<16xf32> to vector<16x1xf32>
    %cst_39 = arith.constant 1.280000e+02 : f32
    %61 = vector.broadcast %cst_39 : f32 to vector<16x1xf32>
    %62 = arith.divf %60, %61 : vector<16x1xf32>
    %63 = vector.broadcast %55 : vector<16x1xf32> to vector<16x128xf32>
    %64 = arith.subf %51, %63 : vector<16x128xf32>
    %cst_40 = arith.constant 9.99999974E-6 : f32
    %65 = vector.broadcast %cst_40 : f32 to vector<16x1xf32>
    %66 = arith.addf %62, %65 : vector<16x1xf32>
    %67 = math.rsqrt %66 : vector<16x1xf32>
    %68 = vector.broadcast %67 : vector<16x1xf32> to vector<16x128xf32>
    %69 = arith.mulf %64, %68 : vector<16x128xf32>
    %c0_41 = arith.constant 0 : index
    %c0_42 = arith.constant 0 : index
    %70 = vector.load %arg13[%c0_41, %c0_42] : memref<1x128xf32, #tpu.memory_space<vmem>>, vector<1x128xf32>
    %71 = vector.broadcast %70 : vector<1x128xf32> to vector<16x128xf32>
    %72 = arith.mulf %69, %71 : vector<16x128xf32>
    %c0_43 = arith.constant 0 : index
    %c0_44 = arith.constant 0 : index
    %73 = vector.load %arg14[%c0_43, %c0_44] : memref<1x128xf32, #tpu.memory_space<vmem>>, vector<1x128xf32>
    %74 = vector.broadcast %73 : vector<1x128xf32> to vector<16x128xf32>
    %75 = arith.addf %72, %74 : vector<16x128xf32>
    %c0_45 = arith.constant 0 : index
    %c0_46 = arith.constant 0 : index
    %76 = vector.load %arg15[%c0_45, %c0_46] : memref<128x256xf32, #tpu.memory_space<vmem>>, vector<128x256xf32>
    %cst_47 = arith.constant dense<0.000000e+00> : vector<16x256xf32>
    %77 = tpu.matmul %75, %76, %cst_47 {dimension_numbers = #tpu.dot_dimension_numbers<[1], [0], [0], [1], [0, 0, 1, 1], [], []>} : vector<16x128xf32>, vector<128x256xf32>, vector<16x256xf32> -> vector<16x256xf32>
    %c0_48 = arith.constant 0 : index
    %c0_49 = arith.constant 0 : index
    %78 = vector.load %arg16[%c0_48, %c0_49] : memref<1x256xf32, #tpu.memory_space<vmem>>, vector<1x256xf32>
    %79 = vector.broadcast %78 : vector<1x256xf32> to vector<16x256xf32>
    %80 = arith.addf %77, %79 : vector<16x256xf32>
    %cst_50 = arith.constant 0.000000e+00 : f32
    %81 = vector.broadcast %cst_50 : f32 to vector<16x256xf32>
    %82 = arith.maximumf %80, %81 : vector<16x256xf32>
    %c0_51 = arith.constant 0 : index
    %c0_52 = arith.constant 0 : index
    %83 = vector.load %arg17[%c0_51, %c0_52] : memref<256x128xf32, #tpu.memory_space<vmem>>, vector<256x128xf32>
    %cst_53 = arith.constant dense<0.000000e+00> : vector<16x128xf32>
    %84 = tpu.matmul %82, %83, %cst_53 {dimension_numbers = #tpu.dot_dimension_numbers<[1], [0], [0], [1], [0, 0, 1, 1], [], []>} : vector<16x256xf32>, vector<256x128xf32>, vector<16x128xf32> -> vector<16x128xf32>
    %c0_54 = arith.constant 0 : index
    %c0_55 = arith.constant 0 : index
    %85 = vector.load %arg18[%c0_54, %c0_55] : memref<1x128xf32, #tpu.memory_space<vmem>>, vector<1x128xf32>
    %86 = vector.broadcast %85 : vector<1x128xf32> to vector<16x128xf32>
    %87 = arith.addf %84, %86 : vector<16x128xf32>
    %88 = arith.addf %75, %87 : vector<16x128xf32>
    %cst_56 = arith.constant dense<0.000000e+00> : vector<16xf32>
    %89 = vector.multi_reduction <add>, %88, %cst_56 [1] : vector<16x128xf32> to vector<16xf32>
    %90 = vector.shape_cast %89 : vector<16xf32> to vector<16x1xf32>
    %cst_57 = arith.constant 1.280000e+02 : f32
    %91 = vector.broadcast %cst_57 : f32 to vector<16x1xf32>
    %92 = arith.divf %90, %91 : vector<16x1xf32>
    %93 = vector.broadcast %92 : vector<16x1xf32> to vector<16x128xf32>
    %94 = arith.subf %88, %93 : vector<16x128xf32>
    %95 = arith.mulf %94, %94 : vector<16x128xf32>
    %cst_58 = arith.constant dense<0.000000e+00> : vector<16xf32>
    %96 = vector.multi_reduction <add>, %95, %cst_58 [1] : vector<16x128xf32> to vector<16xf32>
    %97 = vector.shape_cast %96 : vector<16xf32> to vector<16x1xf32>
    %cst_59 = arith.constant 1.280000e+02 : f32
    %98 = vector.broadcast %cst_59 : f32 to vector<16x1xf32>
    %99 = arith.divf %97, %98 : vector<16x1xf32>
    %100 = vector.broadcast %92 : vector<16x1xf32> to vector<16x128xf32>
    %101 = arith.subf %88, %100 : vector<16x128xf32>
    %cst_60 = arith.constant 9.99999974E-6 : f32
    %102 = vector.broadcast %cst_60 : f32 to vector<16x1xf32>
    %103 = arith.addf %99, %102 : vector<16x1xf32>
    %104 = math.rsqrt %103 : vector<16x1xf32>
    %105 = vector.broadcast %104 : vector<16x1xf32> to vector<16x128xf32>
    %106 = arith.mulf %101, %105 : vector<16x128xf32>
    %c0_61 = arith.constant 0 : index
    %c0_62 = arith.constant 0 : index
    %107 = vector.load %arg19[%c0_61, %c0_62] : memref<1x128xf32, #tpu.memory_space<vmem>>, vector<1x128xf32>
    %108 = vector.broadcast %107 : vector<1x128xf32> to vector<16x128xf32>
    %109 = arith.mulf %106, %108 : vector<16x128xf32>
    %c0_63 = arith.constant 0 : index
    %c0_64 = arith.constant 0 : index
    %110 = vector.load %arg20[%c0_63, %c0_64] : memref<1x128xf32, #tpu.memory_space<vmem>>, vector<1x128xf32>
    %111 = vector.broadcast %110 : vector<1x128xf32> to vector<16x128xf32>
    %112 = arith.addf %109, %111 : vector<16x128xf32>
    %c0_65 = arith.constant 0 : index
    %c0_66 = arith.constant 0 : index
    %c0_67 = arith.constant 0 : index
    %113 = vector.load %arg21[%c0_65, %c0_66, %c0_67] : memref<1x16x128xf32, #tpu.memory_space<vmem>>, vector<1x16x128xf32>
    %114 = vector.shape_cast %113 : vector<1x16x128xf32> to vector<16x128xf32>
    %115 = vector.shape_cast %112 : vector<16x128xf32> to vector<1x16x128xf32>
    tpu.vector_store %arg21[%c0_65, %c0_66, %c0_67], %115 {strides = array<i32>} : memref<1x16x128xf32, #tpu.memory_space<vmem>>, vector<1x16x128xf32>,
    return
  }
  func.func @transform_0(%arg0: i32, %arg1: i32) -> (i32, i32, i32) {
    %c0_i32 = arith.constant 0 : i32
    %c0_i32_0 = arith.constant 0 : i32
    return %arg0, %arg1, %c0_i32 : i32, i32, i32
  }
  func.func @transform_1(%arg0: i32, %arg1: i32) -> (i32, i32, i32) {
    %c0_i32 = arith.constant 0 : i32
    %c0_i32_0 = arith.constant 0 : i32
    return %arg0, %arg1, %c0_i32 : i32, i32, i32
  }
  func.func @transform_2(%arg0: i32, %arg1: i32) -> (i32, i32, i32) {
    %c0_i32 = arith.constant 0 : i32
    %c0_i32_0 = arith.constant 0 : i32
    %c0_i32_1 = arith.constant 0 : i32
    return %arg0, %c0_i32, %c0_i32_0 : i32, i32, i32
  }
  func.func @transform_3(%arg0: i32, %arg1: i32) -> (i32, i32) {
    %c0_i32 = arith.constant 0 : i32
    %c0_i32_0 = arith.constant 0 : i32
    %c0_i32_1 = arith.constant 0 : i32
    return %c0_i32, %c0_i32_0 : i32, i32
  }
  func.func @transform_4(%arg0: i32, %arg1: i32) -> (i32, i32) {
    %c0_i32 = arith.constant 0 : i32
    %c0_i32_0 = arith.constant 0 : i32
    %c0_i32_1 = arith.constant 0 : i32
    return %c0_i32, %c0_i32_0 : i32, i32
  }
  func.func @transform_5(%arg0: i32, %arg1: i32) -> (i32, i32) {
    %c0_i32 = arith.constant 0 : i32
    %c0_i32_0 = arith.constant 0 : i32
    %c0_i32_1 = arith.constant 0 : i32
    return %c0_i32, %c0_i32_0 : i32, i32
  }
  func.func @transform_6(%arg0: i32, %arg1: i32) -> (i32, i32) {
    %c0_i32 = arith.constant 0 : i32
    %c0_i32_0 = arith.constant 0 : i32
    %c0_i32_1 = arith.constant 0 : i32
    return %c0_i32, %c0_i32_0 : i32, i32
  }
  func.func @transform_7(%arg0: i32, %arg1: i32) -> (i32, i32) {
    %c0_i32 = arith.constant 0 : i32
    %c0_i32_0 = arith.constant 0 : i32
    %c0_i32_1 = arith.constant 0 : i32
    return %c0_i32, %c0_i32_0 : i32, i32
  }
  func.func @transform_8(%arg0: i32, %arg1: i32) -> (i32, i32) {
    %c0_i32 = arith.constant 0 : i32
    %c0_i32_0 = arith.constant 0 : i32
    %c0_i32_1 = arith.constant 0 : i32
    return %c0_i32, %c0_i32_0 : i32, i32
  }
  func.func @transform_9(%arg0: i32, %arg1: i32) -> (i32, i32) {
    %c0_i32 = arith.constant 0 : i32
    %c0_i32_0 = arith.constant 0 : i32
    %c0_i32_1 = arith.constant 0 : i32
    return %c0_i32, %c0_i32_0 : i32, i32
  }
  func.func @transform_10(%arg0: i32, %arg1: i32) -> (i32, i32) {
    %c0_i32 = arith.constant 0 : i32
    %c0_i32_0 = arith.constant 0 : i32
    %c0_i32_1 = arith.constant 0 : i32
    return %c0_i32, %c0_i32_0 : i32, i32
  }
  func.func @transform_11(%arg0: i32, %arg1: i32) -> (i32, i32) {
    %c0_i32 = arith.constant 0 : i32
    %c0_i32_0 = arith.constant 0 : i32
    %c0_i32_1 = arith.constant 0 : i32
    return %c0_i32, %c0_i32_0 : i32, i32
  }
  func.func @transform_12(%arg0: i32, %arg1: i32) -> (i32, i32) {
    %c0_i32 = arith.constant 0 : i32
    %c0_i32_0 = arith.constant 0 : i32
    %c0_i32_1 = arith.constant 0 : i32
    return %c0_i32, %c0_i32_0 : i32, i32
  }
  func.func @transform_13(%arg0: i32, %arg1: i32) -> (i32, i32) {
    %c0_i32 = arith.constant 0 : i32
    %c0_i32_0 = arith.constant 0 : i32
    %c0_i32_1 = arith.constant 0 : i32
    return %c0_i32, %c0_i32_0 : i32, i32
  }
  func.func @transform_14(%arg0: i32, %arg1: i32) -> (i32, i32) {
    %c0_i32 = arith.constant 0 : i32
    %c0_i32_0 = arith.constant 0 : i32
    %c0_i32_1 = arith.constant 0 : i32
    return %c0_i32, %c0_i32_0 : i32, i32
  }
  func.func @transform_15(%arg0: i32, %arg1: i32) -> (i32, i32) {
    %c0_i32 = arith.constant 0 : i32
    %c0_i32_0 = arith.constant 0 : i32
    %c0_i32_1 = arith.constant 0 : i32
    return %c0_i32, %c0_i32_0 : i32, i32
  }
  func.func @transform_16(%arg0: i32, %arg1: i32) -> (i32, i32) {
    %c0_i32 = arith.constant 0 : i32
    %c0_i32_0 = arith.constant 0 : i32
    %c0_i32_1 = arith.constant 0 : i32
    return %c0_i32, %c0_i32_0 : i32, i32
  }
  func.func @transform_17(%arg0: i32, %arg1: i32) -> (i32, i32) {
    %c0_i32 = arith.constant 0 : i32
    %c0_i32_0 = arith.constant 0 : i32
    %c0_i32_1 = arith.constant 0 : i32
    return %c0_i32, %c0_i32_0 : i32, i32
  }
  func.func @transform_18(%arg0: i32, %arg1: i32) -> (i32, i32) {
    %c0_i32 = arith.constant 0 : i32
    %c0_i32_0 = arith.constant 0 : i32
    %c0_i32_1 = arith.constant 0 : i32
    return %c0_i32, %c0_i32_0 : i32, i32
  }
  func.func @transform_19(%arg0: i32, %arg1: i32) -> (i32, i32, i32) {
    %c0_i32 = arith.constant 0 : i32
    %c0_i32_0 = arith.constant 0 : i32
    return %arg0, %arg1, %c0_i32 : i32, i32, i32
  }
  func.func @transform_20(%arg0: i32, %arg1: i32) -> (i32, i32, i32) {
    %c0_i32 = arith.constant 0 : i32
    %c0_i32_0 = arith.constant 0 : i32
    return %arg0, %arg1, %c0_i32 : i32, i32, i32
  }
}

module attributes {stable_mosaic.version = 11 : i64} {
  func.func @kernel(%arg0: i32, %arg1: i32, %arg2: memref<1x16x128xf32, #tpu.memory_space<vmem>>, %arg3: memref<1x16x128xf32, #tpu.memory_space<vmem>>, %arg4: memref<1x16x128xf32, #tpu.memory_space<vmem>>, %arg5: memref<128x128xf32, #tpu.memory_space<vmem>>, %arg6: memref<128x128xf32, #tpu.memory_space<vmem>>, %arg7: memref<128x128xf32, #tpu.memory_space<vmem>>, %arg8: memref<1x128xf32, #tpu.memory_space<vmem>>, %arg9: memref<1x128xf32, #tpu.memory_space<vmem>>, %arg10: memref<1x128xf32, #tpu.memory_space<vmem>>, %arg11: memref<128x128xf32, #tpu.memory_space<vmem>>, %arg12: memref<1x128xf32, #tpu.memory_space<vmem>>, %arg13: memref<1x128xf32, #tpu.memory_space<vmem>>, %arg14: memref<1x128xf32, #tpu.memory_space<vmem>>, %arg15: memref<128x256xf32, #tpu.memory_space<vmem>>, %arg16: memref<1x256xf32, #tpu.memory_space<vmem>>, %arg17: memref<256x128xf32, #tpu.memory_space<vmem>>, %arg18: memref<1x128xf32, #tpu.memory_space<vmem>>, %arg19: memref<1x128xf32, #tpu.memory_space<vmem>>, %arg20: memref<1x128xf32, #tpu.memory_space<vmem>>, %arg21: memref<1x16x128xf32, #tpu.memory_space<vmem>>, %arg22: memref<1x16x16xf32, #tpu.memory_space<vmem>>) attributes {dimension_semantics = [#tpu.dimension_semantics<parallel>, #tpu.dimension_semantics<parallel>], iteration_bounds = array<i64: 2, 1>, scalar_prefetch = 0 : i64, scratch_operands = 0 : i64, tpu.core_type = #tpu.core_type<tc>, window_params = [{transform_indices = @transform_0, window_bounds = array<i64: 1, 16, 128>}, {transform_indices = @transform_1, window_bounds = array<i64: 1, 16, 128>}, {transform_indices = @transform_2, window_bounds = array<i64: 1, 16, 128>}, {pipeline_mode = #tpu.pipeline_mode<synchronous>, transform_indices = @transform_3, window_bounds = array<i64: 128, 128>}, {pipeline_mode = #tpu.pipeline_mode<synchronous>, transform_indices = @transform_4, window_bounds = array<i64: 128, 128>}, {pipeline_mode = #tpu.pipeline_mode<synchronous>, transform_indices = @transform_5, window_bounds = array<i64: 128, 128>}, {pipeline_mode = #tpu.pipeline_mode<synchronous>, transform_indices = @transform_6, window_bounds = array<i64: 1, 128>}, {pipeline_mode = #tpu.pipeline_mode<synchronous>, transform_indices = @transform_7, window_bounds = array<i64: 1, 128>}, {pipeline_mode = #tpu.pipeline_mode<synchronous>, transform_indices = @transform_8, window_bounds = array<i64: 1, 128>}, {pipeline_mode = #tpu.pipeline_mode<synchronous>, transform_indices = @transform_9, window_bounds = array<i64: 128, 128>}, {pipeline_mode = #tpu.pipeline_mode<synchronous>, transform_indices = @transform_10, window_bounds = array<i64: 1, 128>}, {pipeline_mode = #tpu.pipeline_mode<synchronous>, transform_indices = @transform_11, window_bounds = array<i64: 1, 128>}, {pipeline_mode = #tpu.pipeline_mode<synchronous>, transform_indices = @transform_12, window_bounds = array<i64: 1, 128>}, {pipeline_mode = #tpu.pipeline_mode<synchronous>, transform_indices = @transform_13, window_bounds = array<i64: 128, 256>}, {pipeline_mode = #tpu.pipeline_mode<synchronous>, transform_indices = @transform_14, window_bounds = array<i64: 1, 256>}, {pipeline_mode = #tpu.pipeline_mode<synchronous>, transform_indices = @transform_15, window_bounds = array<i64: 256, 128>}, {pipeline_mode = #tpu.pipeline_mode<synchronous>, transform_indices = @transform_16, window_bounds = array<i64: 1, 128>}, {pipeline_mode = #tpu.pipeline_mode<synchronous>, transform_indices = @transform_17, window_bounds = array<i64: 1, 128>}, {pipeline_mode = #tpu.pipeline_mode<synchronous>, transform_indices = @transform_18, window_bounds = array<i64: 1, 128>}, {transform_indices = @transform_19, window_bounds = array<i64: 1, 16, 128>}, {transform_indices = @transform_20, window_bounds = array<i64: 1, 16, 16>}]} {
    %c0 = arith.constant 0 : index
    %c0_0 = arith.constant 0 : index
    %c0_1 = arith.constant 0 : index
    %0 = vector.load %arg2[%c0, %c0_0, %c0_1] : memref<1x16x128xf32, #tpu.memory_space<vmem>>, vector<1x16x128xf32>
    %1 = vector.shape_cast %0 : vector<1x16x128xf32> to vector<16x128xf32>
    %c0_2 = arith.constant 0 : index
    %c0_3 = arith.constant 0 : index
    %c0_4 = arith.constant 0 : index
    %2 = vector.load %arg3[%c0_2, %c0_3, %c0_4] : memref<1x16x128xf32, #tpu.memory_space<vmem>>, vector<1x16x128xf32>
    %3 = vector.shape_cast %2 : vector<1x16x128xf32> to vector<16x128xf32>
    %c0_5 = arith.constant 0 : index
    %c0_6 = arith.constant 0 : index
    %c0_7 = arith.constant 0 : index
    %4 = vector.load %arg4[%c0_5, %c0_6, %c0_7] : memref<1x16x128xf32, #tpu.memory_space<vmem>>, vector<1x16x128xf32>
    %5 = vector.shape_cast %4 : vector<1x16x128xf32> to vector<16x128xf32>
    %c0_8 = arith.constant 0 : index
    %c0_9 = arith.constant 0 : index
    %6 = vector.load %arg5[%c0_8, %c0_9] : memref<128x128xf32, #tpu.memory_space<vmem>>, vector<128x128xf32>
    %cst = arith.constant dense<0.000000e+00> : vector<16x128xf32>
    %7 = tpu.matmul %3, %6, %cst {dimension_numbers = #tpu.dot_dimension_numbers<[1], [0], [0], [1], [0, 0, 1, 1], [], []>} : vector<16x128xf32>, vector<128x128xf32>, vector<16x128xf32> -> vector<16x128xf32>
    %c0_10 = arith.constant 0 : index
    %c0_11 = arith.constant 0 : index
    %8 = vector.load %arg8[%c0_10, %c0_11] : memref<1x128xf32, #tpu.memory_space<vmem>>, vector<1x128xf32>
    %9 = vector.broadcast %8 : vector<1x128xf32> to vector<16x128xf32>
    %10 = arith.addf %7, %9 : vector<16x128xf32>
    %c0_12 = arith.constant 0 : index
    %c0_13 = arith.constant 0 : index
    %11 = vector.load %arg6[%c0_12, %c0_13] : memref<128x128xf32, #tpu.memory_space<vmem>>, vector<128x128xf32>
    %cst_14 = arith.constant dense<0.000000e+00> : vector<16x128xf32>
    %12 = tpu.matmul %5, %11, %cst_14 {dimension_numbers = #tpu.dot_dimension_numbers<[1], [0], [0], [1], [0, 0, 1, 1], [], []>} : vector<16x128xf32>, vector<128x128xf32>, vector<16x128xf32> -> vector<16x128xf32>
    %c0_15 = arith.constant 0 : index
    %c0_16 = arith.constant 0 : index
    %13 = vector.load %arg9[%c0_15, %c0_16] : memref<1x128xf32, #tpu.memory_space<vmem>>, vector<1x128xf32>
    %14 = vector.broadcast %13 : vector<1x128xf32> to vector<16x128xf32>
    %15 = arith.addf %12, %14 : vector<16x128xf32>
    %c0_17 = arith.constant 0 : index
    %c0_18 = arith.constant 0 : index
    %16 = vector.load %arg7[%c0_17, %c0_18] : memref<128x128xf32, #tpu.memory_space<vmem>>, vector<128x128xf32>
    %cst_19 = arith.constant dense<0.000000e+00> : vector<16x128xf32>
    %17 = tpu.matmul %5, %16, %cst_19 {dimension_numbers = #tpu.dot_dimension_numbers<[1], [0], [0], [1], [0, 0, 1, 1], [], []>} : vector<16x128xf32>, vector<128x128xf32>, vector<16x128xf32> -> vector<16x128xf32>
    %c0_20 = arith.constant 0 : index
    %c0_21 = arith.constant 0 : index
    %18 = vector.load %arg10[%c0_20, %c0_21] : memref<1x128xf32, #tpu.memory_space<vmem>>, vector<1x128xf32>
    %19 = vector.broadcast %18 : vector<1x128xf32> to vector<16x128xf32>
    %20 = arith.addf %17, %19 : vector<16x128xf32>
    %21 = vector.shape_cast %10 : vector<16x128xf32> to vector<16x4x32xf32>
    %22 = tpu.transpose %21, [1, 0, 2] : vector<16x4x32xf32> -> vector<4x16x32xf32>
    %23 = vector.shape_cast %15 : vector<16x128xf32> to vector<16x4x32xf32>
    %24 = tpu.transpose %23, [1, 0, 2] : vector<16x4x32xf32> -> vector<4x16x32xf32>
    %25 = vector.shape_cast %20 : vector<16x128xf32> to vector<16x4x32xf32>
    %26 = tpu.transpose %25, [1, 0, 2] : vector<16x4x32xf32> -> vector<4x16x32xf32>
    "tpu.trace_start"() <{level = 10 : i32, message = "hqd,hkd->hqk"}> : () -> ()
    %cst_22 = arith.constant dense<0.000000e+00> : vector<4x16x16xf32>
    %27 = tpu.matmul %22, %24, %cst_22 {dimension_numbers = #tpu.dot_dimension_numbers<[2], [2], [1], [1], [0, 0, 0, 1, 1, 1], [0], [0]>} : vector<4x16x32xf32>, vector<4x16x32xf32>, vector<4x16x16xf32> -> vector<4x16x16xf32>
    "tpu.trace_stop"() : () -> ()
    %cst_23 = arith.constant dense<0xFF800000> : vector<4x16xf32>
    %28 = vector.multi_reduction <maximumf>, %27, %cst_23 [2] : vector<4x16x16xf32> to vector<4x16xf32>
    %29 = vector.shape_cast %28 : vector<4x16xf32> to vector<4x16x1xf32>
    %30 = vector.broadcast %29 : vector<4x16x1xf32> to vector<4x16x16xf32>
    %31 = arith.subf %27, %30 : vector<4x16x16xf32>
    %32 = math.exp %31 : vector<4x16x16xf32>
    %cst_24 = arith.constant dense<0.000000e+00> : vector<4x16xf32>
    %33 = vector.multi_reduction <add>, %32, %cst_24 [2] : vector<4x16x16xf32> to vector<4x16xf32>
    %34 = vector.shape_cast %33 : vector<4x16xf32> to vector<4x16x1xf32>
    %35 = vector.broadcast %34 : vector<4x16x1xf32> to vector<4x16x16xf32>
    %36 = arith.divf %32, %35 : vector<4x16x16xf32>
    %cst_25 = arith.constant dense<0.000000e+00> : vector<16x16xf32>
    %37 = vector.multi_reduction <add>, %36, %cst_25 [0] : vector<4x16x16xf32> to vector<16x16xf32>
    %cst_26 = arith.constant 4.000000e+00 : f32
    %38 = vector.broadcast %cst_26 : f32 to vector<16x16xf32>
    %39 = arith.divf %37, %38 : vector<16x16xf32>
    %c0_27 = arith.constant 0 : index
    %c0_28 = arith.constant 0 : index
    %c0_29 = arith.constant 0 : index
    %40 = vector.load %arg22[%c0_27, %c0_28, %c0_29] : memref<1x16x16xf32, #tpu.memory_space<vmem>>, vector<1x16x16xf32>
    %41 = vector.shape_cast %40 : vector<1x16x16xf32> to vector<16x16xf32>
    %42 = vector.shape_cast %39 : vector<16x16xf32> to vector<1x16x16xf32>
    tpu.vector_store %arg22[%c0_27, %c0_28, %c0_29], %42 {strides = array<i32>} : memref<1x16x16xf32, #tpu.memory_space<vmem>>, vector<1x16x16xf32>,
    "tpu.trace_start"() <{level = 10 : i32, message = "hqk,hkd->hqd"}> : () -> ()
    %cst_30 = arith.constant dense<0.000000e+00> : vector<4x16x32xf32>
    %43 = tpu.matmul %36, %26, %cst_30 {dimension_numbers = #tpu.dot_dimension_numbers<[2], [1], [1], [2], [0, 0, 0, 1, 1, 2], [0], [0]>} : vector<4x16x16xf32>, vector<4x16x32xf32>, vector<4x16x32xf32> -> vector<4x16x32xf32>
    "tpu.trace_stop"() : () -> ()
    %44 = tpu.transpose %43, [1, 0, 2] : vector<4x16x32xf32> -> vector<16x4x32xf32>
    %45 = vector.shape_cast %44 : vector<16x4x32xf32> to vector<16x128xf32>
    %c0_31 = arith.constant 0 : index
    %c0_32 = arith.constant 0 : index
    %46 = vector.load %arg11[%c0_31, %c0_32] : memref<128x128xf32, #tpu.memory_space<vmem>>, vector<128x128xf32>
    %cst_33 = arith.constant dense<0.000000e+00> : vector<16x128xf32>
    %47 = tpu.matmul %45, %46, %cst_33 {dimension_numbers = #tpu.dot_dimension_numbers<[1], [0], [0], [1], [0, 0, 1, 1], [], []>} : vector<16x128xf32>, vector<128x128xf32>, vector<16x128xf32> -> vector<16x128xf32>
    %c0_34 = arith.constant 0 : index
    %c0_35 = arith.constant 0 : index
    %48 = vector.load %arg12[%c0_34, %c0_35] : memref<1x128xf32, #tpu.memory_space<vmem>>, vector<1x128xf32>
    %49 = vector.broadcast %48 : vector<1x128xf32> to vector<16x128xf32>
    %50 = arith.addf %47, %49 : vector<16x128xf32>
    %51 = arith.addf %1, %50 : vector<16x128xf32>
    %cst_36 = arith.constant dense<0.000000e+00> : vector<16xf32>
    %52 = vector.multi_reduction <add>, %51, %cst_36 [1] : vector<16x128xf32> to vector<16xf32>
    %53 = vector.shape_cast %52 : vector<16xf32> to vector<16x1xf32>
    %cst_37 = arith.constant 1.280000e+02 : f32
    %54 = vector.broadcast %cst_37 : f32 to vector<16x1xf32>
    %55 = arith.divf %53, %54 : vector<16x1xf32>
    %56 = vector.broadcast %55 : vector<16x1xf32> to vector<16x128xf32>
    %57 = arith.subf %51, %56 : vector<16x128xf32>
    %58 = arith.mulf %57, %57 : vector<16x128xf32>
    %cst_38 = arith.constant dense<0.000000e+00> : vector<16xf32>
    %59 = vector.multi_reduction <add>, %58, %cst_38 [1] : vector<16x128xf32> to vector<16xf32>
    %60 = vector.shape_cast %59 : vector<16xf32> to vector<16x1xf32>
    %cst_39 = arith.constant 1.280000e+02 : f32
    %61 = vector.broadcast %cst_39 : f32 to vector<16x1xf32>
    %62 = arith.divf %60, %61 : vector<16x1xf32>
    %63 = vector.broadcast %55 : vector<16x1xf32> to vector<16x128xf32>
    %64 = arith.subf %51, %63 : vector<16x128xf32>
    %cst_40 = arith.constant 9.99999974E-6 : f32
    %65 = vector.broadcast %cst_40 : f32 to vector<16x1xf32>
    %66 = arith.addf %62, %65 : vector<16x1xf32>
    %67 = math.rsqrt %66 : vector<16x1xf32>
    %68 = vector.broadcast %67 : vector<16x1xf32> to vector<16x128xf32>
    %69 = arith.mulf %64, %68 : vector<16x128xf32>
    %c0_41 = arith.constant 0 : index
    %c0_42 = arith.constant 0 : index
    %70 = vector.load %arg13[%c0_41, %c0_42] : memref<1x128xf32, #tpu.memory_space<vmem>>, vector<1x128xf32>
    %71 = vector.broadcast %70 : vector<1x128xf32> to vector<16x128xf32>
    %72 = arith.mulf %69, %71 : vector<16x128xf32>
    %c0_43 = arith.constant 0 : index
    %c0_44 = arith.constant 0 : index
    %73 = vector.load %arg14[%c0_43, %c0_44] : memref<1x128xf32, #tpu.memory_space<vmem>>, vector<1x128xf32>
    %74 = vector.broadcast %73 : vector<1x128xf32> to vector<16x128xf32>
    %75 = arith.addf %72, %74 : vector<16x128xf32>
    %c0_45 = arith.constant 0 : index
    %c0_46 = arith.constant 0 : index
    %76 = vector.load %arg15[%c0_45, %c0_46] : memref<128x256xf32, #tpu.memory_space<vmem>>, vector<128x256xf32>
    %cst_47 = arith.constant dense<0.000000e+00> : vector<16x256xf32>
    %77 = tpu.matmul %75, %76, %cst_47 {dimension_numbers = #tpu.dot_dimension_numbers<[1], [0], [0], [1], [0, 0, 1, 1], [], []>} : vector<16x128xf32>, vector<128x256xf32>, vector<16x256xf32> -> vector<16x256xf32>
    %c0_48 = arith.constant 0 : index
    %c0_49 = arith.constant 0 : index
    %78 = vector.load %arg16[%c0_48, %c0_49] : memref<1x256xf32, #tpu.memory_space<vmem>>, vector<1x256xf32>
    %79 = vector.broadcast %78 : vector<1x256xf32> to vector<16x256xf32>
    %80 = arith.addf %77, %79 : vector<16x256xf32>
    %cst_50 = arith.constant 0.000000e+00 : f32
    %81 = vector.broadcast %cst_50 : f32 to vector<16x256xf32>
    %82 = arith.maximumf %80, %81 : vector<16x256xf32>
    %c0_51 = arith.constant 0 : index
    %c0_52 = arith.constant 0 : index
    %83 = vector.load %arg17[%c0_51, %c0_52] : memref<256x128xf32, #tpu.memory_space<vmem>>, vector<256x128xf32>
    %cst_53 = arith.constant dense<0.000000e+00> : vector<16x128xf32>
    %84 = tpu.matmul %82, %83, %cst_53 {dimension_numbers = #tpu.dot_dimension_numbers<[1], [0], [0], [1], [0, 0, 1, 1], [], []>} : vector<16x256xf32>, vector<256x128xf32>, vector<16x128xf32> -> vector<16x128xf32>
    %c0_54 = arith.constant 0 : index
    %c0_55 = arith.constant 0 : index
    %85 = vector.load %arg18[%c0_54, %c0_55] : memref<1x128xf32, #tpu.memory_space<vmem>>, vector<1x128xf32>
    %86 = vector.broadcast %85 : vector<1x128xf32> to vector<16x128xf32>
    %87 = arith.addf %84, %86 : vector<16x128xf32>
    %88 = arith.addf %75, %87 : vector<16x128xf32>
    %cst_56 = arith.constant dense<0.000000e+00> : vector<16xf32>
    %89 = vector.multi_reduction <add>, %88, %cst_56 [1] : vector<16x128xf32> to vector<16xf32>
    %90 = vector.shape_cast %89 : vector<16xf32> to vector<16x1xf32>
    %cst_57 = arith.constant 1.280000e+02 : f32
    %91 = vector.broadcast %cst_57 : f32 to vector<16x1xf32>
    %92 = arith.divf %90, %91 : vector<16x1xf32>
    %93 = vector.broadcast %92 : vector<16x1xf32> to vector<16x128xf32>
    %94 = arith.subf %88, %93 : vector<16x128xf32>
    %95 = arith.mulf %94, %94 : vector<16x128xf32>
    %cst_58 = arith.constant dense<0.000000e+00> : vector<16xf32>
    %96 = vector.multi_reduction <add>, %95, %cst_58 [1] : vector<16x128xf32> to vector<16xf32>
    %97 = vector.shape_cast %96 : vector<16xf32> to vector<16x1xf32>
    %cst_59 = arith.constant 1.280000e+02 : f32
    %98 = vector.broadcast %cst_59 : f32 to vector<16x1xf32>
    %99 = arith.divf %97, %98 : vector<16x1xf32>
    %100 = vector.broadcast %92 : vector<16x1xf32> to vector<16x128xf32>
    %101 = arith.subf %88, %100 : vector<16x128xf32>
    %cst_60 = arith.constant 9.99999974E-6 : f32
    %102 = vector.broadcast %cst_60 : f32 to vector<16x1xf32>
    %103 = arith.addf %99, %102 : vector<16x1xf32>
    %104 = math.rsqrt %103 : vector<16x1xf32>
    %105 = vector.broadcast %104 : vector<16x1xf32> to vector<16x128xf32>
    %106 = arith.mulf %101, %105 : vector<16x128xf32>
    %c0_61 = arith.constant 0 : index
    %c0_62 = arith.constant 0 : index
    %107 = vector.load %arg19[%c0_61, %c0_62] : memref<1x128xf32, #tpu.memory_space<vmem>>, vector<1x128xf32>
    %108 = vector.broadcast %107 : vector<1x128xf32> to vector<16x128xf32>
    %109 = arith.mulf %106, %108 : vector<16x128xf32>
    %c0_63 = arith.constant 0 : index
    %c0_64 = arith.constant 0 : index
    %110 = vector.load %arg20[%c0_63, %c0_64] : memref<1x128xf32, #tpu.memory_space<vmem>>, vector<1x128xf32>
    %111 = vector.broadcast %110 : vector<1x128xf32> to vector<16x128xf32>
    %112 = arith.addf %109, %111 : vector<16x128xf32>
    %c0_65 = arith.constant 0 : index
    %c0_66 = arith.constant 0 : index
    %c0_67 = arith.constant 0 : index
    %113 = vector.load %arg21[%c0_65, %c0_66, %c0_67] : memref<1x16x128xf32, #tpu.memory_space<vmem>>, vector<1x16x128xf32>
    %114 = vector.shape_cast %113 : vector<1x16x128xf32> to vector<16x128xf32>
    %115 = vector.shape_cast %112 : vector<16x128xf32> to vector<1x16x128xf32>
    tpu.vector_store %arg21[%c0_65, %c0_66, %c0_67], %115 {strides = array<i32>} : memref<1x16x128xf32, #tpu.memory_space<vmem>>, vector<1x16x128xf32>,
    return
  }
  func.func @transform_0(%arg0: i32, %arg1: i32) -> (i32, i32, i32) {
    %c0_i32 = arith.constant 0 : i32
    %c0_i32_0 = arith.constant 0 : i32
    return %arg0, %arg1, %c0_i32 : i32, i32, i32
  }
  func.func @transform_1(%arg0: i32, %arg1: i32) -> (i32, i32, i32) {
    %c0_i32 = arith.constant 0 : i32
    %c0_i32_0 = arith.constant 0 : i32
    return %arg0, %arg1, %c0_i32 : i32, i32, i32
  }
  func.func @transform_2(%arg0: i32, %arg1: i32) -> (i32, i32, i32) {
    %c0_i32 = arith.constant 0 : i32
    %c0_i32_0 = arith.constant 0 : i32
    %c0_i32_1 = arith.constant 0 : i32
    return %arg0, %c0_i32, %c0_i32_0 : i32, i32, i32
  }
  func.func @transform_3(%arg0: i32, %arg1: i32) -> (i32, i32) {
    %c0_i32 = arith.constant 0 : i32
    %c0_i32_0 = arith.constant 0 : i32
    %c0_i32_1 = arith.constant 0 : i32
    return %c0_i32, %c0_i32_0 : i32, i32
  }
  func.func @transform_4(%arg0: i32, %arg1: i32) -> (i32, i32) {
    %c0_i32 = arith.constant 0 : i32
    %c0_i32_0 = arith.constant 0 : i32
    %c0_i32_1 = arith.constant 0 : i32
    return %c0_i32, %c0_i32_0 : i32, i32
  }
  func.func @transform_5(%arg0: i32, %arg1: i32) -> (i32, i32) {
    %c0_i32 = arith.constant 0 : i32
    %c0_i32_0 = arith.constant 0 : i32
    %c0_i32_1 = arith.constant 0 : i32
    return %c0_i32, %c0_i32_0 : i32, i32
  }
  func.func @transform_6(%arg0: i32, %arg1: i32) -> (i32, i32) {
    %c0_i32 = arith.constant 0 : i32
    %c0_i32_0 = arith.constant 0 : i32
    %c0_i32_1 = arith.constant 0 : i32
    return %c0_i32, %c0_i32_0 : i32, i32
  }
  func.func @transform_7(%arg0: i32, %arg1: i32) -> (i32, i32) {
    %c0_i32 = arith.constant 0 : i32
    %c0_i32_0 = arith.constant 0 : i32
    %c0_i32_1 = arith.constant 0 : i32
    return %c0_i32, %c0_i32_0 : i32, i32
  }
  func.func @transform_8(%arg0: i32, %arg1: i32) -> (i32, i32) {
    %c0_i32 = arith.constant 0 : i32
    %c0_i32_0 = arith.constant 0 : i32
    %c0_i32_1 = arith.constant 0 : i32
    return %c0_i32, %c0_i32_0 : i32, i32
  }
  func.func @transform_9(%arg0: i32, %arg1: i32) -> (i32, i32) {
    %c0_i32 = arith.constant 0 : i32
    %c0_i32_0 = arith.constant 0 : i32
    %c0_i32_1 = arith.constant 0 : i32
    return %c0_i32, %c0_i32_0 : i32, i32
  }
  func.func @transform_10(%arg0: i32, %arg1: i32) -> (i32, i32) {
    %c0_i32 = arith.constant 0 : i32
    %c0_i32_0 = arith.constant 0 : i32
    %c0_i32_1 = arith.constant 0 : i32
    return %c0_i32, %c0_i32_0 : i32, i32
  }
  func.func @transform_11(%arg0: i32, %arg1: i32) -> (i32, i32) {
    %c0_i32 = arith.constant 0 : i32
    %c0_i32_0 = arith.constant 0 : i32
    %c0_i32_1 = arith.constant 0 : i32
    return %c0_i32, %c0_i32_0 : i32, i32
  }
  func.func @transform_12(%arg0: i32, %arg1: i32) -> (i32, i32) {
    %c0_i32 = arith.constant 0 : i32
    %c0_i32_0 = arith.constant 0 : i32
    %c0_i32_1 = arith.constant 0 : i32
    return %c0_i32, %c0_i32_0 : i32, i32
  }
  func.func @transform_13(%arg0: i32, %arg1: i32) -> (i32, i32) {
    %c0_i32 = arith.constant 0 : i32
    %c0_i32_0 = arith.constant 0 : i32
    %c0_i32_1 = arith.constant 0 : i32
    return %c0_i32, %c0_i32_0 : i32, i32
  }
  func.func @transform_14(%arg0: i32, %arg1: i32) -> (i32, i32) {
    %c0_i32 = arith.constant 0 : i32
    %c0_i32_0 = arith.constant 0 : i32
    %c0_i32_1 = arith.constant 0 : i32
    return %c0_i32, %c0_i32_0 : i32, i32
  }
  func.func @transform_15(%arg0: i32, %arg1: i32) -> (i32, i32) {
    %c0_i32 = arith.constant 0 : i32
    %c0_i32_0 = arith.constant 0 : i32
    %c0_i32_1 = arith.constant 0 : i32
    return %c0_i32, %c0_i32_0 : i32, i32
  }
  func.func @transform_16(%arg0: i32, %arg1: i32) -> (i32, i32) {
    %c0_i32 = arith.constant 0 : i32
    %c0_i32_0 = arith.constant 0 : i32
    %c0_i32_1 = arith.constant 0 : i32
    return %c0_i32, %c0_i32_0 : i32, i32
  }
  func.func @transform_17(%arg0: i32, %arg1: i32) -> (i32, i32) {
    %c0_i32 = arith.constant 0 : i32
    %c0_i32_0 = arith.constant 0 : i32
    %c0_i32_1 = arith.constant 0 : i32
    return %c0_i32, %c0_i32_0 : i32, i32
  }
  func.func @transform_18(%arg0: i32, %arg1: i32) -> (i32, i32) {
    %c0_i32 = arith.constant 0 : i32
    %c0_i32_0 = arith.constant 0 : i32
    %c0_i32_1 = arith.constant 0 : i32
    return %c0_i32, %c0_i32_0 : i32, i32
  }
  func.func @transform_19(%arg0: i32, %arg1: i32) -> (i32, i32, i32) {
    %c0_i32 = arith.constant 0 : i32
    %c0_i32_0 = arith.constant 0 : i32
    return %arg0, %arg1, %c0_i32 : i32, i32, i32
  }
  func.func @transform_20(%arg0: i32, %arg1: i32) -> (i32, i32, i32) {
    %c0_i32 = arith.constant 0 : i32
    %c0_i32_0 = arith.constant 0 : i32
    return %arg0, %arg1, %c0_i32 : i32, i32, i32
  }
}

</mosaic_0001>

<llo_original>
// kernel: tpu_custom_call.1
$region0: #{tpu_custom_call.1}
  #allocation0 [shape = 'u32[]', space=smem, size = 0x4, offset = 0x4, fixed_abs, tag = 'smem constant byte address 0x4 - core index']
  #allocation1 [shape = 'u32[144,128]{1,0:T(1,128)}', space=vmem, size = 0x12000, scoped, tag = 'internal scratch']
  %s0 = inlined_call_operand.hbm [shape: f32[2,16,128], index: 0, kind: input, shape index: {}]
  %s1 = inlined_call_operand.hbm [shape: f32[2,16,128], index: 1, kind: input, shape index: {}]
  %s2 = inlined_call_operand.hbm [shape: f32[2,16,128], index: 2, kind: input, shape index: {}]
  %s3 = inlined_call_operand.hbm [shape: f32[128,128], index: 3, kind: input, shape index: {}]
  %s4 = inlined_call_operand.hbm [shape: f32[128,128], index: 4, kind: input, shape index: {}]
  %s5 = inlined_call_operand.hbm [shape: f32[128,128], index: 5, kind: input, shape index: {}]
  %s6 = inlined_call_operand.vmem [shape: f32[1,128], index: 6, kind: input, shape index: {}]
  %s7 = inlined_call_operand.vmem [shape: f32[1,128], index: 7, kind: input, shape index: {}]
  %s8 = inlined_call_operand.vmem [shape: f32[1,128], index: 8, kind: input, shape index: {}]
  %s9 = inlined_call_operand.hbm [shape: f32[128,128], index: 9, kind: input, shape index: {}]
  %s10 = inlined_call_operand.vmem [shape: f32[1,128], index: 10, kind: input, shape index: {}]
  %s11 = inlined_call_operand.vmem [shape: f32[1,128], index: 11, kind: input, shape index: {}]
  %s12 = inlined_call_operand.vmem [shape: f32[1,128], index: 12, kind: input, shape index: {}]
  %s13 = inlined_call_operand.hbm [shape: f32[128,256], index: 13, kind: input, shape index: {}]
  %s14 = inlined_call_operand.vmem [shape: f32[1,256], index: 14, kind: input, shape index: {}]
  %s15 = inlined_call_operand.hbm [shape: f32[256,128], index: 15, kind: input, shape index: {}]
  %s16 = inlined_call_operand.vmem [shape: f32[1,128], index: 16, kind: input, shape index: {}]
  %s17 = inlined_call_operand.vmem [shape: f32[1,128], index: 17, kind: input, shape index: {}]
  %s18 = inlined_call_operand.vmem [shape: f32[1,128], index: 18, kind: input, shape index: {}]
  %s19 = inlined_call_operand.hbm [shape: f32[2,16,128], index: 19, kind: output, shape index: {0}]
  %s20 = inlined_call_operand.hbm [shape: f32[2,16,16], index: 20, kind: output, shape index: {1}]
  %21 = xla_tuple %s19, %s20
  %s22 = sld [smem:[#allocation0]]
  $region153: #{tpu_custom_call.1} parent=0
    _
  %s24 = ssub.s32 1, %s22
  %s25 = scalar_select 0, %s24, %s22
  $region1: #{tpu_custom_call.1} parent=0
    #allocation2 [shape = 'u8[16384]{0}', space=vmem, size = 0x4000, scoped, tag = 'input window, operand 0']
    #allocation3 [shape = 's32[2]{0}', space=sflag, size = 0x8, scoped, tag = 'scoped memory for tpu_custom_call.1']
    #allocation4 [shape = 's32[2]{0}', space=sflag, size = 0x8, scoped, tag = 'scoped memory for tpu_custom_call.1']
    #allocation5 [shape = 'u8[16384]{0}', space=vmem, size = 0x4000, scoped, tag = 'input window, operand 1']
    #allocation6 [shape = 's32[2]{0}', space=sflag, size = 0x8, scoped, tag = 'scoped memory for tpu_custom_call.1']
    #allocation7 [shape = 'u8[16384]{0}', space=vmem, size = 0x4000, scoped, tag = 'input window, operand 2']
    #allocation8 [shape = 'u8[65536]{0}', space=vmem, size = 0x10000, scoped, tag = 'input window, operand 3, single buffered']
    #allocation9 [shape = 's32[1]{0}', space=sflag, size = 0x4, scoped, tag = 'scoped memory for tpu_custom_call.1']
    #allocation10 [shape = 'u8[65536]{0}', space=vmem, size = 0x10000, scoped, tag = 'input window, operand 4, single buffered']
    #allocation11 [shape = 'u8[65536]{0}', space=vmem, size = 0x10000, scoped, tag = 'input window, operand 5, single buffered']
    #allocation12 [shape = 's32[1]{0}', space=sflag, size = 0x4, scoped, tag = 'scoped memory for tpu_custom_call.1']
    #allocation13 [shape = 'u8[65536]{0}', space=vmem, size = 0x10000, scoped, tag = 'input window, operand 9, single buffered']
    #allocation14 [shape = 'u8[131072]{0}', space=vmem, size = 0x20000, scoped, tag = 'input window, operand 13, single buffered']
    #allocation15 [shape = 's32[1]{0}', space=sflag, size = 0x4, scoped, tag = 'scoped memory for tpu_custom_call.1']
    #allocation16 [shape = 'u8[131072]{0}', space=vmem, size = 0x20000, scoped, tag = 'input window, operand 15, single buffered']
    #allocation17 [shape = 'u8[16384]{0}', space=vmem, size = 0x4000, scoped, tag = 'output window, operand 0']
    #allocation18 [shape = 'u8[16384]{0}', space=vmem, size = 0x4000, scoped, tag = 'output window, operand 1']
    #allocation19 [shape = 's32[2]{0}', space=sflag, size = 0x8, scoped, tag = 'scoped memory for tpu_custom_call.1']
    %26 = vsyncpa [#allocation3], 0
    %s27 = scalar_lea.sflag [#allocation3], 1
    %28 = vsyncpa %s27, 0
    %29 = vsyncpa [#allocation6], 0
    %s30 = scalar_lea.sflag [#allocation6], 1
    %31 = vsyncpa %s30, 0
    %32 = vsyncpa [#allocation9], 0
    %33 = vsyncpa [#allocation12], 0
    %34 = vsyncpa [#allocation15], 0
    %35 = vsyncpa [#allocation4], 0
    %s36 = scalar_lea.sflag [#allocation4], 1
    %37 = vsyncpa %s36, 0
    %38 = vsyncpa [#allocation19], 0
    %s39 = scalar_lea.sflag [#allocation19], 1
    %40 = vsyncpa %s39, 0
    loop: start=0, step=1, limit=4
    $region2: #{tpu_custom_call.1} parent=1 // loop_pre_header
      _
    $region3: #{tpu_custom_call.1} parent=1 // loop_header
      %s42 = sphi 0, %s46
      %p43 = scmp.ge.s32.totalorder %s42, 4
      %s49 = sphi 0, %s61
      %s50 = sphi 0, %s57
      %s51 = sphi 0, %s49
      %s52 = sphi 0, %s50
      %s53 = sphi 0, %s51
      %s54 = sphi 0, %s52
      %s66 = sphi 0, %s68
      %s69 = sphi 0, %s66
      %s70 = sphi 0, %s69
      %s86 = sphi 0, %s70
      %s94 = sphi 0, %s96
      %s97 = sphi 0, %s94
      %s98 = sphi 0, %s97
      %s114 = sphi 0, %s98
      %s120 = sphi 0, %s122
      %s123 = sphi 0, %s120
      %s124 = sphi 0, %s123
      %s140 = sphi 0, %s124
      %s144 = sphi 0, %s144
      %s146 = sphi 0, %s144
      %s147 = sphi 0, %s146
      %s161 = sphi 0, %s147
      %s165 = sphi 0, %s165
      %s167 = sphi 0, %s165
      %s168 = sphi 0, %s167
      %s182 = sphi 0, %s168
      %s186 = sphi 0, %s186
      %s188 = sphi 0, %s186
      %s189 = sphi 0, %s188
      %s203 = sphi 0, %s189
      %s207 = sphi 0, %s207
      %s209 = sphi 0, %s207
      %s210 = sphi 0, %s209
      %s224 = sphi 0, %s210
      %s228 = sphi 0, %s228
      %s230 = sphi 0, %s228
      %s231 = sphi 0, %s230
      %s245 = sphi 0, %s231
      %s249 = sphi 0, %s249
      %s251 = sphi 0, %s249
      %s252 = sphi 0, %s251
      %s266 = sphi 0, %s252
      %s270 = sphi 0, %s270
      %s272 = sphi 0, %s270
      %s273 = sphi 0, %s272
      %s287 = sphi 0, %s273
      %s291 = sphi 0, %s291
      %s293 = sphi 0, %s291
      %s294 = sphi 0, %s293
      %s308 = sphi 0, %s294
      %s312 = sphi 0, %s312
      %s314 = sphi 0, %s312
      %s315 = sphi 0, %s314
      %s329 = sphi 0, %s315
      %s333 = sphi 0, %s333
      %s335 = sphi 0, %s333
      %s336 = sphi 0, %s335
      %s350 = sphi 0, %s336
      %s354 = sphi 0, %s354
      %s356 = sphi 0, %s354
      %s357 = sphi 0, %s356
      %s371 = sphi 0, %s357
      %s375 = sphi 0, %s375
      %s377 = sphi 0, %s375
      %s378 = sphi 0, %s377
      %s392 = sphi 0, %s378
      %s396 = sphi 0, %s396
      %s398 = sphi 0, %s396
      %s399 = sphi 0, %s398
      %s413 = sphi 0, %s399
      %s417 = sphi 0, %s417
      %s419 = sphi 0, %s417
      %s420 = sphi 0, %s419
      %s434 = sphi 0, %s420
      %s438 = sphi 0, %s438
      %s440 = sphi 0, %s438
      %s441 = sphi 0, %s440
      %s455 = sphi 0, %s441
      %s459 = sphi 0, %s459
      %s461 = sphi 0, %s459
      %s462 = sphi 0, %s461
      %s476 = sphi 0, %s462
      %s484 = sphi 0, %s486
      %s487 = sphi 0, %s484
      %s488 = sphi 0, %s487
      %s504 = sphi 0, %s488
      %s512 = sphi 0, %s514
      %s515 = sphi 0, %s512
      %s516 = sphi 0, %s515
      %s532 = sphi 0, %s516
    $region4: #{tpu_custom_call.1} parent=1 // loop_header_branch
      %45 = sbr.rel (%p43) target = $region8
    $region5: #{tpu_custom_call.1} parent=1 // loop_body
      %s47 = ssub.s32 %s42, 1
      %s48 = ssub.s32 %s42, 2
      %s55 = sadd.s32 1, %s50
      %p56 = scmp.ge.s32.totalorder %s55, 1
      %s57 = scalar_select %p56, 0, %s55
      %s58 = sadd.s32 1, %s49
      %s59 = scalar_select %p56, %s58, %s49
      %p60 = scmp.ge.s32.totalorder %s59, 2
      %s61 = scalar_select %p60, 0, %s59
      %s62 = ssub.s32 %s49, %s61
      %s63 = ssub.s32 %s50, %s57
      %s64 = sor.u32 %s62, %s63
      %p65 = scmp.eq.s32.totalorder %s64, 0
      %s67 = sadd.s32 %s66, 1
      %s68 = scalar_select %p65, %s66, %s67
      %p71 = pneg %p65
      %p72 = scmp.eq.s32.totalorder %s42, 1
      %p73 = por %p71, %p72
      %p74 = scmp.ne.s32.totalorder %s66, %s69
      %p75 = scmp.eq.s32.totalorder %s42, 0
      %p76 = por %p74, %p75
      %p77 = scmp.ne.s32.totalorder %s66, %s69
      %p78 = scmp.eq.s32.totalorder %s47, 1
      %p79 = por %p77, %p78
      %p80 = scmp.ne.s32.totalorder %s69, %s70
      %p81 = scmp.eq.s32.totalorder %s47, 0
      %p82 = por %p80, %p81
      %p83 = scmp.ne.s32.totalorder %s69, %s70
      %p84 = scmp.eq.s32.totalorder %s48, 1
      %p85 = por %p83, %p84
      %p87 = scmp.ne.s32.totalorder %s70, %s86
      %p88 = scmp.eq.s32.totalorder %s48, 0
      %p89 = por %p87, %p88
      %s90 = ssub.s32 %s49, %s61
      %s91 = ssub.s32 %s50, %s57
      %s92 = sor.u32 %s90, %s91
      %p93 = scmp.eq.s32.totalorder %s92, 0
      %s95 = sadd.s32 %s94, 1
      %s96 = scalar_select %p93, %s94, %s95
      %p99 = pneg %p93
      %p100 = scmp.eq.s32.totalorder %s42, 1
      %p101 = por %p99, %p100
      %p102 = scmp.ne.s32.totalorder %s94, %s97
      %p103 = scmp.eq.s32.totalorder %s42, 0
      %p104 = por %p102, %p103
      %p105 = scmp.ne.s32.totalorder %s94, %s97
      %p106 = scmp.eq.s32.totalorder %s47, 1
      %p107 = por %p105, %p106
      %p108 = scmp.ne.s32.totalorder %s97, %s98
      %p109 = scmp.eq.s32.totalorder %s47, 0
      %p110 = por %p108, %p109
      %p111 = scmp.ne.s32.totalorder %s97, %s98
      %p112 = scmp.eq.s32.totalorder %s48, 1
      %p113 = por %p111, %p112
      %p115 = scmp.ne.s32.totalorder %s98, %s114
      %p116 = scmp.eq.s32.totalorder %s48, 0
      %p117 = por %p115, %p116
      %s118 = ssub.s32 %s49, %s61
      %p119 = scmp.eq.s32.totalorder %s118, 0
      %s121 = sadd.s32 %s120, 1
      %s122 = scalar_select %p119, %s120, %s121
      %p125 = pneg %p119
      %p126 = scmp.eq.s32.totalorder %s42, 1
      %p127 = por %p125, %p126
      %p128 = scmp.ne.s32.totalorder %s120, %s123
      %p129 = scmp.eq.s32.totalorder %s42, 0
      %p130 = por %p128, %p129
      %p131 = scmp.ne.s32.totalorder %s120, %s123
      %p132 = scmp.eq.s32.totalorder %s47, 1
      %p133 = por %p131, %p132
      %p134 = scmp.ne.s32.totalorder %s123, %s124
      %p135 = scmp.eq.s32.totalorder %s47, 0
      %p136 = por %p134, %p135
      %p137 = scmp.ne.s32.totalorder %s123, %s124
      %p138 = scmp.eq.s32.totalorder %s48, 1
      %p139 = por %p137, %p138
      %p141 = scmp.ne.s32.totalorder %s124, %s140
      %p142 = scmp.eq.s32.totalorder %s48, 0
      %p143 = por %p141, %p142
      %s145 = sadd.s32 %s144, 1
      %p148 = scmp.eq.s32.totalorder %s42, 1
      %p149 = scmp.ne.s32.totalorder %s144, %s146
      %p150 = scmp.eq.s32.totalorder %s42, 0
      %p151 = por %p149, %p150
      %p152 = scmp.ne.s32.totalorder %s144, %s146
      %p153 = scmp.eq.s32.totalorder %s47, 1
      %p154 = por %p152, %p153
      %p155 = scmp.ne.s32.totalorder %s146, %s147
      %p156 = scmp.eq.s32.totalorder %s47, 0
      %p157 = por %p155, %p156
      %p158 = scmp.ne.s32.totalorder %s146, %s147
      %p159 = scmp.eq.s32.totalorder %s48, 1
      %p160 = por %p158, %p159
      %p162 = scmp.ne.s32.totalorder %s147, %s161
      %p163 = scmp.eq.s32.totalorder %s48, 0
      %p164 = por %p162, %p163
      %s166 = sadd.s32 %s165, 1
      %p169 = scmp.eq.s32.totalorder %s42, 1
      %p170 = scmp.ne.s32.totalorder %s165, %s167
      %p171 = scmp.eq.s32.totalorder %s42, 0
      %p172 = por %p170, %p171
      %p173 = scmp.ne.s32.totalorder %s165, %s167
      %p174 = scmp.eq.s32.totalorder %s47, 1
      %p175 = por %p173, %p174
      %p176 = scmp.ne.s32.totalorder %s167, %s168
      %p177 = scmp.eq.s32.totalorder %s47, 0
      %p178 = por %p176, %p177
      %p179 = scmp.ne.s32.totalorder %s167, %s168
      %p180 = scmp.eq.s32.totalorder %s48, 1
      %p181 = por %p179, %p180
      %p183 = scmp.ne.s32.totalorder %s168, %s182
      %p184 = scmp.eq.s32.totalorder %s48, 0
      %p185 = por %p183, %p184
      %s187 = sadd.s32 %s186, 1
      %p190 = scmp.eq.s32.totalorder %s42, 1
      %p191 = scmp.ne.s32.totalorder %s186, %s188
      %p192 = scmp.eq.s32.totalorder %s42, 0
      %p193 = por %p191, %p192
      %p194 = scmp.ne.s32.totalorder %s186, %s188
      %p195 = scmp.eq.s32.totalorder %s47, 1
      %p196 = por %p194, %p195
      %p197 = scmp.ne.s32.totalorder %s188, %s189
      %p198 = scmp.eq.s32.totalorder %s47, 0
      %p199 = por %p197, %p198
      %p200 = scmp.ne.s32.totalorder %s188, %s189
      %p201 = scmp.eq.s32.totalorder %s48, 1
      %p202 = por %p200, %p201
      %p204 = scmp.ne.s32.totalorder %s189, %s203
      %p205 = scmp.eq.s32.totalorder %s48, 0
      %p206 = por %p204, %p205
      %s208 = sadd.s32 %s207, 1
      %p211 = scmp.eq.s32.totalorder %s42, 1
      %p212 = scmp.ne.s32.totalorder %s207, %s209
      %p213 = scmp.eq.s32.totalorder %s42, 0
      %p214 = por %p212, %p213
      %p215 = scmp.ne.s32.totalorder %s207, %s209
      %p216 = scmp.eq.s32.totalorder %s47, 1
      %p217 = por %p215, %p216
      %p218 = scmp.ne.s32.totalorder %s209, %s210
      %p219 = scmp.eq.s32.totalorder %s47, 0
      %p220 = por %p218, %p219
      %p221 = scmp.ne.s32.totalorder %s209, %s210
      %p222 = scmp.eq.s32.totalorder %s48, 1
      %p223 = por %p221, %p222
      %p225 = scmp.ne.s32.totalorder %s210, %s224
      %p226 = scmp.eq.s32.totalorder %s48, 0
      %p227 = por %p225, %p226
      %s229 = sadd.s32 %s228, 1
      %p232 = scmp.eq.s32.totalorder %s42, 1
      %p233 = scmp.ne.s32.totalorder %s228, %s230
      %p234 = scmp.eq.s32.totalorder %s42, 0
      %p235 = por %p233, %p234
      %p236 = scmp.ne.s32.totalorder %s228, %s230
      %p237 = scmp.eq.s32.totalorder %s47, 1
      %p238 = por %p236, %p237
      %p239 = scmp.ne.s32.totalorder %s230, %s231
      %p240 = scmp.eq.s32.totalorder %s47, 0
      %p241 = por %p239, %p240
      %p242 = scmp.ne.s32.totalorder %s230, %s231
      %p243 = scmp.eq.s32.totalorder %s48, 1
      %p244 = por %p242, %p243
      %p246 = scmp.ne.s32.totalorder %s231, %s245
      %p247 = scmp.eq.s32.totalorder %s48, 0
      %p248 = por %p246, %p247
      %s250 = sadd.s32 %s249, 1
      %p253 = scmp.eq.s32.totalorder %s42, 1
      %p254 = scmp.ne.s32.totalorder %s249, %s251
      %p255 = scmp.eq.s32.totalorder %s42, 0
      %p256 = por %p254, %p255
      %p257 = scmp.ne.s32.totalorder %s249, %s251
      %p258 = scmp.eq.s32.totalorder %s47, 1
      %p259 = por %p257, %p258
      %p260 = scmp.ne.s32.totalorder %s251, %s252
      %p261 = scmp.eq.s32.totalorder %s47, 0
      %p262 = por %p260, %p261
      %p263 = scmp.ne.s32.totalorder %s251, %s252
      %p264 = scmp.eq.s32.totalorder %s48, 1
      %p265 = por %p263, %p264
      %p267 = scmp.ne.s32.totalorder %s252, %s266
      %p268 = scmp.eq.s32.totalorder %s48, 0
      %p269 = por %p267, %p268
      %s271 = sadd.s32 %s270, 1
      %p274 = scmp.eq.s32.totalorder %s42, 1
      %p275 = scmp.ne.s32.totalorder %s270, %s272
      %p276 = scmp.eq.s32.totalorder %s42, 0
      %p277 = por %p275, %p276
      %p278 = scmp.ne.s32.totalorder %s270, %s272
      %p279 = scmp.eq.s32.totalorder %s47, 1
      %p280 = por %p278, %p279
      %p281 = scmp.ne.s32.totalorder %s272, %s273
      %p282 = scmp.eq.s32.totalorder %s47, 0
      %p283 = por %p281, %p282
      %p284 = scmp.ne.s32.totalorder %s272, %s273
      %p285 = scmp.eq.s32.totalorder %s48, 1
      %p286 = por %p284, %p285
      %p288 = scmp.ne.s32.totalorder %s273, %s287
      %p289 = scmp.eq.s32.totalorder %s48, 0
      %p290 = por %p288, %p289
      %s292 = sadd.s32 %s291, 1
      %p295 = scmp.eq.s32.totalorder %s42, 1
      %p296 = scmp.ne.s32.totalorder %s291, %s293
      %p297 = scmp.eq.s32.totalorder %s42, 0
      %p298 = por %p296, %p297
      %p299 = scmp.ne.s32.totalorder %s291, %s293
      %p300 = scmp.eq.s32.totalorder %s47, 1
      %p301 = por %p299, %p300
      %p302 = scmp.ne.s32.totalorder %s293, %s294
      %p303 = scmp.eq.s32.totalorder %s47, 0
      %p304 = por %p302, %p303
      %p305 = scmp.ne.s32.totalorder %s293, %s294
      %p306 = scmp.eq.s32.totalorder %s48, 1
      %p307 = por %p305, %p306
      %p309 = scmp.ne.s32.totalorder %s294, %s308
      %p310 = scmp.eq.s32.totalorder %s48, 0
      %p311 = por %p309, %p310
      %s313 = sadd.s32 %s312, 1
      %p316 = scmp.eq.s32.totalorder %s42, 1
      %p317 = scmp.ne.s32.totalorder %s312, %s314
      %p318 = scmp.eq.s32.totalorder %s42, 0
      %p319 = por %p317, %p318
      %p320 = scmp.ne.s32.totalorder %s312, %s314
      %p321 = scmp.eq.s32.totalorder %s47, 1
      %p322 = por %p320, %p321
      %p323 = scmp.ne.s32.totalorder %s314, %s315
      %p324 = scmp.eq.s32.totalorder %s47, 0
      %p325 = por %p323, %p324
      %p326 = scmp.ne.s32.totalorder %s314, %s315
      %p327 = scmp.eq.s32.totalorder %s48, 1
      %p328 = por %p326, %p327
      %p330 = scmp.ne.s32.totalorder %s315, %s329
      %p331 = scmp.eq.s32.totalorder %s48, 0
      %p332 = por %p330, %p331
      %s334 = sadd.s32 %s333, 1
      %p337 = scmp.eq.s32.totalorder %s42, 1
      %p338 = scmp.ne.s32.totalorder %s333, %s335
      %p339 = scmp.eq.s32.totalorder %s42, 0
      %p340 = por %p338, %p339
      %p341 = scmp.ne.s32.totalorder %s333, %s335
      %p342 = scmp.eq.s32.totalorder %s47, 1
      %p343 = por %p341, %p342
      %p344 = scmp.ne.s32.totalorder %s335, %s336
      %p345 = scmp.eq.s32.totalorder %s47, 0
      %p346 = por %p344, %p345
      %p347 = scmp.ne.s32.totalorder %s335, %s336
      %p348 = scmp.eq.s32.totalorder %s48, 1
      %p349 = por %p347, %p348
      %p351 = scmp.ne.s32.totalorder %s336, %s350
      %p352 = scmp.eq.s32.totalorder %s48, 0
      %p353 = por %p351, %p352
      %s355 = sadd.s32 %s354, 1
      %p358 = scmp.eq.s32.totalorder %s42, 1
      %p359 = scmp.ne.s32.totalorder %s354, %s356
      %p360 = scmp.eq.s32.totalorder %s42, 0
      %p361 = por %p359, %p360
      %p362 = scmp.ne.s32.totalorder %s354, %s356
      %p363 = scmp.eq.s32.totalorder %s47, 1
      %p364 = por %p362, %p363
      %p365 = scmp.ne.s32.totalorder %s356, %s357
      %p366 = scmp.eq.s32.totalorder %s47, 0
      %p367 = por %p365, %p366
      %p368 = scmp.ne.s32.totalorder %s356, %s357
      %p369 = scmp.eq.s32.totalorder %s48, 1
      %p370 = por %p368, %p369
      %p372 = scmp.ne.s32.totalorder %s357, %s371
      %p373 = scmp.eq.s32.totalorder %s48, 0
      %p374 = por %p372, %p373
      %s376 = sadd.s32 %s375, 1
      %p379 = scmp.eq.s32.totalorder %s42, 1
      %p380 = scmp.ne.s32.totalorder %s375, %s377
      %p381 = scmp.eq.s32.totalorder %s42, 0
      %p382 = por %p380, %p381
      %p383 = scmp.ne.s32.totalorder %s375, %s377
      %p384 = scmp.eq.s32.totalorder %s47, 1
      %p385 = por %p383, %p384
      %p386 = scmp.ne.s32.totalorder %s377, %s378
      %p387 = scmp.eq.s32.totalorder %s47, 0
      %p388 = por %p386, %p387
      %p389 = scmp.ne.s32.totalorder %s377, %s378
      %p390 = scmp.eq.s32.totalorder %s48, 1
      %p391 = por %p389, %p390
      %p393 = scmp.ne.s32.totalorder %s378, %s392
      %p394 = scmp.eq.s32.totalorder %s48, 0
      %p395 = por %p393, %p394
      %s397 = sadd.s32 %s396, 1
      %p400 = scmp.eq.s32.totalorder %s42, 1
      %p401 = scmp.ne.s32.totalorder %s396, %s398
      %p402 = scmp.eq.s32.totalorder %s42, 0
      %p403 = por %p401, %p402
      %p404 = scmp.ne.s32.totalorder %s396, %s398
      %p405 = scmp.eq.s32.totalorder %s47, 1
      %p406 = por %p404, %p405
      %p407 = scmp.ne.s32.totalorder %s398, %s399
      %p408 = scmp.eq.s32.totalorder %s47, 0
      %p409 = por %p407, %p408
      %p410 = scmp.ne.s32.totalorder %s398, %s399
      %p411 = scmp.eq.s32.totalorder %s48, 1
      %p412 = por %p410, %p411
      %p414 = scmp.ne.s32.totalorder %s399, %s413
      %p415 = scmp.eq.s32.totalorder %s48, 0
      %p416 = por %p414, %p415
      %s418 = sadd.s32 %s417, 1
      %p421 = scmp.eq.s32.totalorder %s42, 1
      %p422 = scmp.ne.s32.totalorder %s417, %s419
      %p423 = scmp.eq.s32.totalorder %s42, 0
      %p424 = por %p422, %p423
      %p425 = scmp.ne.s32.totalorder %s417, %s419
      %p426 = scmp.eq.s32.totalorder %s47, 1
      %p427 = por %p425, %p426
      %p428 = scmp.ne.s32.totalorder %s419, %s420
      %p429 = scmp.eq.s32.totalorder %s47, 0
      %p430 = por %p428, %p429
      %p431 = scmp.ne.s32.totalorder %s419, %s420
      %p432 = scmp.eq.s32.totalorder %s48, 1
      %p433 = por %p431, %p432
      %p435 = scmp.ne.s32.totalorder %s420, %s434
      %p436 = scmp.eq.s32.totalorder %s48, 0
      %p437 = por %p435, %p436
      %s439 = sadd.s32 %s438, 1
      %p442 = scmp.eq.s32.totalorder %s42, 1
      %p443 = scmp.ne.s32.totalorder %s438, %s440
      %p444 = scmp.eq.s32.totalorder %s42, 0
      %p445 = por %p443, %p444
      %p446 = scmp.ne.s32.totalorder %s438, %s440
      %p447 = scmp.eq.s32.totalorder %s47, 1
      %p448 = por %p446, %p447
      %p449 = scmp.ne.s32.totalorder %s440, %s441
      %p450 = scmp.eq.s32.totalorder %s47, 0
      %p451 = por %p449, %p450
      %p452 = scmp.ne.s32.totalorder %s440, %s441
      %p453 = scmp.eq.s32.totalorder %s48, 1
      %p454 = por %p452, %p453
      %p456 = scmp.ne.s32.totalorder %s441, %s455
      %p457 = scmp.eq.s32.totalorder %s48, 0
      %p458 = por %p456, %p457
      %s460 = sadd.s32 %s459, 1
      %p463 = scmp.eq.s32.totalorder %s42, 1
      %p464 = scmp.ne.s32.totalorder %s459, %s461
      %p465 = scmp.eq.s32.totalorder %s42, 0
      %p466 = por %p464, %p465
      %p467 = scmp.ne.s32.totalorder %s459, %s461
      %p468 = scmp.eq.s32.totalorder %s47, 1
      %p469 = por %p467, %p468
      %p470 = scmp.ne.s32.totalorder %s461, %s462
      %p471 = scmp.eq.s32.totalorder %s47, 0
      %p472 = por %p470, %p471
      %p473 = scmp.ne.s32.totalorder %s461, %s462
      %p474 = scmp.eq.s32.totalorder %s48, 1
      %p475 = por %p473, %p474
      %p477 = scmp.ne.s32.totalorder %s462, %s476
      %p478 = scmp.eq.s32.totalorder %s48, 0
      %p479 = por %p477, %p478
      %s480 = ssub.s32 %s49, %s61
      %s481 = ssub.s32 %s50, %s57
      %s482 = sor.u32 %s480, %s481
      %p483 = scmp.eq.s32.totalorder %s482, 0
      %s485 = sadd.s32 %s484, 1
      %s486 = scalar_select %p483, %s484, %s485
      %p489 = pneg %p483
      %p490 = scmp.eq.s32.totalorder %s42, 1
      %p491 = por %p489, %p490
      %p492 = scmp.ne.s32.totalorder %s484, %s487
      %p493 = scmp.eq.s32.totalorder %s42, 0
      %p494 = por %p492, %p493
      %p495 = scmp.ne.s32.totalorder %s484, %s487
      %p496 = scmp.eq.s32.totalorder %s47, 1
      %p497 = por %p495, %p496
      %p498 = scmp.ne.s32.totalorder %s487, %s488
      %p499 = scmp.eq.s32.totalorder %s47, 0
      %p500 = por %p498, %p499
      %p501 = scmp.ne.s32.totalorder %s487, %s488
      %p502 = scmp.eq.s32.totalorder %s48, 1
      %p503 = por %p501, %p502
      %p505 = scmp.ne.s32.totalorder %s488, %s504
      %p506 = scmp.eq.s32.totalorder %s48, 0
      %p507 = por %p505, %p506
      %s508 = ssub.s32 %s49, %s61
      %s509 = ssub.s32 %s50, %s57
      %s510 = sor.u32 %s508, %s509
      %p511 = scmp.eq.s32.totalorder %s510, 0
      %s513 = sadd.s32 %s512, 1
      %s514 = scalar_select %p511, %s512, %s513
      %p517 = pneg %p511
      %p518 = scmp.eq.s32.totalorder %s42, 1
      %p519 = por %p517, %p518
      %p520 = scmp.ne.s32.totalorder %s512, %s515
      %p521 = scmp.eq.s32.totalorder %s42, 0
      %p522 = por %p520, %p521
      %p523 = scmp.ne.s32.totalorder %s512, %s515
      %p524 = scmp.eq.s32.totalorder %s47, 1
      %p525 = por %p523, %p524
      %p526 = scmp.ne.s32.totalorder %s515, %s516
      %p527 = scmp.eq.s32.totalorder %s47, 0
      %p528 = por %p526, %p527
      %p529 = scmp.ne.s32.totalorder %s515, %s516
      %p530 = scmp.eq.s32.totalorder %s48, 1
      %p531 = por %p529, %p530
      %p533 = scmp.ne.s32.totalorder %s516, %s532
      %p534 = scmp.eq.s32.totalorder %s48, 0
      %p535 = por %p533, %p534
      %p536 = scmp.le.s32.totalorder 1, %s42
      %p537 = scmp.lt.s32.totalorder %s42, 3
      %p538 = pnand %p536, %p537
      %p539 = pneg %p538
      // Predicated region
      $region9: #{tpu_custom_call.1} parent=5 // pred_check
        _
      $region10: #{tpu_custom_call.1} parent=5 // pred_check_branch
        %541 = sbr.rel (%p538) target = $region12
      $region11: #{tpu_custom_call.1} parent=5 // pred_region
        %s542 = ssub.s32 %s42, 1
        // Predicated region
        $region13: #{tpu_custom_call.1} parent=11 // pred_check
          %p543 = pneg %p157
        $region14: #{tpu_custom_call.1} parent=11 // pred_check_branch
          %545 = sbr.rel (%p543) target = $region16
        $region15: #{tpu_custom_call.1} parent=11 // pred_region
          %s547 = ssub.s32 2048, 2048
          %548 = vsyncadd [#allocation9], %s547
          %s549 = sshll.u32 [#allocation8], 4
          %s550 = int_to_ptr.vmem [resolvable:$true] %s549
          %555 = dma.hbm_to_vmem [thread:$0]  %s3, 2048, %s550, [#allocation9], 128, 128, 8
        $region16: #{tpu_custom_call.1} parent=11 // pred_fallthru
          _
        // Predicated region
        $region17: #{tpu_custom_call.1} parent=11 // pred_check
          %p556 = pneg %p178
        $region18: #{tpu_custom_call.1} parent=11 // pred_check_branch
          %558 = sbr.rel (%p556) target = $region20
        $region19: #{tpu_custom_call.1} parent=11 // pred_region
          %s560 = ssub.s32 2048, 2048
          %561 = vsyncadd [#allocation9], %s560
          %s562 = sshll.u32 [#allocation10], 4
          %s563 = int_to_ptr.vmem [resolvable:$true] %s562
          %568 = dma.hbm_to_vmem [thread:$0]  %s4, 2048, %s563, [#allocation9], 128, 128, 8
        $region20: #{tpu_custom_call.1} parent=11 // pred_fallthru
          _
        // Predicated region
        $region21: #{tpu_custom_call.1} parent=11 // pred_check
          %p569 = pneg %p199
        $region22: #{tpu_custom_call.1} parent=11 // pred_check_branch
          %571 = sbr.rel (%p569) target = $region24
        $region23: #{tpu_custom_call.1} parent=11 // pred_region
          %s573 = ssub.s32 2048, 2048
          %574 = vsyncadd [#allocation12], %s573
          %s575 = sshll.u32 [#allocation11], 4
          %s576 = int_to_ptr.vmem [resolvable:$true] %s575
          %581 = dma.hbm_to_vmem [thread:$0]  %s5, 2048, %s576, [#allocation12], 128, 128, 8
        $region24: #{tpu_custom_call.1} parent=11 // pred_fallthru
          _
        // Predicated region
        $region25: #{tpu_custom_call.1} parent=11 // pred_check
          %p582 = pneg %p220
        $region26: #{tpu_custom_call.1} parent=11 // pred_check_branch
          %584 = sbr.rel (%p582) target = $region28
        $region27: #{tpu_custom_call.1} parent=11 // pred_region
          _
        $region28: #{tpu_custom_call.1} parent=11 // pred_fallthru
          _
        // Predicated region
        $region29: #{tpu_custom_call.1} parent=11 // pred_check
          %p585 = pneg %p241
        $region30: #{tpu_custom_call.1} parent=11 // pred_check_branch
          %587 = sbr.rel (%p585) target = $region32
        $region31: #{tpu_custom_call.1} parent=11 // pred_region
          _
        $region32: #{tpu_custom_call.1} parent=11 // pred_fallthru
          _
        // Predicated region
        $region33: #{tpu_custom_call.1} parent=11 // pred_check
          %p588 = pneg %p262
        $region34: #{tpu_custom_call.1} parent=11 // pred_check_branch
          %590 = sbr.rel (%p588) target = $region36
        $region35: #{tpu_custom_call.1} parent=11 // pred_region
          _
        $region36: #{tpu_custom_call.1} parent=11 // pred_fallthru
          _
        // Predicated region
        $region37: #{tpu_custom_call.1} parent=11 // pred_check
          %p591 = pneg %p283
        $region38: #{tpu_custom_call.1} parent=11 // pred_check_branch
          %593 = sbr.rel (%p591) target = $region40
        $region39: #{tpu_custom_call.1} parent=11 // pred_region
          %s595 = ssub.s32 2048, 2048
          %596 = vsyncadd [#allocation12], %s595
          %s597 = sshll.u32 [#allocation13], 4
          %s598 = int_to_ptr.vmem [resolvable:$true] %s597
          %603 = dma.hbm_to_vmem [thread:$0]  %s9, 2048, %s598, [#allocation12], 128, 128, 8
        $region40: #{tpu_custom_call.1} parent=11 // pred_fallthru
          _
        // Predicated region
        $region41: #{tpu_custom_call.1} parent=11 // pred_check
          %p604 = pneg %p304
        $region42: #{tpu_custom_call.1} parent=11 // pred_check_branch
          %606 = sbr.rel (%p604) target = $region44
        $region43: #{tpu_custom_call.1} parent=11 // pred_region
          _
        $region44: #{tpu_custom_call.1} parent=11 // pred_fallthru
          _
        // Predicated region
        $region45: #{tpu_custom_call.1} parent=11 // pred_check
          %p607 = pneg %p325
        $region46: #{tpu_custom_call.1} parent=11 // pred_check_branch
          %609 = sbr.rel (%p607) target = $region48
        $region47: #{tpu_custom_call.1} parent=11 // pred_region
          _
        $region48: #{tpu_custom_call.1} parent=11 // pred_fallthru
          _
        // Predicated region
        $region49: #{tpu_custom_call.1} parent=11 // pred_check
          %p610 = pneg %p346
        $region50: #{tpu_custom_call.1} parent=11 // pred_check_branch
          %612 = sbr.rel (%p610) target = $region52
        $region51: #{tpu_custom_call.1} parent=11 // pred_region
          _
        $region52: #{tpu_custom_call.1} parent=11 // pred_fallthru
          _
        // Predicated region
        $region53: #{tpu_custom_call.1} parent=11 // pred_check
          %p613 = pneg %p367
        $region54: #{tpu_custom_call.1} parent=11 // pred_check_branch
          %615 = sbr.rel (%p613) target = $region56
        $region55: #{tpu_custom_call.1} parent=11 // pred_region
          %s617 = ssub.s32 4096, 4096
          %618 = vsyncadd [#allocation15], %s617
          %s619 = sshll.u32 [#allocation14], 4
          %s620 = int_to_ptr.vmem [resolvable:$true] %s619
          %625 = dma.hbm_to_vmem [thread:$0]  %s13, 4096, %s620, [#allocation15], 256, 256, 16
        $region56: #{tpu_custom_call.1} parent=11 // pred_fallthru
          _
        // Predicated region
        $region57: #{tpu_custom_call.1} parent=11 // pred_check
          %p626 = pneg %p388
        $region58: #{tpu_custom_call.1} parent=11 // pred_check_branch
          %628 = sbr.rel (%p626) target = $region60
        $region59: #{tpu_custom_call.1} parent=11 // pred_region
          _
        $region60: #{tpu_custom_call.1} parent=11 // pred_fallthru
          _
        // Predicated region
        $region61: #{tpu_custom_call.1} parent=11 // pred_check
          %p629 = pneg %p409
        $region62: #{tpu_custom_call.1} parent=11 // pred_check_branch
          %631 = sbr.rel (%p629) target = $region64
        $region63: #{tpu_custom_call.1} parent=11 // pred_region
          %s633 = ssub.s32 4096, 4096
          %634 = vsyncadd [#allocation15], %s633
          %s635 = sshll.u32 [#allocation16], 4
          %s636 = int_to_ptr.vmem [resolvable:$true] %s635
          %641 = dma.hbm_to_vmem [thread:$0]  %s15, 4096, %s636, [#allocation15], 128, 128, 8
        $region64: #{tpu_custom_call.1} parent=11 // pred_fallthru
          _
        // Predicated region
        $region65: #{tpu_custom_call.1} parent=11 // pred_check
          %p642 = pneg %p430
        $region66: #{tpu_custom_call.1} parent=11 // pred_check_branch
          %644 = sbr.rel (%p642) target = $region68
        $region67: #{tpu_custom_call.1} parent=11 // pred_region
          _
        $region68: #{tpu_custom_call.1} parent=11 // pred_fallthru
          _
        // Predicated region
        $region69: #{tpu_custom_call.1} parent=11 // pred_check
          %p645 = pneg %p451
        $region70: #{tpu_custom_call.1} parent=11 // pred_check_branch
          %647 = sbr.rel (%p645) target = $region72
        $region71: #{tpu_custom_call.1} parent=11 // pred_region
          _
        $region72: #{tpu_custom_call.1} parent=11 // pred_fallthru
          _
        // Predicated region
        $region73: #{tpu_custom_call.1} parent=11 // pred_check
          %p648 = pneg %p472
        $region74: #{tpu_custom_call.1} parent=11 // pred_check_branch
          %650 = sbr.rel (%p648) target = $region76
        $region75: #{tpu_custom_call.1} parent=11 // pred_region
          _
        $region76: #{tpu_custom_call.1} parent=11 // pred_fallthru
          _
      $region12: #{tpu_custom_call.1} parent=5 // pred_fallthru
        _
      %p651 = scmp.lt.s32.totalorder %s42, 2
      // Predicated region
      $region77: #{tpu_custom_call.1} parent=5 // pred_check
        %p652 = pneg %p651
      $region78: #{tpu_custom_call.1} parent=5 // pred_check_branch
        %654 = sbr.rel (%p652) target = $region80
      $region79: #{tpu_custom_call.1} parent=5 // pred_region
        // Predicated region
        $region81: #{tpu_custom_call.1} parent=79 // pred_check
          %p655 = pneg %p76
        $region82: #{tpu_custom_call.1} parent=79 // pred_check_branch
          %657 = sbr.rel (%p655) target = $region84
        $region83: #{tpu_custom_call.1} parent=79 // pred_region
          %s658 = sand.u32 %s66, 1
          %s659 = scalar_lea.sflag [#allocation3], %s658
          %s660 = sand.u32 %s66, 1
          %s661 = smul.addr %s660, 16
          %s662 = scalar_lea.vmem [#allocation2], %s661
          %s663 = smul.u32 2, %s50
          %s665 = ssub.s32 256, 256
          %666 = vsyncadd %s659, %s665
          %s667 = smul.addr %s49, 2
          %s668 = sadd.s32 %s663, %s667
          %s669 = smul.addr %s668, 128
          %s670 = scalar_lea.hbm %s0, %s669
          %s671 = sshll.u32 %s662, 4
          %s672 = int_to_ptr.vmem [resolvable:$true] %s671
          %677 = dma.hbm_to_vmem [thread:$0]  %s670, 256, %s672, %s659, 128, 128, 8
        $region84: #{tpu_custom_call.1} parent=79 // pred_fallthru
          _
        // Predicated region
        $region85: #{tpu_custom_call.1} parent=79 // pred_check
          %p678 = pneg %p104
        $region86: #{tpu_custom_call.1} parent=79 // pred_check_branch
          %680 = sbr.rel (%p678) target = $region88
        $region87: #{tpu_custom_call.1} parent=79 // pred_region
          %s681 = sand.u32 %s42, 1
          %s682 = scalar_lea.sflag [#allocation6], %s681
          %s683 = sand.u32 %s94, 1
          %s684 = smul.addr %s683, 16
          %s685 = scalar_lea.vmem [#allocation5], %s684
          %s686 = smul.u32 2, %s50
          %s688 = ssub.s32 256, 256
          %689 = vsyncadd %s682, %s688
          %s690 = smul.addr %s49, 2
          %s691 = sadd.s32 %s686, %s690
          %s692 = smul.addr %s691, 128
          %s693 = scalar_lea.hbm %s1, %s692
          %s694 = sshll.u32 %s685, 4
          %s695 = int_to_ptr.vmem [resolvable:$true] %s694
          %700 = dma.hbm_to_vmem [thread:$0]  %s693, 256, %s695, %s682, 128, 128, 8
        $region88: #{tpu_custom_call.1} parent=79 // pred_fallthru
          _
        // Predicated region
        $region89: #{tpu_custom_call.1} parent=79 // pred_check
          %p701 = pneg %p130
        $region90: #{tpu_custom_call.1} parent=79 // pred_check_branch
          %703 = sbr.rel (%p701) target = $region92
        $region91: #{tpu_custom_call.1} parent=79 // pred_region
          %s704 = sand.u32 %s42, 1
          %s705 = scalar_lea.sflag [#allocation6], %s704
          %s706 = sand.u32 %s120, 1
          %s707 = smul.addr %s706, 16
          %s708 = scalar_lea.vmem [#allocation7], %s707
          %s710 = ssub.s32 256, 256
          %711 = vsyncadd %s705, %s710
          %s712 = smul.addr %s49, 2
          %s713 = smul.addr %s712, 128
          %s714 = scalar_lea.hbm %s2, %s713
          %s715 = sshll.u32 %s708, 4
          %s716 = int_to_ptr.vmem [resolvable:$true] %s715
          %721 = dma.hbm_to_vmem [thread:$0]  %s714, 256, %s716, %s705, 128, 128, 8
        $region92: #{tpu_custom_call.1} parent=79 // pred_fallthru
          _
      $region80: #{tpu_custom_call.1} parent=5 // pred_fallthru
        _
      %p722 = scmp.le.s32.totalorder 1, %s42
      %p723 = scmp.lt.s32.totalorder %s42, 3
      %p724 = pnand %p722, %p723
      %p725 = pneg %p724
      // Predicated region
      $region93: #{tpu_custom_call.1} parent=5 // pred_check
        _
      $region94: #{tpu_custom_call.1} parent=5 // pred_check_branch
        %727 = sbr.rel (%p724) target = $region96
      $region95: #{tpu_custom_call.1} parent=5 // pred_region
        %s728 = ssub.s32 %s42, 1
        %s729 = sand.u32 %s69, 1
        %s730 = scalar_lea.sflag [#allocation3], %s729
        %s731 = sand.u32 %s69, 1
        %s732 = smul.addr %s731, 16
        %s733 = scalar_lea.vmem [#allocation2], %s732
        // Predicated region
        $region97: #{tpu_custom_call.1} parent=95 // pred_check
          %p734 = pneg %p82
        $region98: #{tpu_custom_call.1} parent=95 // pred_check_branch
          %736 = sbr.rel (%p734) target = $region100
        $region99: #{tpu_custom_call.1} parent=95 // pred_region
          %737 = dma.done %s730, 256
        $region100: #{tpu_custom_call.1} parent=95 // pred_fallthru
          _
        %s738 = sand.u32 %s47, 1
        %s739 = scalar_lea.sflag [#allocation6], %s738
        %s740 = sand.u32 %s97, 1
        %s741 = smul.addr %s740, 16
        %s742 = scalar_lea.vmem [#allocation5], %s741
        // Predicated region
        $region101: #{tpu_custom_call.1} parent=95 // pred_check
          %p743 = pneg %p110
        $region102: #{tpu_custom_call.1} parent=95 // pred_check_branch
          %745 = sbr.rel (%p743) target = $region104
        $region103: #{tpu_custom_call.1} parent=95 // pred_region
          %746 = dma.done %s739, 256
        $region104: #{tpu_custom_call.1} parent=95 // pred_fallthru
          _
        %s747 = sand.u32 %s47, 1
        %s748 = scalar_lea.sflag [#allocation6], %s747
        %s749 = sand.u32 %s123, 1
        %s750 = smul.addr %s749, 16
        %s751 = scalar_lea.vmem [#allocation7], %s750
        // Predicated region
        $region105: #{tpu_custom_call.1} parent=95 // pred_check
          %p752 = pneg %p136
        $region106: #{tpu_custom_call.1} parent=95 // pred_check_branch
          %754 = sbr.rel (%p752) target = $region108
        $region107: #{tpu_custom_call.1} parent=95 // pred_region
          %755 = dma.done %s748, 256
        $region108: #{tpu_custom_call.1} parent=95 // pred_fallthru
          _
        // Predicated region
        $region109: #{tpu_custom_call.1} parent=95 // pred_check
          %p756 = pneg %p157
        $region110: #{tpu_custom_call.1} parent=95 // pred_check_branch
          %758 = sbr.rel (%p756) target = $region112
        $region111: #{tpu_custom_call.1} parent=95 // pred_region
          %759 = dma.done [#allocation9], 2048
        $region112: #{tpu_custom_call.1} parent=95 // pred_fallthru
          _
        // Predicated region
        $region113: #{tpu_custom_call.1} parent=95 // pred_check
          %p760 = pneg %p178
        $region114: #{tpu_custom_call.1} parent=95 // pred_check_branch
          %762 = sbr.rel (%p760) target = $region116
        $region115: #{tpu_custom_call.1} parent=95 // pred_region
          %763 = dma.done [#allocation9], 2048
        $region116: #{tpu_custom_call.1} parent=95 // pred_fallthru
          _
        // Predicated region
        $region117: #{tpu_custom_call.1} parent=95 // pred_check
          %p764 = pneg %p199
        $region118: #{tpu_custom_call.1} parent=95 // pred_check_branch
          %766 = sbr.rel (%p764) target = $region120
        $region119: #{tpu_custom_call.1} parent=95 // pred_region
          %767 = dma.done [#allocation12], 2048
        $region120: #{tpu_custom_call.1} parent=95 // pred_fallthru
          _
        // Predicated region
        $region121: #{tpu_custom_call.1} parent=95 // pred_check
          %p768 = pneg %p283
        $region122: #{tpu_custom_call.1} parent=95 // pred_check_branch
          %770 = sbr.rel (%p768) target = $region124
        $region123: #{tpu_custom_call.1} parent=95 // pred_region
          %771 = dma.done [#allocation12], 2048
        $region124: #{tpu_custom_call.1} parent=95 // pred_fallthru
          _
        // Predicated region
        $region125: #{tpu_custom_call.1} parent=95 // pred_check
          %p772 = pneg %p367
        $region126: #{tpu_custom_call.1} parent=95 // pred_check_branch
          %774 = sbr.rel (%p772) target = $region128
        $region127: #{tpu_custom_call.1} parent=95 // pred_region
          %775 = dma.done [#allocation15], 4096
        $region128: #{tpu_custom_call.1} parent=95 // pred_fallthru
          _
        // Predicated region
        $region129: #{tpu_custom_call.1} parent=95 // pred_check
          %p776 = pneg %p409
        $region130: #{tpu_custom_call.1} parent=95 // pred_check_branch
          %778 = sbr.rel (%p776) target = $region132
        $region131: #{tpu_custom_call.1} parent=95 // pred_region
          %779 = dma.done [#allocation15], 4096
        $region132: #{tpu_custom_call.1} parent=95 // pred_fallthru
          _
        %s780 = sand.u32 %s69, 1
        %s781 = scalar_lea.sflag [#allocation3], %s780
        %s782 = sand.u32 %s69, 1
        %s783 = smul.addr %s782, 16
        %s784 = scalar_lea.vmem [#allocation2], %s783
        %p785 = pneg %p82
        %p786 = pneg %p79
        %s787 = sand.u32 %s47, 1
        %s788 = scalar_lea.sflag [#allocation6], %s787
        %s789 = sand.u32 %s97, 1
        %s790 = smul.addr %s789, 16
        %s791 = scalar_lea.vmem [#allocation5], %s790
        %p792 = pneg %p110
        %p793 = pneg %p107
        %s794 = sand.u32 %s47, 1
        %s795 = scalar_lea.sflag [#allocation6], %s794
        %s796 = sand.u32 %s123, 1
        %s797 = smul.addr %s796, 16
        %s798 = scalar_lea.vmem [#allocation7], %s797
        %p799 = pneg %p136
        %p800 = pneg %p133
        %p801 = pneg %p157
        %p802 = pneg %p154
        %p803 = pneg %p178
        %p804 = pneg %p175
        %p805 = pneg %p199
        %p806 = pneg %p196
        %p807 = pneg %p220
        %p808 = pneg %p217
        %p809 = pneg %p241
        %p810 = pneg %p238
        %p811 = pneg %p262
        %p812 = pneg %p259
        %p813 = pneg %p283
        %p814 = pneg %p280
        %p815 = pneg %p304
        %p816 = pneg %p301
        %p817 = pneg %p325
        %p818 = pneg %p322
        %p819 = pneg %p346
        %p820 = pneg %p343
        %p821 = pneg %p367
        %p822 = pneg %p364
        %p823 = pneg %p388
        %p824 = pneg %p385
        %p825 = pneg %p409
        %p826 = pneg %p406
        %p827 = pneg %p430
        %p828 = pneg %p427
        %p829 = pneg %p451
        %p830 = pneg %p448
        %p831 = pneg %p472
        %p832 = pneg %p469
        %p833 = pneg %p500
        %p834 = pneg %p497
        %s835 = sand.u32 %s487, 1
        %s836 = scalar_lea.sflag [#allocation4], %s835
        %s837 = sand.u32 %s487, 1
        %s838 = smul.addr %s837, 16
        %s839 = scalar_lea.vmem [#allocation17], %s838
        %p840 = pneg %p528
        %p841 = pneg %p525
        %s842 = sand.u32 %s515, 1
        %s843 = scalar_lea.sflag [#allocation19], %s842
        %s844 = sand.u32 %s515, 1
        %s845 = smul.addr %s844, 16
        %s846 = scalar_lea.vmem [#allocation18], %s845
        %s847 = smul.u32 2, %s52
        %s848 = smul.u32 2, %s52
        %s849 = smul.u32 2, %s52
        %s850 = smul.u32 2, %s52
        %v851 = vld [vmem:[%s733] sm:$0xff]
        %v852 = vld [vmem:[%s733 + $0x8] sm:$0xff]
        %v853 = vld [vmem:[%s742] sm:$0xff]
        %v854 = vld [vmem:[%s742 + $0x8] sm:$0xff]
        %v855 = vld [vmem:[%s751] sm:$0xff]
        %v856 = vld [vmem:[%s751 + $0x8] sm:$0xff]
        %v857 = vld [vmem:[#allocation8] sm:$0xff]
        %v858 = vld [vmem:[#allocation8 + $0x8] sm:$0xff]
        %v859 = vld [vmem:[#allocation8 + $0x10] sm:$0xff]
        %v860 = vld [vmem:[#allocation8 + $0x18] sm:$0xff]
        %v861 = vld [vmem:[#allocation8 + $0x20] sm:$0xff]
        %v862 = vld [vmem:[#allocation8 + $0x28] sm:$0xff]
        %v863 = vld [vmem:[#allocation8 + $0x30] sm:$0xff]
        %v864 = vld [vmem:[#allocation8 + $0x38] sm:$0xff]
        %v865 = vld [vmem:[#allocation8 + $0x40] sm:$0xff]
        %v866 = vld [vmem:[#allocation8 + $0x48] sm:$0xff]
        %v867 = vld [vmem:[#allocation8 + $0x50] sm:$0xff]
        %v868 = vld [vmem:[#allocation8 + $0x58] sm:$0xff]
        %v869 = vld [vmem:[#allocation8 + $0x60] sm:$0xff]
        %v870 = vld [vmem:[#allocation8 + $0x68] sm:$0xff]
        %v871 = vld [vmem:[#allocation8 + $0x70] sm:$0xff]
        %v872 = vld [vmem:[#allocation8 + $0x78] sm:$0xff]
        %v873 = vld [vmem:[%s6] sm:$0x1]
        %v875 = vlaneseq
        %v876 = vshrl.u32 %v875, 7
        %v877 = vsub.s32 0, %v876
        %v878 = vrot.slane %v873, %v877
        %880 = vmatprep.subr.mxu0 0.0
        %881 = vmatpush1.msra.mxu0 %v872
        %882 = vmatprep.subr.mxu0 0.0
        %883 = vmatpush1.msra.mxu0 %v871
        %884 = vmatprep.subr.mxu0 0.0
        %885 = vmatpush1.msra.mxu0 %v870
        %886 = vmatprep.subr.mxu0 0.0
        %887 = vmatpush1.msra.mxu0 %v869
        %888 = vmatprep.subr.mxu0 0.0
        %889 = vmatpush1.msra.mxu0 %v868
        %890 = vmatprep.subr.mxu0 0.0
        %891 = vmatpush1.msra.mxu0 %v867
        %892 = vmatprep.subr.mxu0 0.0
        %893 = vmatpush1.msra.mxu0 %v866
        %894 = vmatprep.subr.mxu0 0.0
        %895 = vmatpush1.msra.mxu0 %v865
        %896 = vmatprep.subr.mxu0 0.0
        %897 = vmatpush1.msra.mxu0 %v864
        %898 = vmatprep.subr.mxu0 0.0
        %899 = vmatpush1.msra.mxu0 %v863
        %900 = vmatprep.subr.mxu0 0.0
        %901 = vmatpush1.msra.mxu0 %v862
        %902 = vmatprep.subr.mxu0 0.0
        %903 = vmatpush1.msra.mxu0 %v861
        %904 = vmatprep.subr.mxu0 0.0
        %905 = vmatpush1.msra.mxu0 %v860
        %906 = vmatprep.subr.mxu0 0.0
        %907 = vmatpush1.msra.mxu0 %v859
        %908 = vmatprep.subr.mxu0 0.0
        %909 = vmatpush1.msra.mxu0 %v858
        %910 = vmatprep.subr.mxu0 0.0
        %911 = vmatpush1.msra.mxu0 %v857
        %912 = vmatprep.subr.mxu0 0.0
        %913 = vmatpush2.msra.mxu0 0.0
        %914 = vmatprep.subr.mxu0 0.0
        %915 = vmatpush2.msra.mxu0 0.0
        %916 = vmatprep.subr.mxu0 0.0
        %917 = vmatpush2.msra.mxu0 0.0
        %918 = vmatprep.subr.mxu0 0.0
        %919 = vmatpush2.msra.mxu0 0.0
        %920 = vmatprep.subr.mxu0 0.0
        %921 = vmatpush2.msra.mxu0 0.0
        %922 = vmatprep.subr.mxu0 0.0
        %923 = vmatpush2.msra.mxu0 0.0
        %924 = vmatprep.subr.mxu0 0.0
        %925 = vmatpush2.msra.mxu0 0.0
        %926 = vmatprep.subr.mxu0 0.0
        %927 = vmatpush2.msra.mxu0 0.0
        %928 = vmatprep.subr.mxu0 0.0
        %929 = vmatpush2.msra.mxu0 0.0
        %930 = vmatprep.subr.mxu0 0.0
        %931 = vmatpush2.msra.mxu0 0.0
        %932 = vmatprep.subr.mxu0 0.0
        %933 = vmatpush2.msra.mxu0 0.0
        %934 = vmatprep.subr.mxu0 0.0
        %935 = vmatpush2.msra.mxu0 0.0
        %936 = vmatprep.subr.mxu0 0.0
        %937 = vmatpush2.msra.mxu0 0.0
        %938 = vmatprep.subr.mxu0 0.0
        %939 = vmatpush2.msra.mxu0 0.0
        %940 = vmatprep.subr.mxu0 0.0
        %941 = vmatpush2.msra.mxu0 0.0
        %942 = vmatprep.subr.mxu0 0.0
        %943 = vmatpush2.msra.mxu0 0.0
        %944 = vmatprep.mubr.f32.mxu0 0.0
        %945 = vmatmul.mubr.f32.gmra.mxu0 %v853
        %v946 = vpop.f32.mrf.mxu0
        %v947 = vadd.f32 %v878, %v946
        %v948 = vpop.f32.mrf.mxu0
        %949 = vmatprep.mubr.f32.mxu0 0.0
        %950 = vmatmul.mubr.f32.gmra.mxu0 %v854
        %v951 = vpop.f32.mrf.mxu0
        %v952 = vadd.f32 %v878, %v951
        %v953 = vpop.f32.mrf.mxu0
        %954 = vdwg.mxu0
        %v955 = vld [vmem:[#allocation10] sm:$0xff]
        %v956 = vld [vmem:[#allocation10 + $0x8] sm:$0xff]
        %v957 = vld [vmem:[#allocation10 + $0x10] sm:$0xff]
        %v958 = vld [vmem:[#allocation10 + $0x18] sm:$0xff]
        %v959 = vld [vmem:[#allocation10 + $0x20] sm:$0xff]
        %v960 = vld [vmem:[#allocation10 + $0x28] sm:$0xff]
        %v961 = vld [vmem:[#allocation10 + $0x30] sm:$0xff]
        %v962 = vld [vmem:[#allocation10 + $0x38] sm:$0xff]
        %v963 = vld [vmem:[#allocation10 + $0x40] sm:$0xff]
        %v964 = vld [vmem:[#allocation10 + $0x48] sm:$0xff]
        %v965 = vld [vmem:[#allocation10 + $0x50] sm:$0xff]
        %v966 = vld [vmem:[#allocation10 + $0x58] sm:$0xff]
        %v967 = vld [vmem:[#allocation10 + $0x60] sm:$0xff]
        %v968 = vld [vmem:[#allocation10 + $0x68] sm:$0xff]
        %v969 = vld [vmem:[#allocation10 + $0x70] sm:$0xff]
        %v970 = vld [vmem:[#allocation10 + $0x78] sm:$0xff]
        %v971 = vld [vmem:[%s7] sm:$0x1]
        %v973 = vlaneseq
        %v974 = vshrl.u32 %v973, 7
        %v975 = vsub.s32 0, %v974
        %v976 = vrot.slane %v971, %v975
        %978 = vmatprep.subr.mxu0 0.0
        %979 = vmatpush1.msra.mxu0 %v970
        %980 = vmatprep.subr.mxu0 0.0
        %981 = vmatpush1.msra.mxu0 %v969
        %982 = vmatprep.subr.mxu0 0.0
        %983 = vmatpush1.msra.mxu0 %v968
        %984 = vmatprep.subr.mxu0 0.0
        %985 = vmatpush1.msra.mxu0 %v967
        %986 = vmatprep.subr.mxu0 0.0
        %987 = vmatpush1.msra.mxu0 %v966
        %988 = vmatprep.subr.mxu0 0.0
        %989 = vmatpush1.msra.mxu0 %v965
        %990 = vmatprep.subr.mxu0 0.0
        %991 = vmatpush1.msra.mxu0 %v964
        %992 = vmatprep.subr.mxu0 0.0
        %993 = vmatpush1.msra.mxu0 %v963
        %994 = vmatprep.subr.mxu0 0.0
        %995 = vmatpush1.msra.mxu0 %v962
        %996 = vmatprep.subr.mxu0 0.0
        %997 = vmatpush1.msra.mxu0 %v961
        %998 = vmatprep.subr.mxu0 0.0
        %999 = vmatpush1.msra.mxu0 %v960
        %1000 = vmatprep.subr.mxu0 0.0
        %1001 = vmatpush1.msra.mxu0 %v959
        %1002 = vmatprep.subr.mxu0 0.0
        %1003 = vmatpush1.msra.mxu0 %v958
        %1004 = vmatprep.subr.mxu0 0.0
        %1005 = vmatpush1.msra.mxu0 %v957
        %1006 = vmatprep.subr.mxu0 0.0
        %1007 = vmatpush1.msra.mxu0 %v956
        %1008 = vmatprep.subr.mxu0 0.0
        %1009 = vmatpush1.msra.mxu0 %v955
        %1010 = vmatprep.subr.mxu0 0.0
        %1011 = vmatpush2.msra.mxu0 0.0
        %1012 = vmatprep.subr.mxu0 0.0
        %1013 = vmatpush2.msra.mxu0 0.0
        %1014 = vmatprep.subr.mxu0 0.0
        %1015 = vmatpush2.msra.mxu0 0.0
        %1016 = vmatprep.subr.mxu0 0.0
        %1017 = vmatpush2.msra.mxu0 0.0
        %1018 = vmatprep.subr.mxu0 0.0
        %1019 = vmatpush2.msra.mxu0 0.0
        %1020 = vmatprep.subr.mxu0 0.0
        %1021 = vmatpush2.msra.mxu0 0.0
        %1022 = vmatprep.subr.mxu0 0.0
        %1023 = vmatpush2.msra.mxu0 0.0
        %1024 = vmatprep.subr.mxu0 0.0
        %1025 = vmatpush2.msra.mxu0 0.0
        %1026 = vmatprep.subr.mxu0 0.0
        %1027 = vmatpush2.msra.mxu0 0.0
        %1028 = vmatprep.subr.mxu0 0.0
        %1029 = vmatpush2.msra.mxu0 0.0
        %1030 = vmatprep.subr.mxu0 0.0
        %1031 = vmatpush2.msra.mxu0 0.0
        %1032 = vmatprep.subr.mxu0 0.0
        %1033 = vmatpush2.msra.mxu0 0.0
        %1034 = vmatprep.subr.mxu0 0.0
        %1035 = vmatpush2.msra.mxu0 0.0
        %1036 = vmatprep.subr.mxu0 0.0
        %1037 = vmatpush2.msra.mxu0 0.0
        %1038 = vmatprep.subr.mxu0 0.0
        %1039 = vmatpush2.msra.mxu0 0.0
        %1040 = vmatprep.subr.mxu0 0.0
        %1041 = vmatpush2.msra.mxu0 0.0
        %1042 = vmatprep.mubr.f32.mxu0 0.0
        %1043 = vmatmul.mubr.f32.gmra.mxu0 %v855
        %v1044 = vpop.f32.mrf.mxu0
        %v1045 = vadd.f32 %v976, %v1044
        %v1046 = vpop.f32.mrf.mxu0
        %1047 = vmatprep.mubr.f32.mxu0 0.0
        %1048 = vmatmul.mubr.f32.gmra.mxu0 %v856
        %v1049 = vpop.f32.mrf.mxu0
        %v1050 = vadd.f32 %v976, %v1049
        %v1051 = vpop.f32.mrf.mxu0
        %1052 = vdwg.mxu0
        %v1053 = vld [vmem:[#allocation11] sm:$0xff]
        %v1054 = vld [vmem:[#allocation11 + $0x8] sm:$0xff]
        %v1055 = vld [vmem:[#allocation11 + $0x10] sm:$0xff]
        %v1056 = vld [vmem:[#allocation11 + $0x18] sm:$0xff]
        %v1057 = vld [vmem:[#allocation11 + $0x20] sm:$0xff]
        %v1058 = vld [vmem:[#allocation11 + $0x28] sm:$0xff]
        %v1059 = vld [vmem:[#allocation11 + $0x30] sm:$0xff]
        %v1060 = vld [vmem:[#allocation11 + $0x38] sm:$0xff]
        %v1061 = vld [vmem:[#allocation11 + $0x40] sm:$0xff]
        %v1062 = vld [vmem:[#allocation11 + $0x48] sm:$0xff]
        %v1063 = vld [vmem:[#allocation11 + $0x50] sm:$0xff]
        %v1064 = vld [vmem:[#allocation11 + $0x58] sm:$0xff]
        %v1065 = vld [vmem:[#allocation11 + $0x60] sm:$0xff]
        %v1066 = vld [vmem:[#allocation11 + $0x68] sm:$0xff]
        %v1067 = vld [vmem:[#allocation11 + $0x70] sm:$0xff]
        %v1068 = vld [vmem:[#allocation11 + $0x78] sm:$0xff]
        %v1069 = vld [vmem:[%s8] sm:$0x1]
        %v1071 = vlaneseq
        %v1072 = vshrl.u32 %v1071, 7
        %v1073 = vsub.s32 0, %v1072
        %v1074 = vrot.slane %v1069, %v1073
        %1076 = vmatprep.subr.mxu0 0.0
        %1077 = vmatpush1.msra.mxu0 %v1068
        %1078 = vmatprep.subr.mxu0 0.0
        %1079 = vmatpush1.msra.mxu0 %v1067
        %1080 = vmatprep.subr.mxu0 0.0
        %1081 = vmatpush1.msra.mxu0 %v1066
        %1082 = vmatprep.subr.mxu0 0.0
        %1083 = vmatpush1.msra.mxu0 %v1065
        %1084 = vmatprep.subr.mxu0 0.0
        %1085 = vmatpush1.msra.mxu0 %v1064
        %1086 = vmatprep.subr.mxu0 0.0
        %1087 = vmatpush1.msra.mxu0 %v1063
        %1088 = vmatprep.subr.mxu0 0.0
        %1089 = vmatpush1.msra.mxu0 %v1062
        %1090 = vmatprep.subr.mxu0 0.0
        %1091 = vmatpush1.msra.mxu0 %v1061
        %1092 = vmatprep.subr.mxu0 0.0
        %1093 = vmatpush1.msra.mxu0 %v1060
        %1094 = vmatprep.subr.mxu0 0.0
        %1095 = vmatpush1.msra.mxu0 %v1059
        %1096 = vmatprep.subr.mxu0 0.0
        %1097 = vmatpush1.msra.mxu0 %v1058
        %1098 = vmatprep.subr.mxu0 0.0
        %1099 = vmatpush1.msra.mxu0 %v1057
        %1100 = vmatprep.subr.mxu0 0.0
        %1101 = vmatpush1.msra.mxu0 %v1056
        %1102 = vmatprep.subr.mxu0 0.0
        %1103 = vmatpush1.msra.mxu0 %v1055
        %1104 = vmatprep.subr.mxu0 0.0
        %1105 = vmatpush1.msra.mxu0 %v1054
        %1106 = vmatprep.subr.mxu0 0.0
        %1107 = vmatpush1.msra.mxu0 %v1053
        %1108 = vmatprep.subr.mxu0 0.0
        %1109 = vmatpush2.msra.mxu0 0.0
        %1110 = vmatprep.subr.mxu0 0.0
        %1111 = vmatpush2.msra.mxu0 0.0
        %1112 = vmatprep.subr.mxu0 0.0
        %1113 = vmatpush2.msra.mxu0 0.0
        %1114 = vmatprep.subr.mxu0 0.0
        %1115 = vmatpush2.msra.mxu0 0.0
        %1116 = vmatprep.subr.mxu0 0.0
        %1117 = vmatpush2.msra.mxu0 0.0
        %1118 = vmatprep.subr.mxu0 0.0
        %1119 = vmatpush2.msra.mxu0 0.0
        %1120 = vmatprep.subr.mxu0 0.0
        %1121 = vmatpush2.msra.mxu0 0.0
        %1122 = vmatprep.subr.mxu0 0.0
        %1123 = vmatpush2.msra.mxu0 0.0
        %1124 = vmatprep.subr.mxu0 0.0
        %1125 = vmatpush2.msra.mxu0 0.0
        %1126 = vmatprep.subr.mxu0 0.0
        %1127 = vmatpush2.msra.mxu0 0.0
        %1128 = vmatprep.subr.mxu0 0.0
        %1129 = vmatpush2.msra.mxu0 0.0
        %1130 = vmatprep.subr.mxu0 0.0
        %1131 = vmatpush2.msra.mxu0 0.0
        %1132 = vmatprep.subr.mxu0 0.0
        %1133 = vmatpush2.msra.mxu0 0.0
        %1134 = vmatprep.subr.mxu0 0.0
        %1135 = vmatpush2.msra.mxu0 0.0
        %1136 = vmatprep.subr.mxu0 0.0
        %1137 = vmatpush2.msra.mxu0 0.0
        %1138 = vmatprep.subr.mxu0 0.0
        %1139 = vmatpush2.msra.mxu0 0.0
        %1140 = vmatprep.mubr.f32.mxu0 0.0
        %1141 = vmatmul.mubr.f32.gmra.mxu0 %v855
        %v1142 = vpop.f32.mrf.mxu0
        %v1143 = vadd.f32 %v1074, %v1142
        %v1144 = vpop.f32.mrf.mxu0
        %1145 = vmatprep.mubr.f32.mxu0 0.0
        %1146 = vmatmul.mubr.f32.gmra.mxu0 %v856
        %v1147 = vpop.f32.mrf.mxu0
        %v1148 = vadd.f32 %v1074, %v1147
        %v1149 = vpop.f32.mrf.mxu0
        %1150 = vdwg.mxu0
        %1153 = vrot.lane.b32.xlu0 %v947, 96
        %v1154 = vpop.permute.xlu0 %1153
        %1155 = vrot.lane.b32.xlu0 %v952, 96
        %v1156 = vpop.permute.xlu0 %1155
        %1159 = vrot.lane.b32.xlu0 %v947, 64
        %v1160 = vpop.permute.xlu0 %1159
        %1161 = vrot.lane.b32.xlu0 %v952, 64
        %v1162 = vpop.permute.xlu0 %1161
        %1165 = vrot.lane.b32.xlu0 %v947, 32
        %v1166 = vpop.permute.xlu0 %1165
        %1167 = vrot.lane.b32.xlu0 %v952, 32
        %v1168 = vpop.permute.xlu0 %1167
        %v1171 = vcombine.low %v947, %v1160
        %v1172 = vcombine.high %v947, %v1160
        %v1174 = vunpack.c.l.s4 1983009808
        %v1175 = vunpack.c.0.s8 %v1174
        %v1176 = vlaneseq
        %v1177 = vshrl.u32 %v1176, 7
        %v1178 = vsub.s32 %v1175, %v1177
        %v1179 = vrot.slane %v1171, %v1178
        %v1181 = vunpack.c.l.s4 1983009808
        %v1182 = vunpack.c.0.s8 %v1181
        %v1183 = vlaneseq
        %v1184 = vshrl.u32 %v1183, 7
        %v1185 = vsub.s32 %v1182, %v1184
        %v1186 = vrot.slane %v1172, %v1185
        %v1187 = vcombine.low %v1154, %v1166
        %v1188 = vcombine.high %v1154, %v1166
        %v1190 = vunpack.c.l.s4 1983009808
        %v1191 = vunpack.c.0.s8 %v1190
        %v1192 = vlaneseq
        %v1193 = vshrl.u32 %v1192, 7
        %v1194 = vsub.s32 %v1191, %v1193
        %v1195 = vrot.slane %v1187, %v1194
        %v1197 = vunpack.c.l.s4 1983009808
        %v1198 = vunpack.c.0.s8 %v1197
        %v1199 = vlaneseq
        %v1200 = vshrl.u32 %v1199, 7
        %v1201 = vsub.s32 %v1198, %v1200
        %v1202 = vrot.slane %v1188, %v1201
        %v1203 = vcombine.low %v1179, %v1195
        %v1204 = vcombine.high %v1179, %v1195
        %v1206 = vunpack.c.l.s4 1934713408
        %v1207 = vunpack.c.0.s8 %v1206
        %v1208 = vlaneseq
        %v1209 = vshrl.u32 %v1208, 7
        %v1210 = vsub.s32 %v1207, %v1209
        %v1211 = vrot.slane %v1203, %v1210
        %v1213 = vunpack.c.l.s4 1934713408
        %v1214 = vunpack.c.0.s8 %v1213
        %v1215 = vlaneseq
        %v1216 = vshrl.u32 %v1215, 7
        %v1217 = vsub.s32 %v1214, %v1216
        %v1218 = vrot.slane %v1204, %v1217
        %v1219 = vcombine.low %v1186, %v1202
        %v1220 = vcombine.high %v1186, %v1202
        %v1222 = vunpack.c.l.s4 1934713408
        %v1223 = vunpack.c.0.s8 %v1222
        %v1224 = vlaneseq
        %v1225 = vshrl.u32 %v1224, 7
        %v1226 = vsub.s32 %v1223, %v1225
        %v1227 = vrot.slane %v1219, %v1226
        %v1229 = vunpack.c.l.s4 1934713408
        %v1230 = vunpack.c.0.s8 %v1229
        %v1231 = vlaneseq
        %v1232 = vshrl.u32 %v1231, 7
        %v1233 = vsub.s32 %v1230, %v1232
        %v1234 = vrot.slane %v1220, %v1233
        %v1235 = vcombine.high %v1211, 0.0
        %v1236 = vcombine.high %v1218, 0.0
        %v1237 = vcombine.high %v1227, 0.0
        %v1238 = vcombine.high %v1234, 0.0
        %v1239 = vcombine.low %v952, %v1162
        %v1240 = vcombine.high %v952, %v1162
        %v1242 = vunpack.c.l.s4 1983009808
        %v1243 = vunpack.c.0.s8 %v1242
        %v1244 = vlaneseq
        %v1245 = vshrl.u32 %v1244, 7
        %v1246 = vsub.s32 %v1243, %v1245
        %v1247 = vrot.slane %v1239, %v1246
        %v1249 = vunpack.c.l.s4 1983009808
        %v1250 = vunpack.c.0.s8 %v1249
        %v1251 = vlaneseq
        %v1252 = vshrl.u32 %v1251, 7
        %v1253 = vsub.s32 %v1250, %v1252
        %v1254 = vrot.slane %v1240, %v1253
        %v1255 = vcombine.low %v1156, %v1168
        %v1256 = vcombine.high %v1156, %v1168
        %v1258 = vunpack.c.l.s4 1983009808
        %v1259 = vunpack.c.0.s8 %v1258
        %v1260 = vlaneseq
        %v1261 = vshrl.u32 %v1260, 7
        %v1262 = vsub.s32 %v1259, %v1261
        %v1263 = vrot.slane %v1255, %v1262
        %v1265 = vunpack.c.l.s4 1983009808
        %v1266 = vunpack.c.0.s8 %v1265
        %v1267 = vlaneseq
        %v1268 = vshrl.u32 %v1267, 7
        %v1269 = vsub.s32 %v1266, %v1268
        %v1270 = vrot.slane %v1256, %v1269
        %v1271 = vcombine.low %v1247, %v1263
        %v1272 = vcombine.high %v1247, %v1263
        %v1274 = vunpack.c.l.s4 1934713408
        %v1275 = vunpack.c.0.s8 %v1274
        %v1276 = vlaneseq
        %v1277 = vshrl.u32 %v1276, 7
        %v1278 = vsub.s32 %v1275, %v1277
        %v1279 = vrot.slane %v1271, %v1278
        %v1281 = vunpack.c.l.s4 1934713408
        %v1282 = vunpack.c.0.s8 %v1281
        %v1283 = vlaneseq
        %v1284 = vshrl.u32 %v1283, 7
        %v1285 = vsub.s32 %v1282, %v1284
        %v1286 = vrot.slane %v1272, %v1285
        %v1287 = vcombine.low %v1254, %v1270
        %v1288 = vcombine.high %v1254, %v1270
        %v1290 = vunpack.c.l.s4 1934713408
        %v1291 = vunpack.c.0.s8 %v1290
        %v1292 = vlaneseq
        %v1293 = vshrl.u32 %v1292, 7
        %v1294 = vsub.s32 %v1291, %v1293
        %v1295 = vrot.slane %v1287, %v1294
        %v1297 = vunpack.c.l.s4 1934713408
        %v1298 = vunpack.c.0.s8 %v1297
        %v1299 = vlaneseq
        %v1300 = vshrl.u32 %v1299, 7
        %v1301 = vsub.s32 %v1298, %v1300
        %v1302 = vrot.slane %v1288, %v1301
        %v1303 = vcombine.high %v1279, 0.0
        %v1304 = vcombine.high %v1286, 0.0
        %v1305 = vcombine.high %v1295, 0.0
        %v1306 = vcombine.high %v1302, 0.0
        %v1307 = vcombine.low %v1211, %v1218
        %v1309 = vunpack.c.l.s4 1983009808
        %v1310 = vunpack.c.0.s8 %v1309
        %v1311 = vlaneseq
        %v1312 = vshrl.u32 %v1311, 7
        %v1313 = vsub.s32 %v1310, %v1312
        %v1314 = vrot.slane %v1307, %v1313
        %v1315 = vcombine.low %v1235, %v1236
        %v1317 = vunpack.c.l.s4 1983009808
        %v1318 = vunpack.c.0.s8 %v1317
        %v1319 = vlaneseq
        %v1320 = vshrl.u32 %v1319, 7
        %v1321 = vsub.s32 %v1318, %v1320
        %v1322 = vrot.slane %v1315, %v1321
        %v1323 = vcombine.low %v1227, %v1234
        %v1325 = vunpack.c.l.s4 1983009808
        %v1326 = vunpack.c.0.s8 %v1325
        %v1327 = vlaneseq
        %v1328 = vshrl.u32 %v1327, 7
        %v1329 = vsub.s32 %v1326, %v1328
        %v1330 = vrot.slane %v1323, %v1329
        %v1331 = vcombine.low %v1237, %v1238
        %v1333 = vunpack.c.l.s4 1983009808
        %v1334 = vunpack.c.0.s8 %v1333
        %v1335 = vlaneseq
        %v1336 = vshrl.u32 %v1335, 7
        %v1337 = vsub.s32 %v1334, %v1336
        %v1338 = vrot.slane %v1331, %v1337
        %v1339 = vcombine.low %v1314, %v1322
        %v1340 = vcombine.high %v1314, %v1322
        %v1342 = vunpack.c.l.s4 1934713408
        %v1343 = vunpack.c.0.s8 %v1342
        %v1344 = vlaneseq
        %v1345 = vshrl.u32 %v1344, 7
        %v1346 = vsub.s32 %v1343, %v1345
        %v1347 = vrot.slane %v1339, %v1346
        %v1349 = vunpack.c.l.s4 1934713408
        %v1350 = vunpack.c.0.s8 %v1349
        %v1351 = vlaneseq
        %v1352 = vshrl.u32 %v1351, 7
        %v1353 = vsub.s32 %v1350, %v1352
        %v1354 = vrot.slane %v1340, %v1353
        %v1355 = vcombine.low %v1330, %v1338
        %v1356 = vcombine.high %v1330, %v1338
        %v1358 = vunpack.c.l.s4 1934713408
        %v1359 = vunpack.c.0.s8 %v1358
        %v1360 = vlaneseq
        %v1361 = vshrl.u32 %v1360, 7
        %v1362 = vsub.s32 %v1359, %v1361
        %v1363 = vrot.slane %v1355, %v1362
        %v1365 = vunpack.c.l.s4 1934713408
        %v1366 = vunpack.c.0.s8 %v1365
        %v1367 = vlaneseq
        %v1368 = vshrl.u32 %v1367, 7
        %v1369 = vsub.s32 %v1366, %v1368
        %v1370 = vrot.slane %v1356, %v1369
        %v1371 = vcombine.low %v1347, %v1363
        %v1372 = vcombine.high %v1347, %v1363
        %v1373 = vcombine.low %v1354, %v1370
        %v1374 = vcombine.high %v1354, %v1370
        %v1375 = vcombine.low %v1279, %v1286
        %v1377 = vunpack.c.l.s4 1983009808
        %v1378 = vunpack.c.0.s8 %v1377
        %v1379 = vlaneseq
        %v1380 = vshrl.u32 %v1379, 7
        %v1381 = vsub.s32 %v1378, %v1380
        %v1382 = vrot.slane %v1375, %v1381
        %v1383 = vcombine.low %v1303, %v1304
        %v1385 = vunpack.c.l.s4 1983009808
        %v1386 = vunpack.c.0.s8 %v1385
        %v1387 = vlaneseq
        %v1388 = vshrl.u32 %v1387, 7
        %v1389 = vsub.s32 %v1386, %v1388
        %v1390 = vrot.slane %v1383, %v1389
        %v1391 = vcombine.low %v1295, %v1302
        %v1393 = vunpack.c.l.s4 1983009808
        %v1394 = vunpack.c.0.s8 %v1393
        %v1395 = vlaneseq
        %v1396 = vshrl.u32 %v1395, 7
        %v1397 = vsub.s32 %v1394, %v1396
        %v1398 = vrot.slane %v1391, %v1397
        %v1399 = vcombine.low %v1305, %v1306
        %v1401 = vunpack.c.l.s4 1983009808
        %v1402 = vunpack.c.0.s8 %v1401
        %v1403 = vlaneseq
        %v1404 = vshrl.u32 %v1403, 7
        %v1405 = vsub.s32 %v1402, %v1404
        %v1406 = vrot.slane %v1399, %v1405
        %v1407 = vcombine.low %v1382, %v1390
        %v1408 = vcombine.high %v1382, %v1390
        %v1410 = vunpack.c.l.s4 1934713408
        %v1411 = vunpack.c.0.s8 %v1410
        %v1412 = vlaneseq
        %v1413 = vshrl.u32 %v1412, 7
        %v1414 = vsub.s32 %v1411, %v1413
        %v1415 = vrot.slane %v1407, %v1414
        %v1417 = vunpack.c.l.s4 1934713408
        %v1418 = vunpack.c.0.s8 %v1417
        %v1419 = vlaneseq
        %v1420 = vshrl.u32 %v1419, 7
        %v1421 = vsub.s32 %v1418, %v1420
        %v1422 = vrot.slane %v1408, %v1421
        %v1423 = vcombine.low %v1398, %v1406
        %v1424 = vcombine.high %v1398, %v1406
        %v1426 = vunpack.c.l.s4 1934713408
        %v1427 = vunpack.c.0.s8 %v1426
        %v1428 = vlaneseq
        %v1429 = vshrl.u32 %v1428, 7
        %v1430 = vsub.s32 %v1427, %v1429
        %v1431 = vrot.slane %v1423, %v1430
        %v1433 = vunpack.c.l.s4 1934713408
        %v1434 = vunpack.c.0.s8 %v1433
        %v1435 = vlaneseq
        %v1436 = vshrl.u32 %v1435, 7
        %v1437 = vsub.s32 %v1434, %v1436
        %v1438 = vrot.slane %v1424, %v1437
        %v1439 = vcombine.low %v1415, %v1431
        %v1440 = vcombine.high %v1415, %v1431
        %v1441 = vcombine.low %v1422, %v1438
        %v1442 = vcombine.high %v1422, %v1438
        %1445 = vrot.lane.b32.xlu0 %v1045, 96
        %v1446 = vpop.permute.xlu0 %1445
        %1447 = vrot.lane.b32.xlu0 %v1050, 96
        %v1448 = vpop.permute.xlu0 %1447
        %1451 = vrot.lane.b32.xlu0 %v1045, 64
        %v1452 = vpop.permute.xlu0 %1451
        %1453 = vrot.lane.b32.xlu0 %v1050, 64
        %v1454 = vpop.permute.xlu0 %1453
        %1457 = vrot.lane.b32.xlu0 %v1045, 32
        %v1458 = vpop.permute.xlu0 %1457
        %1459 = vrot.lane.b32.xlu0 %v1050, 32
        %v1460 = vpop.permute.xlu0 %1459
        %v1463 = vcombine.low %v1045, %v1452
        %v1464 = vcombine.high %v1045, %v1452
        %v1466 = vunpack.c.l.s4 1983009808
        %v1467 = vunpack.c.0.s8 %v1466
        %v1468 = vlaneseq
        %v1469 = vshrl.u32 %v1468, 7
        %v1470 = vsub.s32 %v1467, %v1469
        %v1471 = vrot.slane %v1463, %v1470
        %v1473 = vunpack.c.l.s4 1983009808
        %v1474 = vunpack.c.0.s8 %v1473
        %v1475 = vlaneseq
        %v1476 = vshrl.u32 %v1475, 7
        %v1477 = vsub.s32 %v1474, %v1476
        %v1478 = vrot.slane %v1464, %v1477
        %v1479 = vcombine.low %v1446, %v1458
        %v1480 = vcombine.high %v1446, %v1458
        %v1482 = vunpack.c.l.s4 1983009808
        %v1483 = vunpack.c.0.s8 %v1482
        %v1484 = vlaneseq
        %v1485 = vshrl.u32 %v1484, 7
        %v1486 = vsub.s32 %v1483, %v1485
        %v1487 = vrot.slane %v1479, %v1486
        %v1489 = vunpack.c.l.s4 1983009808
        %v1490 = vunpack.c.0.s8 %v1489
        %v1491 = vlaneseq
        %v1492 = vshrl.u32 %v1491, 7
        %v1493 = vsub.s32 %v1490, %v1492
        %v1494 = vrot.slane %v1480, %v1493
        %v1495 = vcombine.low %v1471, %v1487
        %v1496 = vcombine.high %v1471, %v1487
        %v1498 = vunpack.c.l.s4 1934713408
        %v1499 = vunpack.c.0.s8 %v1498
        %v1500 = vlaneseq
        %v1501 = vshrl.u32 %v1500, 7
        %v1502 = vsub.s32 %v1499, %v1501
        %v1503 = vrot.slane %v1495, %v1502
        %v1505 = vunpack.c.l.s4 1934713408
        %v1506 = vunpack.c.0.s8 %v1505
        %v1507 = vlaneseq
        %v1508 = vshrl.u32 %v1507, 7
        %v1509 = vsub.s32 %v1506, %v1508
        %v1510 = vrot.slane %v1496, %v1509
        %v1511 = vcombine.low %v1478, %v1494
        %v1512 = vcombine.high %v1478, %v1494
        %v1514 = vunpack.c.l.s4 1934713408
        %v1515 = vunpack.c.0.s8 %v1514
        %v1516 = vlaneseq
        %v1517 = vshrl.u32 %v1516, 7
        %v1518 = vsub.s32 %v1515, %v1517
        %v1519 = vrot.slane %v1511, %v1518
        %v1521 = vunpack.c.l.s4 1934713408
        %v1522 = vunpack.c.0.s8 %v1521
        %v1523 = vlaneseq
        %v1524 = vshrl.u32 %v1523, 7
        %v1525 = vsub.s32 %v1522, %v1524
        %v1526 = vrot.slane %v1512, %v1525
        %v1527 = vcombine.high %v1503, 0.0
        %v1528 = vcombine.high %v1510, 0.0
        %v1529 = vcombine.high %v1519, 0.0
        %v1530 = vcombine.high %v1526, 0.0
        %v1531 = vcombine.low %v1050, %v1454
        %v1532 = vcombine.high %v1050, %v1454
        %v1534 = vunpack.c.l.s4 1983009808
        %v1535 = vunpack.c.0.s8 %v1534
        %v1536 = vlaneseq
        %v1537 = vshrl.u32 %v1536, 7
        %v1538 = vsub.s32 %v1535, %v1537
        %v1539 = vrot.slane %v1531, %v1538
        %v1541 = vunpack.c.l.s4 1983009808
        %v1542 = vunpack.c.0.s8 %v1541
        %v1543 = vlaneseq
        %v1544 = vshrl.u32 %v1543, 7
        %v1545 = vsub.s32 %v1542, %v1544
        %v1546 = vrot.slane %v1532, %v1545
        %v1547 = vcombine.low %v1448, %v1460
        %v1548 = vcombine.high %v1448, %v1460
        %v1550 = vunpack.c.l.s4 1983009808
        %v1551 = vunpack.c.0.s8 %v1550
        %v1552 = vlaneseq
        %v1553 = vshrl.u32 %v1552, 7
        %v1554 = vsub.s32 %v1551, %v1553
        %v1555 = vrot.slane %v1547, %v1554
        %v1557 = vunpack.c.l.s4 1983009808
        %v1558 = vunpack.c.0.s8 %v1557
        %v1559 = vlaneseq
        %v1560 = vshrl.u32 %v1559, 7
        %v1561 = vsub.s32 %v1558, %v1560
        %v1562 = vrot.slane %v1548, %v1561
        %v1563 = vcombine.low %v1539, %v1555
        %v1564 = vcombine.high %v1539, %v1555
        %v1566 = vunpack.c.l.s4 1934713408
        %v1567 = vunpack.c.0.s8 %v1566
        %v1568 = vlaneseq
        %v1569 = vshrl.u32 %v1568, 7
        %v1570 = vsub.s32 %v1567, %v1569
        %v1571 = vrot.slane %v1563, %v1570
        %v1573 = vunpack.c.l.s4 1934713408
        %v1574 = vunpack.c.0.s8 %v1573
        %v1575 = vlaneseq
        %v1576 = vshrl.u32 %v1575, 7
        %v1577 = vsub.s32 %v1574, %v1576
        %v1578 = vrot.slane %v1564, %v1577
        %v1579 = vcombine.low %v1546, %v1562
        %v1580 = vcombine.high %v1546, %v1562
        %v1582 = vunpack.c.l.s4 1934713408
        %v1583 = vunpack.c.0.s8 %v1582
        %v1584 = vlaneseq
        %v1585 = vshrl.u32 %v1584, 7
        %v1586 = vsub.s32 %v1583, %v1585
        %v1587 = vrot.slane %v1579, %v1586
        %v1589 = vunpack.c.l.s4 1934713408
        %v1590 = vunpack.c.0.s8 %v1589
        %v1591 = vlaneseq
        %v1592 = vshrl.u32 %v1591, 7
        %v1593 = vsub.s32 %v1590, %v1592
        %v1594 = vrot.slane %v1580, %v1593
        %v1595 = vcombine.high %v1571, 0.0
        %v1596 = vcombine.high %v1578, 0.0
        %v1597 = vcombine.high %v1587, 0.0
        %v1598 = vcombine.high %v1594, 0.0
        %v1599 = vcombine.low %v1503, %v1510
        %v1601 = vunpack.c.l.s4 1983009808
        %v1602 = vunpack.c.0.s8 %v1601
        %v1603 = vlaneseq
        %v1604 = vshrl.u32 %v1603, 7
        %v1605 = vsub.s32 %v1602, %v1604
        %v1606 = vrot.slane %v1599, %v1605
        %v1607 = vcombine.low %v1527, %v1528
        %v1609 = vunpack.c.l.s4 1983009808
        %v1610 = vunpack.c.0.s8 %v1609
        %v1611 = vlaneseq
        %v1612 = vshrl.u32 %v1611, 7
        %v1613 = vsub.s32 %v1610, %v1612
        %v1614 = vrot.slane %v1607, %v1613
        %v1615 = vcombine.low %v1519, %v1526
        %v1617 = vunpack.c.l.s4 1983009808
        %v1618 = vunpack.c.0.s8 %v1617
        %v1619 = vlaneseq
        %v1620 = vshrl.u32 %v1619, 7
        %v1621 = vsub.s32 %v1618, %v1620
        %v1622 = vrot.slane %v1615, %v1621
        %v1623 = vcombine.low %v1529, %v1530
        %v1625 = vunpack.c.l.s4 1983009808
        %v1626 = vunpack.c.0.s8 %v1625
        %v1627 = vlaneseq
        %v1628 = vshrl.u32 %v1627, 7
        %v1629 = vsub.s32 %v1626, %v1628
        %v1630 = vrot.slane %v1623, %v1629
        %v1631 = vcombine.low %v1606, %v1614
        %v1632 = vcombine.high %v1606, %v1614
        %v1634 = vunpack.c.l.s4 1934713408
        %v1635 = vunpack.c.0.s8 %v1634
        %v1636 = vlaneseq
        %v1637 = vshrl.u32 %v1636, 7
        %v1638 = vsub.s32 %v1635, %v1637
        %v1639 = vrot.slane %v1631, %v1638
        %v1641 = vunpack.c.l.s4 1934713408
        %v1642 = vunpack.c.0.s8 %v1641
        %v1643 = vlaneseq
        %v1644 = vshrl.u32 %v1643, 7
        %v1645 = vsub.s32 %v1642, %v1644
        %v1646 = vrot.slane %v1632, %v1645
        %v1647 = vcombine.low %v1622, %v1630
        %v1648 = vcombine.high %v1622, %v1630
        %v1650 = vunpack.c.l.s4 1934713408
        %v1651 = vunpack.c.0.s8 %v1650
        %v1652 = vlaneseq
        %v1653 = vshrl.u32 %v1652, 7
        %v1654 = vsub.s32 %v1651, %v1653
        %v1655 = vrot.slane %v1647, %v1654
        %v1657 = vunpack.c.l.s4 1934713408
        %v1658 = vunpack.c.0.s8 %v1657
        %v1659 = vlaneseq
        %v1660 = vshrl.u32 %v1659, 7
        %v1661 = vsub.s32 %v1658, %v1660
        %v1662 = vrot.slane %v1648, %v1661
        %v1663 = vcombine.low %v1639, %v1655
        %v1664 = vcombine.high %v1639, %v1655
        %v1665 = vcombine.low %v1646, %v1662
        %v1666 = vcombine.high %v1646, %v1662
        %v1667 = vcombine.low %v1571, %v1578
        %v1669 = vunpack.c.l.s4 1983009808
        %v1670 = vunpack.c.0.s8 %v1669
        %v1671 = vlaneseq
        %v1672 = vshrl.u32 %v1671, 7
        %v1673 = vsub.s32 %v1670, %v1672
        %v1674 = vrot.slane %v1667, %v1673
        %v1675 = vcombine.low %v1595, %v1596
        %v1677 = vunpack.c.l.s4 1983009808
        %v1678 = vunpack.c.0.s8 %v1677
        %v1679 = vlaneseq
        %v1680 = vshrl.u32 %v1679, 7
        %v1681 = vsub.s32 %v1678, %v1680
        %v1682 = vrot.slane %v1675, %v1681
        %v1683 = vcombine.low %v1587, %v1594
        %v1685 = vunpack.c.l.s4 1983009808
        %v1686 = vunpack.c.0.s8 %v1685
        %v1687 = vlaneseq
        %v1688 = vshrl.u32 %v1687, 7
        %v1689 = vsub.s32 %v1686, %v1688
        %v1690 = vrot.slane %v1683, %v1689
        %v1691 = vcombine.low %v1597, %v1598
        %v1693 = vunpack.c.l.s4 1983009808
        %v1694 = vunpack.c.0.s8 %v1693
        %v1695 = vlaneseq
        %v1696 = vshrl.u32 %v1695, 7
        %v1697 = vsub.s32 %v1694, %v1696
        %v1698 = vrot.slane %v1691, %v1697
        %v1699 = vcombine.low %v1674, %v1682
        %v1700 = vcombine.high %v1674, %v1682
        %v1702 = vunpack.c.l.s4 1934713408
        %v1703 = vunpack.c.0.s8 %v1702
        %v1704 = vlaneseq
        %v1705 = vshrl.u32 %v1704, 7
        %v1706 = vsub.s32 %v1703, %v1705
        %v1707 = vrot.slane %v1699, %v1706
        %v1709 = vunpack.c.l.s4 1934713408
        %v1710 = vunpack.c.0.s8 %v1709
        %v1711 = vlaneseq
        %v1712 = vshrl.u32 %v1711, 7
        %v1713 = vsub.s32 %v1710, %v1712
        %v1714 = vrot.slane %v1700, %v1713
        %v1715 = vcombine.low %v1690, %v1698
        %v1716 = vcombine.high %v1690, %v1698
        %v1718 = vunpack.c.l.s4 1934713408
        %v1719 = vunpack.c.0.s8 %v1718
        %v1720 = vlaneseq
        %v1721 = vshrl.u32 %v1720, 7
        %v1722 = vsub.s32 %v1719, %v1721
        %v1723 = vrot.slane %v1715, %v1722
        %v1725 = vunpack.c.l.s4 1934713408
        %v1726 = vunpack.c.0.s8 %v1725
        %v1727 = vlaneseq
        %v1728 = vshrl.u32 %v1727, 7
        %v1729 = vsub.s32 %v1726, %v1728
        %v1730 = vrot.slane %v1716, %v1729
        %v1731 = vcombine.low %v1707, %v1723
        %v1732 = vcombine.high %v1707, %v1723
        %v1733 = vcombine.low %v1714, %v1730
        %v1734 = vcombine.high %v1714, %v1730
        %1737 = vrot.lane.b32.xlu0 %v1143, 96
        %v1738 = vpop.permute.xlu0 %1737
        %1739 = vrot.lane.b32.xlu0 %v1148, 96
        %v1740 = vpop.permute.xlu0 %1739
        %1743 = vrot.lane.b32.xlu0 %v1143, 64
        %v1744 = vpop.permute.xlu0 %1743
        %1745 = vrot.lane.b32.xlu0 %v1148, 64
        %v1746 = vpop.permute.xlu0 %1745
        %1749 = vrot.lane.b32.xlu0 %v1143, 32
        %v1750 = vpop.permute.xlu0 %1749
        %1751 = vrot.lane.b32.xlu0 %v1148, 32
        %v1752 = vpop.permute.xlu0 %1751
        %v1755 = vcombine.low %v1143, %v1744
        %v1756 = vcombine.high %v1143, %v1744
        %v1758 = vunpack.c.l.s4 1983009808
        %v1759 = vunpack.c.0.s8 %v1758
        %v1760 = vlaneseq
        %v1761 = vshrl.u32 %v1760, 7
        %v1762 = vsub.s32 %v1759, %v1761
        %v1763 = vrot.slane %v1755, %v1762
        %v1765 = vunpack.c.l.s4 1983009808
        %v1766 = vunpack.c.0.s8 %v1765
        %v1767 = vlaneseq
        %v1768 = vshrl.u32 %v1767, 7
        %v1769 = vsub.s32 %v1766, %v1768
        %v1770 = vrot.slane %v1756, %v1769
        %v1771 = vcombine.low %v1738, %v1750
        %v1772 = vcombine.high %v1738, %v1750
        %v1774 = vunpack.c.l.s4 1983009808
        %v1775 = vunpack.c.0.s8 %v1774
        %v1776 = vlaneseq
        %v1777 = vshrl.u32 %v1776, 7
        %v1778 = vsub.s32 %v1775, %v1777
        %v1779 = vrot.slane %v1771, %v1778
        %v1781 = vunpack.c.l.s4 1983009808
        %v1782 = vunpack.c.0.s8 %v1781
        %v1783 = vlaneseq
        %v1784 = vshrl.u32 %v1783, 7
        %v1785 = vsub.s32 %v1782, %v1784
        %v1786 = vrot.slane %v1772, %v1785
        %v1787 = vcombine.low %v1763, %v1779
        %v1788 = vcombine.high %v1763, %v1779
        %v1790 = vunpack.c.l.s4 1934713408
        %v1791 = vunpack.c.0.s8 %v1790
        %v1792 = vlaneseq
        %v1793 = vshrl.u32 %v1792, 7
        %v1794 = vsub.s32 %v1791, %v1793
        %v1795 = vrot.slane %v1787, %v1794
        %v1797 = vunpack.c.l.s4 1934713408
        %v1798 = vunpack.c.0.s8 %v1797
        %v1799 = vlaneseq
        %v1800 = vshrl.u32 %v1799, 7
        %v1801 = vsub.s32 %v1798, %v1800
        %v1802 = vrot.slane %v1788, %v1801
        %v1803 = vcombine.low %v1770, %v1786
        %v1804 = vcombine.high %v1770, %v1786
        %v1806 = vunpack.c.l.s4 1934713408
        %v1807 = vunpack.c.0.s8 %v1806
        %v1808 = vlaneseq
        %v1809 = vshrl.u32 %v1808, 7
        %v1810 = vsub.s32 %v1807, %v1809
        %v1811 = vrot.slane %v1803, %v1810
        %v1813 = vunpack.c.l.s4 1934713408
        %v1814 = vunpack.c.0.s8 %v1813
        %v1815 = vlaneseq
        %v1816 = vshrl.u32 %v1815, 7
        %v1817 = vsub.s32 %v1814, %v1816
        %v1818 = vrot.slane %v1804, %v1817
        %v1819 = vcombine.high %v1795, 0.0
        %v1820 = vcombine.high %v1802, 0.0
        %v1821 = vcombine.high %v1811, 0.0
        %v1822 = vcombine.high %v1818, 0.0
        %v1823 = vcombine.low %v1148, %v1746
        %v1824 = vcombine.high %v1148, %v1746
        %v1826 = vunpack.c.l.s4 1983009808
        %v1827 = vunpack.c.0.s8 %v1826
        %v1828 = vlaneseq
        %v1829 = vshrl.u32 %v1828, 7
        %v1830 = vsub.s32 %v1827, %v1829
        %v1831 = vrot.slane %v1823, %v1830
        %v1833 = vunpack.c.l.s4 1983009808
        %v1834 = vunpack.c.0.s8 %v1833
        %v1835 = vlaneseq
        %v1836 = vshrl.u32 %v1835, 7
        %v1837 = vsub.s32 %v1834, %v1836
        %v1838 = vrot.slane %v1824, %v1837
        %v1839 = vcombine.low %v1740, %v1752
        %v1840 = vcombine.high %v1740, %v1752
        %v1842 = vunpack.c.l.s4 1983009808
        %v1843 = vunpack.c.0.s8 %v1842
        %v1844 = vlaneseq
        %v1845 = vshrl.u32 %v1844, 7
        %v1846 = vsub.s32 %v1843, %v1845
        %v1847 = vrot.slane %v1839, %v1846
        %v1849 = vunpack.c.l.s4 1983009808
        %v1850 = vunpack.c.0.s8 %v1849
        %v1851 = vlaneseq
        %v1852 = vshrl.u32 %v1851, 7
        %v1853 = vsub.s32 %v1850, %v1852
        %v1854 = vrot.slane %v1840, %v1853
        %v1855 = vcombine.low %v1831, %v1847
        %v1856 = vcombine.high %v1831, %v1847
        %v1858 = vunpack.c.l.s4 1934713408
        %v1859 = vunpack.c.0.s8 %v1858
        %v1860 = vlaneseq
        %v1861 = vshrl.u32 %v1860, 7
        %v1862 = vsub.s32 %v1859, %v1861
        %v1863 = vrot.slane %v1855, %v1862
        %v1865 = vunpack.c.l.s4 1934713408
        %v1866 = vunpack.c.0.s8 %v1865
        %v1867 = vlaneseq
        %v1868 = vshrl.u32 %v1867, 7
        %v1869 = vsub.s32 %v1866, %v1868
        %v1870 = vrot.slane %v1856, %v1869
        %v1871 = vcombine.low %v1838, %v1854
        %v1872 = vcombine.high %v1838, %v1854
        %v1874 = vunpack.c.l.s4 1934713408
        %v1875 = vunpack.c.0.s8 %v1874
        %v1876 = vlaneseq
        %v1877 = vshrl.u32 %v1876, 7
        %v1878 = vsub.s32 %v1875, %v1877
        %v1879 = vrot.slane %v1871, %v1878
        %v1881 = vunpack.c.l.s4 1934713408
        %v1882 = vunpack.c.0.s8 %v1881
        %v1883 = vlaneseq
        %v1884 = vshrl.u32 %v1883, 7
        %v1885 = vsub.s32 %v1882, %v1884
        %v1886 = vrot.slane %v1872, %v1885
        %v1887 = vcombine.high %v1863, 0.0
        %v1888 = vcombine.high %v1870, 0.0
        %v1889 = vcombine.high %v1879, 0.0
        %v1890 = vcombine.high %v1886, 0.0
        %v1891 = vcombine.low %v1795, %v1802
        %v1893 = vunpack.c.l.s4 1983009808
        %v1894 = vunpack.c.0.s8 %v1893
        %v1895 = vlaneseq
        %v1896 = vshrl.u32 %v1895, 7
        %v1897 = vsub.s32 %v1894, %v1896
        %v1898 = vrot.slane %v1891, %v1897
        %v1899 = vcombine.low %v1819, %v1820
        %v1901 = vunpack.c.l.s4 1983009808
        %v1902 = vunpack.c.0.s8 %v1901
        %v1903 = vlaneseq
        %v1904 = vshrl.u32 %v1903, 7
        %v1905 = vsub.s32 %v1902, %v1904
        %v1906 = vrot.slane %v1899, %v1905
        %v1907 = vcombine.low %v1811, %v1818
        %v1909 = vunpack.c.l.s4 1983009808
        %v1910 = vunpack.c.0.s8 %v1909
        %v1911 = vlaneseq
        %v1912 = vshrl.u32 %v1911, 7
        %v1913 = vsub.s32 %v1910, %v1912
        %v1914 = vrot.slane %v1907, %v1913
        %v1915 = vcombine.low %v1821, %v1822
        %v1917 = vunpack.c.l.s4 1983009808
        %v1918 = vunpack.c.0.s8 %v1917
        %v1919 = vlaneseq
        %v1920 = vshrl.u32 %v1919, 7
        %v1921 = vsub.s32 %v1918, %v1920
        %v1922 = vrot.slane %v1915, %v1921
        %v1923 = vcombine.low %v1898, %v1906
        %v1924 = vcombine.high %v1898, %v1906
        %v1926 = vunpack.c.l.s4 1934713408
        %v1927 = vunpack.c.0.s8 %v1926
        %v1928 = vlaneseq
        %v1929 = vshrl.u32 %v1928, 7
        %v1930 = vsub.s32 %v1927, %v1929
        %v1931 = vrot.slane %v1923, %v1930
        %v1933 = vunpack.c.l.s4 1934713408
        %v1934 = vunpack.c.0.s8 %v1933
        %v1935 = vlaneseq
        %v1936 = vshrl.u32 %v1935, 7
        %v1937 = vsub.s32 %v1934, %v1936
        %v1938 = vrot.slane %v1924, %v1937
        %v1939 = vcombine.low %v1914, %v1922
        %v1940 = vcombine.high %v1914, %v1922
        %v1942 = vunpack.c.l.s4 1934713408
        %v1943 = vunpack.c.0.s8 %v1942
        %v1944 = vlaneseq
        %v1945 = vshrl.u32 %v1944, 7
        %v1946 = vsub.s32 %v1943, %v1945
        %v1947 = vrot.slane %v1939, %v1946
        %v1949 = vunpack.c.l.s4 1934713408
        %v1950 = vunpack.c.0.s8 %v1949
        %v1951 = vlaneseq
        %v1952 = vshrl.u32 %v1951, 7
        %v1953 = vsub.s32 %v1950, %v1952
        %v1954 = vrot.slane %v1940, %v1953
        %v1955 = vcombine.low %v1931, %v1947
        %v1956 = vcombine.high %v1931, %v1947
        %v1957 = vcombine.low %v1938, %v1954
        %v1958 = vcombine.high %v1938, %v1954
        %v1959 = vcombine.low %v1863, %v1870
        %v1961 = vunpack.c.l.s4 1983009808
        %v1962 = vunpack.c.0.s8 %v1961
        %v1963 = vlaneseq
        %v1964 = vshrl.u32 %v1963, 7
        %v1965 = vsub.s32 %v1962, %v1964
        %v1966 = vrot.slane %v1959, %v1965
        %v1967 = vcombine.low %v1887, %v1888
        %v1969 = vunpack.c.l.s4 1983009808
        %v1970 = vunpack.c.0.s8 %v1969
        %v1971 = vlaneseq
        %v1972 = vshrl.u32 %v1971, 7
        %v1973 = vsub.s32 %v1970, %v1972
        %v1974 = vrot.slane %v1967, %v1973
        %v1975 = vcombine.low %v1879, %v1886
        %v1977 = vunpack.c.l.s4 1983009808
        %v1978 = vunpack.c.0.s8 %v1977
        %v1979 = vlaneseq
        %v1980 = vshrl.u32 %v1979, 7
        %v1981 = vsub.s32 %v1978, %v1980
        %v1982 = vrot.slane %v1975, %v1981
        %v1983 = vcombine.low %v1889, %v1890
        %v1985 = vunpack.c.l.s4 1983009808
        %v1986 = vunpack.c.0.s8 %v1985
        %v1987 = vlaneseq
        %v1988 = vshrl.u32 %v1987, 7
        %v1989 = vsub.s32 %v1986, %v1988
        %v1990 = vrot.slane %v1983, %v1989
        %v1991 = vcombine.low %v1966, %v1974
        %v1992 = vcombine.high %v1966, %v1974
        %v1994 = vunpack.c.l.s4 1934713408
        %v1995 = vunpack.c.0.s8 %v1994
        %v1996 = vlaneseq
        %v1997 = vshrl.u32 %v1996, 7
        %v1998 = vsub.s32 %v1995, %v1997
        %v1999 = vrot.slane %v1991, %v1998
        %v2001 = vunpack.c.l.s4 1934713408
        %v2002 = vunpack.c.0.s8 %v2001
        %v2003 = vlaneseq
        %v2004 = vshrl.u32 %v2003, 7
        %v2005 = vsub.s32 %v2002, %v2004
        %v2006 = vrot.slane %v1992, %v2005
        %v2007 = vcombine.low %v1982, %v1990
        %v2008 = vcombine.high %v1982, %v1990
        %v2010 = vunpack.c.l.s4 1934713408
        %v2011 = vunpack.c.0.s8 %v2010
        %v2012 = vlaneseq
        %v2013 = vshrl.u32 %v2012, 7
        %v2014 = vsub.s32 %v2011, %v2013
        %v2015 = vrot.slane %v2007, %v2014
        %v2017 = vunpack.c.l.s4 1934713408
        %v2018 = vunpack.c.0.s8 %v2017
        %v2019 = vlaneseq
        %v2020 = vshrl.u32 %v2019, 7
        %v2021 = vsub.s32 %v2018, %v2020
        %v2022 = vrot.slane %v2008, %v2021
        %v2023 = vcombine.low %v1999, %v2015
        %v2024 = vcombine.high %v1999, %v2015
        %v2025 = vcombine.low %v2006, %v2022
        %v2026 = vcombine.high %v2006, %v2022
        %vm2027 = vcmask 261120
        %v2029 = vsel %vm2027, %v1371, 0
        %v2032 = vsel %vm2027, %v1439, 0
        %v2035 = vsel %vm2027, %v1663, 0
        %v2038 = vsel %vm2027, %v1731, 0
        %2040 = vmatprep.subr.mxu0 0.0
        %2041 = vmatpush1.xpose.msra.mxu0 0.0
        %2042 = vmatprep.subr.mxu0 0.0
        %2043 = vmatpush1.xpose.msra.mxu0 0.0
        %2044 = vmatprep.subr.mxu0 0.0
        %2045 = vmatpush1.xpose.msra.mxu0 0.0
        %2046 = vmatprep.subr.mxu0 0.0
        %2047 = vmatpush1.xpose.msra.mxu0 0.0
        %2048 = vmatprep.subr.mxu0 0.0
        %2049 = vmatpush1.xpose.msra.mxu0 0.0
        %2050 = vmatprep.subr.mxu0 0.0
        %2051 = vmatpush1.xpose.msra.mxu0 0.0
        %2052 = vmatprep.subr.mxu0 0.0
        %2053 = vmatpush1.xpose.msra.mxu0 0.0
        %2054 = vmatprep.subr.mxu0 0.0
        %2055 = vmatpush1.xpose.msra.mxu0 0.0
        %2056 = vmatprep.subr.mxu0 0.0
        %2057 = vmatpush1.xpose.msra.mxu0 0.0
        %2058 = vmatprep.subr.mxu0 0.0
        %2059 = vmatpush1.xpose.msra.mxu0 0.0
        %2060 = vmatprep.subr.mxu0 0.0
        %2061 = vmatpush1.xpose.msra.mxu0 0.0
        %2062 = vmatprep.subr.mxu0 0.0
        %2063 = vmatpush1.xpose.msra.mxu0 0.0
        %2064 = vmatprep.subr.mxu0 0.0
        %2065 = vmatpush1.xpose.msra.mxu0 0.0
        %2066 = vmatprep.subr.mxu0 0.0
        %2067 = vmatpush1.xpose.msra.mxu0 0.0
        %2068 = vmatprep.subr.mxu0 0.0
        %2069 = vmatpush1.xpose.msra.mxu0 %v2038
        %2070 = vmatprep.subr.mxu0 0.0
        %2071 = vmatpush1.xpose.msra.mxu0 %v2035
        %2072 = vmatprep.subr.mxu0 0.0
        %2073 = vmatpush2.xpose.msra.mxu0 0.0
        %2074 = vmatprep.subr.mxu0 0.0
        %2075 = vmatpush2.xpose.msra.mxu0 0.0
        %2076 = vmatprep.subr.mxu0 0.0
        %2077 = vmatpush2.xpose.msra.mxu0 0.0
        %2078 = vmatprep.subr.mxu0 0.0
        %2079 = vmatpush2.xpose.msra.mxu0 0.0
        %2080 = vmatprep.subr.mxu0 0.0
        %2081 = vmatpush2.xpose.msra.mxu0 0.0
        %2082 = vmatprep.subr.mxu0 0.0
        %2083 = vmatpush2.xpose.msra.mxu0 0.0
        %2084 = vmatprep.subr.mxu0 0.0
        %2085 = vmatpush2.xpose.msra.mxu0 0.0
        %2086 = vmatprep.subr.mxu0 0.0
        %2087 = vmatpush2.xpose.msra.mxu0 0.0
        %2088 = vmatprep.subr.mxu0 0.0
        %2089 = vmatpush2.xpose.msra.mxu0 0.0
        %2090 = vmatprep.subr.mxu0 0.0
        %2091 = vmatpush2.xpose.msra.mxu0 0.0
        %2092 = vmatprep.subr.mxu0 0.0
        %2093 = vmatpush2.xpose.msra.mxu0 0.0
        %2094 = vmatprep.subr.mxu0 0.0
        %2095 = vmatpush2.xpose.msra.mxu0 0.0
        %2096 = vmatprep.subr.mxu0 0.0
        %2097 = vmatpush2.xpose.msra.mxu0 0.0
        %2098 = vmatprep.subr.mxu0 0.0
        %2099 = vmatpush2.xpose.msra.mxu0 0.0
        %2100 = vmatprep.subr.mxu0 0.0
        %2101 = vmatpush2.xpose.msra.mxu0 0.0
        %2102 = vmatprep.subr.mxu0 0.0
        %2103 = vmatpush2.xpose.msra.mxu0 0.0
        %2104 = vmatprep.mubr.f32.mxu0 0.0
        %2105 = vmatmul.mubr.f32.gmra.mxu0 %v2029
        %v2106 = vpop.f32.mrf.mxu0
        %v2107 = vadd.f32 0.0, %v2106
        %v2108 = vpop.f32.mrf.mxu0
        %2109 = vmatprep.mubr.f32.mxu0 0.0
        %2110 = vmatmul.mubr.f32.gmra.mxu0 %v2032
        %v2111 = vpop.f32.mrf.mxu0
        %v2112 = vadd.f32 0.0, %v2111
        %v2113 = vpop.f32.mrf.mxu0
        %2114 = vdwg.mxu0
        %v2116 = vsel %vm2027, %v1372, 0
        %v2119 = vsel %vm2027, %v1440, 0
        %v2122 = vsel %vm2027, %v1664, 0
        %v2125 = vsel %vm2027, %v1732, 0
        %2127 = vmatprep.subr.mxu0 0.0
        %2128 = vmatpush1.xpose.msra.mxu0 0.0
        %2129 = vmatprep.subr.mxu0 0.0
        %2130 = vmatpush1.xpose.msra.mxu0 0.0
        %2131 = vmatprep.subr.mxu0 0.0
        %2132 = vmatpush1.xpose.msra.mxu0 0.0
        %2133 = vmatprep.subr.mxu0 0.0
        %2134 = vmatpush1.xpose.msra.mxu0 0.0
        %2135 = vmatprep.subr.mxu0 0.0
        %2136 = vmatpush1.xpose.msra.mxu0 0.0
        %2137 = vmatprep.subr.mxu0 0.0
        %2138 = vmatpush1.xpose.msra.mxu0 0.0
        %2139 = vmatprep.subr.mxu0 0.0
        %2140 = vmatpush1.xpose.msra.mxu0 0.0
        %2141 = vmatprep.subr.mxu0 0.0
        %2142 = vmatpush1.xpose.msra.mxu0 0.0
        %2143 = vmatprep.subr.mxu0 0.0
        %2144 = vmatpush1.xpose.msra.mxu0 0.0
        %2145 = vmatprep.subr.mxu0 0.0
        %2146 = vmatpush1.xpose.msra.mxu0 0.0
        %2147 = vmatprep.subr.mxu0 0.0
        %2148 = vmatpush1.xpose.msra.mxu0 0.0
        %2149 = vmatprep.subr.mxu0 0.0
        %2150 = vmatpush1.xpose.msra.mxu0 0.0
        %2151 = vmatprep.subr.mxu0 0.0
        %2152 = vmatpush1.xpose.msra.mxu0 0.0
        %2153 = vmatprep.subr.mxu0 0.0
        %2154 = vmatpush1.xpose.msra.mxu0 0.0
        %2155 = vmatprep.subr.mxu0 0.0
        %2156 = vmatpush1.xpose.msra.mxu0 %v2125
        %2157 = vmatprep.subr.mxu0 0.0
        %2158 = vmatpush1.xpose.msra.mxu0 %v2122
        %2159 = vmatprep.subr.mxu0 0.0
        %2160 = vmatpush2.xpose.msra.mxu0 0.0
        %2161 = vmatprep.subr.mxu0 0.0
        %2162 = vmatpush2.xpose.msra.mxu0 0.0
        %2163 = vmatprep.subr.mxu0 0.0
        %2164 = vmatpush2.xpose.msra.mxu0 0.0
        %2165 = vmatprep.subr.mxu0 0.0
        %2166 = vmatpush2.xpose.msra.mxu0 0.0
        %2167 = vmatprep.subr.mxu0 0.0
        %2168 = vmatpush2.xpose.msra.mxu0 0.0
        %2169 = vmatprep.subr.mxu0 0.0
        %2170 = vmatpush2.xpose.msra.mxu0 0.0
        %2171 = vmatprep.subr.mxu0 0.0
        %2172 = vmatpush2.xpose.msra.mxu0 0.0
        %2173 = vmatprep.subr.mxu0 0.0
        %2174 = vmatpush2.xpose.msra.mxu0 0.0
        %2175 = vmatprep.subr.mxu0 0.0
        %2176 = vmatpush2.xpose.msra.mxu0 0.0
        %2177 = vmatprep.subr.mxu0 0.0
        %2178 = vmatpush2.xpose.msra.mxu0 0.0
        %2179 = vmatprep.subr.mxu0 0.0
        %2180 = vmatpush2.xpose.msra.mxu0 0.0
        %2181 = vmatprep.subr.mxu0 0.0
        %2182 = vmatpush2.xpose.msra.mxu0 0.0
        %2183 = vmatprep.subr.mxu0 0.0
        %2184 = vmatpush2.xpose.msra.mxu0 0.0
        %2185 = vmatprep.subr.mxu0 0.0
        %2186 = vmatpush2.xpose.msra.mxu0 0.0
        %2187 = vmatprep.subr.mxu0 0.0
        %2188 = vmatpush2.xpose.msra.mxu0 0.0
        %2189 = vmatprep.subr.mxu0 0.0
        %2190 = vmatpush2.xpose.msra.mxu0 0.0
        %2191 = vmatprep.mubr.f32.mxu0 0.0
        %2192 = vmatmul.mubr.f32.gmra.mxu0 %v2116
        %v2193 = vpop.f32.mrf.mxu0
        %v2194 = vadd.f32 0.0, %v2193
        %v2195 = vpop.f32.mrf.mxu0
        %2196 = vmatprep.mubr.f32.mxu0 0.0
        %2197 = vmatmul.mubr.f32.gmra.mxu0 %v2119
        %v2198 = vpop.f32.mrf.mxu0
        %v2199 = vadd.f32 0.0, %v2198
        %v2200 = vpop.f32.mrf.mxu0
        %2201 = vdwg.mxu0
        %v2203 = vsel %vm2027, %v1373, 0
        %v2206 = vsel %vm2027, %v1441, 0
        %v2209 = vsel %vm2027, %v1665, 0
        %v2212 = vsel %vm2027, %v1733, 0
        %2214 = vmatprep.subr.mxu0 0.0
        %2215 = vmatpush1.xpose.msra.mxu0 0.0
        %2216 = vmatprep.subr.mxu0 0.0
        %2217 = vmatpush1.xpose.msra.mxu0 0.0
        %2218 = vmatprep.subr.mxu0 0.0
        %2219 = vmatpush1.xpose.msra.mxu0 0.0
        %2220 = vmatprep.subr.mxu0 0.0
        %2221 = vmatpush1.xpose.msra.mxu0 0.0
        %2222 = vmatprep.subr.mxu0 0.0
        %2223 = vmatpush1.xpose.msra.mxu0 0.0
        %2224 = vmatprep.subr.mxu0 0.0
        %2225 = vmatpush1.xpose.msra.mxu0 0.0
        %2226 = vmatprep.subr.mxu0 0.0
        %2227 = vmatpush1.xpose.msra.mxu0 0.0
        %2228 = vmatprep.subr.mxu0 0.0
        %2229 = vmatpush1.xpose.msra.mxu0 0.0
        %2230 = vmatprep.subr.mxu0 0.0
        %2231 = vmatpush1.xpose.msra.mxu0 0.0
        %2232 = vmatprep.subr.mxu0 0.0
        %2233 = vmatpush1.xpose.msra.mxu0 0.0
        %2234 = vmatprep.subr.mxu0 0.0
        %2235 = vmatpush1.xpose.msra.mxu0 0.0
        %2236 = vmatprep.subr.mxu0 0.0
        %2237 = vmatpush1.xpose.msra.mxu0 0.0
        %2238 = vmatprep.subr.mxu0 0.0
        %2239 = vmatpush1.xpose.msra.mxu0 0.0
        %2240 = vmatprep.subr.mxu0 0.0
        %2241 = vmatpush1.xpose.msra.mxu0 0.0
        %2242 = vmatprep.subr.mxu0 0.0
        %2243 = vmatpush1.xpose.msra.mxu0 %v2212
        %2244 = vmatprep.subr.mxu0 0.0
        %2245 = vmatpush1.xpose.msra.mxu0 %v2209
        %2246 = vmatprep.subr.mxu0 0.0
        %2247 = vmatpush2.xpose.msra.mxu0 0.0
        %2248 = vmatprep.subr.mxu0 0.0
        %2249 = vmatpush2.xpose.msra.mxu0 0.0
        %2250 = vmatprep.subr.mxu0 0.0
        %2251 = vmatpush2.xpose.msra.mxu0 0.0
        %2252 = vmatprep.subr.mxu0 0.0
        %2253 = vmatpush2.xpose.msra.mxu0 0.0
        %2254 = vmatprep.subr.mxu0 0.0
        %2255 = vmatpush2.xpose.msra.mxu0 0.0
        %2256 = vmatprep.subr.mxu0 0.0
        %2257 = vmatpush2.xpose.msra.mxu0 0.0
        %2258 = vmatprep.subr.mxu0 0.0
        %2259 = vmatpush2.xpose.msra.mxu0 0.0
        %2260 = vmatprep.subr.mxu0 0.0
        %2261 = vmatpush2.xpose.msra.mxu0 0.0
        %2262 = vmatprep.subr.mxu0 0.0
        %2263 = vmatpush2.xpose.msra.mxu0 0.0
        %2264 = vmatprep.subr.mxu0 0.0
        %2265 = vmatpush2.xpose.msra.mxu0 0.0
        %2266 = vmatprep.subr.mxu0 0.0
        %2267 = vmatpush2.xpose.msra.mxu0 0.0
        %2268 = vmatprep.subr.mxu0 0.0
        %2269 = vmatpush2.xpose.msra.mxu0 0.0
        %2270 = vmatprep.subr.mxu0 0.0
        %2271 = vmatpush2.xpose.msra.mxu0 0.0
        %2272 = vmatprep.subr.mxu0 0.0
        %2273 = vmatpush2.xpose.msra.mxu0 0.0
        %2274 = vmatprep.subr.mxu0 0.0
        %2275 = vmatpush2.xpose.msra.mxu0 0.0
        %2276 = vmatprep.subr.mxu0 0.0
        %2277 = vmatpush2.xpose.msra.mxu0 0.0
        %2278 = vmatprep.mubr.f32.mxu0 0.0
        %2279 = vmatmul.mubr.f32.gmra.mxu0 %v2203
        %v2280 = vpop.f32.mrf.mxu0
        %v2281 = vadd.f32 0.0, %v2280
        %v2282 = vpop.f32.mrf.mxu0
        %2283 = vmatprep.mubr.f32.mxu0 0.0
        %2284 = vmatmul.mubr.f32.gmra.mxu0 %v2206
        %v2285 = vpop.f32.mrf.mxu0
        %v2286 = vadd.f32 0.0, %v2285
        %v2287 = vpop.f32.mrf.mxu0
        %2288 = vdwg.mxu0
        %v2290 = vsel %vm2027, %v1374, 0
        %v2293 = vsel %vm2027, %v1442, 0
        %v2296 = vsel %vm2027, %v1666, 0
        %v2299 = vsel %vm2027, %v1734, 0
        %2301 = vmatprep.subr.mxu0 0.0
        %2302 = vmatpush1.xpose.msra.mxu0 0.0
        %2303 = vmatprep.subr.mxu0 0.0
        %2304 = vmatpush1.xpose.msra.mxu0 0.0
        %2305 = vmatprep.subr.mxu0 0.0
        %2306 = vmatpush1.xpose.msra.mxu0 0.0
        %2307 = vmatprep.subr.mxu0 0.0
        %2308 = vmatpush1.xpose.msra.mxu0 0.0
        %2309 = vmatprep.subr.mxu0 0.0
        %2310 = vmatpush1.xpose.msra.mxu0 0.0
        %2311 = vmatprep.subr.mxu0 0.0
        %2312 = vmatpush1.xpose.msra.mxu0 0.0
        %2313 = vmatprep.subr.mxu0 0.0
        %2314 = vmatpush1.xpose.msra.mxu0 0.0
        %2315 = vmatprep.subr.mxu0 0.0
        %2316 = vmatpush1.xpose.msra.mxu0 0.0
        %2317 = vmatprep.subr.mxu0 0.0
        %2318 = vmatpush1.xpose.msra.mxu0 0.0
        %2319 = vmatprep.subr.mxu0 0.0
        %2320 = vmatpush1.xpose.msra.mxu0 0.0
        %2321 = vmatprep.subr.mxu0 0.0
        %2322 = vmatpush1.xpose.msra.mxu0 0.0
        %2323 = vmatprep.subr.mxu0 0.0
        %2324 = vmatpush1.xpose.msra.mxu0 0.0
        %2325 = vmatprep.subr.mxu0 0.0
        %2326 = vmatpush1.xpose.msra.mxu0 0.0
        %2327 = vmatprep.subr.mxu0 0.0
        %2328 = vmatpush1.xpose.msra.mxu0 0.0
        %2329 = vmatprep.subr.mxu0 0.0
        %2330 = vmatpush1.xpose.msra.mxu0 %v2299
        %2331 = vmatprep.subr.mxu0 0.0
        %2332 = vmatpush1.xpose.msra.mxu0 %v2296
        %2333 = vmatprep.subr.mxu0 0.0
        %2334 = vmatpush2.xpose.msra.mxu0 0.0
        %2335 = vmatprep.subr.mxu0 0.0
        %2336 = vmatpush2.xpose.msra.mxu0 0.0
        %2337 = vmatprep.subr.mxu0 0.0
        %2338 = vmatpush2.xpose.msra.mxu0 0.0
        %2339 = vmatprep.subr.mxu0 0.0
        %2340 = vmatpush2.xpose.msra.mxu0 0.0
        %2341 = vmatprep.subr.mxu0 0.0
        %2342 = vmatpush2.xpose.msra.mxu0 0.0
        %2343 = vmatprep.subr.mxu0 0.0
        %2344 = vmatpush2.xpose.msra.mxu0 0.0
        %2345 = vmatprep.subr.mxu0 0.0
        %2346 = vmatpush2.xpose.msra.mxu0 0.0
        %2347 = vmatprep.subr.mxu0 0.0
        %2348 = vmatpush2.xpose.msra.mxu0 0.0
        %2349 = vmatprep.subr.mxu0 0.0
        %2350 = vmatpush2.xpose.msra.mxu0 0.0
        %2351 = vmatprep.subr.mxu0 0.0
        %2352 = vmatpush2.xpose.msra.mxu0 0.0
        %2353 = vmatprep.subr.mxu0 0.0
        %2354 = vmatpush2.xpose.msra.mxu0 0.0
        %2355 = vmatprep.subr.mxu0 0.0
        %2356 = vmatpush2.xpose.msra.mxu0 0.0
        %2357 = vmatprep.subr.mxu0 0.0
        %2358 = vmatpush2.xpose.msra.mxu0 0.0
        %2359 = vmatprep.subr.mxu0 0.0
        %2360 = vmatpush2.xpose.msra.mxu0 0.0
        %2361 = vmatprep.subr.mxu0 0.0
        %2362 = vmatpush2.xpose.msra.mxu0 0.0
        %2363 = vmatprep.subr.mxu0 0.0
        %2364 = vmatpush2.xpose.msra.mxu0 0.0
        %2365 = vmatprep.mubr.f32.mxu0 0.0
        %2366 = vmatmul.mubr.f32.gmra.mxu0 %v2290
        %v2367 = vpop.f32.mrf.mxu0
        %v2368 = vadd.f32 0.0, %v2367
        %v2369 = vpop.f32.mrf.mxu0
        %2370 = vmatprep.mubr.f32.mxu0 0.0
        %2371 = vmatmul.mubr.f32.gmra.mxu0 %v2293
        %v2372 = vpop.f32.mrf.mxu0
        %v2373 = vadd.f32 0.0, %v2372
        %v2374 = vpop.f32.mrf.mxu0
        %2375 = vdwg.mxu0
        %vm2376 = vcmask 130048
        %v2377 = vsel %vm2376, %v2107, -inf
        %2378 = vmax.xlane.f32.xlu0 %v2377
        %v2379 = vpop.xlane.xlu0 %2378
        %v2380 = vsel %vm2376, %v2112, -inf
        %2381 = vmax.xlane.f32.xlu0 %v2380
        %v2382 = vpop.xlane.xlu0 %2381
        %v2383 = vsel %vm2376, %v2194, -inf
        %2384 = vmax.xlane.f32.xlu0 %v2383
        %v2385 = vpop.xlane.xlu0 %2384
        %v2386 = vsel %vm2376, %v2199, -inf
        %2387 = vmax.xlane.f32.xlu0 %v2386
        %v2388 = vpop.xlane.xlu0 %2387
        %v2389 = vsel %vm2376, %v2281, -inf
        %2390 = vmax.xlane.f32.xlu0 %v2389
        %v2391 = vpop.xlane.xlu0 %2390
        %v2392 = vsel %vm2376, %v2286, -inf
        %2393 = vmax.xlane.f32.xlu0 %v2392
        %v2394 = vpop.xlane.xlu0 %2393
        %v2395 = vsel %vm2376, %v2368, -inf
        %2396 = vmax.xlane.f32.xlu0 %v2395
        %v2397 = vpop.xlane.xlu0 %2396
        %v2398 = vsel %vm2376, %v2373, -inf
        %2399 = vmax.xlane.f32.xlu0 %v2398
        %v2400 = vpop.xlane.xlu0 %2399
        %v2401 = vsub.f32 %v2107, %v2379
        %v2402 = vsub.f32 %v2112, %v2382
        %v2403 = vsub.f32 %v2194, %v2385
        %v2404 = vsub.f32 %v2199, %v2388
        %v2405 = vsub.f32 %v2281, %v2391
        %v2406 = vsub.f32 %v2286, %v2394
        %v2407 = vsub.f32 %v2368, %v2397
        %v2408 = vsub.f32 %v2373, %v2400
        %v2409 = vmul.f32 %v2401, 1.442695
        %v2410 = vpow.pop %v2409
        %v2411 = vmul.f32 %v2402, 1.442695
        %v2412 = vpow.pop %v2411
        %v2413 = vmul.f32 %v2403, 1.442695
        %v2414 = vpow.pop %v2413
        %v2415 = vmul.f32 %v2404, 1.442695
        %v2416 = vpow.pop %v2415
        %v2417 = vmul.f32 %v2405, 1.442695
        %v2418 = vpow.pop %v2417
        %v2419 = vmul.f32 %v2406, 1.442695
        %v2420 = vpow.pop %v2419
        %v2421 = vmul.f32 %v2407, 1.442695
        %v2422 = vpow.pop %v2421
        %v2423 = vmul.f32 %v2408, 1.442695
        %v2424 = vpow.pop %v2423
        %v2425 = vsel %vm2376, %v2410, 0.0
        %2426 = vadd.xlane.f32.xlu0 %v2425
        %v2427 = vpop.xlane.xlu0 %2426
        %v2428 = vsel %vm2376, %v2412, 0.0
        %2429 = vadd.xlane.f32.xlu0 %v2428
        %v2430 = vpop.xlane.xlu0 %2429
        %v2431 = vsel %vm2376, %v2414, 0.0
        %2432 = vadd.xlane.f32.xlu0 %v2431
        %v2433 = vpop.xlane.xlu0 %2432
        %v2434 = vsel %vm2376, %v2416, 0.0
        %2435 = vadd.xlane.f32.xlu0 %v2434
        %v2436 = vpop.xlane.xlu0 %2435
        %v2437 = vsel %vm2376, %v2418, 0.0
        %2438 = vadd.xlane.f32.xlu0 %v2437
        %v2439 = vpop.xlane.xlu0 %2438
        %v2440 = vsel %vm2376, %v2420, 0.0
        %2441 = vadd.xlane.f32.xlu0 %v2440
        %v2442 = vpop.xlane.xlu0 %2441
        %v2443 = vsel %vm2376, %v2422, 0.0
        %2444 = vadd.xlane.f32.xlu0 %v2443
        %v2445 = vpop.xlane.xlu0 %2444
        %v2446 = vsel %vm2376, %v2424, 0.0
        %2447 = vadd.xlane.f32.xlu0 %v2446
        %v2448 = vpop.xlane.xlu0 %2447
        %v2449 = vrcp.pop %v2427
        %v2450 = vmul.f32 %v2410, %v2449
        %v2451 = vrcp.pop %v2430
        %v2452 = vmul.f32 %v2412, %v2451
        %v2453 = vrcp.pop %v2433
        %v2454 = vmul.f32 %v2414, %v2453
        %v2455 = vrcp.pop %v2436
        %v2456 = vmul.f32 %v2416, %v2455
        %v2457 = vrcp.pop %v2439
        %v2458 = vmul.f32 %v2418, %v2457
        %v2459 = vrcp.pop %v2442
        %v2460 = vmul.f32 %v2420, %v2459
        %v2461 = vrcp.pop %v2445
        %v2462 = vmul.f32 %v2422, %v2461
        %v2463 = vrcp.pop %v2448
        %v2464 = vmul.f32 %v2424, %v2463
        %v2465 = vsel %vm2376, %v2450, 0.0
        %v2466 = vsel %vm2376, %v2454, 0.0
        %v2467 = vadd.f32 %v2465, %v2466
        %v2468 = vsel %vm2376, %v2458, 0.0
        %v2469 = vadd.f32 %v2467, %v2468
        %v2470 = vsel %vm2376, %v2462, 0.0
        %v2471 = vadd.f32 %v2469, %v2470
        %v2472 = vsel %vm2376, %v2452, 0.0
        %v2473 = vsel %vm2376, %v2456, 0.0
        %v2474 = vadd.f32 %v2472, %v2473
        %v2475 = vsel %vm2376, %v2460, 0.0
        %v2476 = vadd.f32 %v2474, %v2475
        %v2477 = vsel %vm2376, %v2464, 0.0
        %v2478 = vadd.f32 %v2476, %v2477
        %v2479 = vrcp.pop 4.0
        %v2480 = vmul.f32 %v2471, %v2479
        %v2481 = vmul.f32 %v2478, %v2479
        %2482 = vst.msk [vmem:[%s846] sm:$0xff] %vm2376, %v2480
        %2483 = vst.msk [vmem:[%s846 + $0x8] sm:$0xff] %vm2376, %v2481
        %v2485 = vsel %vm2376, %v2450, 0
        %v2488 = vsel %vm2376, %v2452, 0
        %2490 = vmatprep.subr.mxu0 0.0
        %2491 = vmatpush1.msra.mxu0 0.0
        %2492 = vmatprep.subr.mxu0 0.0
        %2493 = vmatpush1.msra.mxu0 0.0
        %2494 = vmatprep.subr.mxu0 0.0
        %2495 = vmatpush1.msra.mxu0 0.0
        %2496 = vmatprep.subr.mxu0 0.0
        %2497 = vmatpush1.msra.mxu0 0.0
        %2498 = vmatprep.subr.mxu0 0.0
        %2499 = vmatpush1.msra.mxu0 0.0
        %2500 = vmatprep.subr.mxu0 0.0
        %2501 = vmatpush1.msra.mxu0 0.0
        %2502 = vmatprep.subr.mxu0 0.0
        %2503 = vmatpush1.msra.mxu0 0.0
        %2504 = vmatprep.subr.mxu0 0.0
        %2505 = vmatpush1.msra.mxu0 0.0
        %2506 = vmatprep.subr.mxu0 0.0
        %2507 = vmatpush1.msra.mxu0 0.0
        %2508 = vmatprep.subr.mxu0 0.0
        %2509 = vmatpush1.msra.mxu0 0.0
        %2510 = vmatprep.subr.mxu0 0.0
        %2511 = vmatpush1.msra.mxu0 0.0
        %2512 = vmatprep.subr.mxu0 0.0
        %2513 = vmatpush1.msra.mxu0 0.0
        %2514 = vmatprep.subr.mxu0 0.0
        %2515 = vmatpush1.msra.mxu0 0.0
        %2516 = vmatprep.subr.mxu0 0.0
        %2517 = vmatpush1.msra.mxu0 0.0
        %2518 = vmatprep.subr.mxu0 0.0
        %2519 = vmatpush1.msra.mxu0 %v2023
        %2520 = vmatprep.subr.mxu0 0.0
        %2521 = vmatpush1.msra.mxu0 %v1955
        %2522 = vmatprep.subr.mxu0 0.0
        %2523 = vmatpush2.msra.mxu0 0.0
        %2524 = vmatprep.subr.mxu0 0.0
        %2525 = vmatpush2.msra.mxu0 0.0
        %2526 = vmatprep.subr.mxu0 0.0
        %2527 = vmatpush2.msra.mxu0 0.0
        %2528 = vmatprep.subr.mxu0 0.0
        %2529 = vmatpush2.msra.mxu0 0.0
        %2530 = vmatprep.subr.mxu0 0.0
        %2531 = vmatpush2.msra.mxu0 0.0
        %2532 = vmatprep.subr.mxu0 0.0
        %2533 = vmatpush2.msra.mxu0 0.0
        %2534 = vmatprep.subr.mxu0 0.0
        %2535 = vmatpush2.msra.mxu0 0.0
        %2536 = vmatprep.subr.mxu0 0.0
        %2537 = vmatpush2.msra.mxu0 0.0
        %2538 = vmatprep.subr.mxu0 0.0
        %2539 = vmatpush2.msra.mxu0 0.0
        %2540 = vmatprep.subr.mxu0 0.0
        %2541 = vmatpush2.msra.mxu0 0.0
        %2542 = vmatprep.subr.mxu0 0.0
        %2543 = vmatpush2.msra.mxu0 0.0
        %2544 = vmatprep.subr.mxu0 0.0
        %2545 = vmatpush2.msra.mxu0 0.0
        %2546 = vmatprep.subr.mxu0 0.0
        %2547 = vmatpush2.msra.mxu0 0.0
        %2548 = vmatprep.subr.mxu0 0.0
        %2549 = vmatpush2.msra.mxu0 0.0
        %2550 = vmatprep.subr.mxu0 0.0
        %2551 = vmatpush2.msra.mxu0 0.0
        %2552 = vmatprep.subr.mxu0 0.0
        %2553 = vmatpush2.msra.mxu0 0.0
        %2554 = vmatprep.mubr.f32.mxu0 0.0
        %2555 = vmatmul.mubr.f32.gmra.mxu0 %v2485
        %v2556 = vpop.f32.mrf.mxu0
        %v2557 = vadd.f32 0.0, %v2556
        %v2558 = vpop.f32.mrf.mxu0
        %2559 = vmatprep.mubr.f32.mxu0 0.0
        %2560 = vmatmul.mubr.f32.gmra.mxu0 %v2488
        %v2561 = vpop.f32.mrf.mxu0
        %v2562 = vadd.f32 0.0, %v2561
        %v2563 = vpop.f32.mrf.mxu0
        %2564 = vdwg.mxu0
        %v2566 = vsel %vm2376, %v2454, 0
        %v2569 = vsel %vm2376, %v2456, 0
        %2571 = vmatprep.subr.mxu0 0.0
        %2572 = vmatpush1.msra.mxu0 0.0
        %2573 = vmatprep.subr.mxu0 0.0
        %2574 = vmatpush1.msra.mxu0 0.0
        %2575 = vmatprep.subr.mxu0 0.0
        %2576 = vmatpush1.msra.mxu0 0.0
        %2577 = vmatprep.subr.mxu0 0.0
        %2578 = vmatpush1.msra.mxu0 0.0
        %2579 = vmatprep.subr.mxu0 0.0
        %2580 = vmatpush1.msra.mxu0 0.0
        %2581 = vmatprep.subr.mxu0 0.0
        %2582 = vmatpush1.msra.mxu0 0.0
        %2583 = vmatprep.subr.mxu0 0.0
        %2584 = vmatpush1.msra.mxu0 0.0
        %2585 = vmatprep.subr.mxu0 0.0
        %2586 = vmatpush1.msra.mxu0 0.0
        %2587 = vmatprep.subr.mxu0 0.0
        %2588 = vmatpush1.msra.mxu0 0.0
        %2589 = vmatprep.subr.mxu0 0.0
        %2590 = vmatpush1.msra.mxu0 0.0
        %2591 = vmatprep.subr.mxu0 0.0
        %2592 = vmatpush1.msra.mxu0 0.0
        %2593 = vmatprep.subr.mxu0 0.0
        %2594 = vmatpush1.msra.mxu0 0.0
        %2595 = vmatprep.subr.mxu0 0.0
        %2596 = vmatpush1.msra.mxu0 0.0
        %2597 = vmatprep.subr.mxu0 0.0
        %2598 = vmatpush1.msra.mxu0 0.0
        %2599 = vmatprep.subr.mxu0 0.0
        %2600 = vmatpush1.msra.mxu0 %v2024
        %2601 = vmatprep.subr.mxu0 0.0
        %2602 = vmatpush1.msra.mxu0 %v1956
        %2603 = vmatprep.subr.mxu0 0.0
        %2604 = vmatpush2.msra.mxu0 0.0
        %2605 = vmatprep.subr.mxu0 0.0
        %2606 = vmatpush2.msra.mxu0 0.0
        %2607 = vmatprep.subr.mxu0 0.0
        %2608 = vmatpush2.msra.mxu0 0.0
        %2609 = vmatprep.subr.mxu0 0.0
        %2610 = vmatpush2.msra.mxu0 0.0
        %2611 = vmatprep.subr.mxu0 0.0
        %2612 = vmatpush2.msra.mxu0 0.0
        %2613 = vmatprep.subr.mxu0 0.0
        %2614 = vmatpush2.msra.mxu0 0.0
        %2615 = vmatprep.subr.mxu0 0.0
        %2616 = vmatpush2.msra.mxu0 0.0
        %2617 = vmatprep.subr.mxu0 0.0
        %2618 = vmatpush2.msra.mxu0 0.0
        %2619 = vmatprep.subr.mxu0 0.0
        %2620 = vmatpush2.msra.mxu0 0.0
        %2621 = vmatprep.subr.mxu0 0.0
        %2622 = vmatpush2.msra.mxu0 0.0
        %2623 = vmatprep.subr.mxu0 0.0
        %2624 = vmatpush2.msra.mxu0 0.0
        %2625 = vmatprep.subr.mxu0 0.0
        %2626 = vmatpush2.msra.mxu0 0.0
        %2627 = vmatprep.subr.mxu0 0.0
        %2628 = vmatpush2.msra.mxu0 0.0
        %2629 = vmatprep.subr.mxu0 0.0
        %2630 = vmatpush2.msra.mxu0 0.0
        %2631 = vmatprep.subr.mxu0 0.0
        %2632 = vmatpush2.msra.mxu0 0.0
        %2633 = vmatprep.subr.mxu0 0.0
        %2634 = vmatpush2.msra.mxu0 0.0
        %2635 = vmatprep.mubr.f32.mxu0 0.0
        %2636 = vmatmul.mubr.f32.gmra.mxu0 %v2566
        %v2637 = vpop.f32.mrf.mxu0
        %v2638 = vadd.f32 0.0, %v2637
        %v2639 = vpop.f32.mrf.mxu0
        %2640 = vmatprep.mubr.f32.mxu0 0.0
        %2641 = vmatmul.mubr.f32.gmra.mxu0 %v2569
        %v2642 = vpop.f32.mrf.mxu0
        %v2643 = vadd.f32 0.0, %v2642
        %v2644 = vpop.f32.mrf.mxu0
        %2645 = vdwg.mxu0
        %v2647 = vsel %vm2376, %v2458, 0
        %v2650 = vsel %vm2376, %v2460, 0
        %2652 = vmatprep.subr.mxu0 0.0
        %2653 = vmatpush1.msra.mxu0 0.0
        %2654 = vmatprep.subr.mxu0 0.0
        %2655 = vmatpush1.msra.mxu0 0.0
        %2656 = vmatprep.subr.mxu0 0.0
        %2657 = vmatpush1.msra.mxu0 0.0
        %2658 = vmatprep.subr.mxu0 0.0
        %2659 = vmatpush1.msra.mxu0 0.0
        %2660 = vmatprep.subr.mxu0 0.0
        %2661 = vmatpush1.msra.mxu0 0.0
        %2662 = vmatprep.subr.mxu0 0.0
        %2663 = vmatpush1.msra.mxu0 0.0
        %2664 = vmatprep.subr.mxu0 0.0
        %2665 = vmatpush1.msra.mxu0 0.0
        %2666 = vmatprep.subr.mxu0 0.0
        %2667 = vmatpush1.msra.mxu0 0.0
        %2668 = vmatprep.subr.mxu0 0.0
        %2669 = vmatpush1.msra.mxu0 0.0
        %2670 = vmatprep.subr.mxu0 0.0
        %2671 = vmatpush1.msra.mxu0 0.0
        %2672 = vmatprep.subr.mxu0 0.0
        %2673 = vmatpush1.msra.mxu0 0.0
        %2674 = vmatprep.subr.mxu0 0.0
        %2675 = vmatpush1.msra.mxu0 0.0
        %2676 = vmatprep.subr.mxu0 0.0
        %2677 = vmatpush1.msra.mxu0 0.0
        %2678 = vmatprep.subr.mxu0 0.0
        %2679 = vmatpush1.msra.mxu0 0.0
        %2680 = vmatprep.subr.mxu0 0.0
        %2681 = vmatpush1.msra.mxu0 %v2025
        %2682 = vmatprep.subr.mxu0 0.0
        %2683 = vmatpush1.msra.mxu0 %v1957
        %2684 = vmatprep.subr.mxu0 0.0
        %2685 = vmatpush2.msra.mxu0 0.0
        %2686 = vmatprep.subr.mxu0 0.0
        %2687 = vmatpush2.msra.mxu0 0.0
        %2688 = vmatprep.subr.mxu0 0.0
        %2689 = vmatpush2.msra.mxu0 0.0
        %2690 = vmatprep.subr.mxu0 0.0
        %2691 = vmatpush2.msra.mxu0 0.0
        %2692 = vmatprep.subr.mxu0 0.0
        %2693 = vmatpush2.msra.mxu0 0.0
        %2694 = vmatprep.subr.mxu0 0.0
        %2695 = vmatpush2.msra.mxu0 0.0
        %2696 = vmatprep.subr.mxu0 0.0
        %2697 = vmatpush2.msra.mxu0 0.0
        %2698 = vmatprep.subr.mxu0 0.0
        %2699 = vmatpush2.msra.mxu0 0.0
        %2700 = vmatprep.subr.mxu0 0.0
        %2701 = vmatpush2.msra.mxu0 0.0
        %2702 = vmatprep.subr.mxu0 0.0
        %2703 = vmatpush2.msra.mxu0 0.0
        %2704 = vmatprep.subr.mxu0 0.0
        %2705 = vmatpush2.msra.mxu0 0.0
        %2706 = vmatprep.subr.mxu0 0.0
        %2707 = vmatpush2.msra.mxu0 0.0
        %2708 = vmatprep.subr.mxu0 0.0
        %2709 = vmatpush2.msra.mxu0 0.0
        %2710 = vmatprep.subr.mxu0 0.0
        %2711 = vmatpush2.msra.mxu0 0.0
        %2712 = vmatprep.subr.mxu0 0.0
        %2713 = vmatpush2.msra.mxu0 0.0
        %2714 = vmatprep.subr.mxu0 0.0
        %2715 = vmatpush2.msra.mxu0 0.0
        %2716 = vmatprep.mubr.f32.mxu0 0.0
        %2717 = vmatmul.mubr.f32.gmra.mxu0 %v2647
        %v2718 = vpop.f32.mrf.mxu0
        %v2719 = vadd.f32 0.0, %v2718
        %v2720 = vpop.f32.mrf.mxu0
        %2721 = vmatprep.mubr.f32.mxu0 0.0
        %2722 = vmatmul.mubr.f32.gmra.mxu0 %v2650
        %v2723 = vpop.f32.mrf.mxu0
        %v2724 = vadd.f32 0.0, %v2723
        %v2725 = vpop.f32.mrf.mxu0
        %2726 = vdwg.mxu0
        %v2728 = vsel %vm2376, %v2462, 0
        %v2731 = vsel %vm2376, %v2464, 0
        %2733 = vmatprep.subr.mxu0 0.0
        %2734 = vmatpush1.msra.mxu0 0.0
        %2735 = vmatprep.subr.mxu0 0.0
        %2736 = vmatpush1.msra.mxu0 0.0
        %2737 = vmatprep.subr.mxu0 0.0
        %2738 = vmatpush1.msra.mxu0 0.0
        %2739 = vmatprep.subr.mxu0 0.0
        %2740 = vmatpush1.msra.mxu0 0.0
        %2741 = vmatprep.subr.mxu0 0.0
        %2742 = vmatpush1.msra.mxu0 0.0
        %2743 = vmatprep.subr.mxu0 0.0
        %2744 = vmatpush1.msra.mxu0 0.0
        %2745 = vmatprep.subr.mxu0 0.0
        %2746 = vmatpush1.msra.mxu0 0.0
        %2747 = vmatprep.subr.mxu0 0.0
        %2748 = vmatpush1.msra.mxu0 0.0
        %2749 = vmatprep.subr.mxu0 0.0
        %2750 = vmatpush1.msra.mxu0 0.0
        %2751 = vmatprep.subr.mxu0 0.0
        %2752 = vmatpush1.msra.mxu0 0.0
        %2753 = vmatprep.subr.mxu0 0.0
        %2754 = vmatpush1.msra.mxu0 0.0
        %2755 = vmatprep.subr.mxu0 0.0
        %2756 = vmatpush1.msra.mxu0 0.0
        %2757 = vmatprep.subr.mxu0 0.0
        %2758 = vmatpush1.msra.mxu0 0.0
        %2759 = vmatprep.subr.mxu0 0.0
        %2760 = vmatpush1.msra.mxu0 0.0
        %2761 = vmatprep.subr.mxu0 0.0
        %2762 = vmatpush1.msra.mxu0 %v2026
        %2763 = vmatprep.subr.mxu0 0.0
        %2764 = vmatpush1.msra.mxu0 %v1958
        %2765 = vmatprep.subr.mxu0 0.0
        %2766 = vmatpush2.msra.mxu0 0.0
        %2767 = vmatprep.subr.mxu0 0.0
        %2768 = vmatpush2.msra.mxu0 0.0
        %2769 = vmatprep.subr.mxu0 0.0
        %2770 = vmatpush2.msra.mxu0 0.0
        %2771 = vmatprep.subr.mxu0 0.0
        %2772 = vmatpush2.msra.mxu0 0.0
        %2773 = vmatprep.subr.mxu0 0.0
        %2774 = vmatpush2.msra.mxu0 0.0
        %2775 = vmatprep.subr.mxu0 0.0
        %2776 = vmatpush2.msra.mxu0 0.0
        %2777 = vmatprep.subr.mxu0 0.0
        %2778 = vmatpush2.msra.mxu0 0.0
        %2779 = vmatprep.subr.mxu0 0.0
        %2780 = vmatpush2.msra.mxu0 0.0
        %2781 = vmatprep.subr.mxu0 0.0
        %2782 = vmatpush2.msra.mxu0 0.0
        %2783 = vmatprep.subr.mxu0 0.0
        %2784 = vmatpush2.msra.mxu0 0.0
        %2785 = vmatprep.subr.mxu0 0.0
        %2786 = vmatpush2.msra.mxu0 0.0
        %2787 = vmatprep.subr.mxu0 0.0
        %2788 = vmatpush2.msra.mxu0 0.0
        %2789 = vmatprep.subr.mxu0 0.0
        %2790 = vmatpush2.msra.mxu0 0.0
        %2791 = vmatprep.subr.mxu0 0.0
        %2792 = vmatpush2.msra.mxu0 0.0
        %2793 = vmatprep.subr.mxu0 0.0
        %2794 = vmatpush2.msra.mxu0 0.0
        %2795 = vmatprep.subr.mxu0 0.0
        %2796 = vmatpush2.msra.mxu0 0.0
        %2797 = vmatprep.mubr.f32.mxu0 0.0
        %2798 = vmatmul.mubr.f32.gmra.mxu0 %v2728
        %v2799 = vpop.f32.mrf.mxu0
        %v2800 = vadd.f32 0.0, %v2799
        %v2801 = vpop.f32.mrf.mxu0
        %2802 = vmatprep.mubr.f32.mxu0 0.0
        %2803 = vmatmul.mubr.f32.gmra.mxu0 %v2731
        %v2804 = vpop.f32.mrf.mxu0
        %v2805 = vadd.f32 0.0, %v2804
        %v2806 = vpop.f32.mrf.mxu0
        %2807 = vdwg.mxu0
        %v2808 = vcombine.low %v2557, %v2719
        %v2809 = vcombine.high %v2557, %v2719
        %v2811 = vunpack.c.l.s4 1983009808
        %v2812 = vunpack.c.0.s8 %v2811
        %v2813 = vlaneseq
        %v2814 = vshrl.u32 %v2813, 7
        %v2815 = vsub.s32 %v2812, %v2814
        %v2816 = vrot.slane %v2808, %v2815
        %v2818 = vunpack.c.l.s4 1983009808
        %v2819 = vunpack.c.0.s8 %v2818
        %v2820 = vlaneseq
        %v2821 = vshrl.u32 %v2820, 7
        %v2822 = vsub.s32 %v2819, %v2821
        %v2823 = vrot.slane %v2809, %v2822
        %v2824 = vcombine.low %v2638, %v2800
        %v2825 = vcombine.high %v2638, %v2800
        %v2827 = vunpack.c.l.s4 1983009808
        %v2828 = vunpack.c.0.s8 %v2827
        %v2829 = vlaneseq
        %v2830 = vshrl.u32 %v2829, 7
        %v2831 = vsub.s32 %v2828, %v2830
        %v2832 = vrot.slane %v2824, %v2831
        %v2834 = vunpack.c.l.s4 1983009808
        %v2835 = vunpack.c.0.s8 %v2834
        %v2836 = vlaneseq
        %v2837 = vshrl.u32 %v2836, 7
        %v2838 = vsub.s32 %v2835, %v2837
        %v2839 = vrot.slane %v2825, %v2838
        %v2840 = vcombine.low %v2816, %v2832
        %v2841 = vcombine.high %v2816, %v2832
        %v2843 = vunpack.c.l.s4 1934713408
        %v2844 = vunpack.c.0.s8 %v2843
        %v2845 = vlaneseq
        %v2846 = vshrl.u32 %v2845, 7
        %v2847 = vsub.s32 %v2844, %v2846
        %v2848 = vrot.slane %v2840, %v2847
        %v2850 = vunpack.c.l.s4 1934713408
        %v2851 = vunpack.c.0.s8 %v2850
        %v2852 = vlaneseq
        %v2853 = vshrl.u32 %v2852, 7
        %v2854 = vsub.s32 %v2851, %v2853
        %v2855 = vrot.slane %v2841, %v2854
        %v2856 = vcombine.low %v2823, %v2839
        %v2857 = vcombine.high %v2823, %v2839
        %v2859 = vunpack.c.l.s4 1934713408
        %v2860 = vunpack.c.0.s8 %v2859
        %v2861 = vlaneseq
        %v2862 = vshrl.u32 %v2861, 7
        %v2863 = vsub.s32 %v2860, %v2862
        %v2864 = vrot.slane %v2856, %v2863
        %v2866 = vunpack.c.l.s4 1934713408
        %v2867 = vunpack.c.0.s8 %v2866
        %v2868 = vlaneseq
        %v2869 = vshrl.u32 %v2868, 7
        %v2870 = vsub.s32 %v2867, %v2869
        %v2871 = vrot.slane %v2857, %v2870
        %v2872 = vcombine.high %v2848, 0.0
        %v2873 = vcombine.high %v2855, 0.0
        %v2874 = vcombine.high %v2864, 0.0
        %v2875 = vcombine.high %v2871, 0.0
        %v2876 = vcombine.low %v2562, %v2724
        %v2877 = vcombine.high %v2562, %v2724
        %v2879 = vunpack.c.l.s4 1983009808
        %v2880 = vunpack.c.0.s8 %v2879
        %v2881 = vlaneseq
        %v2882 = vshrl.u32 %v2881, 7
        %v2883 = vsub.s32 %v2880, %v2882
        %v2884 = vrot.slane %v2876, %v2883
        %v2886 = vunpack.c.l.s4 1983009808
        %v2887 = vunpack.c.0.s8 %v2886
        %v2888 = vlaneseq
        %v2889 = vshrl.u32 %v2888, 7
        %v2890 = vsub.s32 %v2887, %v2889
        %v2891 = vrot.slane %v2877, %v2890
        %v2892 = vcombine.low %v2643, %v2805
        %v2893 = vcombine.high %v2643, %v2805
        %v2895 = vunpack.c.l.s4 1983009808
        %v2896 = vunpack.c.0.s8 %v2895
        %v2897 = vlaneseq
        %v2898 = vshrl.u32 %v2897, 7
        %v2899 = vsub.s32 %v2896, %v2898
        %v2900 = vrot.slane %v2892, %v2899
        %v2902 = vunpack.c.l.s4 1983009808
        %v2903 = vunpack.c.0.s8 %v2902
        %v2904 = vlaneseq
        %v2905 = vshrl.u32 %v2904, 7
        %v2906 = vsub.s32 %v2903, %v2905
        %v2907 = vrot.slane %v2893, %v2906
        %v2908 = vcombine.low %v2884, %v2900
        %v2909 = vcombine.high %v2884, %v2900
        %v2911 = vunpack.c.l.s4 1934713408
        %v2912 = vunpack.c.0.s8 %v2911
        %v2913 = vlaneseq
        %v2914 = vshrl.u32 %v2913, 7
        %v2915 = vsub.s32 %v2912, %v2914
        %v2916 = vrot.slane %v2908, %v2915
        %v2918 = vunpack.c.l.s4 1934713408
        %v2919 = vunpack.c.0.s8 %v2918
        %v2920 = vlaneseq
        %v2921 = vshrl.u32 %v2920, 7
        %v2922 = vsub.s32 %v2919, %v2921
        %v2923 = vrot.slane %v2909, %v2922
        %v2924 = vcombine.low %v2891, %v2907
        %v2925 = vcombine.high %v2891, %v2907
        %v2927 = vunpack.c.l.s4 1934713408
        %v2928 = vunpack.c.0.s8 %v2927
        %v2929 = vlaneseq
        %v2930 = vshrl.u32 %v2929, 7
        %v2931 = vsub.s32 %v2928, %v2930
        %v2932 = vrot.slane %v2924, %v2931
        %v2934 = vunpack.c.l.s4 1934713408
        %v2935 = vunpack.c.0.s8 %v2934
        %v2936 = vlaneseq
        %v2937 = vshrl.u32 %v2936, 7
        %v2938 = vsub.s32 %v2935, %v2937
        %v2939 = vrot.slane %v2925, %v2938
        %v2940 = vcombine.high %v2916, 0.0
        %v2941 = vcombine.high %v2923, 0.0
        %v2942 = vcombine.high %v2932, 0.0
        %v2943 = vcombine.high %v2939, 0.0
        %v2944 = vcombine.low %v2848, %v2855
        %v2946 = vunpack.c.l.s4 1983009808
        %v2947 = vunpack.c.0.s8 %v2946
        %v2948 = vlaneseq
        %v2949 = vshrl.u32 %v2948, 7
        %v2950 = vsub.s32 %v2947, %v2949
        %v2951 = vrot.slane %v2944, %v2950
        %v2952 = vcombine.low %v2872, %v2873
        %v2954 = vunpack.c.l.s4 1983009808
        %v2955 = vunpack.c.0.s8 %v2954
        %v2956 = vlaneseq
        %v2957 = vshrl.u32 %v2956, 7
        %v2958 = vsub.s32 %v2955, %v2957
        %v2959 = vrot.slane %v2952, %v2958
        %v2960 = vcombine.low %v2864, %v2871
        %v2962 = vunpack.c.l.s4 1983009808
        %v2963 = vunpack.c.0.s8 %v2962
        %v2964 = vlaneseq
        %v2965 = vshrl.u32 %v2964, 7
        %v2966 = vsub.s32 %v2963, %v2965
        %v2967 = vrot.slane %v2960, %v2966
        %v2968 = vcombine.low %v2874, %v2875
        %v2970 = vunpack.c.l.s4 1983009808
        %v2971 = vunpack.c.0.s8 %v2970
        %v2972 = vlaneseq
        %v2973 = vshrl.u32 %v2972, 7
        %v2974 = vsub.s32 %v2971, %v2973
        %v2975 = vrot.slane %v2968, %v2974
        %v2976 = vcombine.low %v2951, %v2959
        %v2977 = vcombine.high %v2951, %v2959
        %v2979 = vunpack.c.l.s4 1934713408
        %v2980 = vunpack.c.0.s8 %v2979
        %v2981 = vlaneseq
        %v2982 = vshrl.u32 %v2981, 7
        %v2983 = vsub.s32 %v2980, %v2982
        %v2984 = vrot.slane %v2976, %v2983
        %v2986 = vunpack.c.l.s4 1934713408
        %v2987 = vunpack.c.0.s8 %v2986
        %v2988 = vlaneseq
        %v2989 = vshrl.u32 %v2988, 7
        %v2990 = vsub.s32 %v2987, %v2989
        %v2991 = vrot.slane %v2977, %v2990
        %v2992 = vcombine.low %v2967, %v2975
        %v2993 = vcombine.high %v2967, %v2975
        %v2995 = vunpack.c.l.s4 1934713408
        %v2996 = vunpack.c.0.s8 %v2995
        %v2997 = vlaneseq
        %v2998 = vshrl.u32 %v2997, 7
        %v2999 = vsub.s32 %v2996, %v2998
        %v3000 = vrot.slane %v2992, %v2999
        %v3002 = vunpack.c.l.s4 1934713408
        %v3003 = vunpack.c.0.s8 %v3002
        %v3004 = vlaneseq
        %v3005 = vshrl.u32 %v3004, 7
        %v3006 = vsub.s32 %v3003, %v3005
        %v3007 = vrot.slane %v2993, %v3006
        %v3008 = vcombine.low %v2984, %v3000
        %v3009 = vcombine.high %v2984, %v3000
        %v3010 = vcombine.low %v2991, %v3007
        %v3011 = vcombine.high %v2991, %v3007
        %v3012 = vcombine.low %v2916, %v2923
        %v3014 = vunpack.c.l.s4 1983009808
        %v3015 = vunpack.c.0.s8 %v3014
        %v3016 = vlaneseq
        %v3017 = vshrl.u32 %v3016, 7
        %v3018 = vsub.s32 %v3015, %v3017
        %v3019 = vrot.slane %v3012, %v3018
        %v3020 = vcombine.low %v2940, %v2941
        %v3022 = vunpack.c.l.s4 1983009808
        %v3023 = vunpack.c.0.s8 %v3022
        %v3024 = vlaneseq
        %v3025 = vshrl.u32 %v3024, 7
        %v3026 = vsub.s32 %v3023, %v3025
        %v3027 = vrot.slane %v3020, %v3026
        %v3028 = vcombine.low %v2932, %v2939
        %v3030 = vunpack.c.l.s4 1983009808
        %v3031 = vunpack.c.0.s8 %v3030
        %v3032 = vlaneseq
        %v3033 = vshrl.u32 %v3032, 7
        %v3034 = vsub.s32 %v3031, %v3033
        %v3035 = vrot.slane %v3028, %v3034
        %v3036 = vcombine.low %v2942, %v2943
        %v3038 = vunpack.c.l.s4 1983009808
        %v3039 = vunpack.c.0.s8 %v3038
        %v3040 = vlaneseq
        %v3041 = vshrl.u32 %v3040, 7
        %v3042 = vsub.s32 %v3039, %v3041
        %v3043 = vrot.slane %v3036, %v3042
        %v3044 = vcombine.low %v3019, %v3027
        %v3045 = vcombine.high %v3019, %v3027
        %v3047 = vunpack.c.l.s4 1934713408
        %v3048 = vunpack.c.0.s8 %v3047
        %v3049 = vlaneseq
        %v3050 = vshrl.u32 %v3049, 7
        %v3051 = vsub.s32 %v3048, %v3050
        %v3052 = vrot.slane %v3044, %v3051
        %v3054 = vunpack.c.l.s4 1934713408
        %v3055 = vunpack.c.0.s8 %v3054
        %v3056 = vlaneseq
        %v3057 = vshrl.u32 %v3056, 7
        %v3058 = vsub.s32 %v3055, %v3057
        %v3059 = vrot.slane %v3045, %v3058
        %v3060 = vcombine.low %v3035, %v3043
        %v3061 = vcombine.high %v3035, %v3043
        %v3063 = vunpack.c.l.s4 1934713408
        %v3064 = vunpack.c.0.s8 %v3063
        %v3065 = vlaneseq
        %v3066 = vshrl.u32 %v3065, 7
        %v3067 = vsub.s32 %v3064, %v3066
        %v3068 = vrot.slane %v3060, %v3067
        %v3070 = vunpack.c.l.s4 1934713408
        %v3071 = vunpack.c.0.s8 %v3070
        %v3072 = vlaneseq
        %v3073 = vshrl.u32 %v3072, 7
        %v3074 = vsub.s32 %v3071, %v3073
        %v3075 = vrot.slane %v3061, %v3074
        %v3076 = vcombine.low %v3052, %v3068
        %v3077 = vcombine.high %v3052, %v3068
        %v3078 = vcombine.low %v3059, %v3075
        %v3079 = vcombine.high %v3059, %v3075
        %3082 = vrot.lane.b32.xlu0 %v3009, 32
        %v3083 = vpop.permute.xlu0 %3082
        %3084 = vrot.lane.b32.xlu0 %v3077, 32
        %v3085 = vpop.permute.xlu0 %3084
        %3090 = vrot.lane.b32.xlu0 %v3010, 64
        %v3091 = vpop.permute.xlu0 %3090
        %3092 = vrot.lane.b32.xlu0 %v3078, 64
        %v3093 = vpop.permute.xlu0 %3092
        %3098 = vrot.lane.b32.xlu0 %v3011, 96
        %v3099 = vpop.permute.xlu0 %3098
        %3100 = vrot.lane.b32.xlu0 %v3079, 96
        %v3101 = vpop.permute.xlu0 %3100
        %v3104 = vsel %vm2027, %v3008, %v3083
        %v3105 = vsel %vm2027, %v3076, %v3085
        %vm3106 = vcmask 523264
        %v3107 = vsel %vm3106, %v3104, %v3091
        %v3108 = vsel %vm3106, %v3105, %v3093
        %vm3109 = vcmask 785408
        %v3110 = vsel %vm3109, %v3107, %v3099
        %v3111 = vsel %vm3109, %v3108, %v3101
        %v3112 = vld [vmem:[#allocation13] sm:$0xff]
        %v3113 = vld [vmem:[#allocation13 + $0x8] sm:$0xff]
        %v3114 = vld [vmem:[#allocation13 + $0x10] sm:$0xff]
        %v3115 = vld [vmem:[#allocation13 + $0x18] sm:$0xff]
        %v3116 = vld [vmem:[#allocation13 + $0x20] sm:$0xff]
        %v3117 = vld [vmem:[#allocation13 + $0x28] sm:$0xff]
        %v3118 = vld [vmem:[#allocation13 + $0x30] sm:$0xff]
        %v3119 = vld [vmem:[#allocation13 + $0x38] sm:$0xff]
        %v3120 = vld [vmem:[#allocation13 + $0x40] sm:$0xff]
        %v3121 = vld [vmem:[#allocation13 + $0x48] sm:$0xff]
        %v3122 = vld [vmem:[#allocation13 + $0x50] sm:$0xff]
        %v3123 = vld [vmem:[#allocation13 + $0x58] sm:$0xff]
        %v3124 = vld [vmem:[#allocation13 + $0x60] sm:$0xff]
        %v3125 = vld [vmem:[#allocation13 + $0x68] sm:$0xff]
        %v3126 = vld [vmem:[#allocation13 + $0x70] sm:$0xff]
        %v3127 = vld [vmem:[#allocation13 + $0x78] sm:$0xff]
        %v3128 = vld [vmem:[%s10] sm:$0x1]
        %v3130 = vlaneseq
        %v3131 = vshrl.u32 %v3130, 7
        %v3132 = vsub.s32 0, %v3131
        %v3133 = vrot.slane %v3128, %v3132
        %3135 = vmatprep.subr.mxu0 0.0
        %3136 = vmatpush1.msra.mxu0 %v3127
        %3137 = vmatprep.subr.mxu0 0.0
        %3138 = vmatpush1.msra.mxu0 %v3126
        %3139 = vmatprep.subr.mxu0 0.0
        %3140 = vmatpush1.msra.mxu0 %v3125
        %3141 = vmatprep.subr.mxu0 0.0
        %3142 = vmatpush1.msra.mxu0 %v3124
        %3143 = vmatprep.subr.mxu0 0.0
        %3144 = vmatpush1.msra.mxu0 %v3123
        %3145 = vmatprep.subr.mxu0 0.0
        %3146 = vmatpush1.msra.mxu0 %v3122
        %3147 = vmatprep.subr.mxu0 0.0
        %3148 = vmatpush1.msra.mxu0 %v3121
        %3149 = vmatprep.subr.mxu0 0.0
        %3150 = vmatpush1.msra.mxu0 %v3120
        %3151 = vmatprep.subr.mxu0 0.0
        %3152 = vmatpush1.msra.mxu0 %v3119
        %3153 = vmatprep.subr.mxu0 0.0
        %3154 = vmatpush1.msra.mxu0 %v3118
        %3155 = vmatprep.subr.mxu0 0.0
        %3156 = vmatpush1.msra.mxu0 %v3117
        %3157 = vmatprep.subr.mxu0 0.0
        %3158 = vmatpush1.msra.mxu0 %v3116
        %3159 = vmatprep.subr.mxu0 0.0
        %3160 = vmatpush1.msra.mxu0 %v3115
        %3161 = vmatprep.subr.mxu0 0.0
        %3162 = vmatpush1.msra.mxu0 %v3114
        %3163 = vmatprep.subr.mxu0 0.0
        %3164 = vmatpush1.msra.mxu0 %v3113
        %3165 = vmatprep.subr.mxu0 0.0
        %3166 = vmatpush1.msra.mxu0 %v3112
        %3167 = vmatprep.subr.mxu0 0.0
        %3168 = vmatpush2.msra.mxu0 0.0
        %3169 = vmatprep.subr.mxu0 0.0
        %3170 = vmatpush2.msra.mxu0 0.0
        %3171 = vmatprep.subr.mxu0 0.0
        %3172 = vmatpush2.msra.mxu0 0.0
        %3173 = vmatprep.subr.mxu0 0.0
        %3174 = vmatpush2.msra.mxu0 0.0
        %3175 = vmatprep.subr.mxu0 0.0
        %3176 = vmatpush2.msra.mxu0 0.0
        %3177 = vmatprep.subr.mxu0 0.0
        %3178 = vmatpush2.msra.mxu0 0.0
        %3179 = vmatprep.subr.mxu0 0.0
        %3180 = vmatpush2.msra.mxu0 0.0
        %3181 = vmatprep.subr.mxu0 0.0
        %3182 = vmatpush2.msra.mxu0 0.0
        %3183 = vmatprep.subr.mxu0 0.0
        %3184 = vmatpush2.msra.mxu0 0.0
        %3185 = vmatprep.subr.mxu0 0.0
        %3186 = vmatpush2.msra.mxu0 0.0
        %3187 = vmatprep.subr.mxu0 0.0
        %3188 = vmatpush2.msra.mxu0 0.0
        %3189 = vmatprep.subr.mxu0 0.0
        %3190 = vmatpush2.msra.mxu0 0.0
        %3191 = vmatprep.subr.mxu0 0.0
        %3192 = vmatpush2.msra.mxu0 0.0
        %3193 = vmatprep.subr.mxu0 0.0
        %3194 = vmatpush2.msra.mxu0 0.0
        %3195 = vmatprep.subr.mxu0 0.0
        %3196 = vmatpush2.msra.mxu0 0.0
        %3197 = vmatprep.subr.mxu0 0.0
        %3198 = vmatpush2.msra.mxu0 0.0
        %3199 = vmatprep.mubr.f32.mxu0 0.0
        %3200 = vmatmul.mubr.f32.gmra.mxu0 %v3110
        %v3201 = vpop.f32.mrf.mxu0
        %v3202 = vadd.f32 %v3133, %v3201
        %v3203 = vpop.f32.mrf.mxu0
        %3204 = vmatprep.mubr.f32.mxu0 0.0
        %3205 = vmatmul.mubr.f32.gmra.mxu0 %v3111
        %v3206 = vpop.f32.mrf.mxu0
        %v3207 = vadd.f32 %v3133, %v3206
        %v3208 = vpop.f32.mrf.mxu0
        %3209 = vdwg.mxu0
        %v3210 = vadd.f32 %v851, %v3202
        %v3211 = vadd.f32 %v852, %v3207
        %3212 = vadd.xlane.f32.xlu0 %v3210
        %v3213 = vpop.xlane.xlu0 %3212
        %3214 = vadd.xlane.f32.xlu0 %v3211
        %v3215 = vpop.xlane.xlu0 %3214
        %v3216 = vrcp.pop 128.0
        %v3217 = vmul.f32 %v3213, %v3216
        %v3218 = vmul.f32 %v3215, %v3216
        %v3219 = vsub.f32 %v3210, %v3217
        %v3220 = vsub.f32 %v3211, %v3218
        %v3221 = vmul.f32 %v3219, %v3219
        %v3222 = vmul.f32 %v3220, %v3220
        %3223 = vadd.xlane.f32.xlu0 %v3221
        %v3224 = vpop.xlane.xlu0 %3223
        %3225 = vadd.xlane.f32.xlu0 %v3222
        %v3226 = vpop.xlane.xlu0 %3225
        %v3227 = vmul.f32 %v3224, %v3216
        %v3228 = vmul.f32 %v3226, %v3216
        %v3229 = vadd.f32 %v3227, 1e-05
        %v3230 = vadd.f32 %v3228, 1e-05
        %v3231 = vrsqrt.pop %v3229
        %v3232 = vrsqrt.pop %v3230
        %v3233 = vmul.f32 %v3219, %v3231
        %v3234 = vmul.f32 %v3220, %v3232
        %v3235 = vld [vmem:[%s11] sm:$0x1]
        %v3237 = vlaneseq
        %v3238 = vshrl.u32 %v3237, 7
        %v3239 = vsub.s32 0, %v3238
        %v3240 = vrot.slane %v3235, %v3239
        %v3242 = vmul.f32 %v3233, %v3240
        %v3243 = vmul.f32 %v3234, %v3240
        %v3244 = vld [vmem:[%s12] sm:$0x1]
        %v3246 = vlaneseq
        %v3247 = vshrl.u32 %v3246, 7
        %v3248 = vsub.s32 0, %v3247
        %v3249 = vrot.slane %v3244, %v3248
        %v3251 = vadd.f32 %v3242, %v3249
        %v3252 = vadd.f32 %v3243, %v3249
        %v3253 = vld [vmem:[#allocation14] sm:$0xff]
        %v3254 = vld [vmem:[#allocation14 + $0x8] sm:$0xff]
        %v3255 = vld [vmem:[#allocation14 + $0x10] sm:$0xff]
        %v3256 = vld [vmem:[#allocation14 + $0x18] sm:$0xff]
        %v3257 = vld [vmem:[#allocation14 + $0x20] sm:$0xff]
        %v3258 = vld [vmem:[#allocation14 + $0x28] sm:$0xff]
        %v3259 = vld [vmem:[#allocation14 + $0x30] sm:$0xff]
        %v3260 = vld [vmem:[#allocation14 + $0x38] sm:$0xff]
        %v3261 = vld [vmem:[#allocation14 + $0x40] sm:$0xff]
        %v3262 = vld [vmem:[#allocation14 + $0x48] sm:$0xff]
        %v3263 = vld [vmem:[#allocation14 + $0x50] sm:$0xff]
        %v3264 = vld [vmem:[#allocation14 + $0x58] sm:$0xff]
        %v3265 = vld [vmem:[#allocation14 + $0x60] sm:$0xff]
        %v3266 = vld [vmem:[#allocation14 + $0x68] sm:$0xff]
        %v3267 = vld [vmem:[#allocation14 + $0x70] sm:$0xff]
        %v3268 = vld [vmem:[#allocation14 + $0x78] sm:$0xff]
        %v3269 = vld [vmem:[#allocation14 + $0x80] sm:$0xff]
        %v3270 = vld [vmem:[#allocation14 + $0x88] sm:$0xff]
        %v3271 = vld [vmem:[#allocation14 + $0x90] sm:$0xff]
        %v3272 = vld [vmem:[#allocation14 + $0x98] sm:$0xff]
        %v3273 = vld [vmem:[#allocation14 + $0xa0] sm:$0xff]
        %v3274 = vld [vmem:[#allocation14 + $0xa8] sm:$0xff]
        %v3275 = vld [vmem:[#allocation14 + $0xb0] sm:$0xff]
        %v3276 = vld [vmem:[#allocation14 + $0xb8] sm:$0xff]
        %v3277 = vld [vmem:[#allocation14 + $0xc0] sm:$0xff]
        %v3278 = vld [vmem:[#allocation14 + $0xc8] sm:$0xff]
        %v3279 = vld [vmem:[#allocation14 + $0xd0] sm:$0xff]
        %v3280 = vld [vmem:[#allocation14 + $0xd8] sm:$0xff]
        %v3281 = vld [vmem:[#allocation14 + $0xe0] sm:$0xff]
        %v3282 = vld [vmem:[#allocation14 + $0xe8] sm:$0xff]
        %v3283 = vld [vmem:[#allocation14 + $0xf0] sm:$0xff]
        %v3284 = vld [vmem:[#allocation14 + $0xf8] sm:$0xff]
        %v3285 = vld [vmem:[%s14] sm:$0x3]
        %v3287 = vlaneseq
        %v3288 = vshrl.u32 %v3287, 7
        %v3289 = vsub.s32 0, %v3288
        %v3290 = vrot.slane %v3285, %v3289
        %v3291 = vlaneseq
        %v3292 = vshrl.u32 %v3291, 7
        %v3293 = vsub.s32 1, %v3292
        %v3294 = vrot.slane %v3285, %v3293
        %3297 = vmatprep.subr.mxu0 %v3284
        %3298 = vmatpush1.msra.mxu0 %v3283
        %3299 = vmatprep.subr.mxu0 %v3282
        %3300 = vmatpush1.msra.mxu0 %v3281
        %3301 = vmatprep.subr.mxu0 %v3280
        %3302 = vmatpush1.msra.mxu0 %v3279
        %3303 = vmatprep.subr.mxu0 %v3278
        %3304 = vmatpush1.msra.mxu0 %v3277
        %3305 = vmatprep.subr.mxu0 %v3276
        %3306 = vmatpush1.msra.mxu0 %v3275
        %3307 = vmatprep.subr.mxu0 %v3274
        %3308 = vmatpush1.msra.mxu0 %v3273
        %3309 = vmatprep.subr.mxu0 %v3272
        %3310 = vmatpush1.msra.mxu0 %v3271
        %3311 = vmatprep.subr.mxu0 %v3270
        %3312 = vmatpush1.msra.mxu0 %v3269
        %3313 = vmatprep.subr.mxu0 %v3268
        %3314 = vmatpush1.msra.mxu0 %v3267
        %3315 = vmatprep.subr.mxu0 %v3266
        %3316 = vmatpush1.msra.mxu0 %v3265
        %3317 = vmatprep.subr.mxu0 %v3264
        %3318 = vmatpush1.msra.mxu0 %v3263
        %3319 = vmatprep.subr.mxu0 %v3262
        %3320 = vmatpush1.msra.mxu0 %v3261
        %3321 = vmatprep.subr.mxu0 %v3260
        %3322 = vmatpush1.msra.mxu0 %v3259
        %3323 = vmatprep.subr.mxu0 %v3258
        %3324 = vmatpush1.msra.mxu0 %v3257
        %3325 = vmatprep.subr.mxu0 %v3256
        %3326 = vmatpush1.msra.mxu0 %v3255
        %3327 = vmatprep.subr.mxu0 %v3254
        %3328 = vmatpush1.msra.mxu0 %v3253
        %3329 = vmatprep.subr.mxu0 0.0
        %3330 = vmatpush2.msra.mxu0 0.0
        %3331 = vmatprep.subr.mxu0 0.0
        %3332 = vmatpush2.msra.mxu0 0.0
        %3333 = vmatprep.subr.mxu0 0.0
        %3334 = vmatpush2.msra.mxu0 0.0
        %3335 = vmatprep.subr.mxu0 0.0
        %3336 = vmatpush2.msra.mxu0 0.0
        %3337 = vmatprep.subr.mxu0 0.0
        %3338 = vmatpush2.msra.mxu0 0.0
        %3339 = vmatprep.subr.mxu0 0.0
        %3340 = vmatpush2.msra.mxu0 0.0
        %3341 = vmatprep.subr.mxu0 0.0
        %3342 = vmatpush2.msra.mxu0 0.0
        %3343 = vmatprep.subr.mxu0 0.0
        %3344 = vmatpush2.msra.mxu0 0.0
        %3345 = vmatprep.subr.mxu0 0.0
        %3346 = vmatpush2.msra.mxu0 0.0
        %3347 = vmatprep.subr.mxu0 0.0
        %3348 = vmatpush2.msra.mxu0 0.0
        %3349 = vmatprep.subr.mxu0 0.0
        %3350 = vmatpush2.msra.mxu0 0.0
        %3351 = vmatprep.subr.mxu0 0.0
        %3352 = vmatpush2.msra.mxu0 0.0
        %3353 = vmatprep.subr.mxu0 0.0
        %3354 = vmatpush2.msra.mxu0 0.0
        %3355 = vmatprep.subr.mxu0 0.0
        %3356 = vmatpush2.msra.mxu0 0.0
        %3357 = vmatprep.subr.mxu0 0.0
        %3358 = vmatpush2.msra.mxu0 0.0
        %3359 = vmatprep.subr.mxu0 0.0
        %3360 = vmatpush2.msra.mxu0 0.0
        %3361 = vmatprep.mubr.f32.mxu0 0.0
        %3362 = vmatmul.mubr.f32.gmra.mxu0 %v3251
        %v3363 = vpop.f32.mrf.mxu0
        %v3364 = vadd.f32 %v3290, %v3363
        %v3365 = vpop.f32.mrf.mxu0
        %v3366 = vadd.f32 %v3294, %v3365
        %3367 = vmatprep.mubr.f32.mxu0 0.0
        %3368 = vmatmul.mubr.f32.gmra.mxu0 %v3252
        %v3369 = vpop.f32.mrf.mxu0
        %v3370 = vadd.f32 %v3290, %v3369
        %v3371 = vpop.f32.mrf.mxu0
        %v3372 = vadd.f32 %v3294, %v3371
        %3373 = vdwg.mxu0
        %v3374 = vmax.f32 %v3364, 0.0
        %v3375 = vmax.f32 %v3366, 0.0
        %v3376 = vmax.f32 %v3370, 0.0
        %v3377 = vmax.f32 %v3372, 0.0
        %v3378 = vld [vmem:[#allocation16] sm:$0xff]
        %v3379 = vld [vmem:[#allocation16 + $0x8] sm:$0xff]
        %v3380 = vld [vmem:[#allocation16 + $0x10] sm:$0xff]
        %v3381 = vld [vmem:[#allocation16 + $0x18] sm:$0xff]
        %v3382 = vld [vmem:[#allocation16 + $0x20] sm:$0xff]
        %v3383 = vld [vmem:[#allocation16 + $0x28] sm:$0xff]
        %v3384 = vld [vmem:[#allocation16 + $0x30] sm:$0xff]
        %v3385 = vld [vmem:[#allocation16 + $0x38] sm:$0xff]
        %v3386 = vld [vmem:[#allocation16 + $0x40] sm:$0xff]
        %v3387 = vld [vmem:[#allocation16 + $0x48] sm:$0xff]
        %v3388 = vld [vmem:[#allocation16 + $0x50] sm:$0xff]
        %v3389 = vld [vmem:[#allocation16 + $0x58] sm:$0xff]
        %v3390 = vld [vmem:[#allocation16 + $0x60] sm:$0xff]
        %v3391 = vld [vmem:[#allocation16 + $0x68] sm:$0xff]
        %v3392 = vld [vmem:[#allocation16 + $0x70] sm:$0xff]
        %v3393 = vld [vmem:[#allocation16 + $0x78] sm:$0xff]
        %v3394 = vld [vmem:[#allocation16 + $0x80] sm:$0xff]
        %v3395 = vld [vmem:[#allocation16 + $0x88] sm:$0xff]
        %v3396 = vld [vmem:[#allocation16 + $0x90] sm:$0xff]
        %v3397 = vld [vmem:[#allocation16 + $0x98] sm:$0xff]
        %v3398 = vld [vmem:[#allocation16 + $0xa0] sm:$0xff]
        %v3399 = vld [vmem:[#allocation16 + $0xa8] sm:$0xff]
        %v3400 = vld [vmem:[#allocation16 + $0xb0] sm:$0xff]
        %v3401 = vld [vmem:[#allocation16 + $0xb8] sm:$0xff]
        %v3402 = vld [vmem:[#allocation16 + $0xc0] sm:$0xff]
        %v3403 = vld [vmem:[#allocation16 + $0xc8] sm:$0xff]
        %v3404 = vld [vmem:[#allocation16 + $0xd0] sm:$0xff]
        %v3405 = vld [vmem:[#allocation16 + $0xd8] sm:$0xff]
        %v3406 = vld [vmem:[#allocation16 + $0xe0] sm:$0xff]
        %v3407 = vld [vmem:[#allocation16 + $0xe8] sm:$0xff]
        %v3408 = vld [vmem:[#allocation16 + $0xf0] sm:$0xff]
        %v3409 = vld [vmem:[#allocation16 + $0xf8] sm:$0xff]
        %v3410 = vld [vmem:[%s16] sm:$0x1]
        %v3412 = vlaneseq
        %v3413 = vshrl.u32 %v3412, 7
        %v3414 = vsub.s32 0, %v3413
        %v3415 = vrot.slane %v3410, %v3414
        %3417 = vmatprep.subr.mxu0 0.0
        %3418 = vmatpush1.msra.mxu0 %v3393
        %3419 = vmatprep.subr.mxu0 0.0
        %3420 = vmatpush1.msra.mxu0 %v3392
        %3421 = vmatprep.subr.mxu0 0.0
        %3422 = vmatpush1.msra.mxu0 %v3391
        %3423 = vmatprep.subr.mxu0 0.0
        %3424 = vmatpush1.msra.mxu0 %v3390
        %3425 = vmatprep.subr.mxu0 0.0
        %3426 = vmatpush1.msra.mxu0 %v3389
        %3427 = vmatprep.subr.mxu0 0.0
        %3428 = vmatpush1.msra.mxu0 %v3388
        %3429 = vmatprep.subr.mxu0 0.0
        %3430 = vmatpush1.msra.mxu0 %v3387
        %3431 = vmatprep.subr.mxu0 0.0
        %3432 = vmatpush1.msra.mxu0 %v3386
        %3433 = vmatprep.subr.mxu0 0.0
        %3434 = vmatpush1.msra.mxu0 %v3385
        %3435 = vmatprep.subr.mxu0 0.0
        %3436 = vmatpush1.msra.mxu0 %v3384
        %3437 = vmatprep.subr.mxu0 0.0
        %3438 = vmatpush1.msra.mxu0 %v3383
        %3439 = vmatprep.subr.mxu0 0.0
        %3440 = vmatpush1.msra.mxu0 %v3382
        %3441 = vmatprep.subr.mxu0 0.0
        %3442 = vmatpush1.msra.mxu0 %v3381
        %3443 = vmatprep.subr.mxu0 0.0
        %3444 = vmatpush1.msra.mxu0 %v3380
        %3445 = vmatprep.subr.mxu0 0.0
        %3446 = vmatpush1.msra.mxu0 %v3379
        %3447 = vmatprep.subr.mxu0 0.0
        %3448 = vmatpush1.msra.mxu0 %v3378
        %3449 = vmatprep.subr.mxu0 0.0
        %3450 = vmatpush2.msra.mxu0 %v3409
        %3451 = vmatprep.subr.mxu0 0.0
        %3452 = vmatpush2.msra.mxu0 %v3408
        %3453 = vmatprep.subr.mxu0 0.0
        %3454 = vmatpush2.msra.mxu0 %v3407
        %3455 = vmatprep.subr.mxu0 0.0
        %3456 = vmatpush2.msra.mxu0 %v3406
        %3457 = vmatprep.subr.mxu0 0.0
        %3458 = vmatpush2.msra.mxu0 %v3405
        %3459 = vmatprep.subr.mxu0 0.0
        %3460 = vmatpush2.msra.mxu0 %v3404
        %3461 = vmatprep.subr.mxu0 0.0
        %3462 = vmatpush2.msra.mxu0 %v3403
        %3463 = vmatprep.subr.mxu0 0.0
        %3464 = vmatpush2.msra.mxu0 %v3402
        %3465 = vmatprep.subr.mxu0 0.0
        %3466 = vmatpush2.msra.mxu0 %v3401
        %3467 = vmatprep.subr.mxu0 0.0
        %3468 = vmatpush2.msra.mxu0 %v3400
        %3469 = vmatprep.subr.mxu0 0.0
        %3470 = vmatpush2.msra.mxu0 %v3399
        %3471 = vmatprep.subr.mxu0 0.0
        %3472 = vmatpush2.msra.mxu0 %v3398
        %3473 = vmatprep.subr.mxu0 0.0
        %3474 = vmatpush2.msra.mxu0 %v3397
        %3475 = vmatprep.subr.mxu0 0.0
        %3476 = vmatpush2.msra.mxu0 %v3396
        %3477 = vmatprep.subr.mxu0 0.0
        %3478 = vmatpush2.msra.mxu0 %v3395
        %3479 = vmatprep.subr.mxu0 0.0
        %3480 = vmatpush2.msra.mxu0 %v3394
        %3481 = vmatprep.mubr.f32.mxu0 %v3375
        %3482 = vmatmul.mubr.f32.gmra.mxu0 %v3374
        %v3483 = vpop.f32.mrf.mxu0
        %v3484 = vadd.f32 %v3415, %v3483
        %v3485 = vpop.f32.mrf.mxu0
        %3486 = vmatprep.mubr.f32.mxu0 %v3377
        %3487 = vmatmul.mubr.f32.gmra.mxu0 %v3376
        %v3488 = vpop.f32.mrf.mxu0
        %v3489 = vadd.f32 %v3415, %v3488
        %v3490 = vpop.f32.mrf.mxu0
        %3491 = vdwg.mxu0
        %v3492 = vadd.f32 %v3251, %v3484
        %v3493 = vadd.f32 %v3252, %v3489
        %3494 = vadd.xlane.f32.xlu0 %v3492
        %v3495 = vpop.xlane.xlu0 %3494
        %3496 = vadd.xlane.f32.xlu0 %v3493
        %v3497 = vpop.xlane.xlu0 %3496
        %v3498 = vmul.f32 %v3495, %v3216
        %v3499 = vmul.f32 %v3497, %v3216
        %v3500 = vsub.f32 %v3492, %v3498
        %v3501 = vsub.f32 %v3493, %v3499
        %v3502 = vmul.f32 %v3500, %v3500
        %v3503 = vmul.f32 %v3501, %v3501
        %3504 = vadd.xlane.f32.xlu0 %v3502
        %v3505 = vpop.xlane.xlu0 %3504
        %3506 = vadd.xlane.f32.xlu0 %v3503
        %v3507 = vpop.xlane.xlu0 %3506
        %v3508 = vmul.f32 %v3505, %v3216
        %v3509 = vmul.f32 %v3507, %v3216
        %v3510 = vadd.f32 %v3508, 1e-05
        %v3511 = vadd.f32 %v3509, 1e-05
        %v3512 = vrsqrt.pop %v3510
        %v3513 = vrsqrt.pop %v3511
        %v3514 = vmul.f32 %v3500, %v3512
        %v3515 = vmul.f32 %v3501, %v3513
        %v3516 = vld [vmem:[%s17] sm:$0x1]
        %v3518 = vlaneseq
        %v3519 = vshrl.u32 %v3518, 7
        %v3520 = vsub.s32 0, %v3519
        %v3521 = vrot.slane %v3516, %v3520
        %v3523 = vmul.f32 %v3514, %v3521
        %v3524 = vmul.f32 %v3515, %v3521
        %v3525 = vld [vmem:[%s18] sm:$0x1]
        %v3527 = vlaneseq
        %v3528 = vshrl.u32 %v3527, 7
        %v3529 = vsub.s32 0, %v3528
        %v3530 = vrot.slane %v3525, %v3529
        %v3532 = vadd.f32 %v3523, %v3530
        %v3533 = vadd.f32 %v3524, %v3530
        %3534 = vst [vmem:[%s839] sm:$0xff] %v3532
        %3535 = vst [vmem:[%s839 + $0x8] sm:$0xff] %v3533
        %s3536 = sand.u32 %s487, 1
        %s3537 = scalar_lea.sflag [#allocation4], %s3536
        %s3538 = sand.u32 %s487, 1
        %s3539 = smul.addr %s3538, 16
        %s3540 = scalar_lea.vmem [#allocation17], %s3539
        %s3541 = sand.u32 %s515, 1
        %s3542 = scalar_lea.sflag [#allocation19], %s3541
        %s3543 = sand.u32 %s515, 1
        %s3544 = smul.addr %s3543, 16
        %s3545 = scalar_lea.vmem [#allocation18], %s3544
        // Predicated region
        $region133: #{tpu_custom_call.1} parent=95 // pred_check
          %p3546 = pneg %p497
        $region134: #{tpu_custom_call.1} parent=95 // pred_check_branch
          %3548 = sbr.rel (%p3546) target = $region136
        $region135: #{tpu_custom_call.1} parent=95 // pred_region
          %s3549 = smul.u32 2, %s52
          %s3551 = ssub.s32 256, 256
          %3552 = vsyncadd %s3537, %s3551
          %s3553 = smul.addr %s51, 2
          %s3554 = sadd.s32 %s3549, %s3553
          %s3555 = smul.addr %s3554, 128
          %s3556 = scalar_lea.hbm %s19, %s3555
          %s3557 = sshll.u32 %s3540, 4
          %s3558 = int_to_ptr.vmem [resolvable:$true] %s3557
          %3563 = dma.vmem_to_hbm [thread:$0]  %s3558, 256, %s3556, %s3537, 128, 128, 8
        $region136: #{tpu_custom_call.1} parent=95 // pred_fallthru
          _
        // Predicated region
        $region137: #{tpu_custom_call.1} parent=95 // pred_check
          %p3564 = pneg %p525
        $region138: #{tpu_custom_call.1} parent=95 // pred_check_branch
          %3566 = sbr.rel (%p3564) target = $region140
        $region139: #{tpu_custom_call.1} parent=95 // pred_region
          %s3567 = smul.u32 2, %s52
          %s3569 = ssub.s32 256, 256
          %3570 = vsyncadd %s3542, %s3569
          %s3571 = smul.addr %s51, 2
          %s3572 = sadd.s32 %s3567, %s3571
          %s3573 = smul.addr %s3572, 128
          %s3574 = scalar_lea.hbm %s20, %s3573
          %s3575 = sshll.u32 %s3545, 4
          %s3576 = int_to_ptr.vmem [resolvable:$true] %s3575
          %3581 = dma.vmem_to_hbm [thread:$0]  %s3576, 256, %s3574, %s3542, 128, 128, 8
        $region140: #{tpu_custom_call.1} parent=95 // pred_fallthru
          _
      $region96: #{tpu_custom_call.1} parent=5 // pred_fallthru
        _
      %p3582 = scmp.le.s32.totalorder 2, %s42
      // Predicated region
      $region141: #{tpu_custom_call.1} parent=5 // pred_check
        %p3583 = pneg %p3582
      $region142: #{tpu_custom_call.1} parent=5 // pred_check_branch
        %3585 = sbr.rel (%p3583) target = $region144
      $region143: #{tpu_custom_call.1} parent=5 // pred_region
        %s3586 = ssub.s32 %s42, 2
        // Predicated region
        $region145: #{tpu_custom_call.1} parent=143 // pred_check
          %p3587 = pneg %p503
        $region146: #{tpu_custom_call.1} parent=143 // pred_check_branch
          %3589 = sbr.rel (%p3587) target = $region148
        $region147: #{tpu_custom_call.1} parent=143 // pred_region
          %s3590 = sand.u32 %s488, 1
          %s3591 = scalar_lea.sflag [#allocation4], %s3590
          %s3592 = sand.u32 %s488, 1
          %s3593 = smul.addr %s3592, 16
          %s3594 = scalar_lea.vmem [#allocation17], %s3593
          %3595 = dma.done %s3591, 256
        $region148: #{tpu_custom_call.1} parent=143 // pred_fallthru
          _
        // Predicated region
        $region149: #{tpu_custom_call.1} parent=143 // pred_check
          %p3596 = pneg %p531
        $region150: #{tpu_custom_call.1} parent=143 // pred_check_branch
          %3598 = sbr.rel (%p3596) target = $region152
        $region151: #{tpu_custom_call.1} parent=143 // pred_region
          %s3599 = sand.u32 %s516, 1
          %s3600 = scalar_lea.sflag [#allocation19], %s3599
          %s3601 = sand.u32 %s516, 1
          %s3602 = smul.addr %s3601, 16
          %s3603 = scalar_lea.vmem [#allocation18], %s3602
          %3604 = dma.done %s3600, 256
        $region152: #{tpu_custom_call.1} parent=143 // pred_fallthru
          _
      $region144: #{tpu_custom_call.1} parent=5 // pred_fallthru
        _
    $region6: #{tpu_custom_call.1} parent=1 // loop_footer
      %s46 = sadd.s32 1, %s42
    $region7: #{tpu_custom_call.1} parent=1 // loop_footer_branch
      %41 = sbr.rel target = $region3
    $region8: #{tpu_custom_call.1} parent=1 // loop_exit
      _
    %3605 = vsyncpa [#allocation3], 1
    %s3606 = scalar_lea.sflag [#allocation3], 1
    %3607 = vsyncpa %s3606, 1
    %3608 = vsyncpa [#allocation6], 1
    %s3609 = scalar_lea.sflag [#allocation6], 1
    %3610 = vsyncpa %s3609, 1
    %3611 = vsyncpa [#allocation9], 1
    %3612 = vsyncpa [#allocation12], 1
    %3613 = vsyncpa [#allocation15], 1
    %3614 = vsyncpa [#allocation4], 1
    %s3615 = scalar_lea.sflag [#allocation4], 1
    %3616 = vsyncpa %s3615, 1
    %3617 = vsyncpa [#allocation19], 1
    %s3618 = scalar_lea.sflag [#allocation19], 1
    %3619 = vsyncpa %s3618, 1

// kernel: tpu_custom_call.1
$region0: #{tpu_custom_call.1}
  #allocation0 [shape = 'u32[]', space=smem, size = 0x4, offset = 0x4, fixed_abs, tag = 'smem constant byte address 0x4 - core index']
  #allocation1 [shape = 'u32[144,128]{1,0:T(1,128)}', space=vmem, size = 0x12000, scoped, tag = 'internal scratch']
  %s0 = inlined_call_operand.hbm [shape: f32[2,16,128], index: 0, kind: input, shape index: {}]
  %s1 = inlined_call_operand.hbm [shape: f32[2,16,128], index: 1, kind: input, shape index: {}]
  %s2 = inlined_call_operand.hbm [shape: f32[2,16,128], index: 2, kind: input, shape index: {}]
  %s3 = inlined_call_operand.hbm [shape: f32[128,128], index: 3, kind: input, shape index: {}]
  %s4 = inlined_call_operand.hbm [shape: f32[128,128], index: 4, kind: input, shape index: {}]
  %s5 = inlined_call_operand.hbm [shape: f32[128,128], index: 5, kind: input, shape index: {}]
  %s6 = inlined_call_operand.vmem [shape: f32[1,128], index: 6, kind: input, shape index: {}]
  %s7 = inlined_call_operand.vmem [shape: f32[1,128], index: 7, kind: input, shape index: {}]
  %s8 = inlined_call_operand.vmem [shape: f32[1,128], index: 8, kind: input, shape index: {}]
  %s9 = inlined_call_operand.hbm [shape: f32[128,128], index: 9, kind: input, shape index: {}]
  %s10 = inlined_call_operand.vmem [shape: f32[1,128], index: 10, kind: input, shape index: {}]
  %s11 = inlined_call_operand.vmem [shape: f32[1,128], index: 11, kind: input, shape index: {}]
  %s12 = inlined_call_operand.vmem [shape: f32[1,128], index: 12, kind: input, shape index: {}]
  %s13 = inlined_call_operand.hbm [shape: f32[128,256], index: 13, kind: input, shape index: {}]
  %s14 = inlined_call_operand.vmem [shape: f32[1,256], index: 14, kind: input, shape index: {}]
  %s15 = inlined_call_operand.hbm [shape: f32[256,128], index: 15, kind: input, shape index: {}]
  %s16 = inlined_call_operand.vmem [shape: f32[1,128], index: 16, kind: input, shape index: {}]
  %s17 = inlined_call_operand.vmem [shape: f32[1,128], index: 17, kind: input, shape index: {}]
  %s18 = inlined_call_operand.vmem [shape: f32[1,128], index: 18, kind: input, shape index: {}]
  %s19 = inlined_call_operand.hbm [shape: f32[2,16,128], index: 19, kind: output, shape index: {0}]
  %s20 = inlined_call_operand.hbm [shape: f32[2,16,16], index: 20, kind: output, shape index: {1}]
  %21 = xla_tuple %s19, %s20
  %s22 = sld [smem:[#allocation0]]
  $region153: #{tpu_custom_call.1} parent=0
    _
  %s24 = ssub.s32 1, %s22
  %s25 = scalar_select 0, %s24, %s22
  $region1: #{tpu_custom_call.1} parent=0
    #allocation2 [shape = 'u8[16384]{0}', space=vmem, size = 0x4000, scoped, tag = 'input window, operand 0']
    #allocation3 [shape = 's32[2]{0}', space=sflag, size = 0x8, scoped, tag = 'scoped memory for tpu_custom_call.1']
    #allocation4 [shape = 's32[2]{0}', space=sflag, size = 0x8, scoped, tag = 'scoped memory for tpu_custom_call.1']
    #allocation5 [shape = 'u8[16384]{0}', space=vmem, size = 0x4000, scoped, tag = 'input window, operand 1']
    #allocation6 [shape = 's32[2]{0}', space=sflag, size = 0x8, scoped, tag = 'scoped memory for tpu_custom_call.1']
    #allocation7 [shape = 'u8[16384]{0}', space=vmem, size = 0x4000, scoped, tag = 'input window, operand 2']
    #allocation8 [shape = 'u8[65536]{0}', space=vmem, size = 0x10000, scoped, tag = 'input window, operand 3, single buffered']
    #allocation9 [shape = 's32[1]{0}', space=sflag, size = 0x4, scoped, tag = 'scoped memory for tpu_custom_call.1']
    #allocation10 [shape = 'u8[65536]{0}', space=vmem, size = 0x10000, scoped, tag = 'input window, operand 4, single buffered']
    #allocation11 [shape = 'u8[65536]{0}', space=vmem, size = 0x10000, scoped, tag = 'input window, operand 5, single buffered']
    #allocation12 [shape = 's32[1]{0}', space=sflag, size = 0x4, scoped, tag = 'scoped memory for tpu_custom_call.1']
    #allocation13 [shape = 'u8[65536]{0}', space=vmem, size = 0x10000, scoped, tag = 'input window, operand 9, single buffered']
    #allocation14 [shape = 'u8[131072]{0}', space=vmem, size = 0x20000, scoped, tag = 'input window, operand 13, single buffered']
    #allocation15 [shape = 's32[1]{0}', space=sflag, size = 0x4, scoped, tag = 'scoped memory for tpu_custom_call.1']
    #allocation16 [shape = 'u8[131072]{0}', space=vmem, size = 0x20000, scoped, tag = 'input window, operand 15, single buffered']
    #allocation17 [shape = 'u8[16384]{0}', space=vmem, size = 0x4000, scoped, tag = 'output window, operand 0']
    #allocation18 [shape = 'u8[16384]{0}', space=vmem, size = 0x4000, scoped, tag = 'output window, operand 1']
    #allocation19 [shape = 's32[2]{0}', space=sflag, size = 0x8, scoped, tag = 'scoped memory for tpu_custom_call.1']
    %26 = vsyncpa [#allocation3], 0
    %s27 = scalar_lea.sflag [#allocation3], 1
    %28 = vsyncpa %s27, 0
    %29 = vsyncpa [#allocation6], 0
    %s30 = scalar_lea.sflag [#allocation6], 1
    %31 = vsyncpa %s30, 0
    %32 = vsyncpa [#allocation9], 0
    %33 = vsyncpa [#allocation12], 0
    %34 = vsyncpa [#allocation15], 0
    %35 = vsyncpa [#allocation4], 0
    %s36 = scalar_lea.sflag [#allocation4], 1
    %37 = vsyncpa %s36, 0
    %38 = vsyncpa [#allocation19], 0
    %s39 = scalar_lea.sflag [#allocation19], 1
    %40 = vsyncpa %s39, 0
    loop: start=0, step=1, limit=4
    $region2: #{tpu_custom_call.1} parent=1 // loop_pre_header
      _
    $region3: #{tpu_custom_call.1} parent=1 // loop_header
      %s42 = sphi 0, %s46
      %p43 = scmp.ge.s32.totalorder %s42, 4
      %s49 = sphi 0, %s61
      %s50 = sphi 0, %s57
      %s51 = sphi 0, %s49
      %s52 = sphi 0, %s50
      %s53 = sphi 0, %s51
      %s54 = sphi 0, %s52
      %s66 = sphi 0, %s68
      %s69 = sphi 0, %s66
      %s70 = sphi 0, %s69
      %s86 = sphi 0, %s70
      %s94 = sphi 0, %s96
      %s97 = sphi 0, %s94
      %s98 = sphi 0, %s97
      %s114 = sphi 0, %s98
      %s120 = sphi 0, %s122
      %s123 = sphi 0, %s120
      %s124 = sphi 0, %s123
      %s140 = sphi 0, %s124
      %s144 = sphi 0, %s144
      %s146 = sphi 0, %s144
      %s147 = sphi 0, %s146
      %s161 = sphi 0, %s147
      %s165 = sphi 0, %s165
      %s167 = sphi 0, %s165
      %s168 = sphi 0, %s167
      %s182 = sphi 0, %s168
      %s186 = sphi 0, %s186
      %s188 = sphi 0, %s186
      %s189 = sphi 0, %s188
      %s203 = sphi 0, %s189
      %s207 = sphi 0, %s207
      %s209 = sphi 0, %s207
      %s210 = sphi 0, %s209
      %s224 = sphi 0, %s210
      %s228 = sphi 0, %s228
      %s230 = sphi 0, %s228
      %s231 = sphi 0, %s230
      %s245 = sphi 0, %s231
      %s249 = sphi 0, %s249
      %s251 = sphi 0, %s249
      %s252 = sphi 0, %s251
      %s266 = sphi 0, %s252
      %s270 = sphi 0, %s270
      %s272 = sphi 0, %s270
      %s273 = sphi 0, %s272
      %s287 = sphi 0, %s273
      %s291 = sphi 0, %s291
      %s293 = sphi 0, %s291
      %s294 = sphi 0, %s293
      %s308 = sphi 0, %s294
      %s312 = sphi 0, %s312
      %s314 = sphi 0, %s312
      %s315 = sphi 0, %s314
      %s329 = sphi 0, %s315
      %s333 = sphi 0, %s333
      %s335 = sphi 0, %s333
      %s336 = sphi 0, %s335
      %s350 = sphi 0, %s336
      %s354 = sphi 0, %s354
      %s356 = sphi 0, %s354
      %s357 = sphi 0, %s356
      %s371 = sphi 0, %s357
      %s375 = sphi 0, %s375
      %s377 = sphi 0, %s375
      %s378 = sphi 0, %s377
      %s392 = sphi 0, %s378
      %s396 = sphi 0, %s396
      %s398 = sphi 0, %s396
      %s399 = sphi 0, %s398
      %s413 = sphi 0, %s399
      %s417 = sphi 0, %s417
      %s419 = sphi 0, %s417
      %s420 = sphi 0, %s419
      %s434 = sphi 0, %s420
      %s438 = sphi 0, %s438
      %s440 = sphi 0, %s438
      %s441 = sphi 0, %s440
      %s455 = sphi 0, %s441
      %s459 = sphi 0, %s459
      %s461 = sphi 0, %s459
      %s462 = sphi 0, %s461
      %s476 = sphi 0, %s462
      %s484 = sphi 0, %s486
      %s487 = sphi 0, %s484
      %s488 = sphi 0, %s487
      %s504 = sphi 0, %s488
      %s512 = sphi 0, %s514
      %s515 = sphi 0, %s512
      %s516 = sphi 0, %s515
      %s532 = sphi 0, %s516
    $region4: #{tpu_custom_call.1} parent=1 // loop_header_branch
      %45 = sbr.rel (%p43) target = $region8
    $region5: #{tpu_custom_call.1} parent=1 // loop_body
      %s47 = ssub.s32 %s42, 1
      %s48 = ssub.s32 %s42, 2
      %s55 = sadd.s32 1, %s50
      %p56 = scmp.ge.s32.totalorder %s55, 1
      %s57 = scalar_select %p56, 0, %s55
      %s58 = sadd.s32 1, %s49
      %s59 = scalar_select %p56, %s58, %s49
      %p60 = scmp.ge.s32.totalorder %s59, 2
      %s61 = scalar_select %p60, 0, %s59
      %s62 = ssub.s32 %s49, %s61
      %s63 = ssub.s32 %s50, %s57
      %s64 = sor.u32 %s62, %s63
      %p65 = scmp.eq.s32.totalorder %s64, 0
      %s67 = sadd.s32 %s66, 1
      %s68 = scalar_select %p65, %s66, %s67
      %p71 = pneg %p65
      %p72 = scmp.eq.s32.totalorder %s42, 1
      %p73 = por %p71, %p72
      %p74 = scmp.ne.s32.totalorder %s66, %s69
      %p75 = scmp.eq.s32.totalorder %s42, 0
      %p76 = por %p74, %p75
      %p77 = scmp.ne.s32.totalorder %s66, %s69
      %p78 = scmp.eq.s32.totalorder %s47, 1
      %p79 = por %p77, %p78
      %p80 = scmp.ne.s32.totalorder %s69, %s70
      %p81 = scmp.eq.s32.totalorder %s47, 0
      %p82 = por %p80, %p81
      %p83 = scmp.ne.s32.totalorder %s69, %s70
      %p84 = scmp.eq.s32.totalorder %s48, 1
      %p85 = por %p83, %p84
      %p87 = scmp.ne.s32.totalorder %s70, %s86
      %p88 = scmp.eq.s32.totalorder %s48, 0
      %p89 = por %p87, %p88
      %s90 = ssub.s32 %s49, %s61
      %s91 = ssub.s32 %s50, %s57
      %s92 = sor.u32 %s90, %s91
      %p93 = scmp.eq.s32.totalorder %s92, 0
      %s95 = sadd.s32 %s94, 1
      %s96 = scalar_select %p93, %s94, %s95
      %p99 = pneg %p93
      %p100 = scmp.eq.s32.totalorder %s42, 1
      %p101 = por %p99, %p100
      %p102 = scmp.ne.s32.totalorder %s94, %s97
      %p103 = scmp.eq.s32.totalorder %s42, 0
      %p104 = por %p102, %p103
      %p105 = scmp.ne.s32.totalorder %s94, %s97
      %p106 = scmp.eq.s32.totalorder %s47, 1
      %p107 = por %p105, %p106
      %p108 = scmp.ne.s32.totalorder %s97, %s98
      %p109 = scmp.eq.s32.totalorder %s47, 0
      %p110 = por %p108, %p109
      %p111 = scmp.ne.s32.totalorder %s97, %s98
      %p112 = scmp.eq.s32.totalorder %s48, 1
      %p113 = por %p111, %p112
      %p115 = scmp.ne.s32.totalorder %s98, %s114
      %p116 = scmp.eq.s32.totalorder %s48, 0
      %p117 = por %p115, %p116
      %s118 = ssub.s32 %s49, %s61
      %p119 = scmp.eq.s32.totalorder %s118, 0
      %s121 = sadd.s32 %s120, 1
      %s122 = scalar_select %p119, %s120, %s121
      %p125 = pneg %p119
      %p126 = scmp.eq.s32.totalorder %s42, 1
      %p127 = por %p125, %p126
      %p128 = scmp.ne.s32.totalorder %s120, %s123
      %p129 = scmp.eq.s32.totalorder %s42, 0
      %p130 = por %p128, %p129
      %p131 = scmp.ne.s32.totalorder %s120, %s123
      %p132 = scmp.eq.s32.totalorder %s47, 1
      %p133 = por %p131, %p132
      %p134 = scmp.ne.s32.totalorder %s123, %s124
      %p135 = scmp.eq.s32.totalorder %s47, 0
      %p136 = por %p134, %p135
      %p137 = scmp.ne.s32.totalorder %s123, %s124
      %p138 = scmp.eq.s32.totalorder %s48, 1
      %p139 = por %p137, %p138
      %p141 = scmp.ne.s32.totalorder %s124, %s140
      %p142 = scmp.eq.s32.totalorder %s48, 0
      %p143 = por %p141, %p142
      %s145 = sadd.s32 %s144, 1
      %p148 = scmp.eq.s32.totalorder %s42, 1
      %p149 = scmp.ne.s32.totalorder %s144, %s146
      %p150 = scmp.eq.s32.totalorder %s42, 0
      %p151 = por %p149, %p150
      %p152 = scmp.ne.s32.totalorder %s144, %s146
      %p153 = scmp.eq.s32.totalorder %s47, 1
      %p154 = por %p152, %p153
      %p155 = scmp.ne.s32.totalorder %s146, %s147
      %p156 = scmp.eq.s32.totalorder %s47, 0
      %p157 = por %p155, %p156
      %p158 = scmp.ne.s32.totalorder %s146, %s147
      %p159 = scmp.eq.s32.totalorder %s48, 1
      %p160 = por %p158, %p159
      %p162 = scmp.ne.s32.totalorder %s147, %s161
      %p163 = scmp.eq.s32.totalorder %s48, 0
      %p164 = por %p162, %p163
      %s166 = sadd.s32 %s165, 1
      %p169 = scmp.eq.s32.totalorder %s42, 1
      %p170 = scmp.ne.s32.totalorder %s165, %s167
      %p171 = scmp.eq.s32.totalorder %s42, 0
      %p172 = por %p170, %p171
      %p173 = scmp.ne.s32.totalorder %s165, %s167
      %p174 = scmp.eq.s32.totalorder %s47, 1
      %p175 = por %p173, %p174
      %p176 = scmp.ne.s32.totalorder %s167, %s168
      %p177 = scmp.eq.s32.totalorder %s47, 0
      %p178 = por %p176, %p177
      %p179 = scmp.ne.s32.totalorder %s167, %s168
      %p180 = scmp.eq.s32.totalorder %s48, 1
      %p181 = por %p179, %p180
      %p183 = scmp.ne.s32.totalorder %s168, %s182
      %p184 = scmp.eq.s32.totalorder %s48, 0
      %p185 = por %p183, %p184
      %s187 = sadd.s32 %s186, 1
      %p190 = scmp.eq.s32.totalorder %s42, 1
      %p191 = scmp.ne.s32.totalorder %s186, %s188
      %p192 = scmp.eq.s32.totalorder %s42, 0
      %p193 = por %p191, %p192
      %p194 = scmp.ne.s32.totalorder %s186, %s188
      %p195 = scmp.eq.s32.totalorder %s47, 1
      %p196 = por %p194, %p195
      %p197 = scmp.ne.s32.totalorder %s188, %s189
      %p198 = scmp.eq.s32.totalorder %s47, 0
      %p199 = por %p197, %p198
      %p200 = scmp.ne.s32.totalorder %s188, %s189
      %p201 = scmp.eq.s32.totalorder %s48, 1
      %p202 = por %p200, %p201
      %p204 = scmp.ne.s32.totalorder %s189, %s203
      %p205 = scmp.eq.s32.totalorder %s48, 0
      %p206 = por %p204, %p205
      %s208 = sadd.s32 %s207, 1
      %p211 = scmp.eq.s32.totalorder %s42, 1
      %p212 = scmp.ne.s32.totalorder %s207, %s209
      %p213 = scmp.eq.s32.totalorder %s42, 0
      %p214 = por %p212, %p213
      %p215 = scmp.ne.s32.totalorder %s207, %s209
      %p216 = scmp.eq.s32.totalorder %s47, 1
      %p217 = por %p215, %p216
      %p218 = scmp.ne.s32.totalorder %s209, %s210
      %p219 = scmp.eq.s32.totalorder %s47, 0
      %p220 = por %p218, %p219
      %p221 = scmp.ne.s32.totalorder %s209, %s210
      %p222 = scmp.eq.s32.totalorder %s48, 1
      %p223 = por %p221, %p222
      %p225 = scmp.ne.s32.totalorder %s210, %s224
      %p226 = scmp.eq.s32.totalorder %s48, 0
      %p227 = por %p225, %p226
      %s229 = sadd.s32 %s228, 1
      %p232 = scmp.eq.s32.totalorder %s42, 1
      %p233 = scmp.ne.s32.totalorder %s228, %s230
      %p234 = scmp.eq.s32.totalorder %s42, 0
      %p235 = por %p233, %p234
      %p236 = scmp.ne.s32.totalorder %s228, %s230
      %p237 = scmp.eq.s32.totalorder %s47, 1
      %p238 = por %p236, %p237
      %p239 = scmp.ne.s32.totalorder %s230, %s231
      %p240 = scmp.eq.s32.totalorder %s47, 0
      %p241 = por %p239, %p240
      %p242 = scmp.ne.s32.totalorder %s230, %s231
      %p243 = scmp.eq.s32.totalorder %s48, 1
      %p244 = por %p242, %p243
      %p246 = scmp.ne.s32.totalorder %s231, %s245
      %p247 = scmp.eq.s32.totalorder %s48, 0
      %p248 = por %p246, %p247
      %s250 = sadd.s32 %s249, 1
      %p253 = scmp.eq.s32.totalorder %s42, 1
      %p254 = scmp.ne.s32.totalorder %s249, %s251
      %p255 = scmp.eq.s32.totalorder %s42, 0
      %p256 = por %p254, %p255
      %p257 = scmp.ne.s32.totalorder %s249, %s251
      %p258 = scmp.eq.s32.totalorder %s47, 1
      %p259 = por %p257, %p258
      %p260 = scmp.ne.s32.totalorder %s251, %s252
      %p261 = scmp.eq.s32.totalorder %s47, 0
      %p262 = por %p260, %p261
      %p263 = scmp.ne.s32.totalorder %s251, %s252
      %p264 = scmp.eq.s32.totalorder %s48, 1
      %p265 = por %p263, %p264
      %p267 = scmp.ne.s32.totalorder %s252, %s266
      %p268 = scmp.eq.s32.totalorder %s48, 0
      %p269 = por %p267, %p268
      %s271 = sadd.s32 %s270, 1
      %p274 = scmp.eq.s32.totalorder %s42, 1
      %p275 = scmp.ne.s32.totalorder %s270, %s272
      %p276 = scmp.eq.s32.totalorder %s42, 0
      %p277 = por %p275, %p276
      %p278 = scmp.ne.s32.totalorder %s270, %s272
      %p279 = scmp.eq.s32.totalorder %s47, 1
      %p280 = por %p278, %p279
      %p281 = scmp.ne.s32.totalorder %s272, %s273
      %p282 = scmp.eq.s32.totalorder %s47, 0
      %p283 = por %p281, %p282
      %p284 = scmp.ne.s32.totalorder %s272, %s273
      %p285 = scmp.eq.s32.totalorder %s48, 1
      %p286 = por %p284, %p285
      %p288 = scmp.ne.s32.totalorder %s273, %s287
      %p289 = scmp.eq.s32.totalorder %s48, 0
      %p290 = por %p288, %p289
      %s292 = sadd.s32 %s291, 1
      %p295 = scmp.eq.s32.totalorder %s42, 1
      %p296 = scmp.ne.s32.totalorder %s291, %s293
      %p297 = scmp.eq.s32.totalorder %s42, 0
      %p298 = por %p296, %p297
      %p299 = scmp.ne.s32.totalorder %s291, %s293
      %p300 = scmp.eq.s32.totalorder %s47, 1
      %p301 = por %p299, %p300
      %p302 = scmp.ne.s32.totalorder %s293, %s294
      %p303 = scmp.eq.s32.totalorder %s47, 0
      %p304 = por %p302, %p303
      %p305 = scmp.ne.s32.totalorder %s293, %s294
      %p306 = scmp.eq.s32.totalorder %s48, 1
      %p307 = por %p305, %p306
      %p309 = scmp.ne.s32.totalorder %s294, %s308
      %p310 = scmp.eq.s32.totalorder %s48, 0
      %p311 = por %p309, %p310
      %s313 = sadd.s32 %s312, 1
      %p316 = scmp.eq.s32.totalorder %s42, 1
      %p317 = scmp.ne.s32.totalorder %s312, %s314
      %p318 = scmp.eq.s32.totalorder %s42, 0
      %p319 = por %p317, %p318
      %p320 = scmp.ne.s32.totalorder %s312, %s314
      %p321 = scmp.eq.s32.totalorder %s47, 1
      %p322 = por %p320, %p321
      %p323 = scmp.ne.s32.totalorder %s314, %s315
      %p324 = scmp.eq.s32.totalorder %s47, 0
      %p325 = por %p323, %p324
      %p326 = scmp.ne.s32.totalorder %s314, %s315
      %p327 = scmp.eq.s32.totalorder %s48, 1
      %p328 = por %p326, %p327
      %p330 = scmp.ne.s32.totalorder %s315, %s329
      %p331 = scmp.eq.s32.totalorder %s48, 0
      %p332 = por %p330, %p331
      %s334 = sadd.s32 %s333, 1
      %p337 = scmp.eq.s32.totalorder %s42, 1
      %p338 = scmp.ne.s32.totalorder %s333, %s335
      %p339 = scmp.eq.s32.totalorder %s42, 0
      %p340 = por %p338, %p339
      %p341 = scmp.ne.s32.totalorder %s333, %s335
      %p342 = scmp.eq.s32.totalorder %s47, 1
      %p343 = por %p341, %p342
      %p344 = scmp.ne.s32.totalorder %s335, %s336
      %p345 = scmp.eq.s32.totalorder %s47, 0
      %p346 = por %p344, %p345
      %p347 = scmp.ne.s32.totalorder %s335, %s336
      %p348 = scmp.eq.s32.totalorder %s48, 1
      %p349 = por %p347, %p348
      %p351 = scmp.ne.s32.totalorder %s336, %s350
      %p352 = scmp.eq.s32.totalorder %s48, 0
      %p353 = por %p351, %p352
      %s355 = sadd.s32 %s354, 1
      %p358 = scmp.eq.s32.totalorder %s42, 1
      %p359 = scmp.ne.s32.totalorder %s354, %s356
      %p360 = scmp.eq.s32.totalorder %s42, 0
      %p361 = por %p359, %p360
      %p362 = scmp.ne.s32.totalorder %s354, %s356
      %p363 = scmp.eq.s32.totalorder %s47, 1
      %p364 = por %p362, %p363
      %p365 = scmp.ne.s32.totalorder %s356, %s357
      %p366 = scmp.eq.s32.totalorder %s47, 0
      %p367 = por %p365, %p366
      %p368 = scmp.ne.s32.totalorder %s356, %s357
      %p369 = scmp.eq.s32.totalorder %s48, 1
      %p370 = por %p368, %p369
      %p372 = scmp.ne.s32.totalorder %s357, %s371
      %p373 = scmp.eq.s32.totalorder %s48, 0
      %p374 = por %p372, %p373
      %s376 = sadd.s32 %s375, 1
      %p379 = scmp.eq.s32.totalorder %s42, 1
      %p380 = scmp.ne.s32.totalorder %s375, %s377
      %p381 = scmp.eq.s32.totalorder %s42, 0
      %p382 = por %p380, %p381
      %p383 = scmp.ne.s32.totalorder %s375, %s377
      %p384 = scmp.eq.s32.totalorder %s47, 1
      %p385 = por %p383, %p384
      %p386 = scmp.ne.s32.totalorder %s377, %s378
      %p387 = scmp.eq.s32.totalorder %s47, 0
      %p388 = por %p386, %p387
      %p389 = scmp.ne.s32.totalorder %s377, %s378
      %p390 = scmp.eq.s32.totalorder %s48, 1
      %p391 = por %p389, %p390
      %p393 = scmp.ne.s32.totalorder %s378, %s392
      %p394 = scmp.eq.s32.totalorder %s48, 0
      %p395 = por %p393, %p394
      %s397 = sadd.s32 %s396, 1
      %p400 = scmp.eq.s32.totalorder %s42, 1
      %p401 = scmp.ne.s32.totalorder %s396, %s398
      %p402 = scmp.eq.s32.totalorder %s42, 0
      %p403 = por %p401, %p402
      %p404 = scmp.ne.s32.totalorder %s396, %s398
      %p405 = scmp.eq.s32.totalorder %s47, 1
      %p406 = por %p404, %p405
      %p407 = scmp.ne.s32.totalorder %s398, %s399
      %p408 = scmp.eq.s32.totalorder %s47, 0
      %p409 = por %p407, %p408
      %p410 = scmp.ne.s32.totalorder %s398, %s399
      %p411 = scmp.eq.s32.totalorder %s48, 1
      %p412 = por %p410, %p411
      %p414 = scmp.ne.s32.totalorder %s399, %s413
      %p415 = scmp.eq.s32.totalorder %s48, 0
      %p416 = por %p414, %p415
      %s418 = sadd.s32 %s417, 1
      %p421 = scmp.eq.s32.totalorder %s42, 1
      %p422 = scmp.ne.s32.totalorder %s417, %s419
      %p423 = scmp.eq.s32.totalorder %s42, 0
      %p424 = por %p422, %p423
      %p425 = scmp.ne.s32.totalorder %s417, %s419
      %p426 = scmp.eq.s32.totalorder %s47, 1
      %p427 = por %p425, %p426
      %p428 = scmp.ne.s32.totalorder %s419, %s420
      %p429 = scmp.eq.s32.totalorder %s47, 0
      %p430 = por %p428, %p429
      %p431 = scmp.ne.s32.totalorder %s419, %s420
      %p432 = scmp.eq.s32.totalorder %s48, 1
      %p433 = por %p431, %p432
      %p435 = scmp.ne.s32.totalorder %s420, %s434
      %p436 = scmp.eq.s32.totalorder %s48, 0
      %p437 = por %p435, %p436
      %s439 = sadd.s32 %s438, 1
      %p442 = scmp.eq.s32.totalorder %s42, 1
      %p443 = scmp.ne.s32.totalorder %s438, %s440
      %p444 = scmp.eq.s32.totalorder %s42, 0
      %p445 = por %p443, %p444
      %p446 = scmp.ne.s32.totalorder %s438, %s440
      %p447 = scmp.eq.s32.totalorder %s47, 1
      %p448 = por %p446, %p447
      %p449 = scmp.ne.s32.totalorder %s440, %s441
      %p450 = scmp.eq.s32.totalorder %s47, 0
      %p451 = por %p449, %p450
      %p452 = scmp.ne.s32.totalorder %s440, %s441
      %p453 = scmp.eq.s32.totalorder %s48, 1
      %p454 = por %p452, %p453
      %p456 = scmp.ne.s32.totalorder %s441, %s455
      %p457 = scmp.eq.s32.totalorder %s48, 0
      %p458 = por %p456, %p457
      %s460 = sadd.s32 %s459, 1
      %p463 = scmp.eq.s32.totalorder %s42, 1
      %p464 = scmp.ne.s32.totalorder %s459, %s461
      %p465 = scmp.eq.s32.totalorder %s42, 0
      %p466 = por %p464, %p465
      %p467 = scmp.ne.s32.totalorder %s459, %s461
      %p468 = scmp.eq.s32.totalorder %s47, 1
      %p469 = por %p467, %p468
      %p470 = scmp.ne.s32.totalorder %s461, %s462
      %p471 = scmp.eq.s32.totalorder %s47, 0
      %p472 = por %p470, %p471
      %p473 = scmp.ne.s32.totalorder %s461, %s462
      %p474 = scmp.eq.s32.totalorder %s48, 1
      %p475 = por %p473, %p474
      %p477 = scmp.ne.s32.totalorder %s462, %s476
      %p478 = scmp.eq.s32.totalorder %s48, 0
      %p479 = por %p477, %p478
      %s480 = ssub.s32 %s49, %s61
      %s481 = ssub.s32 %s50, %s57
      %s482 = sor.u32 %s480, %s481
      %p483 = scmp.eq.s32.totalorder %s482, 0
      %s485 = sadd.s32 %s484, 1
      %s486 = scalar_select %p483, %s484, %s485
      %p489 = pneg %p483
      %p490 = scmp.eq.s32.totalorder %s42, 1
      %p491 = por %p489, %p490
      %p492 = scmp.ne.s32.totalorder %s484, %s487
      %p493 = scmp.eq.s32.totalorder %s42, 0
      %p494 = por %p492, %p493
      %p495 = scmp.ne.s32.totalorder %s484, %s487
      %p496 = scmp.eq.s32.totalorder %s47, 1
      %p497 = por %p495, %p496
      %p498 = scmp.ne.s32.totalorder %s487, %s488
      %p499 = scmp.eq.s32.totalorder %s47, 0
      %p500 = por %p498, %p499
      %p501 = scmp.ne.s32.totalorder %s487, %s488
      %p502 = scmp.eq.s32.totalorder %s48, 1
      %p503 = por %p501, %p502
      %p505 = scmp.ne.s32.totalorder %s488, %s504
      %p506 = scmp.eq.s32.totalorder %s48, 0
      %p507 = por %p505, %p506
      %s508 = ssub.s32 %s49, %s61
      %s509 = ssub.s32 %s50, %s57
      %s510 = sor.u32 %s508, %s509
      %p511 = scmp.eq.s32.totalorder %s510, 0
      %s513 = sadd.s32 %s512, 1
      %s514 = scalar_select %p511, %s512, %s513
      %p517 = pneg %p511
      %p518 = scmp.eq.s32.totalorder %s42, 1
      %p519 = por %p517, %p518
      %p520 = scmp.ne.s32.totalorder %s512, %s515
      %p521 = scmp.eq.s32.totalorder %s42, 0
      %p522 = por %p520, %p521
      %p523 = scmp.ne.s32.totalorder %s512, %s515
      %p524 = scmp.eq.s32.totalorder %s47, 1
      %p525 = por %p523, %p524
      %p526 = scmp.ne.s32.totalorder %s515, %s516
      %p527 = scmp.eq.s32.totalorder %s47, 0
      %p528 = por %p526, %p527
      %p529 = scmp.ne.s32.totalorder %s515, %s516
      %p530 = scmp.eq.s32.totalorder %s48, 1
      %p531 = por %p529, %p530
      %p533 = scmp.ne.s32.totalorder %s516, %s532
      %p534 = scmp.eq.s32.totalorder %s48, 0
      %p535 = por %p533, %p534
      %p536 = scmp.le.s32.totalorder 1, %s42
      %p537 = scmp.lt.s32.totalorder %s42, 3
      %p538 = pnand %p536, %p537
      %p539 = pneg %p538
      // Predicated region
      $region9: #{tpu_custom_call.1} parent=5 // pred_check
        _
      $region10: #{tpu_custom_call.1} parent=5 // pred_check_branch
        %541 = sbr.rel (%p538) target = $region12
      $region11: #{tpu_custom_call.1} parent=5 // pred_region
        %s542 = ssub.s32 %s42, 1
        // Predicated region
        $region13: #{tpu_custom_call.1} parent=11 // pred_check
          %p543 = pneg %p157
        $region14: #{tpu_custom_call.1} parent=11 // pred_check_branch
          %545 = sbr.rel (%p543) target = $region16
        $region15: #{tpu_custom_call.1} parent=11 // pred_region
          %s547 = ssub.s32 2048, 2048
          %548 = vsyncadd [#allocation9], %s547
          %s549 = sshll.u32 [#allocation8], 4
          %s550 = int_to_ptr.vmem [resolvable:$true] %s549
          %555 = dma.hbm_to_vmem [thread:$0]  %s3, 2048, %s550, [#allocation9], 128, 128, 8
        $region16: #{tpu_custom_call.1} parent=11 // pred_fallthru
          _
        // Predicated region
        $region17: #{tpu_custom_call.1} parent=11 // pred_check
          %p556 = pneg %p178
        $region18: #{tpu_custom_call.1} parent=11 // pred_check_branch
          %558 = sbr.rel (%p556) target = $region20
        $region19: #{tpu_custom_call.1} parent=11 // pred_region
          %s560 = ssub.s32 2048, 2048
          %561 = vsyncadd [#allocation9], %s560
          %s562 = sshll.u32 [#allocation10], 4
          %s563 = int_to_ptr.vmem [resolvable:$true] %s562
          %568 = dma.hbm_to_vmem [thread:$0]  %s4, 2048, %s563, [#allocation9], 128, 128, 8
        $region20: #{tpu_custom_call.1} parent=11 // pred_fallthru
          _
        // Predicated region
        $region21: #{tpu_custom_call.1} parent=11 // pred_check
          %p569 = pneg %p199
        $region22: #{tpu_custom_call.1} parent=11 // pred_check_branch
          %571 = sbr.rel (%p569) target = $region24
        $region23: #{tpu_custom_call.1} parent=11 // pred_region
          %s573 = ssub.s32 2048, 2048
          %574 = vsyncadd [#allocation12], %s573
          %s575 = sshll.u32 [#allocation11], 4
          %s576 = int_to_ptr.vmem [resolvable:$true] %s575
          %581 = dma.hbm_to_vmem [thread:$0]  %s5, 2048, %s576, [#allocation12], 128, 128, 8
        $region24: #{tpu_custom_call.1} parent=11 // pred_fallthru
          _
        // Predicated region
        $region25: #{tpu_custom_call.1} parent=11 // pred_check
          %p582 = pneg %p220
        $region26: #{tpu_custom_call.1} parent=11 // pred_check_branch
          %584 = sbr.rel (%p582) target = $region28
        $region27: #{tpu_custom_call.1} parent=11 // pred_region
          _
        $region28: #{tpu_custom_call.1} parent=11 // pred_fallthru
          _
        // Predicated region
        $region29: #{tpu_custom_call.1} parent=11 // pred_check
          %p585 = pneg %p241
        $region30: #{tpu_custom_call.1} parent=11 // pred_check_branch
          %587 = sbr.rel (%p585) target = $region32
        $region31: #{tpu_custom_call.1} parent=11 // pred_region
          _
        $region32: #{tpu_custom_call.1} parent=11 // pred_fallthru
          _
        // Predicated region
        $region33: #{tpu_custom_call.1} parent=11 // pred_check
          %p588 = pneg %p262
        $region34: #{tpu_custom_call.1} parent=11 // pred_check_branch
          %590 = sbr.rel (%p588) target = $region36
        $region35: #{tpu_custom_call.1} parent=11 // pred_region
          _
        $region36: #{tpu_custom_call.1} parent=11 // pred_fallthru
          _
        // Predicated region
        $region37: #{tpu_custom_call.1} parent=11 // pred_check
          %p591 = pneg %p283
        $region38: #{tpu_custom_call.1} parent=11 // pred_check_branch
          %593 = sbr.rel (%p591) target = $region40
        $region39: #{tpu_custom_call.1} parent=11 // pred_region
          %s595 = ssub.s32 2048, 2048
          %596 = vsyncadd [#allocation12], %s595
          %s597 = sshll.u32 [#allocation13], 4
          %s598 = int_to_ptr.vmem [resolvable:$true] %s597
          %603 = dma.hbm_to_vmem [thread:$0]  %s9, 2048, %s598, [#allocation12], 128, 128, 8
        $region40: #{tpu_custom_call.1} parent=11 // pred_fallthru
          _
        // Predicated region
        $region41: #{tpu_custom_call.1} parent=11 // pred_check
          %p604 = pneg %p304
        $region42: #{tpu_custom_call.1} parent=11 // pred_check_branch
          %606 = sbr.rel (%p604) target = $region44
        $region43: #{tpu_custom_call.1} parent=11 // pred_region
          _
        $region44: #{tpu_custom_call.1} parent=11 // pred_fallthru
          _
        // Predicated region
        $region45: #{tpu_custom_call.1} parent=11 // pred_check
          %p607 = pneg %p325
        $region46: #{tpu_custom_call.1} parent=11 // pred_check_branch
          %609 = sbr.rel (%p607) target = $region48
        $region47: #{tpu_custom_call.1} parent=11 // pred_region
          _
        $region48: #{tpu_custom_call.1} parent=11 // pred_fallthru
          _
        // Predicated region
        $region49: #{tpu_custom_call.1} parent=11 // pred_check
          %p610 = pneg %p346
        $region50: #{tpu_custom_call.1} parent=11 // pred_check_branch
          %612 = sbr.rel (%p610) target = $region52
        $region51: #{tpu_custom_call.1} parent=11 // pred_region
          _
        $region52: #{tpu_custom_call.1} parent=11 // pred_fallthru
          _
        // Predicated region
        $region53: #{tpu_custom_call.1} parent=11 // pred_check
          %p613 = pneg %p367
        $region54: #{tpu_custom_call.1} parent=11 // pred_check_branch
          %615 = sbr.rel (%p613) target = $region56
        $region55: #{tpu_custom_call.1} parent=11 // pred_region
          %s617 = ssub.s32 4096, 4096
          %618 = vsyncadd [#allocation15], %s617
          %s619 = sshll.u32 [#allocation14], 4
          %s620 = int_to_ptr.vmem [resolvable:$true] %s619
          %625 = dma.hbm_to_vmem [thread:$0]  %s13, 4096, %s620, [#allocation15], 256, 256, 16
        $region56: #{tpu_custom_call.1} parent=11 // pred_fallthru
          _
        // Predicated region
        $region57: #{tpu_custom_call.1} parent=11 // pred_check
          %p626 = pneg %p388
        $region58: #{tpu_custom_call.1} parent=11 // pred_check_branch
          %628 = sbr.rel (%p626) target = $region60
        $region59: #{tpu_custom_call.1} parent=11 // pred_region
          _
        $region60: #{tpu_custom_call.1} parent=11 // pred_fallthru
          _
        // Predicated region
        $region61: #{tpu_custom_call.1} parent=11 // pred_check
          %p629 = pneg %p409
        $region62: #{tpu_custom_call.1} parent=11 // pred_check_branch
          %631 = sbr.rel (%p629) target = $region64
        $region63: #{tpu_custom_call.1} parent=11 // pred_region
          %s633 = ssub.s32 4096, 4096
          %634 = vsyncadd [#allocation15], %s633
          %s635 = sshll.u32 [#allocation16], 4
          %s636 = int_to_ptr.vmem [resolvable:$true] %s635
          %641 = dma.hbm_to_vmem [thread:$0]  %s15, 4096, %s636, [#allocation15], 128, 128, 8
        $region64: #{tpu_custom_call.1} parent=11 // pred_fallthru
          _
        // Predicated region
        $region65: #{tpu_custom_call.1} parent=11 // pred_check
          %p642 = pneg %p430
        $region66: #{tpu_custom_call.1} parent=11 // pred_check_branch
          %644 = sbr.rel (%p642) target = $region68
        $region67: #{tpu_custom_call.1} parent=11 // pred_region
          _
        $region68: #{tpu_custom_call.1} parent=11 // pred_fallthru
          _
        // Predicated region
        $region69: #{tpu_custom_call.1} parent=11 // pred_check
          %p645 = pneg %p451
        $region70: #{tpu_custom_call.1} parent=11 // pred_check_branch
          %647 = sbr.rel (%p645) target = $region72
        $region71: #{tpu_custom_call.1} parent=11 // pred_region
          _
        $region72: #{tpu_custom_call.1} parent=11 // pred_fallthru
          _
        // Predicated region
        $region73: #{tpu_custom_call.1} parent=11 // pred_check
          %p648 = pneg %p472
        $region74: #{tpu_custom_call.1} parent=11 // pred_check_branch
          %650 = sbr.rel (%p648) target = $region76
        $region75: #{tpu_custom_call.1} parent=11 // pred_region
          _
        $region76: #{tpu_custom_call.1} parent=11 // pred_fallthru
          _
      $region12: #{tpu_custom_call.1} parent=5 // pred_fallthru
        _
      %p651 = scmp.lt.s32.totalorder %s42, 2
      // Predicated region
      $region77: #{tpu_custom_call.1} parent=5 // pred_check
        %p652 = pneg %p651
      $region78: #{tpu_custom_call.1} parent=5 // pred_check_branch
        %654 = sbr.rel (%p652) target = $region80
      $region79: #{tpu_custom_call.1} parent=5 // pred_region
        // Predicated region
        $region81: #{tpu_custom_call.1} parent=79 // pred_check
          %p655 = pneg %p76
        $region82: #{tpu_custom_call.1} parent=79 // pred_check_branch
          %657 = sbr.rel (%p655) target = $region84
        $region83: #{tpu_custom_call.1} parent=79 // pred_region
          %s658 = sand.u32 %s66, 1
          %s659 = scalar_lea.sflag [#allocation3], %s658
          %s660 = sand.u32 %s66, 1
          %s661 = smul.addr %s660, 16
          %s662 = scalar_lea.vmem [#allocation2], %s661
          %s663 = smul.u32 2, %s50
          %s665 = ssub.s32 256, 256
          %666 = vsyncadd %s659, %s665
          %s667 = smul.addr %s49, 2
          %s668 = sadd.s32 %s663, %s667
          %s669 = smul.addr %s668, 128
          %s670 = scalar_lea.hbm %s0, %s669
          %s671 = sshll.u32 %s662, 4
          %s672 = int_to_ptr.vmem [resolvable:$true] %s671
          %677 = dma.hbm_to_vmem [thread:$0]  %s670, 256, %s672, %s659, 128, 128, 8
        $region84: #{tpu_custom_call.1} parent=79 // pred_fallthru
          _
        // Predicated region
        $region85: #{tpu_custom_call.1} parent=79 // pred_check
          %p678 = pneg %p104
        $region86: #{tpu_custom_call.1} parent=79 // pred_check_branch
          %680 = sbr.rel (%p678) target = $region88
        $region87: #{tpu_custom_call.1} parent=79 // pred_region
          %s681 = sand.u32 %s42, 1
          %s682 = scalar_lea.sflag [#allocation6], %s681
          %s683 = sand.u32 %s94, 1
          %s684 = smul.addr %s683, 16
          %s685 = scalar_lea.vmem [#allocation5], %s684
          %s686 = smul.u32 2, %s50
          %s688 = ssub.s32 256, 256
          %689 = vsyncadd %s682, %s688
          %s690 = smul.addr %s49, 2
          %s691 = sadd.s32 %s686, %s690
          %s692 = smul.addr %s691, 128
          %s693 = scalar_lea.hbm %s1, %s692
          %s694 = sshll.u32 %s685, 4
          %s695 = int_to_ptr.vmem [resolvable:$true] %s694
          %700 = dma.hbm_to_vmem [thread:$0]  %s693, 256, %s695, %s682, 128, 128, 8
        $region88: #{tpu_custom_call.1} parent=79 // pred_fallthru
          _
        // Predicated region
        $region89: #{tpu_custom_call.1} parent=79 // pred_check
          %p701 = pneg %p130
        $region90: #{tpu_custom_call.1} parent=79 // pred_check_branch
          %703 = sbr.rel (%p701) target = $region92
        $region91: #{tpu_custom_call.1} parent=79 // pred_region
          %s704 = sand.u32 %s42, 1
          %s705 = scalar_lea.sflag [#allocation6], %s704
          %s706 = sand.u32 %s120, 1
          %s707 = smul.addr %s706, 16
          %s708 = scalar_lea.vmem [#allocation7], %s707
          %s710 = ssub.s32 256, 256
          %711 = vsyncadd %s705, %s710
          %s712 = smul.addr %s49, 2
          %s713 = smul.addr %s712, 128
          %s714 = scalar_lea.hbm %s2, %s713
          %s715 = sshll.u32 %s708, 4
          %s716 = int_to_ptr.vmem [resolvable:$true] %s715
          %721 = dma.hbm_to_vmem [thread:$0]  %s714, 256, %s716, %s705, 128, 128, 8
        $region92: #{tpu_custom_call.1} parent=79 // pred_fallthru
          _
      $region80: #{tpu_custom_call.1} parent=5 // pred_fallthru
        _
      %p722 = scmp.le.s32.totalorder 1, %s42
      %p723 = scmp.lt.s32.totalorder %s42, 3
      %p724 = pnand %p722, %p723
      %p725 = pneg %p724
      // Predicated region
      $region93: #{tpu_custom_call.1} parent=5 // pred_check
        _
      $region94: #{tpu_custom_call.1} parent=5 // pred_check_branch
        %727 = sbr.rel (%p724) target = $region96
      $region95: #{tpu_custom_call.1} parent=5 // pred_region
        %s728 = ssub.s32 %s42, 1
        %s729 = sand.u32 %s69, 1
        %s730 = scalar_lea.sflag [#allocation3], %s729
        %s731 = sand.u32 %s69, 1
        %s732 = smul.addr %s731, 16
        %s733 = scalar_lea.vmem [#allocation2], %s732
        // Predicated region
        $region97: #{tpu_custom_call.1} parent=95 // pred_check
          %p734 = pneg %p82
        $region98: #{tpu_custom_call.1} parent=95 // pred_check_branch
          %736 = sbr.rel (%p734) target = $region100
        $region99: #{tpu_custom_call.1} parent=95 // pred_region
          %737 = dma.done %s730, 256
        $region100: #{tpu_custom_call.1} parent=95 // pred_fallthru
          _
        %s738 = sand.u32 %s47, 1
        %s739 = scalar_lea.sflag [#allocation6], %s738
        %s740 = sand.u32 %s97, 1
        %s741 = smul.addr %s740, 16
        %s742 = scalar_lea.vmem [#allocation5], %s741
        // Predicated region
        $region101: #{tpu_custom_call.1} parent=95 // pred_check
          %p743 = pneg %p110
        $region102: #{tpu_custom_call.1} parent=95 // pred_check_branch
          %745 = sbr.rel (%p743) target = $region104
        $region103: #{tpu_custom_call.1} parent=95 // pred_region
          %746 = dma.done %s739, 256
        $region104: #{tpu_custom_call.1} parent=95 // pred_fallthru
          _
        %s747 = sand.u32 %s47, 1
        %s748 = scalar_lea.sflag [#allocation6], %s747
        %s749 = sand.u32 %s123, 1
        %s750 = smul.addr %s749, 16
        %s751 = scalar_lea.vmem [#allocation7], %s750
        // Predicated region
        $region105: #{tpu_custom_call.1} parent=95 // pred_check
          %p752 = pneg %p136
        $region106: #{tpu_custom_call.1} parent=95 // pred_check_branch
          %754 = sbr.rel (%p752) target = $region108
        $region107: #{tpu_custom_call.1} parent=95 // pred_region
          %755 = dma.done %s748, 256
        $region108: #{tpu_custom_call.1} parent=95 // pred_fallthru
          _
        // Predicated region
        $region109: #{tpu_custom_call.1} parent=95 // pred_check
          %p756 = pneg %p157
        $region110: #{tpu_custom_call.1} parent=95 // pred_check_branch
          %758 = sbr.rel (%p756) target = $region112
        $region111: #{tpu_custom_call.1} parent=95 // pred_region
          %759 = dma.done [#allocation9], 2048
        $region112: #{tpu_custom_call.1} parent=95 // pred_fallthru
          _
        // Predicated region
        $region113: #{tpu_custom_call.1} parent=95 // pred_check
          %p760 = pneg %p178
        $region114: #{tpu_custom_call.1} parent=95 // pred_check_branch
          %762 = sbr.rel (%p760) target = $region116
        $region115: #{tpu_custom_call.1} parent=95 // pred_region
          %763 = dma.done [#allocation9], 2048
        $region116: #{tpu_custom_call.1} parent=95 // pred_fallthru
          _
        // Predicated region
        $region117: #{tpu_custom_call.1} parent=95 // pred_check
          %p764 = pneg %p199
        $region118: #{tpu_custom_call.1} parent=95 // pred_check_branch
          %766 = sbr.rel (%p764) target = $region120
        $region119: #{tpu_custom_call.1} parent=95 // pred_region
          %767 = dma.done [#allocation12], 2048
        $region120: #{tpu_custom_call.1} parent=95 // pred_fallthru
          _
        // Predicated region
        $region121: #{tpu_custom_call.1} parent=95 // pred_check
          %p768 = pneg %p283
        $region122: #{tpu_custom_call.1} parent=95 // pred_check_branch
          %770 = sbr.rel (%p768) target = $region124
        $region123: #{tpu_custom_call.1} parent=95 // pred_region
          %771 = dma.done [#allocation12], 2048
        $region124: #{tpu_custom_call.1} parent=95 // pred_fallthru
          _
        // Predicated region
        $region125: #{tpu_custom_call.1} parent=95 // pred_check
          %p772 = pneg %p367
        $region126: #{tpu_custom_call.1} parent=95 // pred_check_branch
          %774 = sbr.rel (%p772) target = $region128
        $region127: #{tpu_custom_call.1} parent=95 // pred_region
          %775 = dma.done [#allocation15], 4096
        $region128: #{tpu_custom_call.1} parent=95 // pred_fallthru
          _
        // Predicated region
        $region129: #{tpu_custom_call.1} parent=95 // pred_check
          %p776 = pneg %p409
        $region130: #{tpu_custom_call.1} parent=95 // pred_check_branch
          %778 = sbr.rel (%p776) target = $region132
        $region131: #{tpu_custom_call.1} parent=95 // pred_region
          %779 = dma.done [#allocation15], 4096
        $region132: #{tpu_custom_call.1} parent=95 // pred_fallthru
          _
        %s780 = sand.u32 %s69, 1
        %s781 = scalar_lea.sflag [#allocation3], %s780
        %s782 = sand.u32 %s69, 1
        %s783 = smul.addr %s782, 16
        %s784 = scalar_lea.vmem [#allocation2], %s783
        %p785 = pneg %p82
        %p786 = pneg %p79
        %s787 = sand.u32 %s47, 1
        %s788 = scalar_lea.sflag [#allocation6], %s787
        %s789 = sand.u32 %s97, 1
        %s790 = smul.addr %s789, 16
        %s791 = scalar_lea.vmem [#allocation5], %s790
        %p792 = pneg %p110
        %p793 = pneg %p107
        %s794 = sand.u32 %s47, 1
        %s795 = scalar_lea.sflag [#allocation6], %s794
        %s796 = sand.u32 %s123, 1
        %s797 = smul.addr %s796, 16
        %s798 = scalar_lea.vmem [#allocation7], %s797
        %p799 = pneg %p136
        %p800 = pneg %p133
        %p801 = pneg %p157
        %p802 = pneg %p154
        %p803 = pneg %p178
        %p804 = pneg %p175
        %p805 = pneg %p199
        %p806 = pneg %p196
        %p807 = pneg %p220
        %p808 = pneg %p217
        %p809 = pneg %p241
        %p810 = pneg %p238
        %p811 = pneg %p262
        %p812 = pneg %p259
        %p813 = pneg %p283
        %p814 = pneg %p280
        %p815 = pneg %p304
        %p816 = pneg %p301
        %p817 = pneg %p325
        %p818 = pneg %p322
        %p819 = pneg %p346
        %p820 = pneg %p343
        %p821 = pneg %p367
        %p822 = pneg %p364
        %p823 = pneg %p388
        %p824 = pneg %p385
        %p825 = pneg %p409
        %p826 = pneg %p406
        %p827 = pneg %p430
        %p828 = pneg %p427
        %p829 = pneg %p451
        %p830 = pneg %p448
        %p831 = pneg %p472
        %p832 = pneg %p469
        %p833 = pneg %p500
        %p834 = pneg %p497
        %s835 = sand.u32 %s487, 1
        %s836 = scalar_lea.sflag [#allocation4], %s835
        %s837 = sand.u32 %s487, 1
        %s838 = smul.addr %s837, 16
        %s839 = scalar_lea.vmem [#allocation17], %s838
        %p840 = pneg %p528
        %p841 = pneg %p525
        %s842 = sand.u32 %s515, 1
        %s843 = scalar_lea.sflag [#allocation19], %s842
        %s844 = sand.u32 %s515, 1
        %s845 = smul.addr %s844, 16
        %s846 = scalar_lea.vmem [#allocation18], %s845
        %s847 = smul.u32 2, %s52
        %s848 = smul.u32 2, %s52
        %s849 = smul.u32 2, %s52
        %s850 = smul.u32 2, %s52
        %v851 = vld [vmem:[%s733] sm:$0xff]
        %v852 = vld [vmem:[%s733 + $0x8] sm:$0xff]
        %v853 = vld [vmem:[%s742] sm:$0xff]
        %v854 = vld [vmem:[%s742 + $0x8] sm:$0xff]
        %v855 = vld [vmem:[%s751] sm:$0xff]
        %v856 = vld [vmem:[%s751 + $0x8] sm:$0xff]
        %v857 = vld [vmem:[#allocation8] sm:$0xff]
        %v858 = vld [vmem:[#allocation8 + $0x8] sm:$0xff]
        %v859 = vld [vmem:[#allocation8 + $0x10] sm:$0xff]
        %v860 = vld [vmem:[#allocation8 + $0x18] sm:$0xff]
        %v861 = vld [vmem:[#allocation8 + $0x20] sm:$0xff]
        %v862 = vld [vmem:[#allocation8 + $0x28] sm:$0xff]
        %v863 = vld [vmem:[#allocation8 + $0x30] sm:$0xff]
        %v864 = vld [vmem:[#allocation8 + $0x38] sm:$0xff]
        %v865 = vld [vmem:[#allocation8 + $0x40] sm:$0xff]
        %v866 = vld [vmem:[#allocation8 + $0x48] sm:$0xff]
        %v867 = vld [vmem:[#allocation8 + $0x50] sm:$0xff]
        %v868 = vld [vmem:[#allocation8 + $0x58] sm:$0xff]
        %v869 = vld [vmem:[#allocation8 + $0x60] sm:$0xff]
        %v870 = vld [vmem:[#allocation8 + $0x68] sm:$0xff]
        %v871 = vld [vmem:[#allocation8 + $0x70] sm:$0xff]
        %v872 = vld [vmem:[#allocation8 + $0x78] sm:$0xff]
        %v873 = vld [vmem:[%s6] sm:$0x1]
        %v875 = vlaneseq
        %v876 = vshrl.u32 %v875, 7
        %v877 = vsub.s32 0, %v876
        %v878 = vrot.slane %v873, %v877
        %880 = vmatprep.subr.mxu0 0.0
        %881 = vmatpush1.msra.mxu0 %v872
        %882 = vmatprep.subr.mxu0 0.0
        %883 = vmatpush1.msra.mxu0 %v871
        %884 = vmatprep.subr.mxu0 0.0
        %885 = vmatpush1.msra.mxu0 %v870
        %886 = vmatprep.subr.mxu0 0.0
        %887 = vmatpush1.msra.mxu0 %v869
        %888 = vmatprep.subr.mxu0 0.0
        %889 = vmatpush1.msra.mxu0 %v868
        %890 = vmatprep.subr.mxu0 0.0
        %891 = vmatpush1.msra.mxu0 %v867
        %892 = vmatprep.subr.mxu0 0.0
        %893 = vmatpush1.msra.mxu0 %v866
        %894 = vmatprep.subr.mxu0 0.0
        %895 = vmatpush1.msra.mxu0 %v865
        %896 = vmatprep.subr.mxu0 0.0
        %897 = vmatpush1.msra.mxu0 %v864
        %898 = vmatprep.subr.mxu0 0.0
        %899 = vmatpush1.msra.mxu0 %v863
        %900 = vmatprep.subr.mxu0 0.0
        %901 = vmatpush1.msra.mxu0 %v862
        %902 = vmatprep.subr.mxu0 0.0
        %903 = vmatpush1.msra.mxu0 %v861
        %904 = vmatprep.subr.mxu0 0.0
        %905 = vmatpush1.msra.mxu0 %v860
        %906 = vmatprep.subr.mxu0 0.0
        %907 = vmatpush1.msra.mxu0 %v859
        %908 = vmatprep.subr.mxu0 0.0
        %909 = vmatpush1.msra.mxu0 %v858
        %910 = vmatprep.subr.mxu0 0.0
        %911 = vmatpush1.msra.mxu0 %v857
        %912 = vmatprep.subr.mxu0 0.0
        %913 = vmatpush2.msra.mxu0 0.0
        %914 = vmatprep.subr.mxu0 0.0
        %915 = vmatpush2.msra.mxu0 0.0
        %916 = vmatprep.subr.mxu0 0.0
        %917 = vmatpush2.msra.mxu0 0.0
        %918 = vmatprep.subr.mxu0 0.0
        %919 = vmatpush2.msra.mxu0 0.0
        %920 = vmatprep.subr.mxu0 0.0
        %921 = vmatpush2.msra.mxu0 0.0
        %922 = vmatprep.subr.mxu0 0.0
        %923 = vmatpush2.msra.mxu0 0.0
        %924 = vmatprep.subr.mxu0 0.0
        %925 = vmatpush2.msra.mxu0 0.0
        %926 = vmatprep.subr.mxu0 0.0
        %927 = vmatpush2.msra.mxu0 0.0
        %928 = vmatprep.subr.mxu0 0.0
        %929 = vmatpush2.msra.mxu0 0.0
        %930 = vmatprep.subr.mxu0 0.0
        %931 = vmatpush2.msra.mxu0 0.0
        %932 = vmatprep.subr.mxu0 0.0
        %933 = vmatpush2.msra.mxu0 0.0
        %934 = vmatprep.subr.mxu0 0.0
        %935 = vmatpush2.msra.mxu0 0.0
        %936 = vmatprep.subr.mxu0 0.0
        %937 = vmatpush2.msra.mxu0 0.0
        %938 = vmatprep.subr.mxu0 0.0
        %939 = vmatpush2.msra.mxu0 0.0
        %940 = vmatprep.subr.mxu0 0.0
        %941 = vmatpush2.msra.mxu0 0.0
        %942 = vmatprep.subr.mxu0 0.0
        %943 = vmatpush2.msra.mxu0 0.0
        %944 = vmatprep.mubr.f32.mxu0 0.0
        %945 = vmatmul.mubr.f32.gmra.mxu0 %v853
        %v946 = vpop.f32.mrf.mxu0
        %v947 = vadd.f32 %v878, %v946
        %v948 = vpop.f32.mrf.mxu0
        %949 = vmatprep.mubr.f32.mxu0 0.0
        %950 = vmatmul.mubr.f32.gmra.mxu0 %v854
        %v951 = vpop.f32.mrf.mxu0
        %v952 = vadd.f32 %v878, %v951
        %v953 = vpop.f32.mrf.mxu0
        %954 = vdwg.mxu0
        %v955 = vld [vmem:[#allocation10] sm:$0xff]
        %v956 = vld [vmem:[#allocation10 + $0x8] sm:$0xff]
        %v957 = vld [vmem:[#allocation10 + $0x10] sm:$0xff]
        %v958 = vld [vmem:[#allocation10 + $0x18] sm:$0xff]
        %v959 = vld [vmem:[#allocation10 + $0x20] sm:$0xff]
        %v960 = vld [vmem:[#allocation10 + $0x28] sm:$0xff]
        %v961 = vld [vmem:[#allocation10 + $0x30] sm:$0xff]
        %v962 = vld [vmem:[#allocation10 + $0x38] sm:$0xff]
        %v963 = vld [vmem:[#allocation10 + $0x40] sm:$0xff]
        %v964 = vld [vmem:[#allocation10 + $0x48] sm:$0xff]
        %v965 = vld [vmem:[#allocation10 + $0x50] sm:$0xff]
        %v966 = vld [vmem:[#allocation10 + $0x58] sm:$0xff]
        %v967 = vld [vmem:[#allocation10 + $0x60] sm:$0xff]
        %v968 = vld [vmem:[#allocation10 + $0x68] sm:$0xff]
        %v969 = vld [vmem:[#allocation10 + $0x70] sm:$0xff]
        %v970 = vld [vmem:[#allocation10 + $0x78] sm:$0xff]
        %v971 = vld [vmem:[%s7] sm:$0x1]
        %v973 = vlaneseq
        %v974 = vshrl.u32 %v973, 7
        %v975 = vsub.s32 0, %v974
        %v976 = vrot.slane %v971, %v975
        %978 = vmatprep.subr.mxu0 0.0
        %979 = vmatpush1.msra.mxu0 %v970
        %980 = vmatprep.subr.mxu0 0.0
        %981 = vmatpush1.msra.mxu0 %v969
        %982 = vmatprep.subr.mxu0 0.0
        %983 = vmatpush1.msra.mxu0 %v968
        %984 = vmatprep.subr.mxu0 0.0
        %985 = vmatpush1.msra.mxu0 %v967
        %986 = vmatprep.subr.mxu0 0.0
        %987 = vmatpush1.msra.mxu0 %v966
        %988 = vmatprep.subr.mxu0 0.0
        %989 = vmatpush1.msra.mxu0 %v965
        %990 = vmatprep.subr.mxu0 0.0
        %991 = vmatpush1.msra.mxu0 %v964
        %992 = vmatprep.subr.mxu0 0.0
        %993 = vmatpush1.msra.mxu0 %v963
        %994 = vmatprep.subr.mxu0 0.0
        %995 = vmatpush1.msra.mxu0 %v962
        %996 = vmatprep.subr.mxu0 0.0
        %997 = vmatpush1.msra.mxu0 %v961
        %998 = vmatprep.subr.mxu0 0.0
        %999 = vmatpush1.msra.mxu0 %v960
        %1000 = vmatprep.subr.mxu0 0.0
        %1001 = vmatpush1.msra.mxu0 %v959
        %1002 = vmatprep.subr.mxu0 0.0
        %1003 = vmatpush1.msra.mxu0 %v958
        %1004 = vmatprep.subr.mxu0 0.0
        %1005 = vmatpush1.msra.mxu0 %v957
        %1006 = vmatprep.subr.mxu0 0.0
        %1007 = vmatpush1.msra.mxu0 %v956
        %1008 = vmatprep.subr.mxu0 0.0
        %1009 = vmatpush1.msra.mxu0 %v955
        %1010 = vmatprep.subr.mxu0 0.0
        %1011 = vmatpush2.msra.mxu0 0.0
        %1012 = vmatprep.subr.mxu0 0.0
        %1013 = vmatpush2.msra.mxu0 0.0
        %1014 = vmatprep.subr.mxu0 0.0
        %1015 = vmatpush2.msra.mxu0 0.0
        %1016 = vmatprep.subr.mxu0 0.0
        %1017 = vmatpush2.msra.mxu0 0.0
        %1018 = vmatprep.subr.mxu0 0.0
        %1019 = vmatpush2.msra.mxu0 0.0
        %1020 = vmatprep.subr.mxu0 0.0
        %1021 = vmatpush2.msra.mxu0 0.0
        %1022 = vmatprep.subr.mxu0 0.0
        %1023 = vmatpush2.msra.mxu0 0.0
        %1024 = vmatprep.subr.mxu0 0.0
        %1025 = vmatpush2.msra.mxu0 0.0
        %1026 = vmatprep.subr.mxu0 0.0
        %1027 = vmatpush2.msra.mxu0 0.0
        %1028 = vmatprep.subr.mxu0 0.0
        %1029 = vmatpush2.msra.mxu0 0.0
        %1030 = vmatprep.subr.mxu0 0.0
        %1031 = vmatpush2.msra.mxu0 0.0
        %1032 = vmatprep.subr.mxu0 0.0
        %1033 = vmatpush2.msra.mxu0 0.0
        %1034 = vmatprep.subr.mxu0 0.0
        %1035 = vmatpush2.msra.mxu0 0.0
        %1036 = vmatprep.subr.mxu0 0.0
        %1037 = vmatpush2.msra.mxu0 0.0
        %1038 = vmatprep.subr.mxu0 0.0
        %1039 = vmatpush2.msra.mxu0 0.0
        %1040 = vmatprep.subr.mxu0 0.0
        %1041 = vmatpush2.msra.mxu0 0.0
        %1042 = vmatprep.mubr.f32.mxu0 0.0
        %1043 = vmatmul.mubr.f32.gmra.mxu0 %v855
        %v1044 = vpop.f32.mrf.mxu0
        %v1045 = vadd.f32 %v976, %v1044
        %v1046 = vpop.f32.mrf.mxu0
        %1047 = vmatprep.mubr.f32.mxu0 0.0
        %1048 = vmatmul.mubr.f32.gmra.mxu0 %v856
        %v1049 = vpop.f32.mrf.mxu0
        %v1050 = vadd.f32 %v976, %v1049
        %v1051 = vpop.f32.mrf.mxu0
        %1052 = vdwg.mxu0
        %v1053 = vld [vmem:[#allocation11] sm:$0xff]
        %v1054 = vld [vmem:[#allocation11 + $0x8] sm:$0xff]
        %v1055 = vld [vmem:[#allocation11 + $0x10] sm:$0xff]
        %v1056 = vld [vmem:[#allocation11 + $0x18] sm:$0xff]
        %v1057 = vld [vmem:[#allocation11 + $0x20] sm:$0xff]
        %v1058 = vld [vmem:[#allocation11 + $0x28] sm:$0xff]
        %v1059 = vld [vmem:[#allocation11 + $0x30] sm:$0xff]
        %v1060 = vld [vmem:[#allocation11 + $0x38] sm:$0xff]
        %v1061 = vld [vmem:[#allocation11 + $0x40] sm:$0xff]
        %v1062 = vld [vmem:[#allocation11 + $0x48] sm:$0xff]
        %v1063 = vld [vmem:[#allocation11 + $0x50] sm:$0xff]
        %v1064 = vld [vmem:[#allocation11 + $0x58] sm:$0xff]
        %v1065 = vld [vmem:[#allocation11 + $0x60] sm:$0xff]
        %v1066 = vld [vmem:[#allocation11 + $0x68] sm:$0xff]
        %v1067 = vld [vmem:[#allocation11 + $0x70] sm:$0xff]
        %v1068 = vld [vmem:[#allocation11 + $0x78] sm:$0xff]
        %v1069 = vld [vmem:[%s8] sm:$0x1]
        %v1071 = vlaneseq
        %v1072 = vshrl.u32 %v1071, 7
        %v1073 = vsub.s32 0, %v1072
        %v1074 = vrot.slane %v1069, %v1073
        %1076 = vmatprep.subr.mxu0 0.0
        %1077 = vmatpush1.msra.mxu0 %v1068
        %1078 = vmatprep.subr.mxu0 0.0
        %1079 = vmatpush1.msra.mxu0 %v1067
        %1080 = vmatprep.subr.mxu0 0.0
        %1081 = vmatpush1.msra.mxu0 %v1066
        %1082 = vmatprep.subr.mxu0 0.0
        %1083 = vmatpush1.msra.mxu0 %v1065
        %1084 = vmatprep.subr.mxu0 0.0
        %1085 = vmatpush1.msra.mxu0 %v1064
        %1086 = vmatprep.subr.mxu0 0.0
        %1087 = vmatpush1.msra.mxu0 %v1063
        %1088 = vmatprep.subr.mxu0 0.0
        %1089 = vmatpush1.msra.mxu0 %v1062
        %1090 = vmatprep.subr.mxu0 0.0
        %1091 = vmatpush1.msra.mxu0 %v1061
        %1092 = vmatprep.subr.mxu0 0.0
        %1093 = vmatpush1.msra.mxu0 %v1060
        %1094 = vmatprep.subr.mxu0 0.0
        %1095 = vmatpush1.msra.mxu0 %v1059
        %1096 = vmatprep.subr.mxu0 0.0
        %1097 = vmatpush1.msra.mxu0 %v1058
        %1098 = vmatprep.subr.mxu0 0.0
        %1099 = vmatpush1.msra.mxu0 %v1057
        %1100 = vmatprep.subr.mxu0 0.0
        %1101 = vmatpush1.msra.mxu0 %v1056
        %1102 = vmatprep.subr.mxu0 0.0
        %1103 = vmatpush1.msra.mxu0 %v1055
        %1104 = vmatprep.subr.mxu0 0.0
        %1105 = vmatpush1.msra.mxu0 %v1054
        %1106 = vmatprep.subr.mxu0 0.0
        %1107 = vmatpush1.msra.mxu0 %v1053
        %1108 = vmatprep.subr.mxu0 0.0
        %1109 = vmatpush2.msra.mxu0 0.0
        %1110 = vmatprep.subr.mxu0 0.0
        %1111 = vmatpush2.msra.mxu0 0.0
        %1112 = vmatprep.subr.mxu0 0.0
        %1113 = vmatpush2.msra.mxu0 0.0
        %1114 = vmatprep.subr.mxu0 0.0
        %1115 = vmatpush2.msra.mxu0 0.0
        %1116 = vmatprep.subr.mxu0 0.0
        %1117 = vmatpush2.msra.mxu0 0.0
        %1118 = vmatprep.subr.mxu0 0.0
        %1119 = vmatpush2.msra.mxu0 0.0
        %1120 = vmatprep.subr.mxu0 0.0
        %1121 = vmatpush2.msra.mxu0 0.0
        %1122 = vmatprep.subr.mxu0 0.0
        %1123 = vmatpush2.msra.mxu0 0.0
        %1124 = vmatprep.subr.mxu0 0.0
        %1125 = vmatpush2.msra.mxu0 0.0
        %1126 = vmatprep.subr.mxu0 0.0
        %1127 = vmatpush2.msra.mxu0 0.0
        %1128 = vmatprep.subr.mxu0 0.0
        %1129 = vmatpush2.msra.mxu0 0.0
        %1130 = vmatprep.subr.mxu0 0.0
        %1131 = vmatpush2.msra.mxu0 0.0
        %1132 = vmatprep.subr.mxu0 0.0
        %1133 = vmatpush2.msra.mxu0 0.0
        %1134 = vmatprep.subr.mxu0 0.0
        %1135 = vmatpush2.msra.mxu0 0.0
        %1136 = vmatprep.subr.mxu0 0.0
        %1137 = vmatpush2.msra.mxu0 0.0
        %1138 = vmatprep.subr.mxu0 0.0
        %1139 = vmatpush2.msra.mxu0 0.0
        %1140 = vmatprep.mubr.f32.mxu0 0.0
        %1141 = vmatmul.mubr.f32.gmra.mxu0 %v855
        %v1142 = vpop.f32.mrf.mxu0
        %v1143 = vadd.f32 %v1074, %v1142
        %v1144 = vpop.f32.mrf.mxu0
        %1145 = vmatprep.mubr.f32.mxu0 0.0
        %1146 = vmatmul.mubr.f32.gmra.mxu0 %v856
        %v1147 = vpop.f32.mrf.mxu0
        %v1148 = vadd.f32 %v1074, %v1147
        %v1149 = vpop.f32.mrf.mxu0
        %1150 = vdwg.mxu0
        %1153 = vrot.lane.b32.xlu0 %v947, 96
        %v1154 = vpop.permute.xlu0 %1153
        %1155 = vrot.lane.b32.xlu0 %v952, 96
        %v1156 = vpop.permute.xlu0 %1155
        %1159 = vrot.lane.b32.xlu0 %v947, 64
        %v1160 = vpop.permute.xlu0 %1159
        %1161 = vrot.lane.b32.xlu0 %v952, 64
        %v1162 = vpop.permute.xlu0 %1161
        %1165 = vrot.lane.b32.xlu0 %v947, 32
        %v1166 = vpop.permute.xlu0 %1165
        %1167 = vrot.lane.b32.xlu0 %v952, 32
        %v1168 = vpop.permute.xlu0 %1167
        %v1171 = vcombine.low %v947, %v1160
        %v1172 = vcombine.high %v947, %v1160
        %v1174 = vunpack.c.l.s4 1983009808
        %v1175 = vunpack.c.0.s8 %v1174
        %v1176 = vlaneseq
        %v1177 = vshrl.u32 %v1176, 7
        %v1178 = vsub.s32 %v1175, %v1177
        %v1179 = vrot.slane %v1171, %v1178
        %v1181 = vunpack.c.l.s4 1983009808
        %v1182 = vunpack.c.0.s8 %v1181
        %v1183 = vlaneseq
        %v1184 = vshrl.u32 %v1183, 7
        %v1185 = vsub.s32 %v1182, %v1184
        %v1186 = vrot.slane %v1172, %v1185
        %v1187 = vcombine.low %v1154, %v1166
        %v1188 = vcombine.high %v1154, %v1166
        %v1190 = vunpack.c.l.s4 1983009808
        %v1191 = vunpack.c.0.s8 %v1190
        %v1192 = vlaneseq
        %v1193 = vshrl.u32 %v1192, 7
        %v1194 = vsub.s32 %v1191, %v1193
        %v1195 = vrot.slane %v1187, %v1194
        %v1197 = vunpack.c.l.s4 1983009808
        %v1198 = vunpack.c.0.s8 %v1197
        %v1199 = vlaneseq
        %v1200 = vshrl.u32 %v1199, 7
        %v1201 = vsub.s32 %v1198, %v1200
        %v1202 = vrot.slane %v1188, %v1201
        %v1203 = vcombine.low %v1179, %v1195
        %v1204 = vcombine.high %v1179, %v1195
        %v1206 = vunpack.c.l.s4 1934713408
        %v1207 = vunpack.c.0.s8 %v1206
        %v1208 = vlaneseq
        %v1209 = vshrl.u32 %v1208, 7
        %v1210 = vsub.s32 %v1207, %v1209
        %v1211 = vrot.slane %v1203, %v1210
        %v1213 = vunpack.c.l.s4 1934713408
        %v1214 = vunpack.c.0.s8 %v1213
        %v1215 = vlaneseq
        %v1216 = vshrl.u32 %v1215, 7
        %v1217 = vsub.s32 %v1214, %v1216
        %v1218 = vrot.slane %v1204, %v1217
        %v1219 = vcombine.low %v1186, %v1202
        %v1220 = vcombine.high %v1186, %v1202
        %v1222 = vunpack.c.l.s4 1934713408
        %v1223 = vunpack.c.0.s8 %v1222
        %v1224 = vlaneseq
        %v1225 = vshrl.u32 %v1224, 7
        %v1226 = vsub.s32 %v1223, %v1225
        %v1227 = vrot.slane %v1219, %v1226
        %v1229 = vunpack.c.l.s4 1934713408
        %v1230 = vunpack.c.0.s8 %v1229
        %v1231 = vlaneseq
        %v1232 = vshrl.u32 %v1231, 7
        %v1233 = vsub.s32 %v1230, %v1232
        %v1234 = vrot.slane %v1220, %v1233
        %v1235 = vcombine.high %v1211, 0.0
        %v1236 = vcombine.high %v1218, 0.0
        %v1237 = vcombine.high %v1227, 0.0
        %v1238 = vcombine.high %v1234, 0.0
        %v1239 = vcombine.low %v952, %v1162
        %v1240 = vcombine.high %v952, %v1162
        %v1242 = vunpack.c.l.s4 1983009808
        %v1243 = vunpack.c.0.s8 %v1242
        %v1244 = vlaneseq
        %v1245 = vshrl.u32 %v1244, 7
        %v1246 = vsub.s32 %v1243, %v1245
        %v1247 = vrot.slane %v1239, %v1246
        %v1249 = vunpack.c.l.s4 1983009808
        %v1250 = vunpack.c.0.s8 %v1249
        %v1251 = vlaneseq
        %v1252 = vshrl.u32 %v1251, 7
        %v1253 = vsub.s32 %v1250, %v1252
        %v1254 = vrot.slane %v1240, %v1253
        %v1255 = vcombine.low %v1156, %v1168
        %v1256 = vcombine.high %v1156, %v1168
        %v1258 = vunpack.c.l.s4 1983009808
        %v1259 = vunpack.c.0.s8 %v1258
        %v1260 = vlaneseq
        %v1261 = vshrl.u32 %v1260, 7
        %v1262 = vsub.s32 %v1259, %v1261
        %v1263 = vrot.slane %v1255, %v1262
        %v1265 = vunpack.c.l.s4 1983009808
        %v1266 = vunpack.c.0.s8 %v1265
        %v1267 = vlaneseq
        %v1268 = vshrl.u32 %v1267, 7
        %v1269 = vsub.s32 %v1266, %v1268
        %v1270 = vrot.slane %v1256, %v1269
        %v1271 = vcombine.low %v1247, %v1263
        %v1272 = vcombine.high %v1247, %v1263
        %v1274 = vunpack.c.l.s4 1934713408
        %v1275 = vunpack.c.0.s8 %v1274
        %v1276 = vlaneseq
        %v1277 = vshrl.u32 %v1276, 7
        %v1278 = vsub.s32 %v1275, %v1277
        %v1279 = vrot.slane %v1271, %v1278
        %v1281 = vunpack.c.l.s4 1934713408
        %v1282 = vunpack.c.0.s8 %v1281
        %v1283 = vlaneseq
        %v1284 = vshrl.u32 %v1283, 7
        %v1285 = vsub.s32 %v1282, %v1284
        %v1286 = vrot.slane %v1272, %v1285
        %v1287 = vcombine.low %v1254, %v1270
        %v1288 = vcombine.high %v1254, %v1270
        %v1290 = vunpack.c.l.s4 1934713408
        %v1291 = vunpack.c.0.s8 %v1290
        %v1292 = vlaneseq
        %v1293 = vshrl.u32 %v1292, 7
        %v1294 = vsub.s32 %v1291, %v1293
        %v1295 = vrot.slane %v1287, %v1294
        %v1297 = vunpack.c.l.s4 1934713408
        %v1298 = vunpack.c.0.s8 %v1297
        %v1299 = vlaneseq
        %v1300 = vshrl.u32 %v1299, 7
        %v1301 = vsub.s32 %v1298, %v1300
        %v1302 = vrot.slane %v1288, %v1301
        %v1303 = vcombine.high %v1279, 0.0
        %v1304 = vcombine.high %v1286, 0.0
        %v1305 = vcombine.high %v1295, 0.0
        %v1306 = vcombine.high %v1302, 0.0
        %v1307 = vcombine.low %v1211, %v1218
        %v1309 = vunpack.c.l.s4 1983009808
        %v1310 = vunpack.c.0.s8 %v1309
        %v1311 = vlaneseq
        %v1312 = vshrl.u32 %v1311, 7
        %v1313 = vsub.s32 %v1310, %v1312
        %v1314 = vrot.slane %v1307, %v1313
        %v1315 = vcombine.low %v1235, %v1236
        %v1317 = vunpack.c.l.s4 1983009808
        %v1318 = vunpack.c.0.s8 %v1317
        %v1319 = vlaneseq
        %v1320 = vshrl.u32 %v1319, 7
        %v1321 = vsub.s32 %v1318, %v1320
        %v1322 = vrot.slane %v1315, %v1321
        %v1323 = vcombine.low %v1227, %v1234
        %v1325 = vunpack.c.l.s4 1983009808
        %v1326 = vunpack.c.0.s8 %v1325
        %v1327 = vlaneseq
        %v1328 = vshrl.u32 %v1327, 7
        %v1329 = vsub.s32 %v1326, %v1328
        %v1330 = vrot.slane %v1323, %v1329
        %v1331 = vcombine.low %v1237, %v1238
        %v1333 = vunpack.c.l.s4 1983009808
        %v1334 = vunpack.c.0.s8 %v1333
        %v1335 = vlaneseq
        %v1336 = vshrl.u32 %v1335, 7
        %v1337 = vsub.s32 %v1334, %v1336
        %v1338 = vrot.slane %v1331, %v1337
        %v1339 = vcombine.low %v1314, %v1322
        %v1340 = vcombine.high %v1314, %v1322
        %v1342 = vunpack.c.l.s4 1934713408
        %v1343 = vunpack.c.0.s8 %v1342
        %v1344 = vlaneseq
        %v1345 = vshrl.u32 %v1344, 7
        %v1346 = vsub.s32 %v1343, %v1345
        %v1347 = vrot.slane %v1339, %v1346
        %v1349 = vunpack.c.l.s4 1934713408
        %v1350 = vunpack.c.0.s8 %v1349
        %v1351 = vlaneseq
        %v1352 = vshrl.u32 %v1351, 7
        %v1353 = vsub.s32 %v1350, %v1352
        %v1354 = vrot.slane %v1340, %v1353
        %v1355 = vcombine.low %v1330, %v1338
        %v1356 = vcombine.high %v1330, %v1338
        %v1358 = vunpack.c.l.s4 1934713408
        %v1359 = vunpack.c.0.s8 %v1358
        %v1360 = vlaneseq
        %v1361 = vshrl.u32 %v1360, 7
        %v1362 = vsub.s32 %v1359, %v1361
        %v1363 = vrot.slane %v1355, %v1362
        %v1365 = vunpack.c.l.s4 1934713408
        %v1366 = vunpack.c.0.s8 %v1365
        %v1367 = vlaneseq
        %v1368 = vshrl.u32 %v1367, 7
        %v1369 = vsub.s32 %v1366, %v1368
        %v1370 = vrot.slane %v1356, %v1369
        %v1371 = vcombine.low %v1347, %v1363
        %v1372 = vcombine.high %v1347, %v1363
        %v1373 = vcombine.low %v1354, %v1370
        %v1374 = vcombine.high %v1354, %v1370
        %v1375 = vcombine.low %v1279, %v1286
        %v1377 = vunpack.c.l.s4 1983009808
        %v1378 = vunpack.c.0.s8 %v1377
        %v1379 = vlaneseq
        %v1380 = vshrl.u32 %v1379, 7
        %v1381 = vsub.s32 %v1378, %v1380
        %v1382 = vrot.slane %v1375, %v1381
        %v1383 = vcombine.low %v1303, %v1304
        %v1385 = vunpack.c.l.s4 1983009808
        %v1386 = vunpack.c.0.s8 %v1385
        %v1387 = vlaneseq
        %v1388 = vshrl.u32 %v1387, 7
        %v1389 = vsub.s32 %v1386, %v1388
        %v1390 = vrot.slane %v1383, %v1389
        %v1391 = vcombine.low %v1295, %v1302
        %v1393 = vunpack.c.l.s4 1983009808
        %v1394 = vunpack.c.0.s8 %v1393
        %v1395 = vlaneseq
        %v1396 = vshrl.u32 %v1395, 7
        %v1397 = vsub.s32 %v1394, %v1396
        %v1398 = vrot.slane %v1391, %v1397
        %v1399 = vcombine.low %v1305, %v1306
        %v1401 = vunpack.c.l.s4 1983009808
        %v1402 = vunpack.c.0.s8 %v1401
        %v1403 = vlaneseq
        %v1404 = vshrl.u32 %v1403, 7
        %v1405 = vsub.s32 %v1402, %v1404
        %v1406 = vrot.slane %v1399, %v1405
        %v1407 = vcombine.low %v1382, %v1390
        %v1408 = vcombine.high %v1382, %v1390
        %v1410 = vunpack.c.l.s4 1934713408
        %v1411 = vunpack.c.0.s8 %v1410
        %v1412 = vlaneseq
        %v1413 = vshrl.u32 %v1412, 7
        %v1414 = vsub.s32 %v1411, %v1413
        %v1415 = vrot.slane %v1407, %v1414
        %v1417 = vunpack.c.l.s4 1934713408
        %v1418 = vunpack.c.0.s8 %v1417
        %v1419 = vlaneseq
        %v1420 = vshrl.u32 %v1419, 7
        %v1421 = vsub.s32 %v1418, %v1420
        %v1422 = vrot.slane %v1408, %v1421
        %v1423 = vcombine.low %v1398, %v1406
        %v1424 = vcombine.high %v1398, %v1406
        %v1426 = vunpack.c.l.s4 1934713408
        %v1427 = vunpack.c.0.s8 %v1426
        %v1428 = vlaneseq
        %v1429 = vshrl.u32 %v1428, 7
        %v1430 = vsub.s32 %v1427, %v1429
        %v1431 = vrot.slane %v1423, %v1430
        %v1433 = vunpack.c.l.s4 1934713408
        %v1434 = vunpack.c.0.s8 %v1433
        %v1435 = vlaneseq
        %v1436 = vshrl.u32 %v1435, 7
        %v1437 = vsub.s32 %v1434, %v1436
        %v1438 = vrot.slane %v1424, %v1437
        %v1439 = vcombine.low %v1415, %v1431
        %v1440 = vcombine.high %v1415, %v1431
        %v1441 = vcombine.low %v1422, %v1438
        %v1442 = vcombine.high %v1422, %v1438
        %1445 = vrot.lane.b32.xlu0 %v1045, 96
        %v1446 = vpop.permute.xlu0 %1445
        %1447 = vrot.lane.b32.xlu0 %v1050, 96
        %v1448 = vpop.permute.xlu0 %1447
        %1451 = vrot.lane.b32.xlu0 %v1045, 64
        %v1452 = vpop.permute.xlu0 %1451
        %1453 = vrot.lane.b32.xlu0 %v1050, 64
        %v1454 = vpop.permute.xlu0 %1453
        %1457 = vrot.lane.b32.xlu0 %v1045, 32
        %v1458 = vpop.permute.xlu0 %1457
        %1459 = vrot.lane.b32.xlu0 %v1050, 32
        %v1460 = vpop.permute.xlu0 %1459
        %v1463 = vcombine.low %v1045, %v1452
        %v1464 = vcombine.high %v1045, %v1452
        %v1466 = vunpack.c.l.s4 1983009808
        %v1467 = vunpack.c.0.s8 %v1466
        %v1468 = vlaneseq
        %v1469 = vshrl.u32 %v1468, 7
        %v1470 = vsub.s32 %v1467, %v1469
        %v1471 = vrot.slane %v1463, %v1470
        %v1473 = vunpack.c.l.s4 1983009808
        %v1474 = vunpack.c.0.s8 %v1473
        %v1475 = vlaneseq
        %v1476 = vshrl.u32 %v1475, 7
        %v1477 = vsub.s32 %v1474, %v1476
        %v1478 = vrot.slane %v1464, %v1477
        %v1479 = vcombine.low %v1446, %v1458
        %v1480 = vcombine.high %v1446, %v1458
        %v1482 = vunpack.c.l.s4 1983009808
        %v1483 = vunpack.c.0.s8 %v1482
        %v1484 = vlaneseq
        %v1485 = vshrl.u32 %v1484, 7
        %v1486 = vsub.s32 %v1483, %v1485
        %v1487 = vrot.slane %v1479, %v1486
        %v1489 = vunpack.c.l.s4 1983009808
        %v1490 = vunpack.c.0.s8 %v1489
        %v1491 = vlaneseq
        %v1492 = vshrl.u32 %v1491, 7
        %v1493 = vsub.s32 %v1490, %v1492
        %v1494 = vrot.slane %v1480, %v1493
        %v1495 = vcombine.low %v1471, %v1487
        %v1496 = vcombine.high %v1471, %v1487
        %v1498 = vunpack.c.l.s4 1934713408
        %v1499 = vunpack.c.0.s8 %v1498
        %v1500 = vlaneseq
        %v1501 = vshrl.u32 %v1500, 7
        %v1502 = vsub.s32 %v1499, %v1501
        %v1503 = vrot.slane %v1495, %v1502
        %v1505 = vunpack.c.l.s4 1934713408
        %v1506 = vunpack.c.0.s8 %v1505
        %v1507 = vlaneseq
        %v1508 = vshrl.u32 %v1507, 7
        %v1509 = vsub.s32 %v1506, %v1508
        %v1510 = vrot.slane %v1496, %v1509
        %v1511 = vcombine.low %v1478, %v1494
        %v1512 = vcombine.high %v1478, %v1494
        %v1514 = vunpack.c.l.s4 1934713408
        %v1515 = vunpack.c.0.s8 %v1514
        %v1516 = vlaneseq
        %v1517 = vshrl.u32 %v1516, 7
        %v1518 = vsub.s32 %v1515, %v1517
        %v1519 = vrot.slane %v1511, %v1518
        %v1521 = vunpack.c.l.s4 1934713408
        %v1522 = vunpack.c.0.s8 %v1521
        %v1523 = vlaneseq
        %v1524 = vshrl.u32 %v1523, 7
        %v1525 = vsub.s32 %v1522, %v1524
        %v1526 = vrot.slane %v1512, %v1525
        %v1527 = vcombine.high %v1503, 0.0
        %v1528 = vcombine.high %v1510, 0.0
        %v1529 = vcombine.high %v1519, 0.0
        %v1530 = vcombine.high %v1526, 0.0
        %v1531 = vcombine.low %v1050, %v1454
        %v1532 = vcombine.high %v1050, %v1454
        %v1534 = vunpack.c.l.s4 1983009808
        %v1535 = vunpack.c.0.s8 %v1534
        %v1536 = vlaneseq
        %v1537 = vshrl.u32 %v1536, 7
        %v1538 = vsub.s32 %v1535, %v1537
        %v1539 = vrot.slane %v1531, %v1538
        %v1541 = vunpack.c.l.s4 1983009808
        %v1542 = vunpack.c.0.s8 %v1541
        %v1543 = vlaneseq
        %v1544 = vshrl.u32 %v1543, 7
        %v1545 = vsub.s32 %v1542, %v1544
        %v1546 = vrot.slane %v1532, %v1545
        %v1547 = vcombine.low %v1448, %v1460
        %v1548 = vcombine.high %v1448, %v1460
        %v1550 = vunpack.c.l.s4 1983009808
        %v1551 = vunpack.c.0.s8 %v1550
        %v1552 = vlaneseq
        %v1553 = vshrl.u32 %v1552, 7
        %v1554 = vsub.s32 %v1551, %v1553
        %v1555 = vrot.slane %v1547, %v1554
        %v1557 = vunpack.c.l.s4 1983009808
        %v1558 = vunpack.c.0.s8 %v1557
        %v1559 = vlaneseq
        %v1560 = vshrl.u32 %v1559, 7
        %v1561 = vsub.s32 %v1558, %v1560
        %v1562 = vrot.slane %v1548, %v1561
        %v1563 = vcombine.low %v1539, %v1555
        %v1564 = vcombine.high %v1539, %v1555
        %v1566 = vunpack.c.l.s4 1934713408
        %v1567 = vunpack.c.0.s8 %v1566
        %v1568 = vlaneseq
        %v1569 = vshrl.u32 %v1568, 7
        %v1570 = vsub.s32 %v1567, %v1569
        %v1571 = vrot.slane %v1563, %v1570
        %v1573 = vunpack.c.l.s4 1934713408
        %v1574 = vunpack.c.0.s8 %v1573
        %v1575 = vlaneseq
        %v1576 = vshrl.u32 %v1575, 7
        %v1577 = vsub.s32 %v1574, %v1576
        %v1578 = vrot.slane %v1564, %v1577
        %v1579 = vcombine.low %v1546, %v1562
        %v1580 = vcombine.high %v1546, %v1562
        %v1582 = vunpack.c.l.s4 1934713408
        %v1583 = vunpack.c.0.s8 %v1582
        %v1584 = vlaneseq
        %v1585 = vshrl.u32 %v1584, 7
        %v1586 = vsub.s32 %v1583, %v1585
        %v1587 = vrot.slane %v1579, %v1586
        %v1589 = vunpack.c.l.s4 1934713408
        %v1590 = vunpack.c.0.s8 %v1589
        %v1591 = vlaneseq
        %v1592 = vshrl.u32 %v1591, 7
        %v1593 = vsub.s32 %v1590, %v1592
        %v1594 = vrot.slane %v1580, %v1593
        %v1595 = vcombine.high %v1571, 0.0
        %v1596 = vcombine.high %v1578, 0.0
        %v1597 = vcombine.high %v1587, 0.0
        %v1598 = vcombine.high %v1594, 0.0
        %v1599 = vcombine.low %v1503, %v1510
        %v1601 = vunpack.c.l.s4 1983009808
        %v1602 = vunpack.c.0.s8 %v1601
        %v1603 = vlaneseq
        %v1604 = vshrl.u32 %v1603, 7
        %v1605 = vsub.s32 %v1602, %v1604
        %v1606 = vrot.slane %v1599, %v1605
        %v1607 = vcombine.low %v1527, %v1528
        %v1609 = vunpack.c.l.s4 1983009808
        %v1610 = vunpack.c.0.s8 %v1609
        %v1611 = vlaneseq
        %v1612 = vshrl.u32 %v1611, 7
        %v1613 = vsub.s32 %v1610, %v1612
        %v1614 = vrot.slane %v1607, %v1613
        %v1615 = vcombine.low %v1519, %v1526
        %v1617 = vunpack.c.l.s4 1983009808
        %v1618 = vunpack.c.0.s8 %v1617
        %v1619 = vlaneseq
        %v1620 = vshrl.u32 %v1619, 7
        %v1621 = vsub.s32 %v1618, %v1620
        %v1622 = vrot.slane %v1615, %v1621
        %v1623 = vcombine.low %v1529, %v1530
        %v1625 = vunpack.c.l.s4 1983009808
        %v1626 = vunpack.c.0.s8 %v1625
        %v1627 = vlaneseq
        %v1628 = vshrl.u32 %v1627, 7
        %v1629 = vsub.s32 %v1626, %v1628
        %v1630 = vrot.slane %v1623, %v1629
        %v1631 = vcombine.low %v1606, %v1614
        %v1632 = vcombine.high %v1606, %v1614
        %v1634 = vunpack.c.l.s4 1934713408
        %v1635 = vunpack.c.0.s8 %v1634
        %v1636 = vlaneseq
        %v1637 = vshrl.u32 %v1636, 7
        %v1638 = vsub.s32 %v1635, %v1637
        %v1639 = vrot.slane %v1631, %v1638
        %v1641 = vunpack.c.l.s4 1934713408
        %v1642 = vunpack.c.0.s8 %v1641
        %v1643 = vlaneseq
        %v1644 = vshrl.u32 %v1643, 7
        %v1645 = vsub.s32 %v1642, %v1644
        %v1646 = vrot.slane %v1632, %v1645
        %v1647 = vcombine.low %v1622, %v1630
        %v1648 = vcombine.high %v1622, %v1630
        %v1650 = vunpack.c.l.s4 1934713408
        %v1651 = vunpack.c.0.s8 %v1650
        %v1652 = vlaneseq
        %v1653 = vshrl.u32 %v1652, 7
        %v1654 = vsub.s32 %v1651, %v1653
        %v1655 = vrot.slane %v1647, %v1654
        %v1657 = vunpack.c.l.s4 1934713408
        %v1658 = vunpack.c.0.s8 %v1657
        %v1659 = vlaneseq
        %v1660 = vshrl.u32 %v1659, 7
        %v1661 = vsub.s32 %v1658, %v1660
        %v1662 = vrot.slane %v1648, %v1661
        %v1663 = vcombine.low %v1639, %v1655
        %v1664 = vcombine.high %v1639, %v1655
        %v1665 = vcombine.low %v1646, %v1662
        %v1666 = vcombine.high %v1646, %v1662
        %v1667 = vcombine.low %v1571, %v1578
        %v1669 = vunpack.c.l.s4 1983009808
        %v1670 = vunpack.c.0.s8 %v1669
        %v1671 = vlaneseq
        %v1672 = vshrl.u32 %v1671, 7
        %v1673 = vsub.s32 %v1670, %v1672
        %v1674 = vrot.slane %v1667, %v1673
        %v1675 = vcombine.low %v1595, %v1596
        %v1677 = vunpack.c.l.s4 1983009808
        %v1678 = vunpack.c.0.s8 %v1677
        %v1679 = vlaneseq
        %v1680 = vshrl.u32 %v1679, 7
        %v1681 = vsub.s32 %v1678, %v1680
        %v1682 = vrot.slane %v1675, %v1681
        %v1683 = vcombine.low %v1587, %v1594
        %v1685 = vunpack.c.l.s4 1983009808
        %v1686 = vunpack.c.0.s8 %v1685
        %v1687 = vlaneseq
        %v1688 = vshrl.u32 %v1687, 7
        %v1689 = vsub.s32 %v1686, %v1688
        %v1690 = vrot.slane %v1683, %v1689
        %v1691 = vcombine.low %v1597, %v1598
        %v1693 = vunpack.c.l.s4 1983009808
        %v1694 = vunpack.c.0.s8 %v1693
        %v1695 = vlaneseq
        %v1696 = vshrl.u32 %v1695, 7
        %v1697 = vsub.s32 %v1694, %v1696
        %v1698 = vrot.slane %v1691, %v1697
        %v1699 = vcombine.low %v1674, %v1682
        %v1700 = vcombine.high %v1674, %v1682
        %v1702 = vunpack.c.l.s4 1934713408
        %v1703 = vunpack.c.0.s8 %v1702
        %v1704 = vlaneseq
        %v1705 = vshrl.u32 %v1704, 7
        %v1706 = vsub.s32 %v1703, %v1705
        %v1707 = vrot.slane %v1699, %v1706
        %v1709 = vunpack.c.l.s4 1934713408
        %v1710 = vunpack.c.0.s8 %v1709
        %v1711 = vlaneseq
        %v1712 = vshrl.u32 %v1711, 7
        %v1713 = vsub.s32 %v1710, %v1712
        %v1714 = vrot.slane %v1700, %v1713
        %v1715 = vcombine.low %v1690, %v1698
        %v1716 = vcombine.high %v1690, %v1698
        %v1718 = vunpack.c.l.s4 1934713408
        %v1719 = vunpack.c.0.s8 %v1718
        %v1720 = vlaneseq
        %v1721 = vshrl.u32 %v1720, 7
        %v1722 = vsub.s32 %v1719, %v1721
        %v1723 = vrot.slane %v1715, %v1722
        %v1725 = vunpack.c.l.s4 1934713408
        %v1726 = vunpack.c.0.s8 %v1725
        %v1727 = vlaneseq
        %v1728 = vshrl.u32 %v1727, 7
        %v1729 = vsub.s32 %v1726, %v1728
        %v1730 = vrot.slane %v1716, %v1729
        %v1731 = vcombine.low %v1707, %v1723
        %v1732 = vcombine.high %v1707, %v1723
        %v1733 = vcombine.low %v1714, %v1730
        %v1734 = vcombine.high %v1714, %v1730
        %1737 = vrot.lane.b32.xlu0 %v1143, 96
        %v1738 = vpop.permute.xlu0 %1737
        %1739 = vrot.lane.b32.xlu0 %v1148, 96
        %v1740 = vpop.permute.xlu0 %1739
        %1743 = vrot.lane.b32.xlu0 %v1143, 64
        %v1744 = vpop.permute.xlu0 %1743
        %1745 = vrot.lane.b32.xlu0 %v1148, 64
        %v1746 = vpop.permute.xlu0 %1745
        %1749 = vrot.lane.b32.xlu0 %v1143, 32
        %v1750 = vpop.permute.xlu0 %1749
        %1751 = vrot.lane.b32.xlu0 %v1148, 32
        %v1752 = vpop.permute.xlu0 %1751
        %v1755 = vcombine.low %v1143, %v1744
        %v1756 = vcombine.high %v1143, %v1744
        %v1758 = vunpack.c.l.s4 1983009808
        %v1759 = vunpack.c.0.s8 %v1758
        %v1760 = vlaneseq
        %v1761 = vshrl.u32 %v1760, 7
        %v1762 = vsub.s32 %v1759, %v1761
        %v1763 = vrot.slane %v1755, %v1762
        %v1765 = vunpack.c.l.s4 1983009808
        %v1766 = vunpack.c.0.s8 %v1765
        %v1767 = vlaneseq
        %v1768 = vshrl.u32 %v1767, 7
        %v1769 = vsub.s32 %v1766, %v1768
        %v1770 = vrot.slane %v1756, %v1769
        %v1771 = vcombine.low %v1738, %v1750
        %v1772 = vcombine.high %v1738, %v1750
        %v1774 = vunpack.c.l.s4 1983009808
        %v1775 = vunpack.c.0.s8 %v1774
        %v1776 = vlaneseq
        %v1777 = vshrl.u32 %v1776, 7
        %v1778 = vsub.s32 %v1775, %v1777
        %v1779 = vrot.slane %v1771, %v1778
        %v1781 = vunpack.c.l.s4 1983009808
        %v1782 = vunpack.c.0.s8 %v1781
        %v1783 = vlaneseq
        %v1784 = vshrl.u32 %v1783, 7
        %v1785 = vsub.s32 %v1782, %v1784
        %v1786 = vrot.slane %v1772, %v1785
        %v1787 = vcombine.low %v1763, %v1779
        %v1788 = vcombine.high %v1763, %v1779
        %v1790 = vunpack.c.l.s4 1934713408
        %v1791 = vunpack.c.0.s8 %v1790
        %v1792 = vlaneseq
        %v1793 = vshrl.u32 %v1792, 7
        %v1794 = vsub.s32 %v1791, %v1793
        %v1795 = vrot.slane %v1787, %v1794
        %v1797 = vunpack.c.l.s4 1934713408
        %v1798 = vunpack.c.0.s8 %v1797
        %v1799 = vlaneseq
        %v1800 = vshrl.u32 %v1799, 7
        %v1801 = vsub.s32 %v1798, %v1800
        %v1802 = vrot.slane %v1788, %v1801
        %v1803 = vcombine.low %v1770, %v1786
        %v1804 = vcombine.high %v1770, %v1786
        %v1806 = vunpack.c.l.s4 1934713408
        %v1807 = vunpack.c.0.s8 %v1806
        %v1808 = vlaneseq
        %v1809 = vshrl.u32 %v1808, 7
        %v1810 = vsub.s32 %v1807, %v1809
        %v1811 = vrot.slane %v1803, %v1810
        %v1813 = vunpack.c.l.s4 1934713408
        %v1814 = vunpack.c.0.s8 %v1813
        %v1815 = vlaneseq
        %v1816 = vshrl.u32 %v1815, 7
        %v1817 = vsub.s32 %v1814, %v1816
        %v1818 = vrot.slane %v1804, %v1817
        %v1819 = vcombine.high %v1795, 0.0
        %v1820 = vcombine.high %v1802, 0.0
        %v1821 = vcombine.high %v1811, 0.0
        %v1822 = vcombine.high %v1818, 0.0
        %v1823 = vcombine.low %v1148, %v1746
        %v1824 = vcombine.high %v1148, %v1746
        %v1826 = vunpack.c.l.s4 1983009808
        %v1827 = vunpack.c.0.s8 %v1826
        %v1828 = vlaneseq
        %v1829 = vshrl.u32 %v1828, 7
        %v1830 = vsub.s32 %v1827, %v1829
        %v1831 = vrot.slane %v1823, %v1830
        %v1833 = vunpack.c.l.s4 1983009808
        %v1834 = vunpack.c.0.s8 %v1833
        %v1835 = vlaneseq
        %v1836 = vshrl.u32 %v1835, 7
        %v1837 = vsub.s32 %v1834, %v1836
        %v1838 = vrot.slane %v1824, %v1837
        %v1839 = vcombine.low %v1740, %v1752
        %v1840 = vcombine.high %v1740, %v1752
        %v1842 = vunpack.c.l.s4 1983009808
        %v1843 = vunpack.c.0.s8 %v1842
        %v1844 = vlaneseq
        %v1845 = vshrl.u32 %v1844, 7
        %v1846 = vsub.s32 %v1843, %v1845
        %v1847 = vrot.slane %v1839, %v1846
        %v1849 = vunpack.c.l.s4 1983009808
        %v1850 = vunpack.c.0.s8 %v1849
        %v1851 = vlaneseq
        %v1852 = vshrl.u32 %v1851, 7
        %v1853 = vsub.s32 %v1850, %v1852
        %v1854 = vrot.slane %v1840, %v1853
        %v1855 = vcombine.low %v1831, %v1847
        %v1856 = vcombine.high %v1831, %v1847
        %v1858 = vunpack.c.l.s4 1934713408
        %v1859 = vunpack.c.0.s8 %v1858
        %v1860 = vlaneseq
        %v1861 = vshrl.u32 %v1860, 7
        %v1862 = vsub.s32 %v1859, %v1861
        %v1863 = vrot.slane %v1855, %v1862
        %v1865 = vunpack.c.l.s4 1934713408
        %v1866 = vunpack.c.0.s8 %v1865
        %v1867 = vlaneseq
        %v1868 = vshrl.u32 %v1867, 7
        %v1869 = vsub.s32 %v1866, %v1868
        %v1870 = vrot.slane %v1856, %v1869
        %v1871 = vcombine.low %v1838, %v1854
        %v1872 = vcombine.high %v1838, %v1854
        %v1874 = vunpack.c.l.s4 1934713408
        %v1875 = vunpack.c.0.s8 %v1874
        %v1876 = vlaneseq
        %v1877 = vshrl.u32 %v1876, 7
        %v1878 = vsub.s32 %v1875, %v1877
        %v1879 = vrot.slane %v1871, %v1878
        %v1881 = vunpack.c.l.s4 1934713408
        %v1882 = vunpack.c.0.s8 %v1881
        %v1883 = vlaneseq
        %v1884 = vshrl.u32 %v1883, 7
        %v1885 = vsub.s32 %v1882, %v1884
        %v1886 = vrot.slane %v1872, %v1885
        %v1887 = vcombine.high %v1863, 0.0
        %v1888 = vcombine.high %v1870, 0.0
        %v1889 = vcombine.high %v1879, 0.0
        %v1890 = vcombine.high %v1886, 0.0
        %v1891 = vcombine.low %v1795, %v1802
        %v1893 = vunpack.c.l.s4 1983009808
        %v1894 = vunpack.c.0.s8 %v1893
        %v1895 = vlaneseq
        %v1896 = vshrl.u32 %v1895, 7
        %v1897 = vsub.s32 %v1894, %v1896
        %v1898 = vrot.slane %v1891, %v1897
        %v1899 = vcombine.low %v1819, %v1820
        %v1901 = vunpack.c.l.s4 1983009808
        %v1902 = vunpack.c.0.s8 %v1901
        %v1903 = vlaneseq
        %v1904 = vshrl.u32 %v1903, 7
        %v1905 = vsub.s32 %v1902, %v1904
        %v1906 = vrot.slane %v1899, %v1905
        %v1907 = vcombine.low %v1811, %v1818
        %v1909 = vunpack.c.l.s4 1983009808
        %v1910 = vunpack.c.0.s8 %v1909
        %v1911 = vlaneseq
        %v1912 = vshrl.u32 %v1911, 7
        %v1913 = vsub.s32 %v1910, %v1912
        %v1914 = vrot.slane %v1907, %v1913
        %v1915 = vcombine.low %v1821, %v1822
        %v1917 = vunpack.c.l.s4 1983009808
        %v1918 = vunpack.c.0.s8 %v1917
        %v1919 = vlaneseq
        %v1920 = vshrl.u32 %v1919, 7
        %v1921 = vsub.s32 %v1918, %v1920
        %v1922 = vrot.slane %v1915, %v1921
        %v1923 = vcombine.low %v1898, %v1906
        %v1924 = vcombine.high %v1898, %v1906
        %v1926 = vunpack.c.l.s4 1934713408
        %v1927 = vunpack.c.0.s8 %v1926
        %v1928 = vlaneseq
        %v1929 = vshrl.u32 %v1928, 7
        %v1930 = vsub.s32 %v1927, %v1929
        %v1931 = vrot.slane %v1923, %v1930
        %v1933 = vunpack.c.l.s4 1934713408
        %v1934 = vunpack.c.0.s8 %v1933
        %v1935 = vlaneseq
        %v1936 = vshrl.u32 %v1935, 7
        %v1937 = vsub.s32 %v1934, %v1936
        %v1938 = vrot.slane %v1924, %v1937
        %v1939 = vcombine.low %v1914, %v1922
        %v1940 = vcombine.high %v1914, %v1922
        %v1942 = vunpack.c.l.s4 1934713408
        %v1943 = vunpack.c.0.s8 %v1942
        %v1944 = vlaneseq
        %v1945 = vshrl.u32 %v1944, 7
        %v1946 = vsub.s32 %v1943, %v1945
        %v1947 = vrot.slane %v1939, %v1946
        %v1949 = vunpack.c.l.s4 1934713408
        %v1950 = vunpack.c.0.s8 %v1949
        %v1951 = vlaneseq
        %v1952 = vshrl.u32 %v1951, 7
        %v1953 = vsub.s32 %v1950, %v1952
        %v1954 = vrot.slane %v1940, %v1953
        %v1955 = vcombine.low %v1931, %v1947
        %v1956 = vcombine.high %v1931, %v1947
        %v1957 = vcombine.low %v1938, %v1954
        %v1958 = vcombine.high %v1938, %v1954
        %v1959 = vcombine.low %v1863, %v1870
        %v1961 = vunpack.c.l.s4 1983009808
        %v1962 = vunpack.c.0.s8 %v1961
        %v1963 = vlaneseq
        %v1964 = vshrl.u32 %v1963, 7
        %v1965 = vsub.s32 %v1962, %v1964
        %v1966 = vrot.slane %v1959, %v1965
        %v1967 = vcombine.low %v1887, %v1888
        %v1969 = vunpack.c.l.s4 1983009808
        %v1970 = vunpack.c.0.s8 %v1969
        %v1971 = vlaneseq
        %v1972 = vshrl.u32 %v1971, 7
        %v1973 = vsub.s32 %v1970, %v1972
        %v1974 = vrot.slane %v1967, %v1973
        %v1975 = vcombine.low %v1879, %v1886
        %v1977 = vunpack.c.l.s4 1983009808
        %v1978 = vunpack.c.0.s8 %v1977
        %v1979 = vlaneseq
        %v1980 = vshrl.u32 %v1979, 7
        %v1981 = vsub.s32 %v1978, %v1980
        %v1982 = vrot.slane %v1975, %v1981
        %v1983 = vcombine.low %v1889, %v1890
        %v1985 = vunpack.c.l.s4 1983009808
        %v1986 = vunpack.c.0.s8 %v1985
        %v1987 = vlaneseq
        %v1988 = vshrl.u32 %v1987, 7
        %v1989 = vsub.s32 %v1986, %v1988
        %v1990 = vrot.slane %v1983, %v1989
        %v1991 = vcombine.low %v1966, %v1974
        %v1992 = vcombine.high %v1966, %v1974
        %v1994 = vunpack.c.l.s4 1934713408
        %v1995 = vunpack.c.0.s8 %v1994
        %v1996 = vlaneseq
        %v1997 = vshrl.u32 %v1996, 7
        %v1998 = vsub.s32 %v1995, %v1997
        %v1999 = vrot.slane %v1991, %v1998
        %v2001 = vunpack.c.l.s4 1934713408
        %v2002 = vunpack.c.0.s8 %v2001
        %v2003 = vlaneseq
        %v2004 = vshrl.u32 %v2003, 7
        %v2005 = vsub.s32 %v2002, %v2004
        %v2006 = vrot.slane %v1992, %v2005
        %v2007 = vcombine.low %v1982, %v1990
        %v2008 = vcombine.high %v1982, %v1990
        %v2010 = vunpack.c.l.s4 1934713408
        %v2011 = vunpack.c.0.s8 %v2010
        %v2012 = vlaneseq
        %v2013 = vshrl.u32 %v2012, 7
        %v2014 = vsub.s32 %v2011, %v2013
        %v2015 = vrot.slane %v2007, %v2014
        %v2017 = vunpack.c.l.s4 1934713408
        %v2018 = vunpack.c.0.s8 %v2017
        %v2019 = vlaneseq
        %v2020 = vshrl.u32 %v2019, 7
        %v2021 = vsub.s32 %v2018, %v2020
        %v2022 = vrot.slane %v2008, %v2021
        %v2023 = vcombine.low %v1999, %v2015
        %v2024 = vcombine.high %v1999, %v2015
        %v2025 = vcombine.low %v2006, %v2022
        %v2026 = vcombine.high %v2006, %v2022
        %vm2027 = vcmask 261120
        %v2029 = vsel %vm2027, %v1371, 0
        %v2032 = vsel %vm2027, %v1439, 0
        %v2035 = vsel %vm2027, %v1663, 0
        %v2038 = vsel %vm2027, %v1731, 0
        %2040 = vmatprep.subr.mxu0 0.0
        %2041 = vmatpush1.xpose.msra.mxu0 0.0
        %2042 = vmatprep.subr.mxu0 0.0
        %2043 = vmatpush1.xpose.msra.mxu0 0.0
        %2044 = vmatprep.subr.mxu0 0.0
        %2045 = vmatpush1.xpose.msra.mxu0 0.0
        %2046 = vmatprep.subr.mxu0 0.0
        %2047 = vmatpush1.xpose.msra.mxu0 0.0
        %2048 = vmatprep.subr.mxu0 0.0
        %2049 = vmatpush1.xpose.msra.mxu0 0.0
        %2050 = vmatprep.subr.mxu0 0.0
        %2051 = vmatpush1.xpose.msra.mxu0 0.0
        %2052 = vmatprep.subr.mxu0 0.0
        %2053 = vmatpush1.xpose.msra.mxu0 0.0
        %2054 = vmatprep.subr.mxu0 0.0
        %2055 = vmatpush1.xpose.msra.mxu0 0.0
        %2056 = vmatprep.subr.mxu0 0.0
        %2057 = vmatpush1.xpose.msra.mxu0 0.0
        %2058 = vmatprep.subr.mxu0 0.0
        %2059 = vmatpush1.xpose.msra.mxu0 0.0
        %2060 = vmatprep.subr.mxu0 0.0
        %2061 = vmatpush1.xpose.msra.mxu0 0.0
        %2062 = vmatprep.subr.mxu0 0.0
        %2063 = vmatpush1.xpose.msra.mxu0 0.0
        %2064 = vmatprep.subr.mxu0 0.0
        %2065 = vmatpush1.xpose.msra.mxu0 0.0
        %2066 = vmatprep.subr.mxu0 0.0
        %2067 = vmatpush1.xpose.msra.mxu0 0.0
        %2068 = vmatprep.subr.mxu0 0.0
        %2069 = vmatpush1.xpose.msra.mxu0 %v2038
        %2070 = vmatprep.subr.mxu0 0.0
        %2071 = vmatpush1.xpose.msra.mxu0 %v2035
        %2072 = vmatprep.subr.mxu0 0.0
        %2073 = vmatpush2.xpose.msra.mxu0 0.0
        %2074 = vmatprep.subr.mxu0 0.0
        %2075 = vmatpush2.xpose.msra.mxu0 0.0
        %2076 = vmatprep.subr.mxu0 0.0
        %2077 = vmatpush2.xpose.msra.mxu0 0.0
        %2078 = vmatprep.subr.mxu0 0.0
        %2079 = vmatpush2.xpose.msra.mxu0 0.0
        %2080 = vmatprep.subr.mxu0 0.0
        %2081 = vmatpush2.xpose.msra.mxu0 0.0
        %2082 = vmatprep.subr.mxu0 0.0
        %2083 = vmatpush2.xpose.msra.mxu0 0.0
        %2084 = vmatprep.subr.mxu0 0.0
        %2085 = vmatpush2.xpose.msra.mxu0 0.0
        %2086 = vmatprep.subr.mxu0 0.0
        %2087 = vmatpush2.xpose.msra.mxu0 0.0
        %2088 = vmatprep.subr.mxu0 0.0
        %2089 = vmatpush2.xpose.msra.mxu0 0.0
        %2090 = vmatprep.subr.mxu0 0.0
        %2091 = vmatpush2.xpose.msra.mxu0 0.0
        %2092 = vmatprep.subr.mxu0 0.0
        %2093 = vmatpush2.xpose.msra.mxu0 0.0
        %2094 = vmatprep.subr.mxu0 0.0
        %2095 = vmatpush2.xpose.msra.mxu0 0.0
        %2096 = vmatprep.subr.mxu0 0.0
        %2097 = vmatpush2.xpose.msra.mxu0 0.0
        %2098 = vmatprep.subr.mxu0 0.0
        %2099 = vmatpush2.xpose.msra.mxu0 0.0
        %2100 = vmatprep.subr.mxu0 0.0
        %2101 = vmatpush2.xpose.msra.mxu0 0.0
        %2102 = vmatprep.subr.mxu0 0.0
        %2103 = vmatpush2.xpose.msra.mxu0 0.0
        %2104 = vmatprep.mubr.f32.mxu0 0.0
        %2105 = vmatmul.mubr.f32.gmra.mxu0 %v2029
        %v2106 = vpop.f32.mrf.mxu0
        %v2107 = vadd.f32 0.0, %v2106
        %v2108 = vpop.f32.mrf.mxu0
        %2109 = vmatprep.mubr.f32.mxu0 0.0
        %2110 = vmatmul.mubr.f32.gmra.mxu0 %v2032
        %v2111 = vpop.f32.mrf.mxu0
        %v2112 = vadd.f32 0.0, %v2111
        %v2113 = vpop.f32.mrf.mxu0
        %2114 = vdwg.mxu0
        %v2116 = vsel %vm2027, %v1372, 0
        %v2119 = vsel %vm2027, %v1440, 0
        %v2122 = vsel %vm2027, %v1664, 0
        %v2125 = vsel %vm2027, %v1732, 0
        %2127 = vmatprep.subr.mxu0 0.0
        %2128 = vmatpush1.xpose.msra.mxu0 0.0
        %2129 = vmatprep.subr.mxu0 0.0
        %2130 = vmatpush1.xpose.msra.mxu0 0.0
        %2131 = vmatprep.subr.mxu0 0.0
        %2132 = vmatpush1.xpose.msra.mxu0 0.0
        %2133 = vmatprep.subr.mxu0 0.0
        %2134 = vmatpush1.xpose.msra.mxu0 0.0
        %2135 = vmatprep.subr.mxu0 0.0
        %2136 = vmatpush1.xpose.msra.mxu0 0.0
        %2137 = vmatprep.subr.mxu0 0.0
        %2138 = vmatpush1.xpose.msra.mxu0 0.0
        %2139 = vmatprep.subr.mxu0 0.0
        %2140 = vmatpush1.xpose.msra.mxu0 0.0
        %2141 = vmatprep.subr.mxu0 0.0
        %2142 = vmatpush1.xpose.msra.mxu0 0.0
        %2143 = vmatprep.subr.mxu0 0.0
        %2144 = vmatpush1.xpose.msra.mxu0 0.0
        %2145 = vmatprep.subr.mxu0 0.0
        %2146 = vmatpush1.xpose.msra.mxu0 0.0
        %2147 = vmatprep.subr.mxu0 0.0
        %2148 = vmatpush1.xpose.msra.mxu0 0.0
        %2149 = vmatprep.subr.mxu0 0.0
        %2150 = vmatpush1.xpose.msra.mxu0 0.0
        %2151 = vmatprep.subr.mxu0 0.0
        %2152 = vmatpush1.xpose.msra.mxu0 0.0
        %2153 = vmatprep.subr.mxu0 0.0
        %2154 = vmatpush1.xpose.msra.mxu0 0.0
        %2155 = vmatprep.subr.mxu0 0.0
        %2156 = vmatpush1.xpose.msra.mxu0 %v2125
        %2157 = vmatprep.subr.mxu0 0.0
        %2158 = vmatpush1.xpose.msra.mxu0 %v2122
        %2159 = vmatprep.subr.mxu0 0.0
        %2160 = vmatpush2.xpose.msra.mxu0 0.0
        %2161 = vmatprep.subr.mxu0 0.0
        %2162 = vmatpush2.xpose.msra.mxu0 0.0
        %2163 = vmatprep.subr.mxu0 0.0
        %2164 = vmatpush2.xpose.msra.mxu0 0.0
        %2165 = vmatprep.subr.mxu0 0.0
        %2166 = vmatpush2.xpose.msra.mxu0 0.0
        %2167 = vmatprep.subr.mxu0 0.0
        %2168 = vmatpush2.xpose.msra.mxu0 0.0
        %2169 = vmatprep.subr.mxu0 0.0
        %2170 = vmatpush2.xpose.msra.mxu0 0.0
        %2171 = vmatprep.subr.mxu0 0.0
        %2172 = vmatpush2.xpose.msra.mxu0 0.0
        %2173 = vmatprep.subr.mxu0 0.0
        %2174 = vmatpush2.xpose.msra.mxu0 0.0
        %2175 = vmatprep.subr.mxu0 0.0
        %2176 = vmatpush2.xpose.msra.mxu0 0.0
        %2177 = vmatprep.subr.mxu0 0.0
        %2178 = vmatpush2.xpose.msra.mxu0 0.0
        %2179 = vmatprep.subr.mxu0 0.0
        %2180 = vmatpush2.xpose.msra.mxu0 0.0
        %2181 = vmatprep.subr.mxu0 0.0
        %2182 = vmatpush2.xpose.msra.mxu0 0.0
        %2183 = vmatprep.subr.mxu0 0.0
        %2184 = vmatpush2.xpose.msra.mxu0 0.0
        %2185 = vmatprep.subr.mxu0 0.0
        %2186 = vmatpush2.xpose.msra.mxu0 0.0
        %2187 = vmatprep.subr.mxu0 0.0
        %2188 = vmatpush2.xpose.msra.mxu0 0.0
        %2189 = vmatprep.subr.mxu0 0.0
        %2190 = vmatpush2.xpose.msra.mxu0 0.0
        %2191 = vmatprep.mubr.f32.mxu0 0.0
        %2192 = vmatmul.mubr.f32.gmra.mxu0 %v2116
        %v2193 = vpop.f32.mrf.mxu0
        %v2194 = vadd.f32 0.0, %v2193
        %v2195 = vpop.f32.mrf.mxu0
        %2196 = vmatprep.mubr.f32.mxu0 0.0
        %2197 = vmatmul.mubr.f32.gmra.mxu0 %v2119
        %v2198 = vpop.f32.mrf.mxu0
        %v2199 = vadd.f32 0.0, %v2198
        %v2200 = vpop.f32.mrf.mxu0
        %2201 = vdwg.mxu0
        %v2203 = vsel %vm2027, %v1373, 0
        %v2206 = vsel %vm2027, %v1441, 0
        %v2209 = vsel %vm2027, %v1665, 0
        %v2212 = vsel %vm2027, %v1733, 0
        %2214 = vmatprep.subr.mxu0 0.0
        %2215 = vmatpush1.xpose.msra.mxu0 0.0
        %2216 = vmatprep.subr.mxu0 0.0
        %2217 = vmatpush1.xpose.msra.mxu0 0.0
        %2218 = vmatprep.subr.mxu0 0.0
        %2219 = vmatpush1.xpose.msra.mxu0 0.0
        %2220 = vmatprep.subr.mxu0 0.0
        %2221 = vmatpush1.xpose.msra.mxu0 0.0
        %2222 = vmatprep.subr.mxu0 0.0
        %2223 = vmatpush1.xpose.msra.mxu0 0.0
        %2224 = vmatprep.subr.mxu0 0.0
        %2225 = vmatpush1.xpose.msra.mxu0 0.0
        %2226 = vmatprep.subr.mxu0 0.0
        %2227 = vmatpush1.xpose.msra.mxu0 0.0
        %2228 = vmatprep.subr.mxu0 0.0
        %2229 = vmatpush1.xpose.msra.mxu0 0.0
        %2230 = vmatprep.subr.mxu0 0.0
        %2231 = vmatpush1.xpose.msra.mxu0 0.0
        %2232 = vmatprep.subr.mxu0 0.0
        %2233 = vmatpush1.xpose.msra.mxu0 0.0
        %2234 = vmatprep.subr.mxu0 0.0
        %2235 = vmatpush1.xpose.msra.mxu0 0.0
        %2236 = vmatprep.subr.mxu0 0.0
        %2237 = vmatpush1.xpose.msra.mxu0 0.0
        %2238 = vmatprep.subr.mxu0 0.0
        %2239 = vmatpush1.xpose.msra.mxu0 0.0
        %2240 = vmatprep.subr.mxu0 0.0
        %2241 = vmatpush1.xpose.msra.mxu0 0.0
        %2242 = vmatprep.subr.mxu0 0.0
        %2243 = vmatpush1.xpose.msra.mxu0 %v2212
        %2244 = vmatprep.subr.mxu0 0.0
        %2245 = vmatpush1.xpose.msra.mxu0 %v2209
        %2246 = vmatprep.subr.mxu0 0.0
        %2247 = vmatpush2.xpose.msra.mxu0 0.0
        %2248 = vmatprep.subr.mxu0 0.0
        %2249 = vmatpush2.xpose.msra.mxu0 0.0
        %2250 = vmatprep.subr.mxu0 0.0
        %2251 = vmatpush2.xpose.msra.mxu0 0.0
        %2252 = vmatprep.subr.mxu0 0.0
        %2253 = vmatpush2.xpose.msra.mxu0 0.0
        %2254 = vmatprep.subr.mxu0 0.0
        %2255 = vmatpush2.xpose.msra.mxu0 0.0
        %2256 = vmatprep.subr.mxu0 0.0
        %2257 = vmatpush2.xpose.msra.mxu0 0.0
        %2258 = vmatprep.subr.mxu0 0.0
        %2259 = vmatpush2.xpose.msra.mxu0 0.0
        %2260 = vmatprep.subr.mxu0 0.0
        %2261 = vmatpush2.xpose.msra.mxu0 0.0
        %2262 = vmatprep.subr.mxu0 0.0
        %2263 = vmatpush2.xpose.msra.mxu0 0.0
        %2264 = vmatprep.subr.mxu0 0.0
        %2265 = vmatpush2.xpose.msra.mxu0 0.0
        %2266 = vmatprep.subr.mxu0 0.0
        %2267 = vmatpush2.xpose.msra.mxu0 0.0
        %2268 = vmatprep.subr.mxu0 0.0
        %2269 = vmatpush2.xpose.msra.mxu0 0.0
        %2270 = vmatprep.subr.mxu0 0.0
        %2271 = vmatpush2.xpose.msra.mxu0 0.0
        %2272 = vmatprep.subr.mxu0 0.0
        %2273 = vmatpush2.xpose.msra.mxu0 0.0
        %2274 = vmatprep.subr.mxu0 0.0
        %2275 = vmatpush2.xpose.msra.mxu0 0.0
        %2276 = vmatprep.subr.mxu0 0.0
        %2277 = vmatpush2.xpose.msra.mxu0 0.0
        %2278 = vmatprep.mubr.f32.mxu0 0.0
        %2279 = vmatmul.mubr.f32.gmra.mxu0 %v2203
        %v2280 = vpop.f32.mrf.mxu0
        %v2281 = vadd.f32 0.0, %v2280
        %v2282 = vpop.f32.mrf.mxu0
        %2283 = vmatprep.mubr.f32.mxu0 0.0
        %2284 = vmatmul.mubr.f32.gmra.mxu0 %v2206
        %v2285 = vpop.f32.mrf.mxu0
        %v2286 = vadd.f32 0.0, %v2285
        %v2287 = vpop.f32.mrf.mxu0
        %2288 = vdwg.mxu0
        %v2290 = vsel %vm2027, %v1374, 0
        %v2293 = vsel %vm2027, %v1442, 0
        %v2296 = vsel %vm2027, %v1666, 0
        %v2299 = vsel %vm2027, %v1734, 0
        %2301 = vmatprep.subr.mxu0 0.0
        %2302 = vmatpush1.xpose.msra.mxu0 0.0
        %2303 = vmatprep.subr.mxu0 0.0
        %2304 = vmatpush1.xpose.msra.mxu0 0.0
        %2305 = vmatprep.subr.mxu0 0.0
        %2306 = vmatpush1.xpose.msra.mxu0 0.0
        %2307 = vmatprep.subr.mxu0 0.0
        %2308 = vmatpush1.xpose.msra.mxu0 0.0
        %2309 = vmatprep.subr.mxu0 0.0
        %2310 = vmatpush1.xpose.msra.mxu0 0.0
        %2311 = vmatprep.subr.mxu0 0.0
        %2312 = vmatpush1.xpose.msra.mxu0 0.0
        %2313 = vmatprep.subr.mxu0 0.0
        %2314 = vmatpush1.xpose.msra.mxu0 0.0
        %2315 = vmatprep.subr.mxu0 0.0
        %2316 = vmatpush1.xpose.msra.mxu0 0.0
        %2317 = vmatprep.subr.mxu0 0.0
        %2318 = vmatpush1.xpose.msra.mxu0 0.0
        %2319 = vmatprep.subr.mxu0 0.0
        %2320 = vmatpush1.xpose.msra.mxu0 0.0
        %2321 = vmatprep.subr.mxu0 0.0
        %2322 = vmatpush1.xpose.msra.mxu0 0.0
        %2323 = vmatprep.subr.mxu0 0.0
        %2324 = vmatpush1.xpose.msra.mxu0 0.0
        %2325 = vmatprep.subr.mxu0 0.0
        %2326 = vmatpush1.xpose.msra.mxu0 0.0
        %2327 = vmatprep.subr.mxu0 0.0
        %2328 = vmatpush1.xpose.msra.mxu0 0.0
        %2329 = vmatprep.subr.mxu0 0.0
        %2330 = vmatpush1.xpose.msra.mxu0 %v2299
        %2331 = vmatprep.subr.mxu0 0.0
        %2332 = vmatpush1.xpose.msra.mxu0 %v2296
        %2333 = vmatprep.subr.mxu0 0.0
        %2334 = vmatpush2.xpose.msra.mxu0 0.0
        %2335 = vmatprep.subr.mxu0 0.0
        %2336 = vmatpush2.xpose.msra.mxu0 0.0
        %2337 = vmatprep.subr.mxu0 0.0
        %2338 = vmatpush2.xpose.msra.mxu0 0.0
        %2339 = vmatprep.subr.mxu0 0.0
        %2340 = vmatpush2.xpose.msra.mxu0 0.0
        %2341 = vmatprep.subr.mxu0 0.0
        %2342 = vmatpush2.xpose.msra.mxu0 0.0
        %2343 = vmatprep.subr.mxu0 0.0
        %2344 = vmatpush2.xpose.msra.mxu0 0.0
        %2345 = vmatprep.subr.mxu0 0.0
        %2346 = vmatpush2.xpose.msra.mxu0 0.0
        %2347 = vmatprep.subr.mxu0 0.0
        %2348 = vmatpush2.xpose.msra.mxu0 0.0
        %2349 = vmatprep.subr.mxu0 0.0
        %2350 = vmatpush2.xpose.msra.mxu0 0.0
        %2351 = vmatprep.subr.mxu0 0.0
        %2352 = vmatpush2.xpose.msra.mxu0 0.0
        %2353 = vmatprep.subr.mxu0 0.0
        %2354 = vmatpush2.xpose.msra.mxu0 0.0
        %2355 = vmatprep.subr.mxu0 0.0
        %2356 = vmatpush2.xpose.msra.mxu0 0.0
        %2357 = vmatprep.subr.mxu0 0.0
        %2358 = vmatpush2.xpose.msra.mxu0 0.0
        %2359 = vmatprep.subr.mxu0 0.0
        %2360 = vmatpush2.xpose.msra.mxu0 0.0
        %2361 = vmatprep.subr.mxu0 0.0
        %2362 = vmatpush2.xpose.msra.mxu0 0.0
        %2363 = vmatprep.subr.mxu0 0.0
        %2364 = vmatpush2.xpose.msra.mxu0 0.0
        %2365 = vmatprep.mubr.f32.mxu0 0.0
        %2366 = vmatmul.mubr.f32.gmra.mxu0 %v2290
        %v2367 = vpop.f32.mrf.mxu0
        %v2368 = vadd.f32 0.0, %v2367
        %v2369 = vpop.f32.mrf.mxu0
        %2370 = vmatprep.mubr.f32.mxu0 0.0
        %2371 = vmatmul.mubr.f32.gmra.mxu0 %v2293
        %v2372 = vpop.f32.mrf.mxu0
        %v2373 = vadd.f32 0.0, %v2372
        %v2374 = vpop.f32.mrf.mxu0
        %2375 = vdwg.mxu0
        %vm2376 = vcmask 130048
        %v2377 = vsel %vm2376, %v2107, -inf
        %2378 = vmax.xlane.f32.xlu0 %v2377
        %v2379 = vpop.xlane.xlu0 %2378
        %v2380 = vsel %vm2376, %v2112, -inf
        %2381 = vmax.xlane.f32.xlu0 %v2380
        %v2382 = vpop.xlane.xlu0 %2381
        %v2383 = vsel %vm2376, %v2194, -inf
        %2384 = vmax.xlane.f32.xlu0 %v2383
        %v2385 = vpop.xlane.xlu0 %2384
        %v2386 = vsel %vm2376, %v2199, -inf
        %2387 = vmax.xlane.f32.xlu0 %v2386
        %v2388 = vpop.xlane.xlu0 %2387
        %v2389 = vsel %vm2376, %v2281, -inf
        %2390 = vmax.xlane.f32.xlu0 %v2389
        %v2391 = vpop.xlane.xlu0 %2390
        %v2392 = vsel %vm2376, %v2286, -inf
        %2393 = vmax.xlane.f32.xlu0 %v2392
        %v2394 = vpop.xlane.xlu0 %2393
        %v2395 = vsel %vm2376, %v2368, -inf
        %2396 = vmax.xlane.f32.xlu0 %v2395
        %v2397 = vpop.xlane.xlu0 %2396
        %v2398 = vsel %vm2376, %v2373, -inf
        %2399 = vmax.xlane.f32.xlu0 %v2398
        %v2400 = vpop.xlane.xlu0 %2399
        %v2401 = vsub.f32 %v2107, %v2379
        %v2402 = vsub.f32 %v2112, %v2382
        %v2403 = vsub.f32 %v2194, %v2385
        %v2404 = vsub.f32 %v2199, %v2388
        %v2405 = vsub.f32 %v2281, %v2391
        %v2406 = vsub.f32 %v2286, %v2394
        %v2407 = vsub.f32 %v2368, %v2397
        %v2408 = vsub.f32 %v2373, %v2400
        %v2409 = vmul.f32 %v2401, 1.442695
        %v2410 = vpow.pop %v2409
        %v2411 = vmul.f32 %v2402, 1.442695
        %v2412 = vpow.pop %v2411
        %v2413 = vmul.f32 %v2403, 1.442695
        %v2414 = vpow.pop %v2413
        %v2415 = vmul.f32 %v2404, 1.442695
        %v2416 = vpow.pop %v2415
        %v2417 = vmul.f32 %v2405, 1.442695
        %v2418 = vpow.pop %v2417
        %v2419 = vmul.f32 %v2406, 1.442695
        %v2420 = vpow.pop %v2419
        %v2421 = vmul.f32 %v2407, 1.442695
        %v2422 = vpow.pop %v2421
        %v2423 = vmul.f32 %v2408, 1.442695
        %v2424 = vpow.pop %v2423
        %v2425 = vsel %vm2376, %v2410, 0.0
        %2426 = vadd.xlane.f32.xlu0 %v2425
        %v2427 = vpop.xlane.xlu0 %2426
        %v2428 = vsel %vm2376, %v2412, 0.0
        %2429 = vadd.xlane.f32.xlu0 %v2428
        %v2430 = vpop.xlane.xlu0 %2429
        %v2431 = vsel %vm2376, %v2414, 0.0
        %2432 = vadd.xlane.f32.xlu0 %v2431
        %v2433 = vpop.xlane.xlu0 %2432
        %v2434 = vsel %vm2376, %v2416, 0.0
        %2435 = vadd.xlane.f32.xlu0 %v2434
        %v2436 = vpop.xlane.xlu0 %2435
        %v2437 = vsel %vm2376, %v2418, 0.0
        %2438 = vadd.xlane.f32.xlu0 %v2437
        %v2439 = vpop.xlane.xlu0 %2438
        %v2440 = vsel %vm2376, %v2420, 0.0
        %2441 = vadd.xlane.f32.xlu0 %v2440
        %v2442 = vpop.xlane.xlu0 %2441
        %v2443 = vsel %vm2376, %v2422, 0.0
        %2444 = vadd.xlane.f32.xlu0 %v2443
        %v2445 = vpop.xlane.xlu0 %2444
        %v2446 = vsel %vm2376, %v2424, 0.0
        %2447 = vadd.xlane.f32.xlu0 %v2446
        %v2448 = vpop.xlane.xlu0 %2447
        %v2449 = vrcp.pop %v2427
        %v2450 = vmul.f32 %v2410, %v2449
        %v2451 = vrcp.pop %v2430
        %v2452 = vmul.f32 %v2412, %v2451
        %v2453 = vrcp.pop %v2433
        %v2454 = vmul.f32 %v2414, %v2453
        %v2455 = vrcp.pop %v2436
        %v2456 = vmul.f32 %v2416, %v2455
        %v2457 = vrcp.pop %v2439
        %v2458 = vmul.f32 %v2418, %v2457
        %v2459 = vrcp.pop %v2442
        %v2460 = vmul.f32 %v2420, %v2459
        %v2461 = vrcp.pop %v2445
        %v2462 = vmul.f32 %v2422, %v2461
        %v2463 = vrcp.pop %v2448
        %v2464 = vmul.f32 %v2424, %v2463
        %v2465 = vsel %vm2376, %v2450, 0.0
        %v2466 = vsel %vm2376, %v2454, 0.0
        %v2467 = vadd.f32 %v2465, %v2466
        %v2468 = vsel %vm2376, %v2458, 0.0
        %v2469 = vadd.f32 %v2467, %v2468
        %v2470 = vsel %vm2376, %v2462, 0.0
        %v2471 = vadd.f32 %v2469, %v2470
        %v2472 = vsel %vm2376, %v2452, 0.0
        %v2473 = vsel %vm2376, %v2456, 0.0
        %v2474 = vadd.f32 %v2472, %v2473
        %v2475 = vsel %vm2376, %v2460, 0.0
        %v2476 = vadd.f32 %v2474, %v2475
        %v2477 = vsel %vm2376, %v2464, 0.0
        %v2478 = vadd.f32 %v2476, %v2477
        %v2479 = vrcp.pop 4.0
        %v2480 = vmul.f32 %v2471, %v2479
        %v2481 = vmul.f32 %v2478, %v2479
        %2482 = vst.msk [vmem:[%s846] sm:$0xff] %vm2376, %v2480
        %2483 = vst.msk [vmem:[%s846 + $0x8] sm:$0xff] %vm2376, %v2481
        %v2485 = vsel %vm2376, %v2450, 0
        %v2488 = vsel %vm2376, %v2452, 0
        %2490 = vmatprep.subr.mxu0 0.0
        %2491 = vmatpush1.msra.mxu0 0.0
        %2492 = vmatprep.subr.mxu0 0.0
        %2493 = vmatpush1.msra.mxu0 0.0
        %2494 = vmatprep.subr.mxu0 0.0
        %2495 = vmatpush1.msra.mxu0 0.0
        %2496 = vmatprep.subr.mxu0 0.0
        %2497 = vmatpush1.msra.mxu0 0.0
        %2498 = vmatprep.subr.mxu0 0.0
        %2499 = vmatpush1.msra.mxu0 0.0
        %2500 = vmatprep.subr.mxu0 0.0
        %2501 = vmatpush1.msra.mxu0 0.0
        %2502 = vmatprep.subr.mxu0 0.0
        %2503 = vmatpush1.msra.mxu0 0.0
        %2504 = vmatprep.subr.mxu0 0.0
        %2505 = vmatpush1.msra.mxu0 0.0
        %2506 = vmatprep.subr.mxu0 0.0
        %2507 = vmatpush1.msra.mxu0 0.0
        %2508 = vmatprep.subr.mxu0 0.0
        %2509 = vmatpush1.msra.mxu0 0.0
        %2510 = vmatprep.subr.mxu0 0.0
        %2511 = vmatpush1.msra.mxu0 0.0
        %2512 = vmatprep.subr.mxu0 0.0
        %2513 = vmatpush1.msra.mxu0 0.0
        %2514 = vmatprep.subr.mxu0 0.0
        %2515 = vmatpush1.msra.mxu0 0.0
        %2516 = vmatprep.subr.mxu0 0.0
        %2517 = vmatpush1.msra.mxu0 0.0
        %2518 = vmatprep.subr.mxu0 0.0
        %2519 = vmatpush1.msra.mxu0 %v2023
        %2520 = vmatprep.subr.mxu0 0.0
        %2521 = vmatpush1.msra.mxu0 %v1955
        %2522 = vmatprep.subr.mxu0 0.0
        %2523 = vmatpush2.msra.mxu0 0.0
        %2524 = vmatprep.subr.mxu0 0.0
        %2525 = vmatpush2.msra.mxu0 0.0
        %2526 = vmatprep.subr.mxu0 0.0
        %2527 = vmatpush2.msra.mxu0 0.0
        %2528 = vmatprep.subr.mxu0 0.0
        %2529 = vmatpush2.msra.mxu0 0.0
        %2530 = vmatprep.subr.mxu0 0.0
        %2531 = vmatpush2.msra.mxu0 0.0
        %2532 = vmatprep.subr.mxu0 0.0
        %2533 = vmatpush2.msra.mxu0 0.0
        %2534 = vmatprep.subr.mxu0 0.0
        %2535 = vmatpush2.msra.mxu0 0.0
        %2536 = vmatprep.subr.mxu0 0.0
        %2537 = vmatpush2.msra.mxu0 0.0
        %2538 = vmatprep.subr.mxu0 0.0
        %2539 = vmatpush2.msra.mxu0 0.0
        %2540 = vmatprep.subr.mxu0 0.0
        %2541 = vmatpush2.msra.mxu0 0.0
        %2542 = vmatprep.subr.mxu0 0.0
        %2543 = vmatpush2.msra.mxu0 0.0
        %2544 = vmatprep.subr.mxu0 0.0
        %2545 = vmatpush2.msra.mxu0 0.0
        %2546 = vmatprep.subr.mxu0 0.0
        %2547 = vmatpush2.msra.mxu0 0.0
        %2548 = vmatprep.subr.mxu0 0.0
        %2549 = vmatpush2.msra.mxu0 0.0
        %2550 = vmatprep.subr.mxu0 0.0
        %2551 = vmatpush2.msra.mxu0 0.0
        %2552 = vmatprep.subr.mxu0 0.0
        %2553 = vmatpush2.msra.mxu0 0.0
        %2554 = vmatprep.mubr.f32.mxu0 0.0
        %2555 = vmatmul.mubr.f32.gmra.mxu0 %v2485
        %v2556 = vpop.f32.mrf.mxu0
        %v2557 = vadd.f32 0.0, %v2556
        %v2558 = vpop.f32.mrf.mxu0
        %2559 = vmatprep.mubr.f32.mxu0 0.0
        %2560 = vmatmul.mubr.f32.gmra.mxu0 %v2488
        %v2561 = vpop.f32.mrf.mxu0
        %v2562 = vadd.f32 0.0, %v2561
        %v2563 = vpop.f32.mrf.mxu0
        %2564 = vdwg.mxu0
        %v2566 = vsel %vm2376, %v2454, 0
        %v2569 = vsel %vm2376, %v2456, 0
        %2571 = vmatprep.subr.mxu0 0.0
        %2572 = vmatpush1.msra.mxu0 0.0
        %2573 = vmatprep.subr.mxu0 0.0
        %2574 = vmatpush1.msra.mxu0 0.0
        %2575 = vmatprep.subr.mxu0 0.0
        %2576 = vmatpush1.msra.mxu0 0.0
        %2577 = vmatprep.subr.mxu0 0.0
        %2578 = vmatpush1.msra.mxu0 0.0
        %2579 = vmatprep.subr.mxu0 0.0
        %2580 = vmatpush1.msra.mxu0 0.0
        %2581 = vmatprep.subr.mxu0 0.0
        %2582 = vmatpush1.msra.mxu0 0.0
        %2583 = vmatprep.subr.mxu0 0.0
        %2584 = vmatpush1.msra.mxu0 0.0
        %2585 = vmatprep.subr.mxu0 0.0
        %2586 = vmatpush1.msra.mxu0 0.0
        %2587 = vmatprep.subr.mxu0 0.0
        %2588 = vmatpush1.msra.mxu0 0.0
        %2589 = vmatprep.subr.mxu0 0.0
        %2590 = vmatpush1.msra.mxu0 0.0
        %2591 = vmatprep.subr.mxu0 0.0
        %2592 = vmatpush1.msra.mxu0 0.0
        %2593 = vmatprep.subr.mxu0 0.0
        %2594 = vmatpush1.msra.mxu0 0.0
        %2595 = vmatprep.subr.mxu0 0.0
        %2596 = vmatpush1.msra.mxu0 0.0
        %2597 = vmatprep.subr.mxu0 0.0
        %2598 = vmatpush1.msra.mxu0 0.0
        %2599 = vmatprep.subr.mxu0 0.0
        %2600 = vmatpush1.msra.mxu0 %v2024
        %2601 = vmatprep.subr.mxu0 0.0
        %2602 = vmatpush1.msra.mxu0 %v1956
        %2603 = vmatprep.subr.mxu0 0.0
        %2604 = vmatpush2.msra.mxu0 0.0
        %2605 = vmatprep.subr.mxu0 0.0
        %2606 = vmatpush2.msra.mxu0 0.0
        %2607 = vmatprep.subr.mxu0 0.0
        %2608 = vmatpush2.msra.mxu0 0.0
        %2609 = vmatprep.subr.mxu0 0.0
        %2610 = vmatpush2.msra.mxu0 0.0
        %2611 = vmatprep.subr.mxu0 0.0
        %2612 = vmatpush2.msra.mxu0 0.0
        %2613 = vmatprep.subr.mxu0 0.0
        %2614 = vmatpush2.msra.mxu0 0.0
        %2615 = vmatprep.subr.mxu0 0.0
        %2616 = vmatpush2.msra.mxu0 0.0
        %2617 = vmatprep.subr.mxu0 0.0
        %2618 = vmatpush2.msra.mxu0 0.0
        %2619 = vmatprep.subr.mxu0 0.0
        %2620 = vmatpush2.msra.mxu0 0.0
        %2621 = vmatprep.subr.mxu0 0.0
        %2622 = vmatpush2.msra.mxu0 0.0
        %2623 = vmatprep.subr.mxu0 0.0
        %2624 = vmatpush2.msra.mxu0 0.0
        %2625 = vmatprep.subr.mxu0 0.0
        %2626 = vmatpush2.msra.mxu0 0.0
        %2627 = vmatprep.subr.mxu0 0.0
        %2628 = vmatpush2.msra.mxu0 0.0
        %2629 = vmatprep.subr.mxu0 0.0
        %2630 = vmatpush2.msra.mxu0 0.0
        %2631 = vmatprep.subr.mxu0 0.0
        %2632 = vmatpush2.msra.mxu0 0.0
        %2633 = vmatprep.subr.mxu0 0.0
        %2634 = vmatpush2.msra.mxu0 0.0
        %2635 = vmatprep.mubr.f32.mxu0 0.0
        %2636 = vmatmul.mubr.f32.gmra.mxu0 %v2566
        %v2637 = vpop.f32.mrf.mxu0
        %v2638 = vadd.f32 0.0, %v2637
        %v2639 = vpop.f32.mrf.mxu0
        %2640 = vmatprep.mubr.f32.mxu0 0.0
        %2641 = vmatmul.mubr.f32.gmra.mxu0 %v2569
        %v2642 = vpop.f32.mrf.mxu0
        %v2643 = vadd.f32 0.0, %v2642
        %v2644 = vpop.f32.mrf.mxu0
        %2645 = vdwg.mxu0
        %v2647 = vsel %vm2376, %v2458, 0
        %v2650 = vsel %vm2376, %v2460, 0
        %2652 = vmatprep.subr.mxu0 0.0
        %2653 = vmatpush1.msra.mxu0 0.0
        %2654 = vmatprep.subr.mxu0 0.0
        %2655 = vmatpush1.msra.mxu0 0.0
        %2656 = vmatprep.subr.mxu0 0.0
        %2657 = vmatpush1.msra.mxu0 0.0
        %2658 = vmatprep.subr.mxu0 0.0
        %2659 = vmatpush1.msra.mxu0 0.0
        %2660 = vmatprep.subr.mxu0 0.0
        %2661 = vmatpush1.msra.mxu0 0.0
        %2662 = vmatprep.subr.mxu0 0.0
        %2663 = vmatpush1.msra.mxu0 0.0
        %2664 = vmatprep.subr.mxu0 0.0
        %2665 = vmatpush1.msra.mxu0 0.0
        %2666 = vmatprep.subr.mxu0 0.0
        %2667 = vmatpush1.msra.mxu0 0.0
        %2668 = vmatprep.subr.mxu0 0.0
        %2669 = vmatpush1.msra.mxu0 0.0
        %2670 = vmatprep.subr.mxu0 0.0
        %2671 = vmatpush1.msra.mxu0 0.0
        %2672 = vmatprep.subr.mxu0 0.0
        %2673 = vmatpush1.msra.mxu0 0.0
        %2674 = vmatprep.subr.mxu0 0.0
        %2675 = vmatpush1.msra.mxu0 0.0
        %2676 = vmatprep.subr.mxu0 0.0
        %2677 = vmatpush1.msra.mxu0 0.0
        %2678 = vmatprep.subr.mxu0 0.0
        %2679 = vmatpush1.msra.mxu0 0.0
        %2680 = vmatprep.subr.mxu0 0.0
        %2681 = vmatpush1.msra.mxu0 %v2025
        %2682 = vmatprep.subr.mxu0 0.0
        %2683 = vmatpush1.msra.mxu0 %v1957
        %2684 = vmatprep.subr.mxu0 0.0
        %2685 = vmatpush2.msra.mxu0 0.0
        %2686 = vmatprep.subr.mxu0 0.0
        %2687 = vmatpush2.msra.mxu0 0.0
        %2688 = vmatprep.subr.mxu0 0.0
        %2689 = vmatpush2.msra.mxu0 0.0
        %2690 = vmatprep.subr.mxu0 0.0
        %2691 = vmatpush2.msra.mxu0 0.0
        %2692 = vmatprep.subr.mxu0 0.0
        %2693 = vmatpush2.msra.mxu0 0.0
        %2694 = vmatprep.subr.mxu0 0.0
        %2695 = vmatpush2.msra.mxu0 0.0
        %2696 = vmatprep.subr.mxu0 0.0
        %2697 = vmatpush2.msra.mxu0 0.0
        %2698 = vmatprep.subr.mxu0 0.0
        %2699 = vmatpush2.msra.mxu0 0.0
        %2700 = vmatprep.subr.mxu0 0.0
        %2701 = vmatpush2.msra.mxu0 0.0
        %2702 = vmatprep.subr.mxu0 0.0
        %2703 = vmatpush2.msra.mxu0 0.0
        %2704 = vmatprep.subr.mxu0 0.0
        %2705 = vmatpush2.msra.mxu0 0.0
        %2706 = vmatprep.subr.mxu0 0.0
        %2707 = vmatpush2.msra.mxu0 0.0
        %2708 = vmatprep.subr.mxu0 0.0
        %2709 = vmatpush2.msra.mxu0 0.0
        %2710 = vmatprep.subr.mxu0 0.0
        %2711 = vmatpush2.msra.mxu0 0.0
        %2712 = vmatprep.subr.mxu0 0.0
        %2713 = vmatpush2.msra.mxu0 0.0
        %2714 = vmatprep.subr.mxu0 0.0
        %2715 = vmatpush2.msra.mxu0 0.0
        %2716 = vmatprep.mubr.f32.mxu0 0.0
        %2717 = vmatmul.mubr.f32.gmra.mxu0 %v2647
        %v2718 = vpop.f32.mrf.mxu0
        %v2719 = vadd.f32 0.0, %v2718
        %v2720 = vpop.f32.mrf.mxu0
        %2721 = vmatprep.mubr.f32.mxu0 0.0
        %2722 = vmatmul.mubr.f32.gmra.mxu0 %v2650
        %v2723 = vpop.f32.mrf.mxu0
        %v2724 = vadd.f32 0.0, %v2723
        %v2725 = vpop.f32.mrf.mxu0
        %2726 = vdwg.mxu0
        %v2728 = vsel %vm2376, %v2462, 0
        %v2731 = vsel %vm2376, %v2464, 0
        %2733 = vmatprep.subr.mxu0 0.0
        %2734 = vmatpush1.msra.mxu0 0.0
        %2735 = vmatprep.subr.mxu0 0.0
        %2736 = vmatpush1.msra.mxu0 0.0
        %2737 = vmatprep.subr.mxu0 0.0
        %2738 = vmatpush1.msra.mxu0 0.0
        %2739 = vmatprep.subr.mxu0 0.0
        %2740 = vmatpush1.msra.mxu0 0.0
        %2741 = vmatprep.subr.mxu0 0.0
        %2742 = vmatpush1.msra.mxu0 0.0
        %2743 = vmatprep.subr.mxu0 0.0
        %2744 = vmatpush1.msra.mxu0 0.0
        %2745 = vmatprep.subr.mxu0 0.0
        %2746 = vmatpush1.msra.mxu0 0.0
        %2747 = vmatprep.subr.mxu0 0.0
        %2748 = vmatpush1.msra.mxu0 0.0
        %2749 = vmatprep.subr.mxu0 0.0
        %2750 = vmatpush1.msra.mxu0 0.0
        %2751 = vmatprep.subr.mxu0 0.0
        %2752 = vmatpush1.msra.mxu0 0.0
        %2753 = vmatprep.subr.mxu0 0.0
        %2754 = vmatpush1.msra.mxu0 0.0
        %2755 = vmatprep.subr.mxu0 0.0
        %2756 = vmatpush1.msra.mxu0 0.0
        %2757 = vmatprep.subr.mxu0 0.0
        %2758 = vmatpush1.msra.mxu0 0.0
        %2759 = vmatprep.subr.mxu0 0.0
        %2760 = vmatpush1.msra.mxu0 0.0
        %2761 = vmatprep.subr.mxu0 0.0
        %2762 = vmatpush1.msra.mxu0 %v2026
        %2763 = vmatprep.subr.mxu0 0.0
        %2764 = vmatpush1.msra.mxu0 %v1958
        %2765 = vmatprep.subr.mxu0 0.0
        %2766 = vmatpush2.msra.mxu0 0.0
        %2767 = vmatprep.subr.mxu0 0.0
        %2768 = vmatpush2.msra.mxu0 0.0
        %2769 = vmatprep.subr.mxu0 0.0
        %2770 = vmatpush2.msra.mxu0 0.0
        %2771 = vmatprep.subr.mxu0 0.0
        %2772 = vmatpush2.msra.mxu0 0.0
        %2773 = vmatprep.subr.mxu0 0.0
        %2774 = vmatpush2.msra.mxu0 0.0
        %2775 = vmatprep.subr.mxu0 0.0
        %2776 = vmatpush2.msra.mxu0 0.0
        %2777 = vmatprep.subr.mxu0 0.0
        %2778 = vmatpush2.msra.mxu0 0.0
        %2779 = vmatprep.subr.mxu0 0.0
        %2780 = vmatpush2.msra.mxu0 0.0
        %2781 = vmatprep.subr.mxu0 0.0
        %2782 = vmatpush2.msra.mxu0 0.0
        %2783 = vmatprep.subr.mxu0 0.0
        %2784 = vmatpush2.msra.mxu0 0.0
        %2785 = vmatprep.subr.mxu0 0.0
        %2786 = vmatpush2.msra.mxu0 0.0
        %2787 = vmatprep.subr.mxu0 0.0
        %2788 = vmatpush2.msra.mxu0 0.0
        %2789 = vmatprep.subr.mxu0 0.0
        %2790 = vmatpush2.msra.mxu0 0.0
        %2791 = vmatprep.subr.mxu0 0.0
        %2792 = vmatpush2.msra.mxu0 0.0
        %2793 = vmatprep.subr.mxu0 0.0
        %2794 = vmatpush2.msra.mxu0 0.0
        %2795 = vmatprep.subr.mxu0 0.0
        %2796 = vmatpush2.msra.mxu0 0.0
        %2797 = vmatprep.mubr.f32.mxu0 0.0
        %2798 = vmatmul.mubr.f32.gmra.mxu0 %v2728
        %v2799 = vpop.f32.mrf.mxu0
        %v2800 = vadd.f32 0.0, %v2799
        %v2801 = vpop.f32.mrf.mxu0
        %2802 = vmatprep.mubr.f32.mxu0 0.0
        %2803 = vmatmul.mubr.f32.gmra.mxu0 %v2731
        %v2804 = vpop.f32.mrf.mxu0
        %v2805 = vadd.f32 0.0, %v2804
        %v2806 = vpop.f32.mrf.mxu0
        %2807 = vdwg.mxu0
        %v2808 = vcombine.low %v2557, %v2719
        %v2809 = vcombine.high %v2557, %v2719
        %v2811 = vunpack.c.l.s4 1983009808
        %v2812 = vunpack.c.0.s8 %v2811
        %v2813 = vlaneseq
        %v2814 = vshrl.u32 %v2813, 7
        %v2815 = vsub.s32 %v2812, %v2814
        %v2816 = vrot.slane %v2808, %v2815
        %v2818 = vunpack.c.l.s4 1983009808
        %v2819 = vunpack.c.0.s8 %v2818
        %v2820 = vlaneseq
        %v2821 = vshrl.u32 %v2820, 7
        %v2822 = vsub.s32 %v2819, %v2821
        %v2823 = vrot.slane %v2809, %v2822
        %v2824 = vcombine.low %v2638, %v2800
        %v2825 = vcombine.high %v2638, %v2800
        %v2827 = vunpack.c.l.s4 1983009808
        %v2828 = vunpack.c.0.s8 %v2827
        %v2829 = vlaneseq
        %v2830 = vshrl.u32 %v2829, 7
        %v2831 = vsub.s32 %v2828, %v2830
        %v2832 = vrot.slane %v2824, %v2831
        %v2834 = vunpack.c.l.s4 1983009808
        %v2835 = vunpack.c.0.s8 %v2834
        %v2836 = vlaneseq
        %v2837 = vshrl.u32 %v2836, 7
        %v2838 = vsub.s32 %v2835, %v2837
        %v2839 = vrot.slane %v2825, %v2838
        %v2840 = vcombine.low %v2816, %v2832
        %v2841 = vcombine.high %v2816, %v2832
        %v2843 = vunpack.c.l.s4 1934713408
        %v2844 = vunpack.c.0.s8 %v2843
        %v2845 = vlaneseq
        %v2846 = vshrl.u32 %v2845, 7
        %v2847 = vsub.s32 %v2844, %v2846
        %v2848 = vrot.slane %v2840, %v2847
        %v2850 = vunpack.c.l.s4 1934713408
        %v2851 = vunpack.c.0.s8 %v2850
        %v2852 = vlaneseq
        %v2853 = vshrl.u32 %v2852, 7
        %v2854 = vsub.s32 %v2851, %v2853
        %v2855 = vrot.slane %v2841, %v2854
        %v2856 = vcombine.low %v2823, %v2839
        %v2857 = vcombine.high %v2823, %v2839
        %v2859 = vunpack.c.l.s4 1934713408
        %v2860 = vunpack.c.0.s8 %v2859
        %v2861 = vlaneseq
        %v2862 = vshrl.u32 %v2861, 7
        %v2863 = vsub.s32 %v2860, %v2862
        %v2864 = vrot.slane %v2856, %v2863
        %v2866 = vunpack.c.l.s4 1934713408
        %v2867 = vunpack.c.0.s8 %v2866
        %v2868 = vlaneseq
        %v2869 = vshrl.u32 %v2868, 7
        %v2870 = vsub.s32 %v2867, %v2869
        %v2871 = vrot.slane %v2857, %v2870
        %v2872 = vcombine.high %v2848, 0.0
        %v2873 = vcombine.high %v2855, 0.0
        %v2874 = vcombine.high %v2864, 0.0
        %v2875 = vcombine.high %v2871, 0.0
        %v2876 = vcombine.low %v2562, %v2724
        %v2877 = vcombine.high %v2562, %v2724
        %v2879 = vunpack.c.l.s4 1983009808
        %v2880 = vunpack.c.0.s8 %v2879
        %v2881 = vlaneseq
        %v2882 = vshrl.u32 %v2881, 7
        %v2883 = vsub.s32 %v2880, %v2882
        %v2884 = vrot.slane %v2876, %v2883
        %v2886 = vunpack.c.l.s4 1983009808
        %v2887 = vunpack.c.0.s8 %v2886
        %v2888 = vlaneseq
        %v2889 = vshrl.u32 %v2888, 7
        %v2890 = vsub.s32 %v2887, %v2889
        %v2891 = vrot.slane %v2877, %v2890
        %v2892 = vcombine.low %v2643, %v2805
        %v2893 = vcombine.high %v2643, %v2805
        %v2895 = vunpack.c.l.s4 1983009808
        %v2896 = vunpack.c.0.s8 %v2895
        %v2897 = vlaneseq
        %v2898 = vshrl.u32 %v2897, 7
        %v2899 = vsub.s32 %v2896, %v2898
        %v2900 = vrot.slane %v2892, %v2899
        %v2902 = vunpack.c.l.s4 1983009808
        %v2903 = vunpack.c.0.s8 %v2902
        %v2904 = vlaneseq
        %v2905 = vshrl.u32 %v2904, 7
        %v2906 = vsub.s32 %v2903, %v2905
        %v2907 = vrot.slane %v2893, %v2906
        %v2908 = vcombine.low %v2884, %v2900
        %v2909 = vcombine.high %v2884, %v2900
        %v2911 = vunpack.c.l.s4 1934713408
        %v2912 = vunpack.c.0.s8 %v2911
        %v2913 = vlaneseq
        %v2914 = vshrl.u32 %v2913, 7
        %v2915 = vsub.s32 %v2912, %v2914
        %v2916 = vrot.slane %v2908, %v2915
        %v2918 = vunpack.c.l.s4 1934713408
        %v2919 = vunpack.c.0.s8 %v2918
        %v2920 = vlaneseq
        %v2921 = vshrl.u32 %v2920, 7
        %v2922 = vsub.s32 %v2919, %v2921
        %v2923 = vrot.slane %v2909, %v2922
        %v2924 = vcombine.low %v2891, %v2907
        %v2925 = vcombine.high %v2891, %v2907
        %v2927 = vunpack.c.l.s4 1934713408
        %v2928 = vunpack.c.0.s8 %v2927
        %v2929 = vlaneseq
        %v2930 = vshrl.u32 %v2929, 7
        %v2931 = vsub.s32 %v2928, %v2930
        %v2932 = vrot.slane %v2924, %v2931
        %v2934 = vunpack.c.l.s4 1934713408
        %v2935 = vunpack.c.0.s8 %v2934
        %v2936 = vlaneseq
        %v2937 = vshrl.u32 %v2936, 7
        %v2938 = vsub.s32 %v2935, %v2937
        %v2939 = vrot.slane %v2925, %v2938
        %v2940 = vcombine.high %v2916, 0.0
        %v2941 = vcombine.high %v2923, 0.0
        %v2942 = vcombine.high %v2932, 0.0
        %v2943 = vcombine.high %v2939, 0.0
        %v2944 = vcombine.low %v2848, %v2855
        %v2946 = vunpack.c.l.s4 1983009808
        %v2947 = vunpack.c.0.s8 %v2946
        %v2948 = vlaneseq
        %v2949 = vshrl.u32 %v2948, 7
        %v2950 = vsub.s32 %v2947, %v2949
        %v2951 = vrot.slane %v2944, %v2950
        %v2952 = vcombine.low %v2872, %v2873
        %v2954 = vunpack.c.l.s4 1983009808
        %v2955 = vunpack.c.0.s8 %v2954
        %v2956 = vlaneseq
        %v2957 = vshrl.u32 %v2956, 7
        %v2958 = vsub.s32 %v2955, %v2957
        %v2959 = vrot.slane %v2952, %v2958
        %v2960 = vcombine.low %v2864, %v2871
        %v2962 = vunpack.c.l.s4 1983009808
        %v2963 = vunpack.c.0.s8 %v2962
        %v2964 = vlaneseq
        %v2965 = vshrl.u32 %v2964, 7
        %v2966 = vsub.s32 %v2963, %v2965
        %v2967 = vrot.slane %v2960, %v2966
        %v2968 = vcombine.low %v2874, %v2875
        %v2970 = vunpack.c.l.s4 1983009808
        %v2971 = vunpack.c.0.s8 %v2970
        %v2972 = vlaneseq
        %v2973 = vshrl.u32 %v2972, 7
        %v2974 = vsub.s32 %v2971, %v2973
        %v2975 = vrot.slane %v2968, %v2974
        %v2976 = vcombine.low %v2951, %v2959
        %v2977 = vcombine.high %v2951, %v2959
        %v2979 = vunpack.c.l.s4 1934713408
        %v2980 = vunpack.c.0.s8 %v2979
        %v2981 = vlaneseq
        %v2982 = vshrl.u32 %v2981, 7
        %v2983 = vsub.s32 %v2980, %v2982
        %v2984 = vrot.slane %v2976, %v2983
        %v2986 = vunpack.c.l.s4 1934713408
        %v2987 = vunpack.c.0.s8 %v2986
        %v2988 = vlaneseq
        %v2989 = vshrl.u32 %v2988, 7
        %v2990 = vsub.s32 %v2987, %v2989
        %v2991 = vrot.slane %v2977, %v2990
        %v2992 = vcombine.low %v2967, %v2975
        %v2993 = vcombine.high %v2967, %v2975
        %v2995 = vunpack.c.l.s4 1934713408
        %v2996 = vunpack.c.0.s8 %v2995
        %v2997 = vlaneseq
        %v2998 = vshrl.u32 %v2997, 7
        %v2999 = vsub.s32 %v2996, %v2998
        %v3000 = vrot.slane %v2992, %v2999
        %v3002 = vunpack.c.l.s4 1934713408
        %v3003 = vunpack.c.0.s8 %v3002
        %v3004 = vlaneseq
        %v3005 = vshrl.u32 %v3004, 7
        %v3006 = vsub.s32 %v3003, %v3005
        %v3007 = vrot.slane %v2993, %v3006
        %v3008 = vcombine.low %v2984, %v3000
        %v3009 = vcombine.high %v2984, %v3000
        %v3010 = vcombine.low %v2991, %v3007
        %v3011 = vcombine.high %v2991, %v3007
        %v3012 = vcombine.low %v2916, %v2923
        %v3014 = vunpack.c.l.s4 1983009808
        %v3015 = vunpack.c.0.s8 %v3014
        %v3016 = vlaneseq
        %v3017 = vshrl.u32 %v3016, 7
        %v3018 = vsub.s32 %v3015, %v3017
        %v3019 = vrot.slane %v3012, %v3018
        %v3020 = vcombine.low %v2940, %v2941
        %v3022 = vunpack.c.l.s4 1983009808
        %v3023 = vunpack.c.0.s8 %v3022
        %v3024 = vlaneseq
        %v3025 = vshrl.u32 %v3024, 7
        %v3026 = vsub.s32 %v3023, %v3025
        %v3027 = vrot.slane %v3020, %v3026
        %v3028 = vcombine.low %v2932, %v2939
        %v3030 = vunpack.c.l.s4 1983009808
        %v3031 = vunpack.c.0.s8 %v3030
        %v3032 = vlaneseq
        %v3033 = vshrl.u32 %v3032, 7
        %v3034 = vsub.s32 %v3031, %v3033
        %v3035 = vrot.slane %v3028, %v3034
        %v3036 = vcombine.low %v2942, %v2943
        %v3038 = vunpack.c.l.s4 1983009808
        %v3039 = vunpack.c.0.s8 %v3038
        %v3040 = vlaneseq
        %v3041 = vshrl.u32 %v3040, 7
        %v3042 = vsub.s32 %v3039, %v3041
        %v3043 = vrot.slane %v3036, %v3042
        %v3044 = vcombine.low %v3019, %v3027
        %v3045 = vcombine.high %v3019, %v3027
        %v3047 = vunpack.c.l.s4 1934713408
        %v3048 = vunpack.c.0.s8 %v3047
        %v3049 = vlaneseq
        %v3050 = vshrl.u32 %v3049, 7
        %v3051 = vsub.s32 %v3048, %v3050
        %v3052 = vrot.slane %v3044, %v3051
        %v3054 = vunpack.c.l.s4 1934713408
        %v3055 = vunpack.c.0.s8 %v3054
        %v3056 = vlaneseq
        %v3057 = vshrl.u32 %v3056, 7
        %v3058 = vsub.s32 %v3055, %v3057
        %v3059 = vrot.slane %v3045, %v3058
        %v3060 = vcombine.low %v3035, %v3043
        %v3061 = vcombine.high %v3035, %v3043
        %v3063 = vunpack.c.l.s4 1934713408
        %v3064 = vunpack.c.0.s8 %v3063
        %v3065 = vlaneseq
        %v3066 = vshrl.u32 %v3065, 7
        %v3067 = vsub.s32 %v3064, %v3066
        %v3068 = vrot.slane %v3060, %v3067
        %v3070 = vunpack.c.l.s4 1934713408
        %v3071 = vunpack.c.0.s8 %v3070
        %v3072 = vlaneseq
        %v3073 = vshrl.u32 %v3072, 7
        %v3074 = vsub.s32 %v3071, %v3073
        %v3075 = vrot.slane %v3061, %v3074
        %v3076 = vcombine.low %v3052, %v3068
        %v3077 = vcombine.high %v3052, %v3068
        %v3078 = vcombine.low %v3059, %v3075
        %v3079 = vcombine.high %v3059, %v3075
        %3082 = vrot.lane.b32.xlu0 %v3009, 32
        %v3083 = vpop.permute.xlu0 %3082
        %3084 = vrot.lane.b32.xlu0 %v3077, 32
        %v3085 = vpop.permute.xlu0 %3084
        %3090 = vrot.lane.b32.xlu0 %v3010, 64
        %v3091 = vpop.permute.xlu0 %3090
        %3092 = vrot.lane.b32.xlu0 %v3078, 64
        %v3093 = vpop.permute.xlu0 %3092
        %3098 = vrot.lane.b32.xlu0 %v3011, 96
        %v3099 = vpop.permute.xlu0 %3098
        %3100 = vrot.lane.b32.xlu0 %v3079, 96
        %v3101 = vpop.permute.xlu0 %3100
        %v3104 = vsel %vm2027, %v3008, %v3083
        %v3105 = vsel %vm2027, %v3076, %v3085
        %vm3106 = vcmask 523264
        %v3107 = vsel %vm3106, %v3104, %v3091
        %v3108 = vsel %vm3106, %v3105, %v3093
        %vm3109 = vcmask 785408
        %v3110 = vsel %vm3109, %v3107, %v3099
        %v3111 = vsel %vm3109, %v3108, %v3101
        %v3112 = vld [vmem:[#allocation13] sm:$0xff]
        %v3113 = vld [vmem:[#allocation13 + $0x8] sm:$0xff]
        %v3114 = vld [vmem:[#allocation13 + $0x10] sm:$0xff]
        %v3115 = vld [vmem:[#allocation13 + $0x18] sm:$0xff]
        %v3116 = vld [vmem:[#allocation13 + $0x20] sm:$0xff]
        %v3117 = vld [vmem:[#allocation13 + $0x28] sm:$0xff]
        %v3118 = vld [vmem:[#allocation13 + $0x30] sm:$0xff]
        %v3119 = vld [vmem:[#allocation13 + $0x38] sm:$0xff]
        %v3120 = vld [vmem:[#allocation13 + $0x40] sm:$0xff]
        %v3121 = vld [vmem:[#allocation13 + $0x48] sm:$0xff]
        %v3122 = vld [vmem:[#allocation13 + $0x50] sm:$0xff]
        %v3123 = vld [vmem:[#allocation13 + $0x58] sm:$0xff]
        %v3124 = vld [vmem:[#allocation13 + $0x60] sm:$0xff]
        %v3125 = vld [vmem:[#allocation13 + $0x68] sm:$0xff]
        %v3126 = vld [vmem:[#allocation13 + $0x70] sm:$0xff]
        %v3127 = vld [vmem:[#allocation13 + $0x78] sm:$0xff]
        %v3128 = vld [vmem:[%s10] sm:$0x1]
        %v3130 = vlaneseq
        %v3131 = vshrl.u32 %v3130, 7
        %v3132 = vsub.s32 0, %v3131
        %v3133 = vrot.slane %v3128, %v3132
        %3135 = vmatprep.subr.mxu0 0.0
        %3136 = vmatpush1.msra.mxu0 %v3127
        %3137 = vmatprep.subr.mxu0 0.0
        %3138 = vmatpush1.msra.mxu0 %v3126
        %3139 = vmatprep.subr.mxu0 0.0
        %3140 = vmatpush1.msra.mxu0 %v3125
        %3141 = vmatprep.subr.mxu0 0.0
        %3142 = vmatpush1.msra.mxu0 %v3124
        %3143 = vmatprep.subr.mxu0 0.0
        %3144 = vmatpush1.msra.mxu0 %v3123
        %3145 = vmatprep.subr.mxu0 0.0
        %3146 = vmatpush1.msra.mxu0 %v3122
        %3147 = vmatprep.subr.mxu0 0.0
        %3148 = vmatpush1.msra.mxu0 %v3121
        %3149 = vmatprep.subr.mxu0 0.0
        %3150 = vmatpush1.msra.mxu0 %v3120
        %3151 = vmatprep.subr.mxu0 0.0
        %3152 = vmatpush1.msra.mxu0 %v3119
        %3153 = vmatprep.subr.mxu0 0.0
        %3154 = vmatpush1.msra.mxu0 %v3118
        %3155 = vmatprep.subr.mxu0 0.0
        %3156 = vmatpush1.msra.mxu0 %v3117
        %3157 = vmatprep.subr.mxu0 0.0
        %3158 = vmatpush1.msra.mxu0 %v3116
        %3159 = vmatprep.subr.mxu0 0.0
        %3160 = vmatpush1.msra.mxu0 %v3115
        %3161 = vmatprep.subr.mxu0 0.0
        %3162 = vmatpush1.msra.mxu0 %v3114
        %3163 = vmatprep.subr.mxu0 0.0
        %3164 = vmatpush1.msra.mxu0 %v3113
        %3165 = vmatprep.subr.mxu0 0.0
        %3166 = vmatpush1.msra.mxu0 %v3112
        %3167 = vmatprep.subr.mxu0 0.0
        %3168 = vmatpush2.msra.mxu0 0.0
        %3169 = vmatprep.subr.mxu0 0.0
        %3170 = vmatpush2.msra.mxu0 0.0
        %3171 = vmatprep.subr.mxu0 0.0
        %3172 = vmatpush2.msra.mxu0 0.0
        %3173 = vmatprep.subr.mxu0 0.0
        %3174 = vmatpush2.msra.mxu0 0.0
        %3175 = vmatprep.subr.mxu0 0.0
        %3176 = vmatpush2.msra.mxu0 0.0
        %3177 = vmatprep.subr.mxu0 0.0
        %3178 = vmatpush2.msra.mxu0 0.0
        %3179 = vmatprep.subr.mxu0 0.0
        %3180 = vmatpush2.msra.mxu0 0.0
        %3181 = vmatprep.subr.mxu0 0.0
        %3182 = vmatpush2.msra.mxu0 0.0
        %3183 = vmatprep.subr.mxu0 0.0
        %3184 = vmatpush2.msra.mxu0 0.0
        %3185 = vmatprep.subr.mxu0 0.0
        %3186 = vmatpush2.msra.mxu0 0.0
        %3187 = vmatprep.subr.mxu0 0.0
        %3188 = vmatpush2.msra.mxu0 0.0
        %3189 = vmatprep.subr.mxu0 0.0
        %3190 = vmatpush2.msra.mxu0 0.0
        %3191 = vmatprep.subr.mxu0 0.0
        %3192 = vmatpush2.msra.mxu0 0.0
        %3193 = vmatprep.subr.mxu0 0.0
        %3194 = vmatpush2.msra.mxu0 0.0
        %3195 = vmatprep.subr.mxu0 0.0
        %3196 = vmatpush2.msra.mxu0 0.0
        %3197 = vmatprep.subr.mxu0 0.0
        %3198 = vmatpush2.msra.mxu0 0.0
        %3199 = vmatprep.mubr.f32.mxu0 0.0
        %3200 = vmatmul.mubr.f32.gmra.mxu0 %v3110
        %v3201 = vpop.f32.mrf.mxu0
        %v3202 = vadd.f32 %v3133, %v3201
        %v3203 = vpop.f32.mrf.mxu0
        %3204 = vmatprep.mubr.f32.mxu0 0.0
        %3205 = vmatmul.mubr.f32.gmra.mxu0 %v3111
        %v3206 = vpop.f32.mrf.mxu0
        %v3207 = vadd.f32 %v3133, %v3206
        %v3208 = vpop.f32.mrf.mxu0
        %3209 = vdwg.mxu0
        %v3210 = vadd.f32 %v851, %v3202
        %v3211 = vadd.f32 %v852, %v3207
        %3212 = vadd.xlane.f32.xlu0 %v3210
        %v3213 = vpop.xlane.xlu0 %3212
        %3214 = vadd.xlane.f32.xlu0 %v3211
        %v3215 = vpop.xlane.xlu0 %3214
        %v3216 = vrcp.pop 128.0
        %v3217 = vmul.f32 %v3213, %v3216
        %v3218 = vmul.f32 %v3215, %v3216
        %v3219 = vsub.f32 %v3210, %v3217
        %v3220 = vsub.f32 %v3211, %v3218
        %v3221 = vmul.f32 %v3219, %v3219
        %v3222 = vmul.f32 %v3220, %v3220
        %3223 = vadd.xlane.f32.xlu0 %v3221
        %v3224 = vpop.xlane.xlu0 %3223
        %3225 = vadd.xlane.f32.xlu0 %v3222
        %v3226 = vpop.xlane.xlu0 %3225
        %v3227 = vmul.f32 %v3224, %v3216
        %v3228 = vmul.f32 %v3226, %v3216
        %v3229 = vadd.f32 %v3227, 1e-05
        %v3230 = vadd.f32 %v3228, 1e-05
        %v3231 = vrsqrt.pop %v3229
        %v3232 = vrsqrt.pop %v3230
        %v3233 = vmul.f32 %v3219, %v3231
        %v3234 = vmul.f32 %v3220, %v3232
        %v3235 = vld [vmem:[%s11] sm:$0x1]
        %v3237 = vlaneseq
        %v3238 = vshrl.u32 %v3237, 7
        %v3239 = vsub.s32 0, %v3238
        %v3240 = vrot.slane %v3235, %v3239
        %v3242 = vmul.f32 %v3233, %v3240
        %v3243 = vmul.f32 %v3234, %v3240
        %v3244 = vld [vmem:[%s12] sm:$0x1]
        %v3246 = vlaneseq
        %v3247 = vshrl.u32 %v3246, 7
        %v3248 = vsub.s32 0, %v3247
        %v3249 = vrot.slane %v3244, %v3248
        %v3251 = vadd.f32 %v3242, %v3249
        %v3252 = vadd.f32 %v3243, %v3249
        %v3253 = vld [vmem:[#allocation14] sm:$0xff]
        %v3254 = vld [vmem:[#allocation14 + $0x8] sm:$0xff]
        %v3255 = vld [vmem:[#allocation14 + $0x10] sm:$0xff]
        %v3256 = vld [vmem:[#allocation14 + $0x18] sm:$0xff]
        %v3257 = vld [vmem:[#allocation14 + $0x20] sm:$0xff]
        %v3258 = vld [vmem:[#allocation14 + $0x28] sm:$0xff]
        %v3259 = vld [vmem:[#allocation14 + $0x30] sm:$0xff]
        %v3260 = vld [vmem:[#allocation14 + $0x38] sm:$0xff]
        %v3261 = vld [vmem:[#allocation14 + $0x40] sm:$0xff]
        %v3262 = vld [vmem:[#allocation14 + $0x48] sm:$0xff]
        %v3263 = vld [vmem:[#allocation14 + $0x50] sm:$0xff]
        %v3264 = vld [vmem:[#allocation14 + $0x58] sm:$0xff]
        %v3265 = vld [vmem:[#allocation14 + $0x60] sm:$0xff]
        %v3266 = vld [vmem:[#allocation14 + $0x68] sm:$0xff]
        %v3267 = vld [vmem:[#allocation14 + $0x70] sm:$0xff]
        %v3268 = vld [vmem:[#allocation14 + $0x78] sm:$0xff]
        %v3269 = vld [vmem:[#allocation14 + $0x80] sm:$0xff]
        %v3270 = vld [vmem:[#allocation14 + $0x88] sm:$0xff]
        %v3271 = vld [vmem:[#allocation14 + $0x90] sm:$0xff]
        %v3272 = vld [vmem:[#allocation14 + $0x98] sm:$0xff]
        %v3273 = vld [vmem:[#allocation14 + $0xa0] sm:$0xff]
        %v3274 = vld [vmem:[#allocation14 + $0xa8] sm:$0xff]
        %v3275 = vld [vmem:[#allocation14 + $0xb0] sm:$0xff]
        %v3276 = vld [vmem:[#allocation14 + $0xb8] sm:$0xff]
        %v3277 = vld [vmem:[#allocation14 + $0xc0] sm:$0xff]
        %v3278 = vld [vmem:[#allocation14 + $0xc8] sm:$0xff]
        %v3279 = vld [vmem:[#allocation14 + $0xd0] sm:$0xff]
        %v3280 = vld [vmem:[#allocation14 + $0xd8] sm:$0xff]
        %v3281 = vld [vmem:[#allocation14 + $0xe0] sm:$0xff]
        %v3282 = vld [vmem:[#allocation14 + $0xe8] sm:$0xff]
        %v3283 = vld [vmem:[#allocation14 + $0xf0] sm:$0xff]
        %v3284 = vld [vmem:[#allocation14 + $0xf8] sm:$0xff]
        %v3285 = vld [vmem:[%s14] sm:$0x3]
        %v3287 = vlaneseq
        %v3288 = vshrl.u32 %v3287, 7
        %v3289 = vsub.s32 0, %v3288
        %v3290 = vrot.slane %v3285, %v3289
        %v3291 = vlaneseq
        %v3292 = vshrl.u32 %v3291, 7
        %v3293 = vsub.s32 1, %v3292
        %v3294 = vrot.slane %v3285, %v3293
        %3297 = vmatprep.subr.mxu0 %v3284
        %3298 = vmatpush1.msra.mxu0 %v3283
        %3299 = vmatprep.subr.mxu0 %v3282
        %3300 = vmatpush1.msra.mxu0 %v3281
        %3301 = vmatprep.subr.mxu0 %v3280
        %3302 = vmatpush1.msra.mxu0 %v3279
        %3303 = vmatprep.subr.mxu0 %v3278
        %3304 = vmatpush1.msra.mxu0 %v3277
        %3305 = vmatprep.subr.mxu0 %v3276
        %3306 = vmatpush1.msra.mxu0 %v3275
        %3307 = vmatprep.subr.mxu0 %v3274
        %3308 = vmatpush1.msra.mxu0 %v3273
        %3309 = vmatprep.subr.mxu0 %v3272
        %3310 = vmatpush1.msra.mxu0 %v3271
        %3311 = vmatprep.subr.mxu0 %v3270
        %3312 = vmatpush1.msra.mxu0 %v3269
        %3313 = vmatprep.subr.mxu0 %v3268
        %3314 = vmatpush1.msra.mxu0 %v3267
        %3315 = vmatprep.subr.mxu0 %v3266
        %3316 = vmatpush1.msra.mxu0 %v3265
        %3317 = vmatprep.subr.mxu0 %v3264
        %3318 = vmatpush1.msra.mxu0 %v3263
        %3319 = vmatprep.subr.mxu0 %v3262
        %3320 = vmatpush1.msra.mxu0 %v3261
        %3321 = vmatprep.subr.mxu0 %v3260
        %3322 = vmatpush1.msra.mxu0 %v3259
        %3323 = vmatprep.subr.mxu0 %v3258
        %3324 = vmatpush1.msra.mxu0 %v3257
        %3325 = vmatprep.subr.mxu0 %v3256
        %3326 = vmatpush1.msra.mxu0 %v3255
        %3327 = vmatprep.subr.mxu0 %v3254
        %3328 = vmatpush1.msra.mxu0 %v3253
        %3329 = vmatprep.subr.mxu0 0.0
        %3330 = vmatpush2.msra.mxu0 0.0
        %3331 = vmatprep.subr.mxu0 0.0
        %3332 = vmatpush2.msra.mxu0 0.0
        %3333 = vmatprep.subr.mxu0 0.0
        %3334 = vmatpush2.msra.mxu0 0.0
        %3335 = vmatprep.subr.mxu0 0.0
        %3336 = vmatpush2.msra.mxu0 0.0
        %3337 = vmatprep.subr.mxu0 0.0
        %3338 = vmatpush2.msra.mxu0 0.0
        %3339 = vmatprep.subr.mxu0 0.0
        %3340 = vmatpush2.msra.mxu0 0.0
        %3341 = vmatprep.subr.mxu0 0.0
        %3342 = vmatpush2.msra.mxu0 0.0
        %3343 = vmatprep.subr.mxu0 0.0
        %3344 = vmatpush2.msra.mxu0 0.0
        %3345 = vmatprep.subr.mxu0 0.0
        %3346 = vmatpush2.msra.mxu0 0.0
        %3347 = vmatprep.subr.mxu0 0.0
        %3348 = vmatpush2.msra.mxu0 0.0
        %3349 = vmatprep.subr.mxu0 0.0
        %3350 = vmatpush2.msra.mxu0 0.0
        %3351 = vmatprep.subr.mxu0 0.0
        %3352 = vmatpush2.msra.mxu0 0.0
        %3353 = vmatprep.subr.mxu0 0.0
        %3354 = vmatpush2.msra.mxu0 0.0
        %3355 = vmatprep.subr.mxu0 0.0
        %3356 = vmatpush2.msra.mxu0 0.0
        %3357 = vmatprep.subr.mxu0 0.0
        %3358 = vmatpush2.msra.mxu0 0.0
        %3359 = vmatprep.subr.mxu0 0.0
        %3360 = vmatpush2.msra.mxu0 0.0
        %3361 = vmatprep.mubr.f32.mxu0 0.0
        %3362 = vmatmul.mubr.f32.gmra.mxu0 %v3251
        %v3363 = vpop.f32.mrf.mxu0
        %v3364 = vadd.f32 %v3290, %v3363
        %v3365 = vpop.f32.mrf.mxu0
        %v3366 = vadd.f32 %v3294, %v3365
        %3367 = vmatprep.mubr.f32.mxu0 0.0
        %3368 = vmatmul.mubr.f32.gmra.mxu0 %v3252
        %v3369 = vpop.f32.mrf.mxu0
        %v3370 = vadd.f32 %v3290, %v3369
        %v3371 = vpop.f32.mrf.mxu0
        %v3372 = vadd.f32 %v3294, %v3371
        %3373 = vdwg.mxu0
        %v3374 = vmax.f32 %v3364, 0.0
        %v3375 = vmax.f32 %v3366, 0.0
        %v3376 = vmax.f32 %v3370, 0.0
        %v3377 = vmax.f32 %v3372, 0.0
        %v3378 = vld [vmem:[#allocation16] sm:$0xff]
        %v3379 = vld [vmem:[#allocation16 + $0x8] sm:$0xff]
        %v3380 = vld [vmem:[#allocation16 + $0x10] sm:$0xff]
        %v3381 = vld [vmem:[#allocation16 + $0x18] sm:$0xff]
        %v3382 = vld [vmem:[#allocation16 + $0x20] sm:$0xff]
        %v3383 = vld [vmem:[#allocation16 + $0x28] sm:$0xff]
        %v3384 = vld [vmem:[#allocation16 + $0x30] sm:$0xff]
        %v3385 = vld [vmem:[#allocation16 + $0x38] sm:$0xff]
        %v3386 = vld [vmem:[#allocation16 + $0x40] sm:$0xff]
        %v3387 = vld [vmem:[#allocation16 + $0x48] sm:$0xff]
        %v3388 = vld [vmem:[#allocation16 + $0x50] sm:$0xff]
        %v3389 = vld [vmem:[#allocation16 + $0x58] sm:$0xff]
        %v3390 = vld [vmem:[#allocation16 + $0x60] sm:$0xff]
        %v3391 = vld [vmem:[#allocation16 + $0x68] sm:$0xff]
        %v3392 = vld [vmem:[#allocation16 + $0x70] sm:$0xff]
        %v3393 = vld [vmem:[#allocation16 + $0x78] sm:$0xff]
        %v3394 = vld [vmem:[#allocation16 + $0x80] sm:$0xff]
        %v3395 = vld [vmem:[#allocation16 + $0x88] sm:$0xff]
        %v3396 = vld [vmem:[#allocation16 + $0x90] sm:$0xff]
        %v3397 = vld [vmem:[#allocation16 + $0x98] sm:$0xff]
        %v3398 = vld [vmem:[#allocation16 + $0xa0] sm:$0xff]
        %v3399 = vld [vmem:[#allocation16 + $0xa8] sm:$0xff]
        %v3400 = vld [vmem:[#allocation16 + $0xb0] sm:$0xff]
        %v3401 = vld [vmem:[#allocation16 + $0xb8] sm:$0xff]
        %v3402 = vld [vmem:[#allocation16 + $0xc0] sm:$0xff]
        %v3403 = vld [vmem:[#allocation16 + $0xc8] sm:$0xff]
        %v3404 = vld [vmem:[#allocation16 + $0xd0] sm:$0xff]
        %v3405 = vld [vmem:[#allocation16 + $0xd8] sm:$0xff]
        %v3406 = vld [vmem:[#allocation16 + $0xe0] sm:$0xff]
        %v3407 = vld [vmem:[#allocation16 + $0xe8] sm:$0xff]
        %v3408 = vld [vmem:[#allocation16 + $0xf0] sm:$0xff]
        %v3409 = vld [vmem:[#allocation16 + $0xf8] sm:$0xff]
        %v3410 = vld [vmem:[%s16] sm:$0x1]
        %v3412 = vlaneseq
        %v3413 = vshrl.u32 %v3412, 7
        %v3414 = vsub.s32 0, %v3413
        %v3415 = vrot.slane %v3410, %v3414
        %3417 = vmatprep.subr.mxu0 0.0
        %3418 = vmatpush1.msra.mxu0 %v3393
        %3419 = vmatprep.subr.mxu0 0.0
        %3420 = vmatpush1.msra.mxu0 %v3392
        %3421 = vmatprep.subr.mxu0 0.0
        %3422 = vmatpush1.msra.mxu0 %v3391
        %3423 = vmatprep.subr.mxu0 0.0
        %3424 = vmatpush1.msra.mxu0 %v3390
        %3425 = vmatprep.subr.mxu0 0.0
        %3426 = vmatpush1.msra.mxu0 %v3389
        %3427 = vmatprep.subr.mxu0 0.0
        %3428 = vmatpush1.msra.mxu0 %v3388
        %3429 = vmatprep.subr.mxu0 0.0
        %3430 = vmatpush1.msra.mxu0 %v3387
        %3431 = vmatprep.subr.mxu0 0.0
        %3432 = vmatpush1.msra.mxu0 %v3386
        %3433 = vmatprep.subr.mxu0 0.0
        %3434 = vmatpush1.msra.mxu0 %v3385
        %3435 = vmatprep.subr.mxu0 0.0
        %3436 = vmatpush1.msra.mxu0 %v3384
        %3437 = vmatprep.subr.mxu0 0.0
        %3438 = vmatpush1.msra.mxu0 %v3383
        %3439 = vmatprep.subr.mxu0 0.0
        %3440 = vmatpush1.msra.mxu0 %v3382
        %3441 = vmatprep.subr.mxu0 0.0
        %3442 = vmatpush1.msra.mxu0 %v3381
        %3443 = vmatprep.subr.mxu0 0.0
        %3444 = vmatpush1.msra.mxu0 %v3380
        %3445 = vmatprep.subr.mxu0 0.0
        %3446 = vmatpush1.msra.mxu0 %v3379
        %3447 = vmatprep.subr.mxu0 0.0
        %3448 = vmatpush1.msra.mxu0 %v3378
        %3449 = vmatprep.subr.mxu0 0.0
        %3450 = vmatpush2.msra.mxu0 %v3409
        %3451 = vmatprep.subr.mxu0 0.0
        %3452 = vmatpush2.msra.mxu0 %v3408
        %3453 = vmatprep.subr.mxu0 0.0
        %3454 = vmatpush2.msra.mxu0 %v3407
        %3455 = vmatprep.subr.mxu0 0.0
        %3456 = vmatpush2.msra.mxu0 %v3406
        %3457 = vmatprep.subr.mxu0 0.0
        %3458 = vmatpush2.msra.mxu0 %v3405
        %3459 = vmatprep.subr.mxu0 0.0
        %3460 = vmatpush2.msra.mxu0 %v3404
        %3461 = vmatprep.subr.mxu0 0.0
        %3462 = vmatpush2.msra.mxu0 %v3403
        %3463 = vmatprep.subr.mxu0 0.0
        %3464 = vmatpush2.msra.mxu0 %v3402
        %3465 = vmatprep.subr.mxu0 0.0
        %3466 = vmatpush2.msra.mxu0 %v3401
        %3467 = vmatprep.subr.mxu0 0.0
        %3468 = vmatpush2.msra.mxu0 %v3400
        %3469 = vmatprep.subr.mxu0 0.0
        %3470 = vmatpush2.msra.mxu0 %v3399
        %3471 = vmatprep.subr.mxu0 0.0
        %3472 = vmatpush2.msra.mxu0 %v3398
        %3473 = vmatprep.subr.mxu0 0.0
        %3474 = vmatpush2.msra.mxu0 %v3397
        %3475 = vmatprep.subr.mxu0 0.0
        %3476 = vmatpush2.msra.mxu0 %v3396
        %3477 = vmatprep.subr.mxu0 0.0
        %3478 = vmatpush2.msra.mxu0 %v3395
        %3479 = vmatprep.subr.mxu0 0.0
        %3480 = vmatpush2.msra.mxu0 %v3394
        %3481 = vmatprep.mubr.f32.mxu0 %v3375
        %3482 = vmatmul.mubr.f32.gmra.mxu0 %v3374
        %v3483 = vpop.f32.mrf.mxu0
        %v3484 = vadd.f32 %v3415, %v3483
        %v3485 = vpop.f32.mrf.mxu0
        %3486 = vmatprep.mubr.f32.mxu0 %v3377
        %3487 = vmatmul.mubr.f32.gmra.mxu0 %v3376
        %v3488 = vpop.f32.mrf.mxu0
        %v3489 = vadd.f32 %v3415, %v3488
        %v3490 = vpop.f32.mrf.mxu0
        %3491 = vdwg.mxu0
        %v3492 = vadd.f32 %v3251, %v3484
        %v3493 = vadd.f32 %v3252, %v3489
        %3494 = vadd.xlane.f32.xlu0 %v3492
        %v3495 = vpop.xlane.xlu0 %3494
        %3496 = vadd.xlane.f32.xlu0 %v3493
        %v3497 = vpop.xlane.xlu0 %3496
        %v3498 = vmul.f32 %v3495, %v3216
        %v3499 = vmul.f32 %v3497, %v3216
        %v3500 = vsub.f32 %v3492, %v3498
        %v3501 = vsub.f32 %v3493, %v3499
        %v3502 = vmul.f32 %v3500, %v3500
        %v3503 = vmul.f32 %v3501, %v3501
        %3504 = vadd.xlane.f32.xlu0 %v3502
        %v3505 = vpop.xlane.xlu0 %3504
        %3506 = vadd.xlane.f32.xlu0 %v3503
        %v3507 = vpop.xlane.xlu0 %3506
        %v3508 = vmul.f32 %v3505, %v3216
        %v3509 = vmul.f32 %v3507, %v3216
        %v3510 = vadd.f32 %v3508, 1e-05
        %v3511 = vadd.f32 %v3509, 1e-05
        %v3512 = vrsqrt.pop %v3510
        %v3513 = vrsqrt.pop %v3511
        %v3514 = vmul.f32 %v3500, %v3512
        %v3515 = vmul.f32 %v3501, %v3513
        %v3516 = vld [vmem:[%s17] sm:$0x1]
        %v3518 = vlaneseq
        %v3519 = vshrl.u32 %v3518, 7
        %v3520 = vsub.s32 0, %v3519
        %v3521 = vrot.slane %v3516, %v3520
        %v3523 = vmul.f32 %v3514, %v3521
        %v3524 = vmul.f32 %v3515, %v3521
        %v3525 = vld [vmem:[%s18] sm:$0x1]
        %v3527 = vlaneseq
        %v3528 = vshrl.u32 %v3527, 7
        %v3529 = vsub.s32 0, %v3528
        %v3530 = vrot.slane %v3525, %v3529
        %v3532 = vadd.f32 %v3523, %v3530
        %v3533 = vadd.f32 %v3524, %v3530
        %3534 = vst [vmem:[%s839] sm:$0xff] %v3532
        %3535 = vst [vmem:[%s839 + $0x8] sm:$0xff] %v3533
        %s3536 = sand.u32 %s487, 1
        %s3537 = scalar_lea.sflag [#allocation4], %s3536
        %s3538 = sand.u32 %s487, 1
        %s3539 = smul.addr %s3538, 16
        %s3540 = scalar_lea.vmem [#allocation17], %s3539
        %s3541 = sand.u32 %s515, 1
        %s3542 = scalar_lea.sflag [#allocation19], %s3541
        %s3543 = sand.u32 %s515, 1
        %s3544 = smul.addr %s3543, 16
        %s3545 = scalar_lea.vmem [#allocation18], %s3544
        // Predicated region
        $region133: #{tpu_custom_call.1} parent=95 // pred_check
          %p3546 = pneg %p497
        $region134: #{tpu_custom_call.1} parent=95 // pred_check_branch
          %3548 = sbr.rel (%p3546) target = $region136
        $region135: #{tpu_custom_call.1} parent=95 // pred_region
          %s3549 = smul.u32 2, %s52
          %s3551 = ssub.s32 256, 256
          %3552 = vsyncadd %s3537, %s3551
          %s3553 = smul.addr %s51, 2
          %s3554 = sadd.s32 %s3549, %s3553
          %s3555 = smul.addr %s3554, 128
          %s3556 = scalar_lea.hbm %s19, %s3555
          %s3557 = sshll.u32 %s3540, 4
          %s3558 = int_to_ptr.vmem [resolvable:$true] %s3557
          %3563 = dma.vmem_to_hbm [thread:$0]  %s3558, 256, %s3556, %s3537, 128, 128, 8
        $region136: #{tpu_custom_call.1} parent=95 // pred_fallthru
          _
        // Predicated region
        $region137: #{tpu_custom_call.1} parent=95 // pred_check
          %p3564 = pneg %p525
        $region138: #{tpu_custom_call.1} parent=95 // pred_check_branch
          %3566 = sbr.rel (%p3564) target = $region140
        $region139: #{tpu_custom_call.1} parent=95 // pred_region
          %s3567 = smul.u32 2, %s52
          %s3569 = ssub.s32 256, 256
          %3570 = vsyncadd %s3542, %s3569
          %s3571 = smul.addr %s51, 2
          %s3572 = sadd.s32 %s3567, %s3571
          %s3573 = smul.addr %s3572, 128
          %s3574 = scalar_lea.hbm %s20, %s3573
          %s3575 = sshll.u32 %s3545, 4
          %s3576 = int_to_ptr.vmem [resolvable:$true] %s3575
          %3581 = dma.vmem_to_hbm [thread:$0]  %s3576, 256, %s3574, %s3542, 128, 128, 8
        $region140: #{tpu_custom_call.1} parent=95 // pred_fallthru
          _
      $region96: #{tpu_custom_call.1} parent=5 // pred_fallthru
        _
      %p3582 = scmp.le.s32.totalorder 2, %s42
      // Predicated region
      $region141: #{tpu_custom_call.1} parent=5 // pred_check
        %p3583 = pneg %p3582
      $region142: #{tpu_custom_call.1} parent=5 // pred_check_branch
        %3585 = sbr.rel (%p3583) target = $region144
      $region143: #{tpu_custom_call.1} parent=5 // pred_region
        %s3586 = ssub.s32 %s42, 2
        // Predicated region
        $region145: #{tpu_custom_call.1} parent=143 // pred_check
          %p3587 = pneg %p503
        $region146: #{tpu_custom_call.1} parent=143 // pred_check_branch
          %3589 = sbr.rel (%p3587) target = $region148
        $region147: #{tpu_custom_call.1} parent=143 // pred_region
          %s3590 = sand.u32 %s488, 1
          %s3591 = scalar_lea.sflag [#allocation4], %s3590
          %s3592 = sand.u32 %s488, 1
          %s3593 = smul.addr %s3592, 16
          %s3594 = scalar_lea.vmem [#allocation17], %s3593
          %3595 = dma.done %s3591, 256
        $region148: #{tpu_custom_call.1} parent=143 // pred_fallthru
          _
        // Predicated region
        $region149: #{tpu_custom_call.1} parent=143 // pred_check
          %p3596 = pneg %p531
        $region150: #{tpu_custom_call.1} parent=143 // pred_check_branch
          %3598 = sbr.rel (%p3596) target = $region152
        $region151: #{tpu_custom_call.1} parent=143 // pred_region
          %s3599 = sand.u32 %s516, 1
          %s3600 = scalar_lea.sflag [#allocation19], %s3599
          %s3601 = sand.u32 %s516, 1
          %s3602 = smul.addr %s3601, 16
          %s3603 = scalar_lea.vmem [#allocation18], %s3602
          %3604 = dma.done %s3600, 256
        $region152: #{tpu_custom_call.1} parent=143 // pred_fallthru
          _
      $region144: #{tpu_custom_call.1} parent=5 // pred_fallthru
        _
    $region6: #{tpu_custom_call.1} parent=1 // loop_footer
      %s46 = sadd.s32 1, %s42
    $region7: #{tpu_custom_call.1} parent=1 // loop_footer_branch
      %41 = sbr.rel target = $region3
    $region8: #{tpu_custom_call.1} parent=1 // loop_exit
      _
    %3605 = vsyncpa [#allocation3], 1
    %s3606 = scalar_lea.sflag [#allocation3], 1
    %3607 = vsyncpa %s3606, 1
    %3608 = vsyncpa [#allocation6], 1
    %s3609 = scalar_lea.sflag [#allocation6], 1
    %3610 = vsyncpa %s3609, 1
    %3611 = vsyncpa [#allocation9], 1
    %3612 = vsyncpa [#allocation12], 1
    %3613 = vsyncpa [#allocation15], 1
    %3614 = vsyncpa [#allocation4], 1
    %s3615 = scalar_lea.sflag [#allocation4], 1
    %3616 = vsyncpa %s3615, 1
    %3617 = vsyncpa [#allocation19], 1
    %s3618 = scalar_lea.sflag [#allocation19], 1
    %3619 = vsyncpa %s3618, 1

</llo_original>
